<compile_context>
chip_gen: v7x
topology: tpu7x:2x2x1
jax: 0.10.0
libtpu: 0.0.40
codegen_flags: <defaults>
</compile_context>

<pallas_src>
import functools
import math

import jax
import jax.numpy as jnp
from jax.experimental import pallas as pl
from jax.experimental.pallas import tpu as pltpu

IMAGENET_MEAN = (0.485, 0.456, 0.406)
IMAGENET_STD = (0.229, 0.224, 0.225)

ENC_PADS = (1, 1, 1, 0)   # ConvEncoder: padding = int(block_i < depth-1) for i>=2
DEC_PADS = (0, 1, 1, 1)   # DeconvDecoder: padding = 0 if d == 0 else 1


def _round_up(x, m):
    return ((x + m - 1) // m) * m


# ---------------------------------------------------------------------------
# Pallas kernel 1: GEMM with full-K / full-N blocks, fused bias + ELU.
# Used by every conv (im2col) and sub-pixel transposed conv in the model.
# ---------------------------------------------------------------------------
def _gemm_bias_act_kernel(a_ref, b_ref, bias_ref, o_ref, *, activation):
    r = jnp.dot(a_ref[...], b_ref[...], preferred_element_type=jnp.float32)
    r = r + bias_ref[...]
    if activation == "elu":                       # ELU(alpha=1), overflow-safe
        r = jnp.where(r > 0.0, r, jnp.exp(jnp.minimum(r, 0.0)) - 1.0)
    o_ref[...] = r.astype(o_ref.dtype)


def pallas_gemm(a, b, bias, activation="none"):
    """a: (M,K) ; b: (K,N) ; bias: (N,).  bf16 MXU inputs, f32 accumulation.

    K is architecture-bounded (<= 2048 here) so the K axis is never tiled;
    M is tiled only when large (full-dim blocks otherwise -> no padding)."""
    M, K = a.shape
    K2, N = b.shape
    assert K == K2
    a16 = a.astype(jnp.bfloat16)
    b16 = b.astype(jnp.bfloat16)
    bias2 = bias.reshape(1, N).astype(jnp.float32)
    if M <= 1024:
        tm, gm = M, 1                              # full-dim block, no (8) constraint
    else:
        tm = 512
        gm = pl.cdiv(M, tm)                        # boundary block handled by Pallas
    kern = functools.partial(_gemm_bias_act_kernel, activation=activation)
    return pl.pallas_call(
        kern,
        out_shape=jax.ShapeDtypeStruct((M, N), jnp.float32),
        grid_spec=pltpu.PrefetchScalarGridSpec(
            num_scalar_prefetch=0,
            grid=(gm,),
            in_specs=[
                pl.BlockSpec((tm, K), lambda i: (i, 0)),
                pl.BlockSpec((K, N), lambda i: (0, 0)),
                pl.BlockSpec((1, N), lambda i: (0, 0)),
            ],
            out_specs=pl.BlockSpec((tm, N), lambda i: (i, 0)),
        ),
        compiler_params=pltpu.CompilerParams(
            dimension_semantics=("parallel",)),
    )(a16, b16, bias2)


# ---------------------------------------------------------------------------
# Conv / transposed-conv lowered onto the Pallas GEMM.
# TODO(synk): im2col patches are materialized by XLA (fine at 32x32); for
# high-resolution inputs the patch extraction should move into the Pallas
# pipeline via an index_map over (kh,kw).
# ---------------------------------------------------------------------------
def conv2d(x, w, b, stride, padding, activation="none"):
    """x: (B,H,W,Cin) NHWC ; w: torch Conv2d layout (Cout,Cin,KH,KW) ; b: (Cout,)."""
    B, H, W, Cin = x.shape
    Cout, _, KH, KW = w.shape
    xp = jnp.pad(x, ((0, 0), (padding, padding), (padding, padding), (0, 0)))
    OH = (H + 2 * padding - KH) // stride + 1
    OW = (W + 2 * padding - KW) // stride + 1
    cols = []
    for kh in range(KH):
        for kw in range(KW):
            cols.append(xp[:, kh:kh + OH * stride:stride,
                           kw:kw + OW * stride:stride, :])
    patches = jnp.stack(cols, axis=3)                       # (B,OH,OW,KH*KW,Cin)
    a = patches.reshape(B * OH * OW, KH * KW * Cin)
    wk = jnp.transpose(w, (2, 3, 1, 0)).reshape(KH * KW * Cin, Cout)
    out = pallas_gemm(a, wk, b, activation)
    return out.reshape(B, OH, OW, Cout)


def conv_transpose2d(x, w, b, padding, activation="none"):
    """Sub-pixel decomposition of ConvTranspose2d(k=4, stride=2).

    x: NHWC ; w: torch ConvTranspose2d layout (Cin,Cout,4,4) ; b: (Cout,).
    A single stride-1 GEMM over shared 2x2 windows produces all 4 output
    phases (4*Cout columns); the phase grids are then interleaved."""
    B, H, W, Cin = x.shape
    _, Cout, KH, KW = w.shape
    assert KH == 4 and KW == 4
    OH = 2 * H + 2 - 2 * padding
    OW = 2 * W + 2 - 2 * padding
    Qh, Qw = OH // 2, OW // 2
    Ph, Pw = H + 1, W + 1
    xp = jnp.pad(x, ((0, 0), (1, 1), (1, 1), (0, 0)))
    # shared 2x2, stride-1 im2col over the padded input: K = 4*Cin (no zeros)
    cols = [xp[:, jh:jh + Ph, jw:jw + Pw, :] for jh in (0, 1) for jw in (0, 1)]
    patches = jnp.stack(cols, axis=3).reshape(B * Ph * Pw, 4 * Cin)
    # phase-combined weight (4*Cin, 4*Cout); column order (rh, rw, co)
    rows = []
    for jh in (0, 1):
        for jw in (0, 1):
            cw = []
            for rh in (0, 1):
                for rw in (0, 1):
                    kh = (rh + padding) % 2 + 2 * (1 - jh)
                    kw = (rw + padding) % 2 + 2 * (1 - jw)
                    cw.append(w[:, :, kh, kw])               # (Cin, Cout)
            rows.append(jnp.concatenate(cw, axis=1))         # (Cin, 4*Cout)
    wb = jnp.concatenate(rows, axis=0)                        # (4*Cin, 4*Cout)
    bb = jnp.tile(b, 4)                                       # (4*Cout,)
    g = pallas_gemm(patches, wb, bb, activation)
    g = g.reshape(B, Ph, Pw, 2, 2, Cout)
    e = ((0 + padding) // 2, (1 + padding) // 2)              # per-phase row shift
    blocks = [[g[:, e[rh]:e[rh] + Qh, e[rw]:e[rw] + Qw, rh, rw, :]
               for rw in (0, 1)] for rh in (0, 1)]
    stacked = jnp.stack([jnp.stack(brow, axis=3) for brow in blocks], axis=2)
    return stacked.reshape(B, OH, OW, Cout)                   # interleave phases


# ---------------------------------------------------------------------------
# Pallas kernels 2/3: lane-dense (channel-major) PCT blend.
# Per pixel: x = img*std+mean ; y_c = sum_d M[c,d]*x_d + t_c ; clamp [0,1];
# y = (y-mean)/std ; out = y*attn + img*(1-attn).
# TODO(synk): exact PCT normalization convention reconstructed from PCT-Net
# conventions (the PCT submodule source is not part of the given reference).
# ---------------------------------------------------------------------------
def _pct_affine_blend(img, params, attn):
    """img: (3,T), params: (12,T), attn: (1,T)  ->  (3,T)."""
    xs = [img[c:c + 1, :] * IMAGENET_STD[c] + IMAGENET_MEAN[c] for c in range(3)]
    ys = []
    for c in range(3):
        y = params[4 * c + 3:4 * c + 4, :]
        for d in range(3):
            y = y + params[4 * c + d:4 * c + d + 1, :] * xs[d]
        y = jnp.clip(y, 0.0, 1.0)
        y = (y - IMAGENET_MEAN[c]) / IMAGENET_STD[c]
        ys.append(y)
    y = jnp.concatenate(ys, axis=0)
    return y * attn + img * (1.0 - attn)


def _head_blend_kernel(lat_ref, img_ref, w_ref, bias_ref,
                       out_ref, par_ref, attn_ref):
    """Fused 1x1 heads (params 32->12, attention 32->1 + sigmoid(3x)) + blend."""
    lat = lat_ref[0]                                   # (32, TP)
    img = img_ref[0]                                   # (3, TP)
    pre = jnp.dot(w_ref[...], lat,
                  preferred_element_type=jnp.float32) + bias_ref[...]   # (13, TP)
    params = pre[0:12, :]
    attn = 1.0 / (1.0 + jnp.exp(-3.0 * pre[12:13, :]))
    out_ref[0] = _pct_affine_blend(img, params, attn).astype(out_ref.dtype)
    par_ref[0] = params.astype(par_ref.dtype)
    attn_ref[0] = attn.astype(attn_ref.dtype)


def _blend_kernel(img_ref, par_ref, attn_ref, out_ref):
    out_ref[0] = _pct_affine_blend(
        img_ref[0], par_ref[0], attn_ref[0]).astype(out_ref.dtype)


def _plan_pixel_tiles(P, target=4096):
    Pp = _round_up(P, 128)
    tp = math.gcd(Pp, target)        # multiple of 128, divides Pp
    return Pp, tp


def _pad_lanes(x, Pp):
    P = x.shape[-1]
    if P == Pp:
        return x
    return jnp.pad(x, ((0, 0), (0, 0), (0, Pp - P)))


def head_pct_blend(latent_cm, img_cm, wcat, bcat):
    """latent_cm: (B,32,P), img_cm: (B,3,P), wcat: (13,32), bcat: (13,1)."""
    B, Cl, P = latent_cm.shape
    Pp, tp = _plan_pixel_tiles(P)
    lat = _pad_lanes(latent_cm.astype(jnp.float32), Pp)
    img = _pad_lanes(img_cm.astype(jnp.float32), Pp)
    out, par, attn = pl.pallas_call(
        _head_blend_kernel,
        out_shape=(jax.ShapeDtypeStruct((B, 3, Pp), jnp.float32),
                   jax.ShapeDtypeStruct((B, 12, Pp), jnp.float32),
                   jax.ShapeDtypeStruct((B, 1, Pp), jnp.float32)),
        grid_spec=pltpu.PrefetchScalarGridSpec(
            num_scalar_prefetch=0,
            grid=(B, Pp // tp),
            in_specs=[
                pl.BlockSpec((1, Cl, tp), lambda b, i: (b, 0, i)),
                pl.BlockSpec((1, 3, tp), lambda b, i: (b, 0, i)),
                pl.BlockSpec((13, Cl), lambda b, i: (0, 0)),
                pl.BlockSpec((13, 1), lambda b, i: (0, 0)),
            ],
            out_specs=(
                pl.BlockSpec((1, 3, tp), lambda b, i: (b, 0, i)),
                pl.BlockSpec((1, 12, tp), lambda b, i: (b, 0, i)),
                pl.BlockSpec((1, 1, tp), lambda b, i: (b, 0, i)),
            ),
        ),
        compiler_params=pltpu.CompilerParams(
            dimension_semantics=("parallel", "parallel")),
    )(lat, img, wcat.astype(jnp.float32), bcat.astype(jnp.float32))
    return out[..., :P], par[..., :P], attn[..., :P]


def pct_blend_cm(img_cm, params_cm, attn_cm):
    """Channel-major blend (full-res path): all args (B, C, P)."""
    B, _, P = img_cm.shape
    Pp, tp = _plan_pixel_tiles(P)
    img = _pad_lanes(img_cm.astype(jnp.float32), Pp)
    par = _pad_lanes(params_cm.astype(jnp.float32), Pp)
    att = _pad_lanes(attn_cm.astype(jnp.float32), Pp)
    out = pl.pallas_call(
        _blend_kernel,
        out_shape=jax.ShapeDtypeStruct((B, 3, Pp), jnp.float32),
        grid_spec=pltpu.PrefetchScalarGridSpec(
            num_scalar_prefetch=0,
            grid=(B, Pp // tp),
            in_specs=[
                pl.BlockSpec((1, 3, tp), lambda b, i: (b, 0, i)),
                pl.BlockSpec((1, 12, tp), lambda b, i: (b, 0, i)),
                pl.BlockSpec((1, 1, tp), lambda b, i: (b, 0, i)),
            ],
            out_specs=pl.BlockSpec((1, 3, tp), lambda b, i: (b, 0, i)),
        ),
        compiler_params=pltpu.CompilerParams(
            dimension_semantics=("parallel", "parallel")),
    )(img, par, att)
    return out[..., :P]


# ---------------------------------------------------------------------------
# Deterministic parameter init (BatchNorm eval-mode folded into conv weights).
# ---------------------------------------------------------------------------
def init_pctnet_params(key):
    keys = jax.random.split(key, 64)
    ki = iter(keys)

    def rand(shape, scale=0.05):
        return scale * jax.random.normal(next(ki), shape, jnp.float32)

    def bn(c):
        gamma = 1.0 + 0.1 * jax.random.normal(next(ki), (c,), jnp.float32)
        beta = 0.02 * jax.random.normal(next(ki), (c,), jnp.float32)
        mean = 0.02 * jax.random.normal(next(ki), (c,), jnp.float32)
        var = jnp.abs(1.0 + 0.1 * jax.random.normal(next(ki), (c,), jnp.float32))
        return gamma, beta, mean, var

    p = {}
    # ConvEncoder(depth=4, ch=64, batchnorm_from=0): Conv2d(k4,s2) + BN + ELU
    p["enc"] = []
    for cin, cout in [(4, 64), (64, 64), (64, 128), (128, 128)]:
        w, b = rand((cout, cin, 4, 4)), rand((cout,), 0.01)
        g, be, m, v = bn(cout)
        s = g / jnp.sqrt(v + 1e-5)
        p["enc"].append((w * s[:, None, None, None], (b - m) * s + be))

    # DeconvDecoderUpsample(depth=4): ConvTranspose2d(k4,s2) + BN + ELU
    # TODO(synk): implemented as the iDIH SEDeconvBlock (ConvTranspose form);
    # the exact "Upsample" block variant source is not in the given reference.
    p["dec"] = []
    for cin, cout in [(128, 128), (128, 64), (64, 64), (64, 32)]:
        w, b = rand((cin, cout, 4, 4)), rand((cout,), 0.01)
        g, be, m, v = bn(cout)
        s = g / jnp.sqrt(v + 1e-5)
        p["dec"].append((w * s[None, :, None, None], (b - m) * s + be))

    # decoder attention head: attention_map = sigmoid(3 * Conv2d(32,1,1)(latent))
    p["attn"] = (rand((1, 32, 1, 1)), rand((1,), 0.01))
    # get_params: Conv2d(32, out_dim=12, kernel_size=1)
    p["get_params"] = (rand((12, 32, 1, 1)), rand((12,), 0.01))
    return p


# ---------------------------------------------------------------------------
# PCTNet forward
# ---------------------------------------------------------------------------
def pctnet_forward(p, image, mask, image_fullres, mask_fullres):
    """All tensor args are NCHW float32 (PyTorch convention)."""
    B, _, H, W = image.shape
    img_nhwc = jnp.transpose(image, (0, 2, 3, 1))
    msk_nhwc = jnp.transpose(mask, (0, 2, 3, 1))
    x = jnp.concatenate([img_nhwc, msk_nhwc], axis=-1)        # (B,H,W,4)

    # ---- encoder ----
    enc_outs = []
    h = x
    for (w, b), pad in zip(p["enc"], ENC_PADS):
        h = conv2d(h, w, b, stride=2, padding=pad, activation="elu")
        enc_outs.append(h)
    enc_rev = enc_outs[::-1]

    # ---- decoder (sub-pixel deconv blocks + encoder skip connections) ----
    out = enc_rev[0]
    n_dec = len(p["dec"])
    for i, ((w, b), pad) in enumerate(zip(p["dec"], DEC_PADS)):
        out = conv_transpose2d(out, w, b, padding=pad, activation="elu")
        if i < n_dec - 1:
            out = out + enc_rev[i + 1]
    latent = out                                              # (B,H,W,32) NHWC

    # ---- fused 1x1 heads + low-res PCT blend (lane-dense, channel-major) ----
    HW = H * W
    latent_cm = jnp.transpose(latent.reshape(B, HW, 32), (0, 2, 1))   # (B,32,HW)
    img_cm = image.reshape(B, 3, HW)                                  # NCHW is already channel-major

    gw, gb = p["get_params"]
    aw, ab = p["attn"]
    wcat = jnp.concatenate([gw.reshape(12, 32), aw.reshape(1, 32)], axis=0)  # (13,32)
    bcat = jnp.concatenate([gb, ab], axis=0).reshape(13, 1)                  # (13,1)

    out_lr_cm, params_cm, attn_cm = head_pct_blend(latent_cm, img_cm, wcat, bcat)
    out_lowres = out_lr_cm.reshape(B, 3, H, W)
    params_nchw = params_cm.reshape(B, 12, H, W)
    attn_nchw = attn_cm.reshape(B, 1, H, W)

    # ---- full-res path ----
    _, _, Hf, Wf = image_fullres.shape
    # TODO(synk): torch F.interpolate(..., mode='bicubic') approximated with
    # jax.image.resize bicubic (same half-pixel / Keys a=-0.5 convention).
    params_fr = jax.image.resize(params_nchw, (B, 12, Hf, Wf), method="bicubic")
    attn_fr = jax.image.resize(attn_nchw, (B, 1, Hf, Wf), method="bicubic")
    out_fr_cm = pct_blend_cm(image_fullres.reshape(B, 3, Hf * Wf),
                             params_fr.reshape(B, 12, Hf * Wf),
                             attn_fr.reshape(B, 1, Hf * Wf))
    out_fullres = out_fr_cm.reshape(B, 3, Hf, Wf)

    return {
        "images": out_lowres,
        "params": params_nchw,
        "attention": attn_nchw,
        "images_fullres": out_fullres,
        "params_fullres": params_fr,
    }


if __name__ == "__main__":
    key = jax.random.PRNGKey(0)
    pkey, dkey = jax.random.split(key)
    params = init_pctnet_params(pkey)

    k1, k2, k3, k4 = jax.random.split(dkey, 4)
    B, H, W = 2, 32, 32
    Hf, Wf = 64, 64
    image = jax.random.normal(k1, (B, 3, H, W), jnp.float32)        # normalized low-res
    mask = (jax.random.uniform(k2, (B, 1, H, W)) > 0.5).astype(jnp.float32)
    image_fullres = jax.random.normal(k3, (B, 3, Hf, Wf), jnp.float32)
    mask_fullres = (jax.random.uniform(k4, (B, 1, Hf, Wf)) > 0.5).astype(jnp.float32)

    forward = jax.jit(pctnet_forward)
    outputs = forward(params, image, mask, image_fullres, mask_fullres)
    outputs = jax.block_until_ready(outputs)

    assert outputs["images"].shape == (B, 3, H, W)
    assert outputs["params"].shape == (B, 12, H, W)
    assert outputs["attention"].shape == (B, 1, H, W)
    assert outputs["images_fullres"].shape == (B, 3, Hf, Wf)
    assert outputs["params_fullres"].shape == (B, 12, Hf, Wf)
    assert all(bool(jnp.all(jnp.isfinite(v))) for v in outputs.values())

    print("KERNEL_OK")
</pallas_src>

<mosaic_0001>
module attributes {stable_mosaic.version = 11 : i64} {
  func.func @_gemm_bias_act_kernel(%arg0: i32, %arg1: memref<512x64xbf16, #tpu.memory_space<vmem>>, %arg2: memref<64x64xbf16, #tpu.memory_space<vmem>>, %arg3: memref<1x64xf32, #tpu.memory_space<vmem>>, %arg4: memref<512x64xf32, #tpu.memory_space<vmem>>) attributes {dimension_semantics = [#tpu.dimension_semantics<parallel>], iteration_bounds = array<i64: 1>, scalar_prefetch = 0 : i64, scratch_operands = 0 : i64, tpu.core_type = #tpu.core_type<tc>, window_params = [{transform_indices = @transform_0, window_bounds = array<i64: 512, 64>}, {pipeline_mode = #tpu.pipeline_mode<synchronous>, transform_indices = @transform_1, window_bounds = array<i64: 64, 64>}, {pipeline_mode = #tpu.pipeline_mode<synchronous>, transform_indices = @transform_2, window_bounds = array<i64: 1, 64>}, {transform_indices = @transform_3, window_bounds = array<i64: 512, 64>}]} {
    %c0 = arith.constant 0 : index
    %c0_0 = arith.constant 0 : index
    %0 = vector.load %arg1[%c0, %c0_0] : memref<512x64xbf16, #tpu.memory_space<vmem>>, vector<512x64xbf16>
    %c0_1 = arith.constant 0 : index
    %c0_2 = arith.constant 0 : index
    %1 = vector.load %arg2[%c0_1, %c0_2] : memref<64x64xbf16, #tpu.memory_space<vmem>>, vector<64x64xbf16>
    %cst = arith.constant dense<0.000000e+00> : vector<512x64xf32>
    %2 = tpu.matmul %0, %1, %cst {dimension_numbers = #tpu.dot_dimension_numbers<[1], [0], [0], [1], [0, 0, 1, 1], [], []>} : vector<512x64xbf16>, vector<64x64xbf16>, vector<512x64xf32> -> vector<512x64xf32>
    %c0_3 = arith.constant 0 : index
    %c0_4 = arith.constant 0 : index
    %3 = vector.load %arg3[%c0_3, %c0_4] : memref<1x64xf32, #tpu.memory_space<vmem>>, vector<1x64xf32>
    %4 = vector.broadcast %3 : vector<1x64xf32> to vector<512x64xf32>
    %5 = arith.addf %2, %4 : vector<512x64xf32>
    %cst_5 = arith.constant 0.000000e+00 : f32
    %6 = vector.broadcast %cst_5 : f32 to vector<512x64xf32>
    %7 = arith.cmpf ogt, %5, %6 : vector<512x64xf32>
    %cst_6 = arith.constant 0.000000e+00 : f32
    %8 = vector.broadcast %cst_6 : f32 to vector<512x64xf32>
    %9 = arith.minimumf %5, %8 : vector<512x64xf32>
    %10 = math.exp %9 : vector<512x64xf32>
    %cst_7 = arith.constant 1.000000e+00 : f32
    %11 = vector.broadcast %cst_7 : f32 to vector<512x64xf32>
    %12 = arith.subf %10, %11 : vector<512x64xf32>
    %13 = arith.select %7, %5, %12 : vector<512x64xi1>, vector<512x64xf32>
    %c0_8 = arith.constant 0 : index
    %c0_9 = arith.constant 0 : index
    %14 = vector.load %arg4[%c0_8, %c0_9] : memref<512x64xf32, #tpu.memory_space<vmem>>, vector<512x64xf32>
    tpu.vector_store %arg4[%c0_8, %c0_9], %13 {strides = array<i32>} : memref<512x64xf32, #tpu.memory_space<vmem>>, vector<512x64xf32>,
    return
  }
  func.func @transform_0(%arg0: i32) -> (i32, i32) {
    %c0_i32 = arith.constant 0 : i32
    %c0_i32_0 = arith.constant 0 : i32
    return %arg0, %c0_i32 : i32, i32
  }
  func.func @transform_1(%arg0: i32) -> (i32, i32) {
    %c0_i32 = arith.constant 0 : i32
    %c0_i32_0 = arith.constant 0 : i32
    %c0_i32_1 = arith.constant 0 : i32
    return %c0_i32, %c0_i32_0 : i32, i32
  }
  func.func @transform_2(%arg0: i32) -> (i32, i32) {
    %c0_i32 = arith.constant 0 : i32
    %c0_i32_0 = arith.constant 0 : i32
    %c0_i32_1 = arith.constant 0 : i32
    return %c0_i32, %c0_i32_0 : i32, i32
  }
  func.func @transform_3(%arg0: i32) -> (i32, i32) {
    %c0_i32 = arith.constant 0 : i32
    %c0_i32_0 = arith.constant 0 : i32
    return %arg0, %c0_i32 : i32, i32
  }
}

module attributes {stable_mosaic.version = 11 : i64} {
  func.func @_gemm_bias_act_kernel(%arg0: i32, %arg1: memref<128x1024xbf16, #tpu.memory_space<vmem>>, %arg2: memref<1024x64xbf16, #tpu.memory_space<vmem>>, %arg3: memref<1x64xf32, #tpu.memory_space<vmem>>, %arg4: memref<128x64xf32, #tpu.memory_space<vmem>>) attributes {dimension_semantics = [#tpu.dimension_semantics<parallel>], iteration_bounds = array<i64: 1>, scalar_prefetch = 0 : i64, scratch_operands = 0 : i64, tpu.core_type = #tpu.core_type<tc>, window_params = [{transform_indices = @transform_0, window_bounds = array<i64: 128, 1024>}, {pipeline_mode = #tpu.pipeline_mode<synchronous>, transform_indices = @transform_1, window_bounds = array<i64: 1024, 64>}, {pipeline_mode = #tpu.pipeline_mode<synchronous>, transform_indices = @transform_2, window_bounds = array<i64: 1, 64>}, {transform_indices = @transform_3, window_bounds = array<i64: 128, 64>}]} {
    %c0 = arith.constant 0 : index
    %c0_0 = arith.constant 0 : index
    %0 = vector.load %arg1[%c0, %c0_0] : memref<128x1024xbf16, #tpu.memory_space<vmem>>, vector<128x1024xbf16>
    %c0_1 = arith.constant 0 : index
    %c0_2 = arith.constant 0 : index
    %1 = vector.load %arg2[%c0_1, %c0_2] : memref<1024x64xbf16, #tpu.memory_space<vmem>>, vector<1024x64xbf16>
    %cst = arith.constant dense<0.000000e+00> : vector<128x64xf32>
    %2 = tpu.matmul %0, %1, %cst {dimension_numbers = #tpu.dot_dimension_numbers<[1], [0], [0], [1], [0, 0, 1, 1], [], []>} : vector<128x1024xbf16>, vector<1024x64xbf16>, vector<128x64xf32> -> vector<128x64xf32>
    %c0_3 = arith.constant 0 : index
    %c0_4 = arith.constant 0 : index
    %3 = vector.load %arg3[%c0_3, %c0_4] : memref<1x64xf32, #tpu.memory_space<vmem>>, vector<1x64xf32>
    %4 = vector.broadcast %3 : vector<1x64xf32> to vector<128x64xf32>
    %5 = arith.addf %2, %4 : vector<128x64xf32>
    %cst_5 = arith.constant 0.000000e+00 : f32
    %6 = vector.broadcast %cst_5 : f32 to vector<128x64xf32>
    %7 = arith.cmpf ogt, %5, %6 : vector<128x64xf32>
    %cst_6 = arith.constant 0.000000e+00 : f32
    %8 = vector.broadcast %cst_6 : f32 to vector<128x64xf32>
    %9 = arith.minimumf %5, %8 : vector<128x64xf32>
    %10 = math.exp %9 : vector<128x64xf32>
    %cst_7 = arith.constant 1.000000e+00 : f32
    %11 = vector.broadcast %cst_7 : f32 to vector<128x64xf32>
    %12 = arith.subf %10, %11 : vector<128x64xf32>
    %13 = arith.select %7, %5, %12 : vector<128x64xi1>, vector<128x64xf32>
    %c0_8 = arith.constant 0 : index
    %c0_9 = arith.constant 0 : index
    %14 = vector.load %arg4[%c0_8, %c0_9] : memref<128x64xf32, #tpu.memory_space<vmem>>, vector<128x64xf32>
    tpu.vector_store %arg4[%c0_8, %c0_9], %13 {strides = array<i32>} : memref<128x64xf32, #tpu.memory_space<vmem>>, vector<128x64xf32>,
    return
  }
  func.func @transform_0(%arg0: i32) -> (i32, i32) {
    %c0_i32 = arith.constant 0 : i32
    %c0_i32_0 = arith.constant 0 : i32
    return %arg0, %c0_i32 : i32, i32
  }
  func.func @transform_1(%arg0: i32) -> (i32, i32) {
    %c0_i32 = arith.constant 0 : i32
    %c0_i32_0 = arith.constant 0 : i32
    %c0_i32_1 = arith.constant 0 : i32
    return %c0_i32, %c0_i32_0 : i32, i32
  }
  func.func @transform_2(%arg0: i32) -> (i32, i32) {
    %c0_i32 = arith.constant 0 : i32
    %c0_i32_0 = arith.constant 0 : i32
    %c0_i32_1 = arith.constant 0 : i32
    return %c0_i32, %c0_i32_0 : i32, i32
  }
  func.func @transform_3(%arg0: i32) -> (i32, i32) {
    %c0_i32 = arith.constant 0 : i32
    %c0_i32_0 = arith.constant 0 : i32
    return %arg0, %c0_i32 : i32, i32
  }
}

module attributes {stable_mosaic.version = 11 : i64} {
  func.func @_gemm_bias_act_kernel(%arg0: i32, %arg1: memref<32x1024xbf16, #tpu.memory_space<vmem>>, %arg2: memref<1024x128xbf16, #tpu.memory_space<vmem>>, %arg3: memref<1x128xf32, #tpu.memory_space<vmem>>, %arg4: memref<32x128xf32, #tpu.memory_space<vmem>>) attributes {dimension_semantics = [#tpu.dimension_semantics<parallel>], iteration_bounds = array<i64: 1>, scalar_prefetch = 0 : i64, scratch_operands = 0 : i64, tpu.core_type = #tpu.core_type<tc>, window_params = [{transform_indices = @transform_0, window_bounds = array<i64: 32, 1024>}, {pipeline_mode = #tpu.pipeline_mode<synchronous>, transform_indices = @transform_1, window_bounds = array<i64: 1024, 128>}, {pipeline_mode = #tpu.pipeline_mode<synchronous>, transform_indices = @transform_2, window_bounds = array<i64: 1, 128>}, {transform_indices = @transform_3, window_bounds = array<i64: 32, 128>}]} {
    %c0 = arith.constant 0 : index
    %c0_0 = arith.constant 0 : index
    %0 = vector.load %arg1[%c0, %c0_0] : memref<32x1024xbf16, #tpu.memory_space<vmem>>, vector<32x1024xbf16>
    %c0_1 = arith.constant 0 : index
    %c0_2 = arith.constant 0 : index
    %1 = vector.load %arg2[%c0_1, %c0_2] : memref<1024x128xbf16, #tpu.memory_space<vmem>>, vector<1024x128xbf16>
    %cst = arith.constant dense<0.000000e+00> : vector<32x128xf32>
    %2 = tpu.matmul %0, %1, %cst {dimension_numbers = #tpu.dot_dimension_numbers<[1], [0], [0], [1], [0, 0, 1, 1], [], []>} : vector<32x1024xbf16>, vector<1024x128xbf16>, vector<32x128xf32> -> vector<32x128xf32>
    %c0_3 = arith.constant 0 : index
    %c0_4 = arith.constant 0 : index
    %3 = vector.load %arg3[%c0_3, %c0_4] : memref<1x128xf32, #tpu.memory_space<vmem>>, vector<1x128xf32>
    %4 = vector.broadcast %3 : vector<1x128xf32> to vector<32x128xf32>
    %5 = arith.addf %2, %4 : vector<32x128xf32>
    %cst_5 = arith.constant 0.000000e+00 : f32
    %6 = vector.broadcast %cst_5 : f32 to vector<32x128xf32>
    %7 = arith.cmpf ogt, %5, %6 : vector<32x128xf32>
    %cst_6 = arith.constant 0.000000e+00 : f32
    %8 = vector.broadcast %cst_6 : f32 to vector<32x128xf32>
    %9 = arith.minimumf %5, %8 : vector<32x128xf32>
    %10 = math.exp %9 : vector<32x128xf32>
    %cst_7 = arith.constant 1.000000e+00 : f32
    %11 = vector.broadcast %cst_7 : f32 to vector<32x128xf32>
    %12 = arith.subf %10, %11 : vector<32x128xf32>
    %13 = arith.select %7, %5, %12 : vector<32x128xi1>, vector<32x128xf32>
    %c0_8 = arith.constant 0 : index
    %c0_9 = arith.constant 0 : index
    %14 = vector.load %arg4[%c0_8, %c0_9] : memref<32x128xf32, #tpu.memory_space<vmem>>, vector<32x128xf32>
    tpu.vector_store %arg4[%c0_8, %c0_9], %13 {strides = array<i32>} : memref<32x128xf32, #tpu.memory_space<vmem>>, vector<32x128xf32>,
    return
  }
  func.func @transform_0(%arg0: i32) -> (i32, i32) {
    %c0_i32 = arith.constant 0 : i32
    %c0_i32_0 = arith.constant 0 : i32
    return %arg0, %c0_i32 : i32, i32
  }
  func.func @transform_1(%arg0: i32) -> (i32, i32) {
    %c0_i32 = arith.constant 0 : i32
    %c0_i32_0 = arith.constant 0 : i32
    %c0_i32_1 = arith.constant 0 : i32
    return %c0_i32, %c0_i32_0 : i32, i32
  }
  func.func @transform_2(%arg0: i32) -> (i32, i32) {
    %c0_i32 = arith.constant 0 : i32
    %c0_i32_0 = arith.constant 0 : i32
    %c0_i32_1 = arith.constant 0 : i32
    return %c0_i32, %c0_i32_0 : i32, i32
  }
  func.func @transform_3(%arg0: i32) -> (i32, i32) {
    %c0_i32 = arith.constant 0 : i32
    %c0_i32_0 = arith.constant 0 : i32
    return %arg0, %c0_i32 : i32, i32
  }
}

module attributes {stable_mosaic.version = 11 : i64} {
  func.func @_gemm_bias_act_kernel(%arg0: i32, %arg1: memref<2x2048xbf16, #tpu.memory_space<vmem>>, %arg2: memref<2048x128xbf16, #tpu.memory_space<vmem>>, %arg3: memref<1x128xf32, #tpu.memory_space<vmem>>, %arg4: memref<2x128xf32, #tpu.memory_space<vmem>>) attributes {dimension_semantics = [#tpu.dimension_semantics<parallel>], iteration_bounds = array<i64: 1>, scalar_prefetch = 0 : i64, scratch_operands = 0 : i64, tpu.core_type = #tpu.core_type<tc>, window_params = [{transform_indices = @transform_0, window_bounds = array<i64: 2, 2048>}, {pipeline_mode = #tpu.pipeline_mode<synchronous>, transform_indices = @transform_1, window_bounds = array<i64: 2048, 128>}, {pipeline_mode = #tpu.pipeline_mode<synchronous>, transform_indices = @transform_2, window_bounds = array<i64: 1, 128>}, {transform_indices = @transform_3, window_bounds = array<i64: 2, 128>}]} {
    %c0 = arith.constant 0 : index
    %c0_0 = arith.constant 0 : index
    %0 = vector.load %arg1[%c0, %c0_0] : memref<2x2048xbf16, #tpu.memory_space<vmem>>, vector<2x2048xbf16>
    %c0_1 = arith.constant 0 : index
    %c0_2 = arith.constant 0 : index
    %1 = vector.load %arg2[%c0_1, %c0_2] : memref<2048x128xbf16, #tpu.memory_space<vmem>>, vector<2048x128xbf16>
    %cst = arith.constant dense<0.000000e+00> : vector<2x128xf32>
    %2 = tpu.matmul %0, %1, %cst {dimension_numbers = #tpu.dot_dimension_numbers<[1], [0], [0], [1], [0, 0, 1, 1], [], []>} : vector<2x2048xbf16>, vector<2048x128xbf16>, vector<2x128xf32> -> vector<2x128xf32>
    %c0_3 = arith.constant 0 : index
    %c0_4 = arith.constant 0 : index
    %3 = vector.load %arg3[%c0_3, %c0_4] : memref<1x128xf32, #tpu.memory_space<vmem>>, vector<1x128xf32>
    %4 = vector.broadcast %3 : vector<1x128xf32> to vector<2x128xf32>
    %5 = arith.addf %2, %4 : vector<2x128xf32>
    %cst_5 = arith.constant 0.000000e+00 : f32
    %6 = vector.broadcast %cst_5 : f32 to vector<2x128xf32>
    %7 = arith.cmpf ogt, %5, %6 : vector<2x128xf32>
    %cst_6 = arith.constant 0.000000e+00 : f32
    %8 = vector.broadcast %cst_6 : f32 to vector<2x128xf32>
    %9 = arith.minimumf %5, %8 : vector<2x128xf32>
    %10 = math.exp %9 : vector<2x128xf32>
    %cst_7 = arith.constant 1.000000e+00 : f32
    %11 = vector.broadcast %cst_7 : f32 to vector<2x128xf32>
    %12 = arith.subf %10, %11 : vector<2x128xf32>
    %13 = arith.select %7, %5, %12 : vector<2x128xi1>, vector<2x128xf32>
    %c0_8 = arith.constant 0 : index
    %c0_9 = arith.constant 0 : index
    %14 = vector.load %arg4[%c0_8, %c0_9] : memref<2x128xf32, #tpu.memory_space<vmem>>, vector<2x128xf32>
    tpu.vector_store %arg4[%c0_8, %c0_9], %13 {strides = array<i32>} : memref<2x128xf32, #tpu.memory_space<vmem>>, vector<2x128xf32>,
    return
  }
  func.func @transform_0(%arg0: i32) -> (i32, i32) {
    %c0_i32 = arith.constant 0 : i32
    %c0_i32_0 = arith.constant 0 : i32
    return %arg0, %c0_i32 : i32, i32
  }
  func.func @transform_1(%arg0: i32) -> (i32, i32) {
    %c0_i32 = arith.constant 0 : i32
    %c0_i32_0 = arith.constant 0 : i32
    %c0_i32_1 = arith.constant 0 : i32
    return %c0_i32, %c0_i32_0 : i32, i32
  }
  func.func @transform_2(%arg0: i32) -> (i32, i32) {
    %c0_i32 = arith.constant 0 : i32
    %c0_i32_0 = arith.constant 0 : i32
    %c0_i32_1 = arith.constant 0 : i32
    return %c0_i32, %c0_i32_0 : i32, i32
  }
  func.func @transform_3(%arg0: i32) -> (i32, i32) {
    %c0_i32 = arith.constant 0 : i32
    %c0_i32_0 = arith.constant 0 : i32
    return %arg0, %c0_i32 : i32, i32
  }
}

module attributes {stable_mosaic.version = 11 : i64} {
  func.func @_gemm_bias_act_kernel(%arg0: i32, %arg1: memref<8x512xbf16, #tpu.memory_space<vmem>>, %arg2: memref<512x512xbf16, #tpu.memory_space<vmem>>, %arg3: memref<1x512xf32, #tpu.memory_space<vmem>>, %arg4: memref<8x512xf32, #tpu.memory_space<vmem>>) attributes {dimension_semantics = [#tpu.dimension_semantics<parallel>], iteration_bounds = array<i64: 1>, scalar_prefetch = 0 : i64, scratch_operands = 0 : i64, tpu.core_type = #tpu.core_type<tc>, window_params = [{transform_indices = @transform_0, window_bounds = array<i64: 8, 512>}, {pipeline_mode = #tpu.pipeline_mode<synchronous>, transform_indices = @transform_1, window_bounds = array<i64: 512, 512>}, {pipeline_mode = #tpu.pipeline_mode<synchronous>, transform_indices = @transform_2, window_bounds = array<i64: 1, 512>}, {transform_indices = @transform_3, window_bounds = array<i64: 8, 512>}]} {
    %c0 = arith.constant 0 : index
    %c0_0 = arith.constant 0 : index
    %0 = vector.load %arg1[%c0, %c0_0] : memref<8x512xbf16, #tpu.memory_space<vmem>>, vector<8x512xbf16>
    %c0_1 = arith.constant 0 : index
    %c0_2 = arith.constant 0 : index
    %1 = vector.load %arg2[%c0_1, %c0_2] : memref<512x512xbf16, #tpu.memory_space<vmem>>, vector<512x512xbf16>
    %cst = arith.constant dense<0.000000e+00> : vector<8x512xf32>
    %2 = tpu.matmul %0, %1, %cst {dimension_numbers = #tpu.dot_dimension_numbers<[1], [0], [0], [1], [0, 0, 1, 1], [], []>} : vector<8x512xbf16>, vector<512x512xbf16>, vector<8x512xf32> -> vector<8x512xf32>
    %c0_3 = arith.constant 0 : index
    %c0_4 = arith.constant 0 : index
    %3 = vector.load %arg3[%c0_3, %c0_4] : memref<1x512xf32, #tpu.memory_space<vmem>>, vector<1x512xf32>
    %4 = vector.broadcast %3 : vector<1x512xf32> to vector<8x512xf32>
    %5 = arith.addf %2, %4 : vector<8x512xf32>
    %cst_5 = arith.constant 0.000000e+00 : f32
    %6 = vector.broadcast %cst_5 : f32 to vector<8x512xf32>
    %7 = arith.cmpf ogt, %5, %6 : vector<8x512xf32>
    %cst_6 = arith.constant 0.000000e+00 : f32
    %8 = vector.broadcast %cst_6 : f32 to vector<8x512xf32>
    %9 = arith.minimumf %5, %8 : vector<8x512xf32>
    %10 = math.exp %9 : vector<8x512xf32>
    %cst_7 = arith.constant 1.000000e+00 : f32
    %11 = vector.broadcast %cst_7 : f32 to vector<8x512xf32>
    %12 = arith.subf %10, %11 : vector<8x512xf32>
    %13 = arith.select %7, %5, %12 : vector<8x512xi1>, vector<8x512xf32>
    %c0_8 = arith.constant 0 : index
    %c0_9 = arith.constant 0 : index
    %14 = vector.load %arg4[%c0_8, %c0_9] : memref<8x512xf32, #tpu.memory_space<vmem>>, vector<8x512xf32>
    tpu.vector_store %arg4[%c0_8, %c0_9], %13 {strides = array<i32>} : memref<8x512xf32, #tpu.memory_space<vmem>>, vector<8x512xf32>,
    return
  }
  func.func @transform_0(%arg0: i32) -> (i32, i32) {
    %c0_i32 = arith.constant 0 : i32
    %c0_i32_0 = arith.constant 0 : i32
    return %arg0, %c0_i32 : i32, i32
  }
  func.func @transform_1(%arg0: i32) -> (i32, i32) {
    %c0_i32 = arith.constant 0 : i32
    %c0_i32_0 = arith.constant 0 : i32
    %c0_i32_1 = arith.constant 0 : i32
    return %c0_i32, %c0_i32_0 : i32, i32
  }
  func.func @transform_2(%arg0: i32) -> (i32, i32) {
    %c0_i32 = arith.constant 0 : i32
    %c0_i32_0 = arith.constant 0 : i32
    %c0_i32_1 = arith.constant 0 : i32
    return %c0_i32, %c0_i32_0 : i32, i32
  }
  func.func @transform_3(%arg0: i32) -> (i32, i32) {
    %c0_i32 = arith.constant 0 : i32
    %c0_i32_0 = arith.constant 0 : i32
    return %arg0, %c0_i32 : i32, i32
  }
}

module attributes {stable_mosaic.version = 11 : i64} {
  func.func @_gemm_bias_act_kernel(%arg0: i32, %arg1: memref<50x512xbf16, #tpu.memory_space<vmem>>, %arg2: memref<512x256xbf16, #tpu.memory_space<vmem>>, %arg3: memref<1x256xf32, #tpu.memory_space<vmem>>, %arg4: memref<50x256xf32, #tpu.memory_space<vmem>>) attributes {dimension_semantics = [#tpu.dimension_semantics<parallel>], iteration_bounds = array<i64: 1>, scalar_prefetch = 0 : i64, scratch_operands = 0 : i64, tpu.core_type = #tpu.core_type<tc>, window_params = [{transform_indices = @transform_0, window_bounds = array<i64: 50, 512>}, {pipeline_mode = #tpu.pipeline_mode<synchronous>, transform_indices = @transform_1, window_bounds = array<i64: 512, 256>}, {pipeline_mode = #tpu.pipeline_mode<synchronous>, transform_indices = @transform_2, window_bounds = array<i64: 1, 256>}, {transform_indices = @transform_3, window_bounds = array<i64: 50, 256>}]} {
    %c0 = arith.constant 0 : index
    %c0_0 = arith.constant 0 : index
    %0 = vector.load %arg1[%c0, %c0_0] : memref<50x512xbf16, #tpu.memory_space<vmem>>, vector<50x512xbf16>
    %c0_1 = arith.constant 0 : index
    %c0_2 = arith.constant 0 : index
    %1 = vector.load %arg2[%c0_1, %c0_2] : memref<512x256xbf16, #tpu.memory_space<vmem>>, vector<512x256xbf16>
    %cst = arith.constant dense<0.000000e+00> : vector<50x256xf32>
    %2 = tpu.matmul %0, %1, %cst {dimension_numbers = #tpu.dot_dimension_numbers<[1], [0], [0], [1], [0, 0, 1, 1], [], []>} : vector<50x512xbf16>, vector<512x256xbf16>, vector<50x256xf32> -> vector<50x256xf32>
    %c0_3 = arith.constant 0 : index
    %c0_4 = arith.constant 0 : index
    %3 = vector.load %arg3[%c0_3, %c0_4] : memref<1x256xf32, #tpu.memory_space<vmem>>, vector<1x256xf32>
    %4 = vector.broadcast %3 : vector<1x256xf32> to vector<50x256xf32>
    %5 = arith.addf %2, %4 : vector<50x256xf32>
    %cst_5 = arith.constant 0.000000e+00 : f32
    %6 = vector.broadcast %cst_5 : f32 to vector<50x256xf32>
    %7 = arith.cmpf ogt, %5, %6 : vector<50x256xf32>
    %cst_6 = arith.constant 0.000000e+00 : f32
    %8 = vector.broadcast %cst_6 : f32 to vector<50x256xf32>
    %9 = arith.minimumf %5, %8 : vector<50x256xf32>
    %10 = math.exp %9 : vector<50x256xf32>
    %cst_7 = arith.constant 1.000000e+00 : f32
    %11 = vector.broadcast %cst_7 : f32 to vector<50x256xf32>
    %12 = arith.subf %10, %11 : vector<50x256xf32>
    %13 = arith.select %7, %5, %12 : vector<50x256xi1>, vector<50x256xf32>
    %c0_8 = arith.constant 0 : index
    %c0_9 = arith.constant 0 : index
    %14 = vector.load %arg4[%c0_8, %c0_9] : memref<50x256xf32, #tpu.memory_space<vmem>>, vector<50x256xf32>
    tpu.vector_store %arg4[%c0_8, %c0_9], %13 {strides = array<i32>} : memref<50x256xf32, #tpu.memory_space<vmem>>, vector<50x256xf32>,
    return
  }
  func.func @transform_0(%arg0: i32) -> (i32, i32) {
    %c0_i32 = arith.constant 0 : i32
    %c0_i32_0 = arith.constant 0 : i32
    return %arg0, %c0_i32 : i32, i32
  }
  func.func @transform_1(%arg0: i32) -> (i32, i32) {
    %c0_i32 = arith.constant 0 : i32
    %c0_i32_0 = arith.constant 0 : i32
    %c0_i32_1 = arith.constant 0 : i32
    return %c0_i32, %c0_i32_0 : i32, i32
  }
  func.func @transform_2(%arg0: i32) -> (i32, i32) {
    %c0_i32 = arith.constant 0 : i32
    %c0_i32_0 = arith.constant 0 : i32
    %c0_i32_1 = arith.constant 0 : i32
    return %c0_i32, %c0_i32_0 : i32, i32
  }
  func.func @transform_3(%arg0: i32) -> (i32, i32) {
    %c0_i32 = arith.constant 0 : i32
    %c0_i32_0 = arith.constant 0 : i32
    return %arg0, %c0_i32 : i32, i32
  }
}

module attributes {stable_mosaic.version = 11 : i64} {
  func.func @_gemm_bias_act_kernel(%arg0: i32, %arg1: memref<162x256xbf16, #tpu.memory_space<vmem>>, %arg2: memref<256x256xbf16, #tpu.memory_space<vmem>>, %arg3: memref<1x256xf32, #tpu.memory_space<vmem>>, %arg4: memref<162x256xf32, #tpu.memory_space<vmem>>) attributes {dimension_semantics = [#tpu.dimension_semantics<parallel>], iteration_bounds = array<i64: 1>, scalar_prefetch = 0 : i64, scratch_operands = 0 : i64, tpu.core_type = #tpu.core_type<tc>, window_params = [{transform_indices = @transform_0, window_bounds = array<i64: 162, 256>}, {pipeline_mode = #tpu.pipeline_mode<synchronous>, transform_indices = @transform_1, window_bounds = array<i64: 256, 256>}, {pipeline_mode = #tpu.pipeline_mode<synchronous>, transform_indices = @transform_2, window_bounds = array<i64: 1, 256>}, {transform_indices = @transform_3, window_bounds = array<i64: 162, 256>}]} {
    %c0 = arith.constant 0 : index
    %c0_0 = arith.constant 0 : index
    %0 = vector.load %arg1[%c0, %c0_0] : memref<162x256xbf16, #tpu.memory_space<vmem>>, vector<162x256xbf16>
    %c0_1 = arith.constant 0 : index
    %c0_2 = arith.constant 0 : index
    %1 = vector.load %arg2[%c0_1, %c0_2] : memref<256x256xbf16, #tpu.memory_space<vmem>>, vector<256x256xbf16>
    %cst = arith.constant dense<0.000000e+00> : vector<162x256xf32>
    %2 = tpu.matmul %0, %1, %cst {dimension_numbers = #tpu.dot_dimension_numbers<[1], [0], [0], [1], [0, 0, 1, 1], [], []>} : vector<162x256xbf16>, vector<256x256xbf16>, vector<162x256xf32> -> vector<162x256xf32>
    %c0_3 = arith.constant 0 : index
    %c0_4 = arith.constant 0 : index
    %3 = vector.load %arg3[%c0_3, %c0_4] : memref<1x256xf32, #tpu.memory_space<vmem>>, vector<1x256xf32>
    %4 = vector.broadcast %3 : vector<1x256xf32> to vector<162x256xf32>
    %5 = arith.addf %2, %4 : vector<162x256xf32>
    %cst_5 = arith.constant 0.000000e+00 : f32
    %6 = vector.broadcast %cst_5 : f32 to vector<162x256xf32>
    %7 = arith.cmpf ogt, %5, %6 : vector<162x256xf32>
    %cst_6 = arith.constant 0.000000e+00 : f32
    %8 = vector.broadcast %cst_6 : f32 to vector<162x256xf32>
    %9 = arith.minimumf %5, %8 : vector<162x256xf32>
    %10 = math.exp %9 : vector<162x256xf32>
    %cst_7 = arith.constant 1.000000e+00 : f32
    %11 = vector.broadcast %cst_7 : f32 to vector<162x256xf32>
    %12 = arith.subf %10, %11 : vector<162x256xf32>
    %13 = arith.select %7, %5, %12 : vector<162x256xi1>, vector<162x256xf32>
    %c0_8 = arith.constant 0 : index
    %c0_9 = arith.constant 0 : index
    %14 = vector.load %arg4[%c0_8, %c0_9] : memref<162x256xf32, #tpu.memory_space<vmem>>, vector<162x256xf32>
    tpu.vector_store %arg4[%c0_8, %c0_9], %13 {strides = array<i32>} : memref<162x256xf32, #tpu.memory_space<vmem>>, vector<162x256xf32>,
    return
  }
  func.func @transform_0(%arg0: i32) -> (i32, i32) {
    %c0_i32 = arith.constant 0 : i32
    %c0_i32_0 = arith.constant 0 : i32
    return %arg0, %c0_i32 : i32, i32
  }
  func.func @transform_1(%arg0: i32) -> (i32, i32) {
    %c0_i32 = arith.constant 0 : i32
    %c0_i32_0 = arith.constant 0 : i32
    %c0_i32_1 = arith.constant 0 : i32
    return %c0_i32, %c0_i32_0 : i32, i32
  }
  func.func @transform_2(%arg0: i32) -> (i32, i32) {
    %c0_i32 = arith.constant 0 : i32
    %c0_i32_0 = arith.constant 0 : i32
    %c0_i32_1 = arith.constant 0 : i32
    return %c0_i32, %c0_i32_0 : i32, i32
  }
  func.func @transform_3(%arg0: i32) -> (i32, i32) {
    %c0_i32 = arith.constant 0 : i32
    %c0_i32_0 = arith.constant 0 : i32
    return %arg0, %c0_i32 : i32, i32
  }
}

module attributes {stable_mosaic.version = 11 : i64} {
  func.func @_gemm_bias_act_kernel(%arg0: i32, %arg1: memref<578x256xbf16, #tpu.memory_space<vmem>>, %arg2: memref<256x128xbf16, #tpu.memory_space<vmem>>, %arg3: memref<1x128xf32, #tpu.memory_space<vmem>>, %arg4: memref<578x128xf32, #tpu.memory_space<vmem>>) attributes {dimension_semantics = [#tpu.dimension_semantics<parallel>], iteration_bounds = array<i64: 1>, scalar_prefetch = 0 : i64, scratch_operands = 0 : i64, tpu.core_type = #tpu.core_type<tc>, window_params = [{transform_indices = @transform_0, window_bounds = array<i64: 578, 256>}, {pipeline_mode = #tpu.pipeline_mode<synchronous>, transform_indices = @transform_1, window_bounds = array<i64: 256, 128>}, {pipeline_mode = #tpu.pipeline_mode<synchronous>, transform_indices = @transform_2, window_bounds = array<i64: 1, 128>}, {transform_indices = @transform_3, window_bounds = array<i64: 578, 128>}]} {
    %c0 = arith.constant 0 : index
    %c0_0 = arith.constant 0 : index
    %0 = vector.load %arg1[%c0, %c0_0] : memref<578x256xbf16, #tpu.memory_space<vmem>>, vector<578x256xbf16>
    %c0_1 = arith.constant 0 : index
    %c0_2 = arith.constant 0 : index
    %1 = vector.load %arg2[%c0_1, %c0_2] : memref<256x128xbf16, #tpu.memory_space<vmem>>, vector<256x128xbf16>
    %cst = arith.constant dense<0.000000e+00> : vector<578x128xf32>
    %2 = tpu.matmul %0, %1, %cst {dimension_numbers = #tpu.dot_dimension_numbers<[1], [0], [0], [1], [0, 0, 1, 1], [], []>} : vector<578x256xbf16>, vector<256x128xbf16>, vector<578x128xf32> -> vector<578x128xf32>
    %c0_3 = arith.constant 0 : index
    %c0_4 = arith.constant 0 : index
    %3 = vector.load %arg3[%c0_3, %c0_4] : memref<1x128xf32, #tpu.memory_space<vmem>>, vector<1x128xf32>
    %4 = vector.broadcast %3 : vector<1x128xf32> to vector<578x128xf32>
    %5 = arith.addf %2, %4 : vector<578x128xf32>
    %cst_5 = arith.constant 0.000000e+00 : f32
    %6 = vector.broadcast %cst_5 : f32 to vector<578x128xf32>
    %7 = arith.cmpf ogt, %5, %6 : vector<578x128xf32>
    %cst_6 = arith.constant 0.000000e+00 : f32
    %8 = vector.broadcast %cst_6 : f32 to vector<578x128xf32>
    %9 = arith.minimumf %5, %8 : vector<578x128xf32>
    %10 = math.exp %9 : vector<578x128xf32>
    %cst_7 = arith.constant 1.000000e+00 : f32
    %11 = vector.broadcast %cst_7 : f32 to vector<578x128xf32>
    %12 = arith.subf %10, %11 : vector<578x128xf32>
    %13 = arith.select %7, %5, %12 : vector<578x128xi1>, vector<578x128xf32>
    %c0_8 = arith.constant 0 : index
    %c0_9 = arith.constant 0 : index
    %14 = vector.load %arg4[%c0_8, %c0_9] : memref<578x128xf32, #tpu.memory_space<vmem>>, vector<578x128xf32>
    tpu.vector_store %arg4[%c0_8, %c0_9], %13 {strides = array<i32>} : memref<578x128xf32, #tpu.memory_space<vmem>>, vector<578x128xf32>,
    return
  }
  func.func @transform_0(%arg0: i32) -> (i32, i32) {
    %c0_i32 = arith.constant 0 : i32
    %c0_i32_0 = arith.constant 0 : i32
    return %arg0, %c0_i32 : i32, i32
  }
  func.func @transform_1(%arg0: i32) -> (i32, i32) {
    %c0_i32 = arith.constant 0 : i32
    %c0_i32_0 = arith.constant 0 : i32
    %c0_i32_1 = arith.constant 0 : i32
    return %c0_i32, %c0_i32_0 : i32, i32
  }
  func.func @transform_2(%arg0: i32) -> (i32, i32) {
    %c0_i32 = arith.constant 0 : i32
    %c0_i32_0 = arith.constant 0 : i32
    %c0_i32_1 = arith.constant 0 : i32
    return %c0_i32, %c0_i32_0 : i32, i32
  }
  func.func @transform_3(%arg0: i32) -> (i32, i32) {
    %c0_i32 = arith.constant 0 : i32
    %c0_i32_0 = arith.constant 0 : i32
    return %arg0, %c0_i32 : i32, i32
  }
}

module attributes {stable_mosaic.version = 11 : i64} {
  func.func @_head_blend_kernel(%arg0: i32, %arg1: i32, %arg2: memref<1x32x1024xf32, #tpu.memory_space<vmem>>, %arg3: memref<1x3x1024xf32, #tpu.memory_space<vmem>>, %arg4: memref<13x32xf32, #tpu.memory_space<vmem>>, %arg5: memref<13x1xf32, #tpu.memory_space<vmem>>, %arg6: memref<1x3x1024xf32, #tpu.memory_space<vmem>>, %arg7: memref<1x12x1024xf32, #tpu.memory_space<vmem>>, %arg8: memref<1x1x1024xf32, #tpu.memory_space<vmem>>) attributes {dimension_semantics = [#tpu.dimension_semantics<parallel>, #tpu.dimension_semantics<parallel>], iteration_bounds = array<i64: 2, 1>, scalar_prefetch = 0 : i64, scratch_operands = 0 : i64, tpu.core_type = #tpu.core_type<tc>, window_params = [{transform_indices = @transform_0, window_bounds = array<i64: 1, 32, 1024>}, {transform_indices = @transform_1, window_bounds = array<i64: 1, 3, 1024>}, {pipeline_mode = #tpu.pipeline_mode<synchronous>, transform_indices = @transform_2, window_bounds = array<i64: 13, 32>}, {pipeline_mode = #tpu.pipeline_mode<synchronous>, transform_indices = @transform_3, window_bounds = array<i64: 13, 1>}, {transform_indices = @transform_4, window_bounds = array<i64: 1, 3, 1024>}, {transform_indices = @transform_5, window_bounds = array<i64: 1, 12, 1024>}, {transform_indices = @transform_6, window_bounds = array<i64: 1, 1, 1024>}]} {
    %c0 = arith.constant 0 : index
    %c0_0 = arith.constant 0 : index
    %c0_1 = arith.constant 0 : index
    %0 = vector.load %arg2[%c0, %c0_0, %c0_1] : memref<1x32x1024xf32, #tpu.memory_space<vmem>>, vector<1x32x1024xf32>
    %1 = vector.shape_cast %0 : vector<1x32x1024xf32> to vector<32x1024xf32>
    %c0_2 = arith.constant 0 : index
    %c0_3 = arith.constant 0 : index
    %c0_4 = arith.constant 0 : index
    %2 = vector.load %arg3[%c0_2, %c0_3, %c0_4] : memref<1x3x1024xf32, #tpu.memory_space<vmem>>, vector<1x3x1024xf32>
    %3 = vector.shape_cast %2 : vector<1x3x1024xf32> to vector<3x1024xf32>
    %c0_5 = arith.constant 0 : index
    %c0_6 = arith.constant 0 : index
    %4 = vector.load %arg4[%c0_5, %c0_6] : memref<13x32xf32, #tpu.memory_space<vmem>>, vector<13x32xf32>
    %cst = arith.constant dense<0.000000e+00> : vector<13x1024xf32>
    %5 = tpu.matmul %4, %1, %cst {dimension_numbers = #tpu.dot_dimension_numbers<[1], [0], [0], [1], [0, 0, 1, 1], [], []>} : vector<13x32xf32>, vector<32x1024xf32>, vector<13x1024xf32> -> vector<13x1024xf32>
    %c0_7 = arith.constant 0 : index
    %c0_8 = arith.constant 0 : index
    %6 = vector.load %arg5[%c0_7, %c0_8] : memref<13x1xf32, #tpu.memory_space<vmem>>, vector<13x1xf32>
    %7 = vector.broadcast %6 : vector<13x1xf32> to vector<13x1024xf32>
    %8 = arith.addf %5, %7 : vector<13x1024xf32>
    %9 = vector.extract_strided_slice %8 {offsets = [0, 0], sizes = [12, 1024], strides = [1, 1]} : vector<13x1024xf32> to vector<12x1024xf32>
    %10 = vector.extract_strided_slice %8 {offsets = [12, 0], sizes = [1, 1024], strides = [1, 1]} : vector<13x1024xf32> to vector<1x1024xf32>
    %cst_9 = arith.constant -3.000000e+00 : f32
    %11 = vector.broadcast %cst_9 : f32 to vector<1x1024xf32>
    %12 = arith.mulf %11, %10 : vector<1x1024xf32>
    %13 = math.exp %12 : vector<1x1024xf32>
    %cst_10 = arith.constant 1.000000e+00 : f32
    %14 = vector.broadcast %cst_10 : f32 to vector<1x1024xf32>
    %15 = arith.addf %14, %13 : vector<1x1024xf32>
    %cst_11 = arith.constant 1.000000e+00 : f32
    %16 = vector.broadcast %cst_11 : f32 to vector<1x1024xf32>
    %17 = arith.divf %16, %15 : vector<1x1024xf32>
    %18 = vector.extract_strided_slice %3 {offsets = [0, 0], sizes = [1, 1024], strides = [1, 1]} : vector<3x1024xf32> to vector<1x1024xf32>
    %cst_12 = arith.constant 2.290000e-01 : f32
    %19 = vector.broadcast %cst_12 : f32 to vector<1x1024xf32>
    %20 = arith.mulf %18, %19 : vector<1x1024xf32>
    %cst_13 = arith.constant 4.850000e-01 : f32
    %21 = vector.broadcast %cst_13 : f32 to vector<1x1024xf32>
    %22 = arith.addf %20, %21 : vector<1x1024xf32>
    %23 = vector.extract_strided_slice %3 {offsets = [1, 0], sizes = [1, 1024], strides = [1, 1]} : vector<3x1024xf32> to vector<1x1024xf32>
    %cst_14 = arith.constant 2.240000e-01 : f32
    %24 = vector.broadcast %cst_14 : f32 to vector<1x1024xf32>
    %25 = arith.mulf %23, %24 : vector<1x1024xf32>
    %cst_15 = arith.constant 4.560000e-01 : f32
    %26 = vector.broadcast %cst_15 : f32 to vector<1x1024xf32>
    %27 = arith.addf %25, %26 : vector<1x1024xf32>
    %28 = vector.extract_strided_slice %3 {offsets = [2, 0], sizes = [1, 1024], strides = [1, 1]} : vector<3x1024xf32> to vector<1x1024xf32>
    %cst_16 = arith.constant 2.250000e-01 : f32
    %29 = vector.broadcast %cst_16 : f32 to vector<1x1024xf32>
    %30 = arith.mulf %28, %29 : vector<1x1024xf32>
    %cst_17 = arith.constant 4.060000e-01 : f32
    %31 = vector.broadcast %cst_17 : f32 to vector<1x1024xf32>
    %32 = arith.addf %30, %31 : vector<1x1024xf32>
    %33 = vector.extract_strided_slice %9 {offsets = [3, 0], sizes = [1, 1024], strides = [1, 1]} : vector<12x1024xf32> to vector<1x1024xf32>
    %34 = vector.extract_strided_slice %9 {offsets = [0, 0], sizes = [1, 1024], strides = [1, 1]} : vector<12x1024xf32> to vector<1x1024xf32>
    %35 = arith.mulf %34, %22 : vector<1x1024xf32>
    %36 = arith.addf %33, %35 : vector<1x1024xf32>
    %37 = vector.extract_strided_slice %9 {offsets = [1, 0], sizes = [1, 1024], strides = [1, 1]} : vector<12x1024xf32> to vector<1x1024xf32>
    %38 = arith.mulf %37, %27 : vector<1x1024xf32>
    %39 = arith.addf %36, %38 : vector<1x1024xf32>
    %40 = vector.extract_strided_slice %9 {offsets = [2, 0], sizes = [1, 1024], strides = [1, 1]} : vector<12x1024xf32> to vector<1x1024xf32>
    %41 = arith.mulf %40, %32 : vector<1x1024xf32>
    %42 = arith.addf %39, %41 : vector<1x1024xf32>
    %cst_18 = arith.constant 0.000000e+00 : f32
    %cst_19 = arith.constant 1.000000e+00 : f32
    %43 = vector.broadcast %cst_18 : f32 to vector<1x1024xf32>
    %44 = arith.maximumf %43, %42 : vector<1x1024xf32>
    %45 = vector.broadcast %cst_19 : f32 to vector<1x1024xf32>
    %46 = arith.minimumf %45, %44 : vector<1x1024xf32>
    %cst_20 = arith.constant 4.850000e-01 : f32
    %47 = vector.broadcast %cst_20 : f32 to vector<1x1024xf32>
    %48 = arith.subf %46, %47 : vector<1x1024xf32>
    %cst_21 = arith.constant 2.290000e-01 : f32
    %49 = vector.broadcast %cst_21 : f32 to vector<1x1024xf32>
    %50 = arith.divf %48, %49 : vector<1x1024xf32>
    %51 = vector.extract_strided_slice %9 {offsets = [7, 0], sizes = [1, 1024], strides = [1, 1]} : vector<12x1024xf32> to vector<1x1024xf32>
    %52 = vector.extract_strided_slice %9 {offsets = [4, 0], sizes = [1, 1024], strides = [1, 1]} : vector<12x1024xf32> to vector<1x1024xf32>
    %53 = arith.mulf %52, %22 : vector<1x1024xf32>
    %54 = arith.addf %51, %53 : vector<1x1024xf32>
    %55 = vector.extract_strided_slice %9 {offsets = [5, 0], sizes = [1, 1024], strides = [1, 1]} : vector<12x1024xf32> to vector<1x1024xf32>
    %56 = arith.mulf %55, %27 : vector<1x1024xf32>
    %57 = arith.addf %54, %56 : vector<1x1024xf32>
    %58 = vector.extract_strided_slice %9 {offsets = [6, 0], sizes = [1, 1024], strides = [1, 1]} : vector<12x1024xf32> to vector<1x1024xf32>
    %59 = arith.mulf %58, %32 : vector<1x1024xf32>
    %60 = arith.addf %57, %59 : vector<1x1024xf32>
    %cst_22 = arith.constant 0.000000e+00 : f32
    %cst_23 = arith.constant 1.000000e+00 : f32
    %61 = vector.broadcast %cst_22 : f32 to vector<1x1024xf32>
    %62 = arith.maximumf %61, %60 : vector<1x1024xf32>
    %63 = vector.broadcast %cst_23 : f32 to vector<1x1024xf32>
    %64 = arith.minimumf %63, %62 : vector<1x1024xf32>
    %cst_24 = arith.constant 4.560000e-01 : f32
    %65 = vector.broadcast %cst_24 : f32 to vector<1x1024xf32>
    %66 = arith.subf %64, %65 : vector<1x1024xf32>
    %cst_25 = arith.constant 2.240000e-01 : f32
    %67 = vector.broadcast %cst_25 : f32 to vector<1x1024xf32>
    %68 = arith.divf %66, %67 : vector<1x1024xf32>
    %69 = vector.extract_strided_slice %9 {offsets = [11, 0], sizes = [1, 1024], strides = [1, 1]} : vector<12x1024xf32> to vector<1x1024xf32>
    %70 = vector.extract_strided_slice %9 {offsets = [8, 0], sizes = [1, 1024], strides = [1, 1]} : vector<12x1024xf32> to vector<1x1024xf32>
    %71 = arith.mulf %70, %22 : vector<1x1024xf32>
    %72 = arith.addf %69, %71 : vector<1x1024xf32>
    %73 = vector.extract_strided_slice %9 {offsets = [9, 0], sizes = [1, 1024], strides = [1, 1]} : vector<12x1024xf32> to vector<1x1024xf32>
    %74 = arith.mulf %73, %27 : vector<1x1024xf32>
    %75 = arith.addf %72, %74 : vector<1x1024xf32>
    %76 = vector.extract_strided_slice %9 {offsets = [10, 0], sizes = [1, 1024], strides = [1, 1]} : vector<12x1024xf32> to vector<1x1024xf32>
    %77 = arith.mulf %76, %32 : vector<1x1024xf32>
    %78 = arith.addf %75, %77 : vector<1x1024xf32>
    %cst_26 = arith.constant 0.000000e+00 : f32
    %cst_27 = arith.constant 1.000000e+00 : f32
    %79 = vector.broadcast %cst_26 : f32 to vector<1x1024xf32>
    %80 = arith.maximumf %79, %78 : vector<1x1024xf32>
    %81 = vector.broadcast %cst_27 : f32 to vector<1x1024xf32>
    %82 = arith.minimumf %81, %80 : vector<1x1024xf32>
    %cst_28 = arith.constant 4.060000e-01 : f32
    %83 = vector.broadcast %cst_28 : f32 to vector<1x1024xf32>
    %84 = arith.subf %82, %83 : vector<1x1024xf32>
    %cst_29 = arith.constant 2.250000e-01 : f32
    %85 = vector.broadcast %cst_29 : f32 to vector<1x1024xf32>
    %86 = arith.divf %84, %85 : vector<1x1024xf32>
    %87 = tpu.concatenate %50, %68, %86 in 0 : vector<1x1024xf32>, vector<1x1024xf32>, vector<1x1024xf32> -> vector<3x1024xf32>
    %88 = vector.broadcast %17 : vector<1x1024xf32> to vector<3x1024xf32>
    %89 = arith.mulf %87, %88 : vector<3x1024xf32>
    %cst_30 = arith.constant 1.000000e+00 : f32
    %90 = vector.broadcast %cst_30 : f32 to vector<1x1024xf32>
    %91 = arith.subf %90, %17 : vector<1x1024xf32>
    %92 = vector.broadcast %91 : vector<1x1024xf32> to vector<3x1024xf32>
    %93 = arith.mulf %3, %92 : vector<3x1024xf32>
    %94 = arith.addf %89, %93 : vector<3x1024xf32>
    %c0_31 = arith.constant 0 : index
    %c0_32 = arith.constant 0 : index
    %c0_33 = arith.constant 0 : index
    %95 = vector.load %arg6[%c0_31, %c0_32, %c0_33] : memref<1x3x1024xf32, #tpu.memory_space<vmem>>, vector<1x3x1024xf32>
    %96 = vector.shape_cast %95 : vector<1x3x1024xf32> to vector<3x1024xf32>
    %97 = vector.shape_cast %94 : vector<3x1024xf32> to vector<1x3x1024xf32>
    tpu.vector_store %arg6[%c0_31, %c0_32, %c0_33], %97 {strides = array<i32>} : memref<1x3x1024xf32, #tpu.memory_space<vmem>>, vector<1x3x1024xf32>,
    %c0_34 = arith.constant 0 : index
    %c0_35 = arith.constant 0 : index
    %c0_36 = arith.constant 0 : index
    %98 = vector.load %arg7[%c0_34, %c0_35, %c0_36] : memref<1x12x1024xf32, #tpu.memory_space<vmem>>, vector<1x12x1024xf32>
    %99 = vector.shape_cast %98 : vector<1x12x1024xf32> to vector<12x1024xf32>
    %100 = vector.shape_cast %9 : vector<12x1024xf32> to vector<1x12x1024xf32>
    tpu.vector_store %arg7[%c0_34, %c0_35, %c0_36], %100 {strides = array<i32>} : memref<1x12x1024xf32, #tpu.memory_space<vmem>>, vector<1x12x1024xf32>,
    %c0_37 = arith.constant 0 : index
    %c0_38 = arith.constant 0 : index
    %c0_39 = arith.constant 0 : index
    %101 = vector.load %arg8[%c0_37, %c0_38, %c0_39] : memref<1x1x1024xf32, #tpu.memory_space<vmem>>, vector<1x1x1024xf32>
    %102 = vector.shape_cast %101 : vector<1x1x1024xf32> to vector<1x1024xf32>
    %103 = vector.shape_cast %17 : vector<1x1024xf32> to vector<1x1x1024xf32>
    tpu.vector_store %arg8[%c0_37, %c0_38, %c0_39], %103 {strides = array<i32>} : memref<1x1x1024xf32, #tpu.memory_space<vmem>>, vector<1x1x1024xf32>,
    return
  }
  func.func @transform_0(%arg0: i32, %arg1: i32) -> (i32, i32, i32) {
    %c0_i32 = arith.constant 0 : i32
    %c0_i32_0 = arith.constant 0 : i32
    return %arg0, %c0_i32, %arg1 : i32, i32, i32
  }
  func.func @transform_1(%arg0: i32, %arg1: i32) -> (i32, i32, i32) {
    %c0_i32 = arith.constant 0 : i32
    %c0_i32_0 = arith.constant 0 : i32
    return %arg0, %c0_i32, %arg1 : i32, i32, i32
  }
  func.func @transform_2(%arg0: i32, %arg1: i32) -> (i32, i32) {
    %c0_i32 = arith.constant 0 : i32
    %c0_i32_0 = arith.constant 0 : i32
    %c0_i32_1 = arith.constant 0 : i32
    return %c0_i32, %c0_i32_0 : i32, i32
  }
  func.func @transform_3(%arg0: i32, %arg1: i32) -> (i32, i32) {
    %c0_i32 = arith.constant 0 : i32
    %c0_i32_0 = arith.constant 0 : i32
    %c0_i32_1 = arith.constant 0 : i32
    return %c0_i32, %c0_i32_0 : i32, i32
  }
  func.func @transform_4(%arg0: i32, %arg1: i32) -> (i32, i32, i32) {
    %c0_i32 = arith.constant 0 : i32
    %c0_i32_0 = arith.constant 0 : i32
    return %arg0, %c0_i32, %arg1 : i32, i32, i32
  }
  func.func @transform_5(%arg0: i32, %arg1: i32) -> (i32, i32, i32) {
    %c0_i32 = arith.constant 0 : i32
    %c0_i32_0 = arith.constant 0 : i32
    return %arg0, %c0_i32, %arg1 : i32, i32, i32
  }
  func.func @transform_6(%arg0: i32, %arg1: i32) -> (i32, i32, i32) {
    %c0_i32 = arith.constant 0 : i32
    %c0_i32_0 = arith.constant 0 : i32
    return %arg0, %c0_i32, %arg1 : i32, i32, i32
  }
}

module attributes {stable_mosaic.version = 11 : i64} {
  func.func @_blend_kernel(%arg0: i32, %arg1: i32, %arg2: memref<1x3x4096xf32, #tpu.memory_space<vmem>>, %arg3: memref<1x12x4096xf32, #tpu.memory_space<vmem>>, %arg4: memref<1x1x4096xf32, #tpu.memory_space<vmem>>, %arg5: memref<1x3x4096xf32, #tpu.memory_space<vmem>>) attributes {dimension_semantics = [#tpu.dimension_semantics<parallel>, #tpu.dimension_semantics<parallel>], iteration_bounds = array<i64: 2, 1>, scalar_prefetch = 0 : i64, scratch_operands = 0 : i64, tpu.core_type = #tpu.core_type<tc>, window_params = [{transform_indices = @transform_0, window_bounds = array<i64: 1, 3, 4096>}, {transform_indices = @transform_1, window_bounds = array<i64: 1, 12, 4096>}, {transform_indices = @transform_2, window_bounds = array<i64: 1, 1, 4096>}, {transform_indices = @transform_3, window_bounds = array<i64: 1, 3, 4096>}]} {
    %c0 = arith.constant 0 : index
    %c0_0 = arith.constant 0 : index
    %c0_1 = arith.constant 0 : index
    %0 = vector.load %arg2[%c0, %c0_0, %c0_1] : memref<1x3x4096xf32, #tpu.memory_space<vmem>>, vector<1x3x4096xf32>
    %1 = vector.shape_cast %0 : vector<1x3x4096xf32> to vector<3x4096xf32>
    %c0_2 = arith.constant 0 : index
    %c0_3 = arith.constant 0 : index
    %c0_4 = arith.constant 0 : index
    %2 = vector.load %arg3[%c0_2, %c0_3, %c0_4] : memref<1x12x4096xf32, #tpu.memory_space<vmem>>, vector<1x12x4096xf32>
    %3 = vector.shape_cast %2 : vector<1x12x4096xf32> to vector<12x4096xf32>
    %c0_5 = arith.constant 0 : index
    %c0_6 = arith.constant 0 : index
    %c0_7 = arith.constant 0 : index
    %4 = vector.load %arg4[%c0_5, %c0_6, %c0_7] : memref<1x1x4096xf32, #tpu.memory_space<vmem>>, vector<1x1x4096xf32>
    %5 = vector.shape_cast %4 : vector<1x1x4096xf32> to vector<1x4096xf32>
    %6 = vector.extract_strided_slice %1 {offsets = [0, 0], sizes = [1, 4096], strides = [1, 1]} : vector<3x4096xf32> to vector<1x4096xf32>
    %cst = arith.constant 2.290000e-01 : f32
    %7 = vector.broadcast %cst : f32 to vector<1x4096xf32>
    %8 = arith.mulf %6, %7 : vector<1x4096xf32>
    %cst_8 = arith.constant 4.850000e-01 : f32
    %9 = vector.broadcast %cst_8 : f32 to vector<1x4096xf32>
    %10 = arith.addf %8, %9 : vector<1x4096xf32>
    %11 = vector.extract_strided_slice %1 {offsets = [1, 0], sizes = [1, 4096], strides = [1, 1]} : vector<3x4096xf32> to vector<1x4096xf32>
    %cst_9 = arith.constant 2.240000e-01 : f32
    %12 = vector.broadcast %cst_9 : f32 to vector<1x4096xf32>
    %13 = arith.mulf %11, %12 : vector<1x4096xf32>
    %cst_10 = arith.constant 4.560000e-01 : f32
    %14 = vector.broadcast %cst_10 : f32 to vector<1x4096xf32>
    %15 = arith.addf %13, %14 : vector<1x4096xf32>
    %16 = vector.extract_strided_slice %1 {offsets = [2, 0], sizes = [1, 4096], strides = [1, 1]} : vector<3x4096xf32> to vector<1x4096xf32>
    %cst_11 = arith.constant 2.250000e-01 : f32
    %17 = vector.broadcast %cst_11 : f32 to vector<1x4096xf32>
    %18 = arith.mulf %16, %17 : vector<1x4096xf32>
    %cst_12 = arith.constant 4.060000e-01 : f32
    %19 = vector.broadcast %cst_12 : f32 to vector<1x4096xf32>
    %20 = arith.addf %18, %19 : vector<1x4096xf32>
    %21 = vector.extract_strided_slice %3 {offsets = [3, 0], sizes = [1, 4096], strides = [1, 1]} : vector<12x4096xf32> to vector<1x4096xf32>
    %22 = vector.extract_strided_slice %3 {offsets = [0, 0], sizes = [1, 4096], strides = [1, 1]} : vector<12x4096xf32> to vector<1x4096xf32>
    %23 = arith.mulf %22, %10 : vector<1x4096xf32>
    %24 = arith.addf %21, %23 : vector<1x4096xf32>
    %25 = vector.extract_strided_slice %3 {offsets = [1, 0], sizes = [1, 4096], strides = [1, 1]} : vector<12x4096xf32> to vector<1x4096xf32>
    %26 = arith.mulf %25, %15 : vector<1x4096xf32>
    %27 = arith.addf %24, %26 : vector<1x4096xf32>
    %28 = vector.extract_strided_slice %3 {offsets = [2, 0], sizes = [1, 4096], strides = [1, 1]} : vector<12x4096xf32> to vector<1x4096xf32>
    %29 = arith.mulf %28, %20 : vector<1x4096xf32>
    %30 = arith.addf %27, %29 : vector<1x4096xf32>
    %cst_13 = arith.constant 0.000000e+00 : f32
    %cst_14 = arith.constant 1.000000e+00 : f32
    %31 = vector.broadcast %cst_13 : f32 to vector<1x4096xf32>
    %32 = arith.maximumf %31, %30 : vector<1x4096xf32>
    %33 = vector.broadcast %cst_14 : f32 to vector<1x4096xf32>
    %34 = arith.minimumf %33, %32 : vector<1x4096xf32>
    %cst_15 = arith.constant 4.850000e-01 : f32
    %35 = vector.broadcast %cst_15 : f32 to vector<1x4096xf32>
    %36 = arith.subf %34, %35 : vector<1x4096xf32>
    %cst_16 = arith.constant 2.290000e-01 : f32
    %37 = vector.broadcast %cst_16 : f32 to vector<1x4096xf32>
    %38 = arith.divf %36, %37 : vector<1x4096xf32>
    %39 = vector.extract_strided_slice %3 {offsets = [7, 0], sizes = [1, 4096], strides = [1, 1]} : vector<12x4096xf32> to vector<1x4096xf32>
    %40 = vector.extract_strided_slice %3 {offsets = [4, 0], sizes = [1, 4096], strides = [1, 1]} : vector<12x4096xf32> to vector<1x4096xf32>
    %41 = arith.mulf %40, %10 : vector<1x4096xf32>
    %42 = arith.addf %39, %41 : vector<1x4096xf32>
    %43 = vector.extract_strided_slice %3 {offsets = [5, 0], sizes = [1, 4096], strides = [1, 1]} : vector<12x4096xf32> to vector<1x4096xf32>
    %44 = arith.mulf %43, %15 : vector<1x4096xf32>
    %45 = arith.addf %42, %44 : vector<1x4096xf32>
    %46 = vector.extract_strided_slice %3 {offsets = [6, 0], sizes = [1, 4096], strides = [1, 1]} : vector<12x4096xf32> to vector<1x4096xf32>
    %47 = arith.mulf %46, %20 : vector<1x4096xf32>
    %48 = arith.addf %45, %47 : vector<1x4096xf32>
    %cst_17 = arith.constant 0.000000e+00 : f32
    %cst_18 = arith.constant 1.000000e+00 : f32
    %49 = vector.broadcast %cst_17 : f32 to vector<1x4096xf32>
    %50 = arith.maximumf %49, %48 : vector<1x4096xf32>
    %51 = vector.broadcast %cst_18 : f32 to vector<1x4096xf32>
    %52 = arith.minimumf %51, %50 : vector<1x4096xf32>
    %cst_19 = arith.constant 4.560000e-01 : f32
    %53 = vector.broadcast %cst_19 : f32 to vector<1x4096xf32>
    %54 = arith.subf %52, %53 : vector<1x4096xf32>
    %cst_20 = arith.constant 2.240000e-01 : f32
    %55 = vector.broadcast %cst_20 : f32 to vector<1x4096xf32>
    %56 = arith.divf %54, %55 : vector<1x4096xf32>
    %57 = vector.extract_strided_slice %3 {offsets = [11, 0], sizes = [1, 4096], strides = [1, 1]} : vector<12x4096xf32> to vector<1x4096xf32>
    %58 = vector.extract_strided_slice %3 {offsets = [8, 0], sizes = [1, 4096], strides = [1, 1]} : vector<12x4096xf32> to vector<1x4096xf32>
    %59 = arith.mulf %58, %10 : vector<1x4096xf32>
    %60 = arith.addf %57, %59 : vector<1x4096xf32>
    %61 = vector.extract_strided_slice %3 {offsets = [9, 0], sizes = [1, 4096], strides = [1, 1]} : vector<12x4096xf32> to vector<1x4096xf32>
    %62 = arith.mulf %61, %15 : vector<1x4096xf32>
    %63 = arith.addf %60, %62 : vector<1x4096xf32>
    %64 = vector.extract_strided_slice %3 {offsets = [10, 0], sizes = [1, 4096], strides = [1, 1]} : vector<12x4096xf32> to vector<1x4096xf32>
    %65 = arith.mulf %64, %20 : vector<1x4096xf32>
    %66 = arith.addf %63, %65 : vector<1x4096xf32>
    %cst_21 = arith.constant 0.000000e+00 : f32
    %cst_22 = arith.constant 1.000000e+00 : f32
    %67 = vector.broadcast %cst_21 : f32 to vector<1x4096xf32>
    %68 = arith.maximumf %67, %66 : vector<1x4096xf32>
    %69 = vector.broadcast %cst_22 : f32 to vector<1x4096xf32>
    %70 = arith.minimumf %69, %68 : vector<1x4096xf32>
    %cst_23 = arith.constant 4.060000e-01 : f32
    %71 = vector.broadcast %cst_23 : f32 to vector<1x4096xf32>
    %72 = arith.subf %70, %71 : vector<1x4096xf32>
    %cst_24 = arith.constant 2.250000e-01 : f32
    %73 = vector.broadcast %cst_24 : f32 to vector<1x4096xf32>
    %74 = arith.divf %72, %73 : vector<1x4096xf32>
    %75 = tpu.concatenate %38, %56, %74 in 0 : vector<1x4096xf32>, vector<1x4096xf32>, vector<1x4096xf32> -> vector<3x4096xf32>
    %76 = vector.broadcast %5 : vector<1x4096xf32> to vector<3x4096xf32>
    %77 = arith.mulf %75, %76 : vector<3x4096xf32>
    %cst_25 = arith.constant 1.000000e+00 : f32
    %78 = vector.broadcast %cst_25 : f32 to vector<1x4096xf32>
    %79 = arith.subf %78, %5 : vector<1x4096xf32>
    %80 = vector.broadcast %79 : vector<1x4096xf32> to vector<3x4096xf32>
    %81 = arith.mulf %1, %80 : vector<3x4096xf32>
    %82 = arith.addf %77, %81 : vector<3x4096xf32>
    %c0_26 = arith.constant 0 : index
    %c0_27 = arith.constant 0 : index
    %c0_28 = arith.constant 0 : index
    %83 = vector.load %arg5[%c0_26, %c0_27, %c0_28] : memref<1x3x4096xf32, #tpu.memory_space<vmem>>, vector<1x3x4096xf32>
    %84 = vector.shape_cast %83 : vector<1x3x4096xf32> to vector<3x4096xf32>
    %85 = vector.shape_cast %82 : vector<3x4096xf32> to vector<1x3x4096xf32>
    tpu.vector_store %arg5[%c0_26, %c0_27, %c0_28], %85 {strides = array<i32>} : memref<1x3x4096xf32, #tpu.memory_space<vmem>>, vector<1x3x4096xf32>,
    return
  }
  func.func @transform_0(%arg0: i32, %arg1: i32) -> (i32, i32, i32) {
    %c0_i32 = arith.constant 0 : i32
    %c0_i32_0 = arith.constant 0 : i32
    return %arg0, %c0_i32, %arg1 : i32, i32, i32
  }
  func.func @transform_1(%arg0: i32, %arg1: i32) -> (i32, i32, i32) {
    %c0_i32 = arith.constant 0 : i32
    %c0_i32_0 = arith.constant 0 : i32
    return %arg0, %c0_i32, %arg1 : i32, i32, i32
  }
  func.func @transform_2(%arg0: i32, %arg1: i32) -> (i32, i32, i32) {
    %c0_i32 = arith.constant 0 : i32
    %c0_i32_0 = arith.constant 0 : i32
    return %arg0, %c0_i32, %arg1 : i32, i32, i32
  }
  func.func @transform_3(%arg0: i32, %arg1: i32) -> (i32, i32, i32) {
    %c0_i32 = arith.constant 0 : i32
    %c0_i32_0 = arith.constant 0 : i32
    return %arg0, %c0_i32, %arg1 : i32, i32, i32
  }
}

</mosaic_0001>

<llo_original>
// kernel: pctnet_forward.10
$region0: #{pctnet_forward.10}
  #allocation0 [shape = 'u32[]', space=smem, size = 0x4, offset = 0x4, fixed_abs, tag = 'smem constant byte address 0x4 - core index']
  #allocation1 [shape = 'u32[144,128]{1,0:T(1,128)}', space=vmem, size = 0x12000, scoped, tag = 'internal scratch']
  %s0 = inlined_call_operand.vmem [shape: bf16[512,64], index: 0, kind: input, shape index: {}]
  %s1 = inlined_call_operand.vmem [shape: bf16[64,64], index: 1, kind: input, shape index: {}]
  %s2 = inlined_call_operand.vmem [shape: f32[1,64], index: 2, kind: input, shape index: {}]
  %s3 = inlined_call_operand.vmem [shape: f32[512,64], index: 3, kind: output, shape index: {}]
  %s4 = sld [smem:[#allocation0]]
  $region22: #{pctnet_forward.10} parent=0
    _
  %s6 = ssub.s32 1, %s4
  %s7 = scalar_select 0, %s6, %s4
  // Predicated region
  $region2: #{pctnet_forward.10} parent=0 // pred_check
    _
  $region3: #{pctnet_forward.10} parent=0 // pred_check_branch
    %9 = sbr.rel (0) target = $region5
  $region4: #{pctnet_forward.10} parent=0 // pred_region
    _
  $region5: #{pctnet_forward.10} parent=0 // pred_fallthru
    _
  // Predicated region
  $region6: #{pctnet_forward.10} parent=0 // pred_check
    _
  $region7: #{pctnet_forward.10} parent=0 // pred_check_branch
    %11 = sbr.rel (0) target = $region9
  $region8: #{pctnet_forward.10} parent=0 // pred_region
    _
  $region9: #{pctnet_forward.10} parent=0 // pred_fallthru
    _
  // Predicated region
  $region10: #{pctnet_forward.10} parent=0 // pred_check
    _
  $region11: #{pctnet_forward.10} parent=0 // pred_check_branch
    %13 = sbr.rel (0) target = $region13
  $region12: #{pctnet_forward.10} parent=0 // pred_region
    _
  $region13: #{pctnet_forward.10} parent=0 // pred_fallthru
    _
  %v15 = vld [vmem:[%s0] sm:$0xf]
  %v16 = vld [vmem:[%s0 + $0x4] sm:$0xf]
  %v17 = vld [vmem:[%s0 + $0x8] sm:$0xf]
  %v18 = vld [vmem:[%s0 + $0xc] sm:$0xf]
  %v19 = vld [vmem:[%s0 + $0x10] sm:$0xf]
  %v20 = vld [vmem:[%s0 + $0x14] sm:$0xf]
  %v21 = vld [vmem:[%s0 + $0x18] sm:$0xf]
  %v22 = vld [vmem:[%s0 + $0x1c] sm:$0xf]
  %v23 = vld [vmem:[%s0 + $0x20] sm:$0xf]
  %v24 = vld [vmem:[%s0 + $0x24] sm:$0xf]
  %v25 = vld [vmem:[%s0 + $0x28] sm:$0xf]
  %v26 = vld [vmem:[%s0 + $0x2c] sm:$0xf]
  %v27 = vld [vmem:[%s0 + $0x30] sm:$0xf]
  %v28 = vld [vmem:[%s0 + $0x34] sm:$0xf]
  %v29 = vld [vmem:[%s0 + $0x38] sm:$0xf]
  %v30 = vld [vmem:[%s0 + $0x3c] sm:$0xf]
  %v31 = vld [vmem:[%s0 + $0x40] sm:$0xf]
  %v32 = vld [vmem:[%s0 + $0x44] sm:$0xf]
  %v33 = vld [vmem:[%s0 + $0x48] sm:$0xf]
  %v34 = vld [vmem:[%s0 + $0x4c] sm:$0xf]
  %v35 = vld [vmem:[%s0 + $0x50] sm:$0xf]
  %v36 = vld [vmem:[%s0 + $0x54] sm:$0xf]
  %v37 = vld [vmem:[%s0 + $0x58] sm:$0xf]
  %v38 = vld [vmem:[%s0 + $0x5c] sm:$0xf]
  %v39 = vld [vmem:[%s0 + $0x60] sm:$0xf]
  %v40 = vld [vmem:[%s0 + $0x64] sm:$0xf]
  %v41 = vld [vmem:[%s0 + $0x68] sm:$0xf]
  %v42 = vld [vmem:[%s0 + $0x6c] sm:$0xf]
  %v43 = vld [vmem:[%s0 + $0x70] sm:$0xf]
  %v44 = vld [vmem:[%s0 + $0x74] sm:$0xf]
  %v45 = vld [vmem:[%s0 + $0x78] sm:$0xf]
  %v46 = vld [vmem:[%s0 + $0x7c] sm:$0xf]
  %v47 = vld [vmem:[%s0 + $0x80] sm:$0xf]
  %v48 = vld [vmem:[%s0 + $0x84] sm:$0xf]
  %v49 = vld [vmem:[%s0 + $0x88] sm:$0xf]
  %v50 = vld [vmem:[%s0 + $0x8c] sm:$0xf]
  %v51 = vld [vmem:[%s0 + $0x90] sm:$0xf]
  %v52 = vld [vmem:[%s0 + $0x94] sm:$0xf]
  %v53 = vld [vmem:[%s0 + $0x98] sm:$0xf]
  %v54 = vld [vmem:[%s0 + $0x9c] sm:$0xf]
  %v55 = vld [vmem:[%s0 + $0xa0] sm:$0xf]
  %v56 = vld [vmem:[%s0 + $0xa4] sm:$0xf]
  %v57 = vld [vmem:[%s0 + $0xa8] sm:$0xf]
  %v58 = vld [vmem:[%s0 + $0xac] sm:$0xf]
  %v59 = vld [vmem:[%s0 + $0xb0] sm:$0xf]
  %v60 = vld [vmem:[%s0 + $0xb4] sm:$0xf]
  %v61 = vld [vmem:[%s0 + $0xb8] sm:$0xf]
  %v62 = vld [vmem:[%s0 + $0xbc] sm:$0xf]
  %v63 = vld [vmem:[%s0 + $0xc0] sm:$0xf]
  %v64 = vld [vmem:[%s0 + $0xc4] sm:$0xf]
  %v65 = vld [vmem:[%s0 + $0xc8] sm:$0xf]
  %v66 = vld [vmem:[%s0 + $0xcc] sm:$0xf]
  %v67 = vld [vmem:[%s0 + $0xd0] sm:$0xf]
  %v68 = vld [vmem:[%s0 + $0xd4] sm:$0xf]
  %v69 = vld [vmem:[%s0 + $0xd8] sm:$0xf]
  %v70 = vld [vmem:[%s0 + $0xdc] sm:$0xf]
  %v71 = vld [vmem:[%s0 + $0xe0] sm:$0xf]
  %v72 = vld [vmem:[%s0 + $0xe4] sm:$0xf]
  %v73 = vld [vmem:[%s0 + $0xe8] sm:$0xf]
  %v74 = vld [vmem:[%s0 + $0xec] sm:$0xf]
  %v75 = vld [vmem:[%s0 + $0xf0] sm:$0xf]
  %v76 = vld [vmem:[%s0 + $0xf4] sm:$0xf]
  %v77 = vld [vmem:[%s0 + $0xf8] sm:$0xf]
  %v78 = vld [vmem:[%s0 + $0xfc] sm:$0xf]
  %v79 = vld [vmem:[%s1] sm:$0xf]
  %v80 = vld [vmem:[%s1 + $0x4] sm:$0xf]
  %v81 = vld [vmem:[%s1 + $0x8] sm:$0xf]
  %v82 = vld [vmem:[%s1 + $0xc] sm:$0xf]
  %v83 = vld [vmem:[%s1 + $0x10] sm:$0xf]
  %v84 = vld [vmem:[%s1 + $0x14] sm:$0xf]
  %v85 = vld [vmem:[%s1 + $0x18] sm:$0xf]
  %v86 = vld [vmem:[%s1 + $0x1c] sm:$0xf]
  %v87 = vld [vmem:[%s2] sm:$0x1]
  %v89 = vlaneseq
  %v90 = vshrl.u32 %v89, 7
  %v91 = vsub.s32 0, %v90
  %v92 = vrot.slane %v87, %v91
  %v158 = vunpack.c.l.b16 %v15
  %v159 = vunpack.c.l.b16 %v16
  %v160 = vunpack.c.l.b16 %v17
  %v161 = vunpack.c.l.b16 %v18
  %v162 = vunpack.c.l.b16 %v19
  %v163 = vunpack.c.l.b16 %v20
  %v164 = vunpack.c.l.b16 %v21
  %v165 = vunpack.c.l.b16 %v22
  %v166 = vunpack.c.l.b16 %v23
  %v167 = vunpack.c.l.b16 %v24
  %v168 = vunpack.c.l.b16 %v25
  %v169 = vunpack.c.l.b16 %v26
  %v170 = vunpack.c.l.b16 %v27
  %v171 = vunpack.c.l.b16 %v28
  %v172 = vunpack.c.l.b16 %v29
  %v173 = vunpack.c.l.b16 %v30
  %v174 = vunpack.c.l.b16 %v31
  %v175 = vunpack.c.l.b16 %v32
  %v176 = vunpack.c.l.b16 %v33
  %v177 = vunpack.c.l.b16 %v34
  %v178 = vunpack.c.l.b16 %v35
  %v179 = vunpack.c.l.b16 %v36
  %v180 = vunpack.c.l.b16 %v37
  %v181 = vunpack.c.l.b16 %v38
  %v182 = vunpack.c.l.b16 %v39
  %v183 = vunpack.c.l.b16 %v40
  %v184 = vunpack.c.l.b16 %v41
  %v185 = vunpack.c.l.b16 %v42
  %v186 = vunpack.c.l.b16 %v43
  %v187 = vunpack.c.l.b16 %v44
  %v188 = vunpack.c.l.b16 %v45
  %v189 = vunpack.c.l.b16 %v46
  %v190 = vunpack.c.l.b16 %v47
  %v191 = vunpack.c.l.b16 %v48
  %v192 = vunpack.c.l.b16 %v49
  %v193 = vunpack.c.l.b16 %v50
  %v194 = vunpack.c.l.b16 %v51
  %v195 = vunpack.c.l.b16 %v52
  %v196 = vunpack.c.l.b16 %v53
  %v197 = vunpack.c.l.b16 %v54
  %v198 = vunpack.c.l.b16 %v55
  %v199 = vunpack.c.l.b16 %v56
  %v200 = vunpack.c.l.b16 %v57
  %v201 = vunpack.c.l.b16 %v58
  %v202 = vunpack.c.l.b16 %v59
  %v203 = vunpack.c.l.b16 %v60
  %v204 = vunpack.c.l.b16 %v61
  %v205 = vunpack.c.l.b16 %v62
  %v206 = vunpack.c.l.b16 %v63
  %v207 = vunpack.c.l.b16 %v64
  %v208 = vunpack.c.l.b16 %v65
  %v209 = vunpack.c.l.b16 %v66
  %v210 = vunpack.c.l.b16 %v67
  %v211 = vunpack.c.l.b16 %v68
  %v212 = vunpack.c.l.b16 %v69
  %v213 = vunpack.c.l.b16 %v70
  %v214 = vunpack.c.l.b16 %v71
  %v215 = vunpack.c.l.b16 %v72
  %v216 = vunpack.c.l.b16 %v73
  %v217 = vunpack.c.l.b16 %v74
  %v218 = vunpack.c.l.b16 %v75
  %v219 = vunpack.c.l.b16 %v76
  %v220 = vunpack.c.l.b16 %v77
  %v221 = vunpack.c.l.b16 %v78
  %v222 = vpack.c.b16 %v159, %v158
  %v223 = vpack.c.b16 %v161, %v160
  %v224 = vpack.c.b16 %v163, %v162
  %v225 = vpack.c.b16 %v165, %v164
  %v226 = vpack.c.b16 %v167, %v166
  %v227 = vpack.c.b16 %v169, %v168
  %v228 = vpack.c.b16 %v171, %v170
  %v229 = vpack.c.b16 %v173, %v172
  %v230 = vpack.c.b16 %v175, %v174
  %v231 = vpack.c.b16 %v177, %v176
  %v232 = vpack.c.b16 %v179, %v178
  %v233 = vpack.c.b16 %v181, %v180
  %v234 = vpack.c.b16 %v183, %v182
  %v235 = vpack.c.b16 %v185, %v184
  %v236 = vpack.c.b16 %v187, %v186
  %v237 = vpack.c.b16 %v189, %v188
  %v238 = vpack.c.b16 %v191, %v190
  %v239 = vpack.c.b16 %v193, %v192
  %v240 = vpack.c.b16 %v195, %v194
  %v241 = vpack.c.b16 %v197, %v196
  %v242 = vpack.c.b16 %v199, %v198
  %v243 = vpack.c.b16 %v201, %v200
  %v244 = vpack.c.b16 %v203, %v202
  %v245 = vpack.c.b16 %v205, %v204
  %v246 = vpack.c.b16 %v207, %v206
  %v247 = vpack.c.b16 %v209, %v208
  %v248 = vpack.c.b16 %v211, %v210
  %v249 = vpack.c.b16 %v213, %v212
  %v250 = vpack.c.b16 %v215, %v214
  %v251 = vpack.c.b16 %v217, %v216
  %v252 = vpack.c.b16 %v219, %v218
  %v253 = vpack.c.b16 %v221, %v220
  %v262 = vunpack.c.l.b16 %v79
  %v263 = vunpack.c.l.b16 %v80
  %v264 = vunpack.c.l.b16 %v81
  %v265 = vunpack.c.l.b16 %v82
  %v266 = vunpack.c.l.b16 %v83
  %v267 = vunpack.c.l.b16 %v84
  %v268 = vunpack.c.l.b16 %v85
  %v269 = vunpack.c.l.b16 %v86
  %v270 = vpack.c.b16 %v263, %v262
  %v271 = vpack.c.b16 %v265, %v264
  %v272 = vpack.c.b16 %v267, %v266
  %v273 = vpack.c.b16 %v269, %v268
  %vm278 = vcmask 523264
  %v280 = vsel %vm278, %v222, 0
  %v283 = vsel %vm278, %v223, 0
  %v286 = vsel %vm278, %v224, 0
  %v289 = vsel %vm278, %v225, 0
  %v292 = vsel %vm278, %v226, 0
  %v295 = vsel %vm278, %v227, 0
  %v298 = vsel %vm278, %v228, 0
  %v301 = vsel %vm278, %v229, 0
  %v304 = vsel %vm278, %v230, 0
  %v307 = vsel %vm278, %v231, 0
  %v310 = vsel %vm278, %v232, 0
  %v313 = vsel %vm278, %v233, 0
  %v316 = vsel %vm278, %v234, 0
  %v319 = vsel %vm278, %v235, 0
  %v322 = vsel %vm278, %v236, 0
  %v325 = vsel %vm278, %v237, 0
  %v328 = vsel %vm278, %v238, 0
  %v331 = vsel %vm278, %v239, 0
  %v334 = vsel %vm278, %v240, 0
  %v337 = vsel %vm278, %v241, 0
  %v340 = vsel %vm278, %v242, 0
  %v343 = vsel %vm278, %v243, 0
  %v346 = vsel %vm278, %v244, 0
  %v349 = vsel %vm278, %v245, 0
  %v352 = vsel %vm278, %v246, 0
  %v355 = vsel %vm278, %v247, 0
  %v358 = vsel %vm278, %v248, 0
  %v361 = vsel %vm278, %v249, 0
  %v364 = vsel %vm278, %v250, 0
  %v367 = vsel %vm278, %v251, 0
  %v370 = vsel %vm278, %v252, 0
  %v373 = vsel %vm278, %v253, 0
  %375 = vmatprep.subr.bf16.mxu0 0
  %376 = vmatpush1.bf16.msra.mxu0 %v270
  %377 = vmatprep.subr.bf16.mxu0 0
  %378 = vmatpush1.bf16.msra.mxu0 %v271
  %379 = vmatprep.subr.bf16.mxu0 0
  %380 = vmatpush1.bf16.msra.mxu0 %v272
  %381 = vmatprep.subr.bf16.mxu0 0
  %382 = vmatpush1.bf16.msra.mxu0 %v273
  %383 = vmatprep.subr.bf16.mxu0 0
  %384 = vmatpush1.bf16.msra.mxu0 0
  %385 = vmatprep.subr.bf16.mxu0 0
  %386 = vmatpush1.bf16.msra.mxu0 0
  %387 = vmatprep.subr.bf16.mxu0 0
  %388 = vmatpush1.bf16.msra.mxu0 0
  %389 = vmatprep.subr.bf16.mxu0 0
  %390 = vmatpush1.bf16.msra.mxu0 0
  %391 = vmatprep.subr.bf16.mxu0 0
  %392 = vmatpush1.bf16.msra.mxu0 0
  %393 = vmatprep.subr.bf16.mxu0 0
  %394 = vmatpush1.bf16.msra.mxu0 0
  %395 = vmatprep.subr.bf16.mxu0 0
  %396 = vmatpush1.bf16.msra.mxu0 0
  %397 = vmatprep.subr.bf16.mxu0 0
  %398 = vmatpush1.bf16.msra.mxu0 0
  %399 = vmatprep.subr.bf16.mxu0 0
  %400 = vmatpush1.bf16.msra.mxu0 0
  %401 = vmatprep.subr.bf16.mxu0 0
  %402 = vmatpush1.bf16.msra.mxu0 0
  %403 = vmatprep.subr.bf16.mxu0 0
  %404 = vmatpush1.bf16.msra.mxu0 0
  %405 = vmatprep.subr.bf16.mxu0 0
  %406 = vmatpush1.bf16.msra.mxu0 0
  %407 = vmatprep.mubr.bf16.mxu0 0
  %408 = vmatmul.mubr.bf16.gmra.mrb[0].mxu0 %v280
  %v409 = vpop.f32.mrb[0].mxu0
  %v410 = vadd.f32 %v92, %v409
  %v411 = vpop.f32.mrb[0].mxu0
  %v412 = vpop.f32.mrb[0].mxu0
  %v413 = vadd.f32 %v92, %v412
  %v414 = vpop.f32.mrb[0].mxu0
  %415 = vmatprep.mubr.bf16.mxu0 0
  %416 = vmatmul.mubr.bf16.gmra.mrb[0].mxu0 %v283
  %v417 = vpop.f32.mrb[0].mxu0
  %v418 = vadd.f32 %v92, %v417
  %v419 = vpop.f32.mrb[0].mxu0
  %v420 = vpop.f32.mrb[0].mxu0
  %v421 = vadd.f32 %v92, %v420
  %v422 = vpop.f32.mrb[0].mxu0
  %423 = vmatprep.mubr.bf16.mxu0 0
  %424 = vmatmul.mubr.bf16.gmra.mrb[0].mxu0 %v286
  %v425 = vpop.f32.mrb[0].mxu0
  %v426 = vadd.f32 %v92, %v425
  %v427 = vpop.f32.mrb[0].mxu0
  %v428 = vpop.f32.mrb[0].mxu0
  %v429 = vadd.f32 %v92, %v428
  %v430 = vpop.f32.mrb[0].mxu0
  %431 = vmatprep.mubr.bf16.mxu0 0
  %432 = vmatmul.mubr.bf16.gmra.mrb[0].mxu0 %v289
  %v433 = vpop.f32.mrb[0].mxu0
  %v434 = vadd.f32 %v92, %v433
  %v435 = vpop.f32.mrb[0].mxu0
  %v436 = vpop.f32.mrb[0].mxu0
  %v437 = vadd.f32 %v92, %v436
  %v438 = vpop.f32.mrb[0].mxu0
  %439 = vmatprep.mubr.bf16.mxu0 0
  %440 = vmatmul.mubr.bf16.gmra.mrb[0].mxu0 %v292
  %v441 = vpop.f32.mrb[0].mxu0
  %v442 = vadd.f32 %v92, %v441
  %v443 = vpop.f32.mrb[0].mxu0
  %v444 = vpop.f32.mrb[0].mxu0
  %v445 = vadd.f32 %v92, %v444
  %v446 = vpop.f32.mrb[0].mxu0
  %447 = vmatprep.mubr.bf16.mxu0 0
  %448 = vmatmul.mubr.bf16.gmra.mrb[0].mxu0 %v295
  %v449 = vpop.f32.mrb[0].mxu0
  %v450 = vadd.f32 %v92, %v449
  %v451 = vpop.f32.mrb[0].mxu0
  %v452 = vpop.f32.mrb[0].mxu0
  %v453 = vadd.f32 %v92, %v452
  %v454 = vpop.f32.mrb[0].mxu0
  %455 = vmatprep.mubr.bf16.mxu0 0
  %456 = vmatmul.mubr.bf16.gmra.mrb[0].mxu0 %v298
  %v457 = vpop.f32.mrb[0].mxu0
  %v458 = vadd.f32 %v92, %v457
  %v459 = vpop.f32.mrb[0].mxu0
  %v460 = vpop.f32.mrb[0].mxu0
  %v461 = vadd.f32 %v92, %v460
  %v462 = vpop.f32.mrb[0].mxu0
  %463 = vmatprep.mubr.bf16.mxu0 0
  %464 = vmatmul.mubr.bf16.gmra.mrb[0].mxu0 %v301
  %v465 = vpop.f32.mrb[0].mxu0
  %v466 = vadd.f32 %v92, %v465
  %v467 = vpop.f32.mrb[0].mxu0
  %v468 = vpop.f32.mrb[0].mxu0
  %v469 = vadd.f32 %v92, %v468
  %v470 = vpop.f32.mrb[0].mxu0
  %471 = vmatprep.mubr.bf16.mxu0 0
  %472 = vmatmul.mubr.bf16.gmra.mrb[0].mxu0 %v304
  %v473 = vpop.f32.mrb[0].mxu0
  %v474 = vadd.f32 %v92, %v473
  %v475 = vpop.f32.mrb[0].mxu0
  %v476 = vpop.f32.mrb[0].mxu0
  %v477 = vadd.f32 %v92, %v476
  %v478 = vpop.f32.mrb[0].mxu0
  %479 = vmatprep.mubr.bf16.mxu0 0
  %480 = vmatmul.mubr.bf16.gmra.mrb[0].mxu0 %v307
  %v481 = vpop.f32.mrb[0].mxu0
  %v482 = vadd.f32 %v92, %v481
  %v483 = vpop.f32.mrb[0].mxu0
  %v484 = vpop.f32.mrb[0].mxu0
  %v485 = vadd.f32 %v92, %v484
  %v486 = vpop.f32.mrb[0].mxu0
  %487 = vmatprep.mubr.bf16.mxu0 0
  %488 = vmatmul.mubr.bf16.gmra.mrb[0].mxu0 %v310
  %v489 = vpop.f32.mrb[0].mxu0
  %v490 = vadd.f32 %v92, %v489
  %v491 = vpop.f32.mrb[0].mxu0
  %v492 = vpop.f32.mrb[0].mxu0
  %v493 = vadd.f32 %v92, %v492
  %v494 = vpop.f32.mrb[0].mxu0
  %495 = vmatprep.mubr.bf16.mxu0 0
  %496 = vmatmul.mubr.bf16.gmra.mrb[0].mxu0 %v313
  %v497 = vpop.f32.mrb[0].mxu0
  %v498 = vadd.f32 %v92, %v497
  %v499 = vpop.f32.mrb[0].mxu0
  %v500 = vpop.f32.mrb[0].mxu0
  %v501 = vadd.f32 %v92, %v500
  %v502 = vpop.f32.mrb[0].mxu0
  %503 = vmatprep.mubr.bf16.mxu0 0
  %504 = vmatmul.mubr.bf16.gmra.mrb[0].mxu0 %v316
  %v505 = vpop.f32.mrb[0].mxu0
  %v506 = vadd.f32 %v92, %v505
  %v507 = vpop.f32.mrb[0].mxu0
  %v508 = vpop.f32.mrb[0].mxu0
  %v509 = vadd.f32 %v92, %v508
  %v510 = vpop.f32.mrb[0].mxu0
  %511 = vmatprep.mubr.bf16.mxu0 0
  %512 = vmatmul.mubr.bf16.gmra.mrb[0].mxu0 %v319
  %v513 = vpop.f32.mrb[0].mxu0
  %v514 = vadd.f32 %v92, %v513
  %v515 = vpop.f32.mrb[0].mxu0
  %v516 = vpop.f32.mrb[0].mxu0
  %v517 = vadd.f32 %v92, %v516
  %v518 = vpop.f32.mrb[0].mxu0
  %519 = vmatprep.mubr.bf16.mxu0 0
  %520 = vmatmul.mubr.bf16.gmra.mrb[0].mxu0 %v322
  %v521 = vpop.f32.mrb[0].mxu0
  %v522 = vadd.f32 %v92, %v521
  %v523 = vpop.f32.mrb[0].mxu0
  %v524 = vpop.f32.mrb[0].mxu0
  %v525 = vadd.f32 %v92, %v524
  %v526 = vpop.f32.mrb[0].mxu0
  %527 = vmatprep.mubr.bf16.mxu0 0
  %528 = vmatmul.mubr.bf16.gmra.mrb[0].mxu0 %v325
  %v529 = vpop.f32.mrb[0].mxu0
  %v530 = vadd.f32 %v92, %v529
  %v531 = vpop.f32.mrb[0].mxu0
  %v532 = vpop.f32.mrb[0].mxu0
  %v533 = vadd.f32 %v92, %v532
  %v534 = vpop.f32.mrb[0].mxu0
  %535 = vmatprep.mubr.bf16.mxu0 0
  %536 = vmatmul.mubr.bf16.gmra.mrb[0].mxu0 %v328
  %v537 = vpop.f32.mrb[0].mxu0
  %v538 = vadd.f32 %v92, %v537
  %v539 = vpop.f32.mrb[0].mxu0
  %v540 = vpop.f32.mrb[0].mxu0
  %v541 = vadd.f32 %v92, %v540
  %v542 = vpop.f32.mrb[0].mxu0
  %543 = vmatprep.mubr.bf16.mxu0 0
  %544 = vmatmul.mubr.bf16.gmra.mrb[0].mxu0 %v331
  %v545 = vpop.f32.mrb[0].mxu0
  %v546 = vadd.f32 %v92, %v545
  %v547 = vpop.f32.mrb[0].mxu0
  %v548 = vpop.f32.mrb[0].mxu0
  %v549 = vadd.f32 %v92, %v548
  %v550 = vpop.f32.mrb[0].mxu0
  %551 = vmatprep.mubr.bf16.mxu0 0
  %552 = vmatmul.mubr.bf16.gmra.mrb[0].mxu0 %v334
  %v553 = vpop.f32.mrb[0].mxu0
  %v554 = vadd.f32 %v92, %v553
  %v555 = vpop.f32.mrb[0].mxu0
  %v556 = vpop.f32.mrb[0].mxu0
  %v557 = vadd.f32 %v92, %v556
  %v558 = vpop.f32.mrb[0].mxu0
  %559 = vmatprep.mubr.bf16.mxu0 0
  %560 = vmatmul.mubr.bf16.gmra.mrb[0].mxu0 %v337
  %v561 = vpop.f32.mrb[0].mxu0
  %v562 = vadd.f32 %v92, %v561
  %v563 = vpop.f32.mrb[0].mxu0
  %v564 = vpop.f32.mrb[0].mxu0
  %v565 = vadd.f32 %v92, %v564
  %v566 = vpop.f32.mrb[0].mxu0
  %567 = vmatprep.mubr.bf16.mxu0 0
  %568 = vmatmul.mubr.bf16.gmra.mrb[0].mxu0 %v340
  %v569 = vpop.f32.mrb[0].mxu0
  %v570 = vadd.f32 %v92, %v569
  %v571 = vpop.f32.mrb[0].mxu0
  %v572 = vpop.f32.mrb[0].mxu0
  %v573 = vadd.f32 %v92, %v572
  %v574 = vpop.f32.mrb[0].mxu0
  %575 = vmatprep.mubr.bf16.mxu0 0
  %576 = vmatmul.mubr.bf16.gmra.mrb[0].mxu0 %v343
  %v577 = vpop.f32.mrb[0].mxu0
  %v578 = vadd.f32 %v92, %v577
  %v579 = vpop.f32.mrb[0].mxu0
  %v580 = vpop.f32.mrb[0].mxu0
  %v581 = vadd.f32 %v92, %v580
  %v582 = vpop.f32.mrb[0].mxu0
  %583 = vmatprep.mubr.bf16.mxu0 0
  %584 = vmatmul.mubr.bf16.gmra.mrb[0].mxu0 %v346
  %v585 = vpop.f32.mrb[0].mxu0
  %v586 = vadd.f32 %v92, %v585
  %v587 = vpop.f32.mrb[0].mxu0
  %v588 = vpop.f32.mrb[0].mxu0
  %v589 = vadd.f32 %v92, %v588
  %v590 = vpop.f32.mrb[0].mxu0
  %591 = vmatprep.mubr.bf16.mxu0 0
  %592 = vmatmul.mubr.bf16.gmra.mrb[0].mxu0 %v349
  %v593 = vpop.f32.mrb[0].mxu0
  %v594 = vadd.f32 %v92, %v593
  %v595 = vpop.f32.mrb[0].mxu0
  %v596 = vpop.f32.mrb[0].mxu0
  %v597 = vadd.f32 %v92, %v596
  %v598 = vpop.f32.mrb[0].mxu0
  %599 = vmatprep.mubr.bf16.mxu0 0
  %600 = vmatmul.mubr.bf16.gmra.mrb[0].mxu0 %v352
  %v601 = vpop.f32.mrb[0].mxu0
  %v602 = vadd.f32 %v92, %v601
  %v603 = vpop.f32.mrb[0].mxu0
  %v604 = vpop.f32.mrb[0].mxu0
  %v605 = vadd.f32 %v92, %v604
  %v606 = vpop.f32.mrb[0].mxu0
  %607 = vmatprep.mubr.bf16.mxu0 0
  %608 = vmatmul.mubr.bf16.gmra.mrb[0].mxu0 %v355
  %v609 = vpop.f32.mrb[0].mxu0
  %v610 = vadd.f32 %v92, %v609
  %v611 = vpop.f32.mrb[0].mxu0
  %v612 = vpop.f32.mrb[0].mxu0
  %v613 = vadd.f32 %v92, %v612
  %v614 = vpop.f32.mrb[0].mxu0
  %615 = vmatprep.mubr.bf16.mxu0 0
  %616 = vmatmul.mubr.bf16.gmra.mrb[0].mxu0 %v358
  %v617 = vpop.f32.mrb[0].mxu0
  %v618 = vadd.f32 %v92, %v617
  %v619 = vpop.f32.mrb[0].mxu0
  %v620 = vpop.f32.mrb[0].mxu0
  %v621 = vadd.f32 %v92, %v620
  %v622 = vpop.f32.mrb[0].mxu0
  %623 = vmatprep.mubr.bf16.mxu0 0
  %624 = vmatmul.mubr.bf16.gmra.mrb[0].mxu0 %v361
  %v625 = vpop.f32.mrb[0].mxu0
  %v626 = vadd.f32 %v92, %v625
  %v627 = vpop.f32.mrb[0].mxu0
  %v628 = vpop.f32.mrb[0].mxu0
  %v629 = vadd.f32 %v92, %v628
  %v630 = vpop.f32.mrb[0].mxu0
  %631 = vmatprep.mubr.bf16.mxu0 0
  %632 = vmatmul.mubr.bf16.gmra.mrb[0].mxu0 %v364
  %v633 = vpop.f32.mrb[0].mxu0
  %v634 = vadd.f32 %v92, %v633
  %v635 = vpop.f32.mrb[0].mxu0
  %v636 = vpop.f32.mrb[0].mxu0
  %v637 = vadd.f32 %v92, %v636
  %v638 = vpop.f32.mrb[0].mxu0
  %639 = vmatprep.mubr.bf16.mxu0 0
  %640 = vmatmul.mubr.bf16.gmra.mrb[0].mxu0 %v367
  %v641 = vpop.f32.mrb[0].mxu0
  %v642 = vadd.f32 %v92, %v641
  %v643 = vpop.f32.mrb[0].mxu0
  %v644 = vpop.f32.mrb[0].mxu0
  %v645 = vadd.f32 %v92, %v644
  %v646 = vpop.f32.mrb[0].mxu0
  %647 = vmatprep.mubr.bf16.mxu0 0
  %648 = vmatmul.mubr.bf16.gmra.mrb[0].mxu0 %v370
  %v649 = vpop.f32.mrb[0].mxu0
  %v650 = vadd.f32 %v92, %v649
  %v651 = vpop.f32.mrb[0].mxu0
  %v652 = vpop.f32.mrb[0].mxu0
  %v653 = vadd.f32 %v92, %v652
  %v654 = vpop.f32.mrb[0].mxu0
  %655 = vmatprep.mubr.bf16.mxu0 0
  %656 = vmatmul.mubr.bf16.gmra.mrb[0].mxu0 %v373
  %v657 = vpop.f32.mrb[0].mxu0
  %v658 = vadd.f32 %v92, %v657
  %v659 = vpop.f32.mrb[0].mxu0
  %v660 = vpop.f32.mrb[0].mxu0
  %v661 = vadd.f32 %v92, %v660
  %v662 = vpop.f32.mrb[0].mxu0
  %663 = vdwg.mxu0
  %vm664 = vcmp.gt.f32.partialorder %v410, 0.0
  %vm665 = vcmp.gt.f32.partialorder %v413, 0.0
  %vm666 = vcmp.gt.f32.partialorder %v418, 0.0
  %vm667 = vcmp.gt.f32.partialorder %v421, 0.0
  %vm668 = vcmp.gt.f32.partialorder %v426, 0.0
  %vm669 = vcmp.gt.f32.partialorder %v429, 0.0
  %vm670 = vcmp.gt.f32.partialorder %v434, 0.0
  %vm671 = vcmp.gt.f32.partialorder %v437, 0.0
  %vm672 = vcmp.gt.f32.partialorder %v442, 0.0
  %vm673 = vcmp.gt.f32.partialorder %v445, 0.0
  %vm674 = vcmp.gt.f32.partialorder %v450, 0.0
  %vm675 = vcmp.gt.f32.partialorder %v453, 0.0
  %vm676 = vcmp.gt.f32.partialorder %v458, 0.0
  %vm677 = vcmp.gt.f32.partialorder %v461, 0.0
  %vm678 = vcmp.gt.f32.partialorder %v466, 0.0
  %vm679 = vcmp.gt.f32.partialorder %v469, 0.0
  %vm680 = vcmp.gt.f32.partialorder %v474, 0.0
  %vm681 = vcmp.gt.f32.partialorder %v477, 0.0
  %vm682 = vcmp.gt.f32.partialorder %v482, 0.0
  %vm683 = vcmp.gt.f32.partialorder %v485, 0.0
  %vm684 = vcmp.gt.f32.partialorder %v490, 0.0
  %vm685 = vcmp.gt.f32.partialorder %v493, 0.0
  %vm686 = vcmp.gt.f32.partialorder %v498, 0.0
  %vm687 = vcmp.gt.f32.partialorder %v501, 0.0
  %vm688 = vcmp.gt.f32.partialorder %v506, 0.0
  %vm689 = vcmp.gt.f32.partialorder %v509, 0.0
  %vm690 = vcmp.gt.f32.partialorder %v514, 0.0
  %vm691 = vcmp.gt.f32.partialorder %v517, 0.0
  %vm692 = vcmp.gt.f32.partialorder %v522, 0.0
  %vm693 = vcmp.gt.f32.partialorder %v525, 0.0
  %vm694 = vcmp.gt.f32.partialorder %v530, 0.0
  %vm695 = vcmp.gt.f32.partialorder %v533, 0.0
  %vm696 = vcmp.gt.f32.partialorder %v538, 0.0
  %vm697 = vcmp.gt.f32.partialorder %v541, 0.0
  %vm698 = vcmp.gt.f32.partialorder %v546, 0.0
  %vm699 = vcmp.gt.f32.partialorder %v549, 0.0
  %vm700 = vcmp.gt.f32.partialorder %v554, 0.0
  %vm701 = vcmp.gt.f32.partialorder %v557, 0.0
  %vm702 = vcmp.gt.f32.partialorder %v562, 0.0
  %vm703 = vcmp.gt.f32.partialorder %v565, 0.0
  %vm704 = vcmp.gt.f32.partialorder %v570, 0.0
  %vm705 = vcmp.gt.f32.partialorder %v573, 0.0
  %vm706 = vcmp.gt.f32.partialorder %v578, 0.0
  %vm707 = vcmp.gt.f32.partialorder %v581, 0.0
  %vm708 = vcmp.gt.f32.partialorder %v586, 0.0
  %vm709 = vcmp.gt.f32.partialorder %v589, 0.0
  %vm710 = vcmp.gt.f32.partialorder %v594, 0.0
  %vm711 = vcmp.gt.f32.partialorder %v597, 0.0
  %vm712 = vcmp.gt.f32.partialorder %v602, 0.0
  %vm713 = vcmp.gt.f32.partialorder %v605, 0.0
  %vm714 = vcmp.gt.f32.partialorder %v610, 0.0
  %vm715 = vcmp.gt.f32.partialorder %v613, 0.0
  %vm716 = vcmp.gt.f32.partialorder %v618, 0.0
  %vm717 = vcmp.gt.f32.partialorder %v621, 0.0
  %vm718 = vcmp.gt.f32.partialorder %v626, 0.0
  %vm719 = vcmp.gt.f32.partialorder %v629, 0.0
  %vm720 = vcmp.gt.f32.partialorder %v634, 0.0
  %vm721 = vcmp.gt.f32.partialorder %v637, 0.0
  %vm722 = vcmp.gt.f32.partialorder %v642, 0.0
  %vm723 = vcmp.gt.f32.partialorder %v645, 0.0
  %vm724 = vcmp.gt.f32.partialorder %v650, 0.0
  %vm725 = vcmp.gt.f32.partialorder %v653, 0.0
  %vm726 = vcmp.gt.f32.partialorder %v658, 0.0
  %vm727 = vcmp.gt.f32.partialorder %v661, 0.0
  %v728 = vmin.f32 %v410, 0.0
  %v729 = vmin.f32 %v413, 0.0
  %v730 = vmin.f32 %v418, 0.0
  %v731 = vmin.f32 %v421, 0.0
  %v732 = vmin.f32 %v426, 0.0
  %v733 = vmin.f32 %v429, 0.0
  %v734 = vmin.f32 %v434, 0.0
  %v735 = vmin.f32 %v437, 0.0
  %v736 = vmin.f32 %v442, 0.0
  %v737 = vmin.f32 %v445, 0.0
  %v738 = vmin.f32 %v450, 0.0
  %v739 = vmin.f32 %v453, 0.0
  %v740 = vmin.f32 %v458, 0.0
  %v741 = vmin.f32 %v461, 0.0
  %v742 = vmin.f32 %v466, 0.0
  %v743 = vmin.f32 %v469, 0.0
  %v744 = vmin.f32 %v474, 0.0
  %v745 = vmin.f32 %v477, 0.0
  %v746 = vmin.f32 %v482, 0.0
  %v747 = vmin.f32 %v485, 0.0
  %v748 = vmin.f32 %v490, 0.0
  %v749 = vmin.f32 %v493, 0.0
  %v750 = vmin.f32 %v498, 0.0
  %v751 = vmin.f32 %v501, 0.0
  %v752 = vmin.f32 %v506, 0.0
  %v753 = vmin.f32 %v509, 0.0
  %v754 = vmin.f32 %v514, 0.0
  %v755 = vmin.f32 %v517, 0.0
  %v756 = vmin.f32 %v522, 0.0
  %v757 = vmin.f32 %v525, 0.0
  %v758 = vmin.f32 %v530, 0.0
  %v759 = vmin.f32 %v533, 0.0
  %v760 = vmin.f32 %v538, 0.0
  %v761 = vmin.f32 %v541, 0.0
  %v762 = vmin.f32 %v546, 0.0
  %v763 = vmin.f32 %v549, 0.0
  %v764 = vmin.f32 %v554, 0.0
  %v765 = vmin.f32 %v557, 0.0
  %v766 = vmin.f32 %v562, 0.0
  %v767 = vmin.f32 %v565, 0.0
  %v768 = vmin.f32 %v570, 0.0
  %v769 = vmin.f32 %v573, 0.0
  %v770 = vmin.f32 %v578, 0.0
  %v771 = vmin.f32 %v581, 0.0
  %v772 = vmin.f32 %v586, 0.0
  %v773 = vmin.f32 %v589, 0.0
  %v774 = vmin.f32 %v594, 0.0
  %v775 = vmin.f32 %v597, 0.0
  %v776 = vmin.f32 %v602, 0.0
  %v777 = vmin.f32 %v605, 0.0
  %v778 = vmin.f32 %v610, 0.0
  %v779 = vmin.f32 %v613, 0.0
  %v780 = vmin.f32 %v618, 0.0
  %v781 = vmin.f32 %v621, 0.0
  %v782 = vmin.f32 %v626, 0.0
  %v783 = vmin.f32 %v629, 0.0
  %v784 = vmin.f32 %v634, 0.0
  %v785 = vmin.f32 %v637, 0.0
  %v786 = vmin.f32 %v642, 0.0
  %v787 = vmin.f32 %v645, 0.0
  %v788 = vmin.f32 %v650, 0.0
  %v789 = vmin.f32 %v653, 0.0
  %v790 = vmin.f32 %v658, 0.0
  %v791 = vmin.f32 %v661, 0.0
  %v792 = vmul.f32 %v728, 1.442695
  %v793 = vpow.pop %v792
  %v794 = vmul.f32 %v729, 1.442695
  %v795 = vpow.pop %v794
  %v796 = vmul.f32 %v730, 1.442695
  %v797 = vpow.pop %v796
  %v798 = vmul.f32 %v731, 1.442695
  %v799 = vpow.pop %v798
  %v800 = vmul.f32 %v732, 1.442695
  %v801 = vpow.pop %v800
  %v802 = vmul.f32 %v733, 1.442695
  %v803 = vpow.pop %v802
  %v804 = vmul.f32 %v734, 1.442695
  %v805 = vpow.pop %v804
  %v806 = vmul.f32 %v735, 1.442695
  %v807 = vpow.pop %v806
  %v808 = vmul.f32 %v736, 1.442695
  %v809 = vpow.pop %v808
  %v810 = vmul.f32 %v737, 1.442695
  %v811 = vpow.pop %v810
  %v812 = vmul.f32 %v738, 1.442695
  %v813 = vpow.pop %v812
  %v814 = vmul.f32 %v739, 1.442695
  %v815 = vpow.pop %v814
  %v816 = vmul.f32 %v740, 1.442695
  %v817 = vpow.pop %v816
  %v818 = vmul.f32 %v741, 1.442695
  %v819 = vpow.pop %v818
  %v820 = vmul.f32 %v742, 1.442695
  %v821 = vpow.pop %v820
  %v822 = vmul.f32 %v743, 1.442695
  %v823 = vpow.pop %v822
  %v824 = vmul.f32 %v744, 1.442695
  %v825 = vpow.pop %v824
  %v826 = vmul.f32 %v745, 1.442695
  %v827 = vpow.pop %v826
  %v828 = vmul.f32 %v746, 1.442695
  %v829 = vpow.pop %v828
  %v830 = vmul.f32 %v747, 1.442695
  %v831 = vpow.pop %v830
  %v832 = vmul.f32 %v748, 1.442695
  %v833 = vpow.pop %v832
  %v834 = vmul.f32 %v749, 1.442695
  %v835 = vpow.pop %v834
  %v836 = vmul.f32 %v750, 1.442695
  %v837 = vpow.pop %v836
  %v838 = vmul.f32 %v751, 1.442695
  %v839 = vpow.pop %v838
  %v840 = vmul.f32 %v752, 1.442695
  %v841 = vpow.pop %v840
  %v842 = vmul.f32 %v753, 1.442695
  %v843 = vpow.pop %v842
  %v844 = vmul.f32 %v754, 1.442695
  %v845 = vpow.pop %v844
  %v846 = vmul.f32 %v755, 1.442695
  %v847 = vpow.pop %v846
  %v848 = vmul.f32 %v756, 1.442695
  %v849 = vpow.pop %v848
  %v850 = vmul.f32 %v757, 1.442695
  %v851 = vpow.pop %v850
  %v852 = vmul.f32 %v758, 1.442695
  %v853 = vpow.pop %v852
  %v854 = vmul.f32 %v759, 1.442695
  %v855 = vpow.pop %v854
  %v856 = vmul.f32 %v760, 1.442695
  %v857 = vpow.pop %v856
  %v858 = vmul.f32 %v761, 1.442695
  %v859 = vpow.pop %v858
  %v860 = vmul.f32 %v762, 1.442695
  %v861 = vpow.pop %v860
  %v862 = vmul.f32 %v763, 1.442695
  %v863 = vpow.pop %v862
  %v864 = vmul.f32 %v764, 1.442695
  %v865 = vpow.pop %v864
  %v866 = vmul.f32 %v765, 1.442695
  %v867 = vpow.pop %v866
  %v868 = vmul.f32 %v766, 1.442695
  %v869 = vpow.pop %v868
  %v870 = vmul.f32 %v767, 1.442695
  %v871 = vpow.pop %v870
  %v872 = vmul.f32 %v768, 1.442695
  %v873 = vpow.pop %v872
  %v874 = vmul.f32 %v769, 1.442695
  %v875 = vpow.pop %v874
  %v876 = vmul.f32 %v770, 1.442695
  %v877 = vpow.pop %v876
  %v878 = vmul.f32 %v771, 1.442695
  %v879 = vpow.pop %v878
  %v880 = vmul.f32 %v772, 1.442695
  %v881 = vpow.pop %v880
  %v882 = vmul.f32 %v773, 1.442695
  %v883 = vpow.pop %v882
  %v884 = vmul.f32 %v774, 1.442695
  %v885 = vpow.pop %v884
  %v886 = vmul.f32 %v775, 1.442695
  %v887 = vpow.pop %v886
  %v888 = vmul.f32 %v776, 1.442695
  %v889 = vpow.pop %v888
  %v890 = vmul.f32 %v777, 1.442695
  %v891 = vpow.pop %v890
  %v892 = vmul.f32 %v778, 1.442695
  %v893 = vpow.pop %v892
  %v894 = vmul.f32 %v779, 1.442695
  %v895 = vpow.pop %v894
  %v896 = vmul.f32 %v780, 1.442695
  %v897 = vpow.pop %v896
  %v898 = vmul.f32 %v781, 1.442695
  %v899 = vpow.pop %v898
  %v900 = vmul.f32 %v782, 1.442695
  %v901 = vpow.pop %v900
  %v902 = vmul.f32 %v783, 1.442695
  %v903 = vpow.pop %v902
  %v904 = vmul.f32 %v784, 1.442695
  %v905 = vpow.pop %v904
  %v906 = vmul.f32 %v785, 1.442695
  %v907 = vpow.pop %v906
  %v908 = vmul.f32 %v786, 1.442695
  %v909 = vpow.pop %v908
  %v910 = vmul.f32 %v787, 1.442695
  %v911 = vpow.pop %v910
  %v912 = vmul.f32 %v788, 1.442695
  %v913 = vpow.pop %v912
  %v914 = vmul.f32 %v789, 1.442695
  %v915 = vpow.pop %v914
  %v916 = vmul.f32 %v790, 1.442695
  %v917 = vpow.pop %v916
  %v918 = vmul.f32 %v791, 1.442695
  %v919 = vpow.pop %v918
  %v920 = vsub.f32 %v793, 1.0
  %v921 = vsub.f32 %v795, 1.0
  %v922 = vsub.f32 %v797, 1.0
  %v923 = vsub.f32 %v799, 1.0
  %v924 = vsub.f32 %v801, 1.0
  %v925 = vsub.f32 %v803, 1.0
  %v926 = vsub.f32 %v805, 1.0
  %v927 = vsub.f32 %v807, 1.0
  %v928 = vsub.f32 %v809, 1.0
  %v929 = vsub.f32 %v811, 1.0
  %v930 = vsub.f32 %v813, 1.0
  %v931 = vsub.f32 %v815, 1.0
  %v932 = vsub.f32 %v817, 1.0
  %v933 = vsub.f32 %v819, 1.0
  %v934 = vsub.f32 %v821, 1.0
  %v935 = vsub.f32 %v823, 1.0
  %v936 = vsub.f32 %v825, 1.0
  %v937 = vsub.f32 %v827, 1.0
  %v938 = vsub.f32 %v829, 1.0
  %v939 = vsub.f32 %v831, 1.0
  %v940 = vsub.f32 %v833, 1.0
  %v941 = vsub.f32 %v835, 1.0
  %v942 = vsub.f32 %v837, 1.0
  %v943 = vsub.f32 %v839, 1.0
  %v944 = vsub.f32 %v841, 1.0
  %v945 = vsub.f32 %v843, 1.0
  %v946 = vsub.f32 %v845, 1.0
  %v947 = vsub.f32 %v847, 1.0
  %v948 = vsub.f32 %v849, 1.0
  %v949 = vsub.f32 %v851, 1.0
  %v950 = vsub.f32 %v853, 1.0
  %v951 = vsub.f32 %v855, 1.0
  %v952 = vsub.f32 %v857, 1.0
  %v953 = vsub.f32 %v859, 1.0
  %v954 = vsub.f32 %v861, 1.0
  %v955 = vsub.f32 %v863, 1.0
  %v956 = vsub.f32 %v865, 1.0
  %v957 = vsub.f32 %v867, 1.0
  %v958 = vsub.f32 %v869, 1.0
  %v959 = vsub.f32 %v871, 1.0
  %v960 = vsub.f32 %v873, 1.0
  %v961 = vsub.f32 %v875, 1.0
  %v962 = vsub.f32 %v877, 1.0
  %v963 = vsub.f32 %v879, 1.0
  %v964 = vsub.f32 %v881, 1.0
  %v965 = vsub.f32 %v883, 1.0
  %v966 = vsub.f32 %v885, 1.0
  %v967 = vsub.f32 %v887, 1.0
  %v968 = vsub.f32 %v889, 1.0
  %v969 = vsub.f32 %v891, 1.0
  %v970 = vsub.f32 %v893, 1.0
  %v971 = vsub.f32 %v895, 1.0
  %v972 = vsub.f32 %v897, 1.0
  %v973 = vsub.f32 %v899, 1.0
  %v974 = vsub.f32 %v901, 1.0
  %v975 = vsub.f32 %v903, 1.0
  %v976 = vsub.f32 %v905, 1.0
  %v977 = vsub.f32 %v907, 1.0
  %v978 = vsub.f32 %v909, 1.0
  %v979 = vsub.f32 %v911, 1.0
  %v980 = vsub.f32 %v913, 1.0
  %v981 = vsub.f32 %v915, 1.0
  %v982 = vsub.f32 %v917, 1.0
  %v983 = vsub.f32 %v919, 1.0
  %v984 = vsel %vm664, %v410, %v920
  %v985 = vsel %vm665, %v413, %v921
  %v986 = vsel %vm666, %v418, %v922
  %v987 = vsel %vm667, %v421, %v923
  %v988 = vsel %vm668, %v426, %v924
  %v989 = vsel %vm669, %v429, %v925
  %v990 = vsel %vm670, %v434, %v926
  %v991 = vsel %vm671, %v437, %v927
  %v992 = vsel %vm672, %v442, %v928
  %v993 = vsel %vm673, %v445, %v929
  %v994 = vsel %vm674, %v450, %v930
  %v995 = vsel %vm675, %v453, %v931
  %v996 = vsel %vm676, %v458, %v932
  %v997 = vsel %vm677, %v461, %v933
  %v998 = vsel %vm678, %v466, %v934
  %v999 = vsel %vm679, %v469, %v935
  %v1000 = vsel %vm680, %v474, %v936
  %v1001 = vsel %vm681, %v477, %v937
  %v1002 = vsel %vm682, %v482, %v938
  %v1003 = vsel %vm683, %v485, %v939
  %v1004 = vsel %vm684, %v490, %v940
  %v1005 = vsel %vm685, %v493, %v941
  %v1006 = vsel %vm686, %v498, %v942
  %v1007 = vsel %vm687, %v501, %v943
  %v1008 = vsel %vm688, %v506, %v944
  %v1009 = vsel %vm689, %v509, %v945
  %v1010 = vsel %vm690, %v514, %v946
  %v1011 = vsel %vm691, %v517, %v947
  %v1012 = vsel %vm692, %v522, %v948
  %v1013 = vsel %vm693, %v525, %v949
  %v1014 = vsel %vm694, %v530, %v950
  %v1015 = vsel %vm695, %v533, %v951
  %v1016 = vsel %vm696, %v538, %v952
  %v1017 = vsel %vm697, %v541, %v953
  %v1018 = vsel %vm698, %v546, %v954
  %v1019 = vsel %vm699, %v549, %v955
  %v1020 = vsel %vm700, %v554, %v956
  %v1021 = vsel %vm701, %v557, %v957
  %v1022 = vsel %vm702, %v562, %v958
  %v1023 = vsel %vm703, %v565, %v959
  %v1024 = vsel %vm704, %v570, %v960
  %v1025 = vsel %vm705, %v573, %v961
  %v1026 = vsel %vm706, %v578, %v962
  %v1027 = vsel %vm707, %v581, %v963
  %v1028 = vsel %vm708, %v586, %v964
  %v1029 = vsel %vm709, %v589, %v965
  %v1030 = vsel %vm710, %v594, %v966
  %v1031 = vsel %vm711, %v597, %v967
  %v1032 = vsel %vm712, %v602, %v968
  %v1033 = vsel %vm713, %v605, %v969
  %v1034 = vsel %vm714, %v610, %v970
  %v1035 = vsel %vm715, %v613, %v971
  %v1036 = vsel %vm716, %v618, %v972
  %v1037 = vsel %vm717, %v621, %v973
  %v1038 = vsel %vm718, %v626, %v974
  %v1039 = vsel %vm719, %v629, %v975
  %v1040 = vsel %vm720, %v634, %v976
  %v1041 = vsel %vm721, %v637, %v977
  %v1042 = vsel %vm722, %v642, %v978
  %v1043 = vsel %vm723, %v645, %v979
  %v1044 = vsel %vm724, %v650, %v980
  %v1045 = vsel %vm725, %v653, %v981
  %v1046 = vsel %vm726, %v658, %v982
  %v1047 = vsel %vm727, %v661, %v983
  %1048 = vst.msk [vmem:[%s3] sm:$0xff] %vm278, %v984
  %1049 = vst.msk [vmem:[%s3 + $0x8] sm:$0xff] %vm278, %v985
  %1050 = vst.msk [vmem:[%s3 + $0x10] sm:$0xff] %vm278, %v986
  %1051 = vst.msk [vmem:[%s3 + $0x18] sm:$0xff] %vm278, %v987
  %1052 = vst.msk [vmem:[%s3 + $0x20] sm:$0xff] %vm278, %v988
  %1053 = vst.msk [vmem:[%s3 + $0x28] sm:$0xff] %vm278, %v989
  %1054 = vst.msk [vmem:[%s3 + $0x30] sm:$0xff] %vm278, %v990
  %1055 = vst.msk [vmem:[%s3 + $0x38] sm:$0xff] %vm278, %v991
  %1056 = vst.msk [vmem:[%s3 + $0x40] sm:$0xff] %vm278, %v992
  %1057 = vst.msk [vmem:[%s3 + $0x48] sm:$0xff] %vm278, %v993
  %1058 = vst.msk [vmem:[%s3 + $0x50] sm:$0xff] %vm278, %v994
  %1059 = vst.msk [vmem:[%s3 + $0x58] sm:$0xff] %vm278, %v995
  %1060 = vst.msk [vmem:[%s3 + $0x60] sm:$0xff] %vm278, %v996
  %1061 = vst.msk [vmem:[%s3 + $0x68] sm:$0xff] %vm278, %v997
  %1062 = vst.msk [vmem:[%s3 + $0x70] sm:$0xff] %vm278, %v998
  %1063 = vst.msk [vmem:[%s3 + $0x78] sm:$0xff] %vm278, %v999
  %1064 = vst.msk [vmem:[%s3 + $0x80] sm:$0xff] %vm278, %v1000
  %1065 = vst.msk [vmem:[%s3 + $0x88] sm:$0xff] %vm278, %v1001
  %1066 = vst.msk [vmem:[%s3 + $0x90] sm:$0xff] %vm278, %v1002
  %1067 = vst.msk [vmem:[%s3 + $0x98] sm:$0xff] %vm278, %v1003
  %1068 = vst.msk [vmem:[%s3 + $0xa0] sm:$0xff] %vm278, %v1004
  %1069 = vst.msk [vmem:[%s3 + $0xa8] sm:$0xff] %vm278, %v1005
  %1070 = vst.msk [vmem:[%s3 + $0xb0] sm:$0xff] %vm278, %v1006
  %1071 = vst.msk [vmem:[%s3 + $0xb8] sm:$0xff] %vm278, %v1007
  %1072 = vst.msk [vmem:[%s3 + $0xc0] sm:$0xff] %vm278, %v1008
  %1073 = vst.msk [vmem:[%s3 + $0xc8] sm:$0xff] %vm278, %v1009
  %1074 = vst.msk [vmem:[%s3 + $0xd0] sm:$0xff] %vm278, %v1010
  %1075 = vst.msk [vmem:[%s3 + $0xd8] sm:$0xff] %vm278, %v1011
  %1076 = vst.msk [vmem:[%s3 + $0xe0] sm:$0xff] %vm278, %v1012
  %1077 = vst.msk [vmem:[%s3 + $0xe8] sm:$0xff] %vm278, %v1013
  %1078 = vst.msk [vmem:[%s3 + $0xf0] sm:$0xff] %vm278, %v1014
  %1079 = vst.msk [vmem:[%s3 + $0xf8] sm:$0xff] %vm278, %v1015
  %1080 = vst.msk [vmem:[%s3 + $0x100] sm:$0xff] %vm278, %v1016
  %1081 = vst.msk [vmem:[%s3 + $0x108] sm:$0xff] %vm278, %v1017
  %1082 = vst.msk [vmem:[%s3 + $0x110] sm:$0xff] %vm278, %v1018
  %1083 = vst.msk [vmem:[%s3 + $0x118] sm:$0xff] %vm278, %v1019
  %1084 = vst.msk [vmem:[%s3 + $0x120] sm:$0xff] %vm278, %v1020
  %1085 = vst.msk [vmem:[%s3 + $0x128] sm:$0xff] %vm278, %v1021
  %1086 = vst.msk [vmem:[%s3 + $0x130] sm:$0xff] %vm278, %v1022
  %1087 = vst.msk [vmem:[%s3 + $0x138] sm:$0xff] %vm278, %v1023
  %1088 = vst.msk [vmem:[%s3 + $0x140] sm:$0xff] %vm278, %v1024
  %1089 = vst.msk [vmem:[%s3 + $0x148] sm:$0xff] %vm278, %v1025
  %1090 = vst.msk [vmem:[%s3 + $0x150] sm:$0xff] %vm278, %v1026
  %1091 = vst.msk [vmem:[%s3 + $0x158] sm:$0xff] %vm278, %v1027
  %1092 = vst.msk [vmem:[%s3 + $0x160] sm:$0xff] %vm278, %v1028
  %1093 = vst.msk [vmem:[%s3 + $0x168] sm:$0xff] %vm278, %v1029
  %1094 = vst.msk [vmem:[%s3 + $0x170] sm:$0xff] %vm278, %v1030
  %1095 = vst.msk [vmem:[%s3 + $0x178] sm:$0xff] %vm278, %v1031
  %1096 = vst.msk [vmem:[%s3 + $0x180] sm:$0xff] %vm278, %v1032
  %1097 = vst.msk [vmem:[%s3 + $0x188] sm:$0xff] %vm278, %v1033
  %1098 = vst.msk [vmem:[%s3 + $0x190] sm:$0xff] %vm278, %v1034
  %1099 = vst.msk [vmem:[%s3 + $0x198] sm:$0xff] %vm278, %v1035
  %1100 = vst.msk [vmem:[%s3 + $0x1a0] sm:$0xff] %vm278, %v1036
  %1101 = vst.msk [vmem:[%s3 + $0x1a8] sm:$0xff] %vm278, %v1037
  %1102 = vst.msk [vmem:[%s3 + $0x1b0] sm:$0xff] %vm278, %v1038
  %1103 = vst.msk [vmem:[%s3 + $0x1b8] sm:$0xff] %vm278, %v1039
  %1104 = vst.msk [vmem:[%s3 + $0x1c0] sm:$0xff] %vm278, %v1040
  %1105 = vst.msk [vmem:[%s3 + $0x1c8] sm:$0xff] %vm278, %v1041
  %1106 = vst.msk [vmem:[%s3 + $0x1d0] sm:$0xff] %vm278, %v1042
  %1107 = vst.msk [vmem:[%s3 + $0x1d8] sm:$0xff] %vm278, %v1043
  %1108 = vst.msk [vmem:[%s3 + $0x1e0] sm:$0xff] %vm278, %v1044
  %1109 = vst.msk [vmem:[%s3 + $0x1e8] sm:$0xff] %vm278, %v1045
  %1110 = vst.msk [vmem:[%s3 + $0x1f0] sm:$0xff] %vm278, %v1046
  %1111 = vst.msk [vmem:[%s3 + $0x1f8] sm:$0xff] %vm278, %v1047
  // Predicated region
  $region14: #{pctnet_forward.10} parent=0 // pred_check
    _
  $region15: #{pctnet_forward.10} parent=0 // pred_check_branch
    %1113 = sbr.rel (0) target = $region17
  $region16: #{pctnet_forward.10} parent=0 // pred_region
    _
  $region17: #{pctnet_forward.10} parent=0 // pred_fallthru
    _
  // Predicated region
  $region18: #{pctnet_forward.10} parent=0 // pred_check
    _
  $region19: #{pctnet_forward.10} parent=0 // pred_check_branch
    %1115 = sbr.rel (0) target = $region21
  $region20: #{pctnet_forward.10} parent=0 // pred_region
    _
  $region21: #{pctnet_forward.10} parent=0 // pred_fallthru
    _

// kernel: pctnet_forward.11
$region0: #{pctnet_forward.11}
  #allocation0 [shape = 'u32[]', space=smem, size = 0x4, offset = 0x4, fixed_abs, tag = 'smem constant byte address 0x4 - core index']
  #allocation1 [shape = 'u32[144,128]{1,0:T(1,128)}', space=vmem, size = 0x12000, scoped, tag = 'internal scratch']
  %s0 = inlined_call_operand.vmem [shape: bf16[128,1024], index: 0, kind: input, shape index: {}]
  %s1 = inlined_call_operand.vmem [shape: bf16[1024,64], index: 1, kind: input, shape index: {}]
  %s2 = inlined_call_operand.vmem [shape: f32[1,64], index: 2, kind: input, shape index: {}]
  %s3 = inlined_call_operand.vmem [shape: f32[128,64], index: 3, kind: output, shape index: {}]
  %s4 = sld [smem:[#allocation0]]
  $region22: #{pctnet_forward.11} parent=0
    _
  %s6 = ssub.s32 1, %s4
  %s7 = scalar_select 0, %s6, %s4
  // Predicated region
  $region2: #{pctnet_forward.11} parent=0 // pred_check
    _
  $region3: #{pctnet_forward.11} parent=0 // pred_check_branch
    %9 = sbr.rel (0) target = $region5
  $region4: #{pctnet_forward.11} parent=0 // pred_region
    _
  $region5: #{pctnet_forward.11} parent=0 // pred_fallthru
    _
  // Predicated region
  $region6: #{pctnet_forward.11} parent=0 // pred_check
    _
  $region7: #{pctnet_forward.11} parent=0 // pred_check_branch
    %11 = sbr.rel (0) target = $region9
  $region8: #{pctnet_forward.11} parent=0 // pred_region
    _
  $region9: #{pctnet_forward.11} parent=0 // pred_fallthru
    _
  // Predicated region
  $region10: #{pctnet_forward.11} parent=0 // pred_check
    _
  $region11: #{pctnet_forward.11} parent=0 // pred_check_branch
    %13 = sbr.rel (0) target = $region13
  $region12: #{pctnet_forward.11} parent=0 // pred_region
    _
  $region13: #{pctnet_forward.11} parent=0 // pred_fallthru
    _
  %v15 = vld [vmem:[%s0] sm:$0xff]
  %v16 = vld [vmem:[%s0 + $0x8] sm:$0xff]
  %v17 = vld [vmem:[%s0 + $0x10] sm:$0xff]
  %v18 = vld [vmem:[%s0 + $0x18] sm:$0xff]
  %v19 = vld [vmem:[%s0 + $0x20] sm:$0xff]
  %v20 = vld [vmem:[%s0 + $0x28] sm:$0xff]
  %v21 = vld [vmem:[%s0 + $0x30] sm:$0xff]
  %v22 = vld [vmem:[%s0 + $0x38] sm:$0xff]
  %v23 = vld [vmem:[%s0 + $0x40] sm:$0xff]
  %v24 = vld [vmem:[%s0 + $0x48] sm:$0xff]
  %v25 = vld [vmem:[%s0 + $0x50] sm:$0xff]
  %v26 = vld [vmem:[%s0 + $0x58] sm:$0xff]
  %v27 = vld [vmem:[%s0 + $0x60] sm:$0xff]
  %v28 = vld [vmem:[%s0 + $0x68] sm:$0xff]
  %v29 = vld [vmem:[%s0 + $0x70] sm:$0xff]
  %v30 = vld [vmem:[%s0 + $0x78] sm:$0xff]
  %v31 = vld [vmem:[%s0 + $0x80] sm:$0xff]
  %v32 = vld [vmem:[%s0 + $0x88] sm:$0xff]
  %v33 = vld [vmem:[%s0 + $0x90] sm:$0xff]
  %v34 = vld [vmem:[%s0 + $0x98] sm:$0xff]
  %v35 = vld [vmem:[%s0 + $0xa0] sm:$0xff]
  %v36 = vld [vmem:[%s0 + $0xa8] sm:$0xff]
  %v37 = vld [vmem:[%s0 + $0xb0] sm:$0xff]
  %v38 = vld [vmem:[%s0 + $0xb8] sm:$0xff]
  %v39 = vld [vmem:[%s0 + $0xc0] sm:$0xff]
  %v40 = vld [vmem:[%s0 + $0xc8] sm:$0xff]
  %v41 = vld [vmem:[%s0 + $0xd0] sm:$0xff]
  %v42 = vld [vmem:[%s0 + $0xd8] sm:$0xff]
  %v43 = vld [vmem:[%s0 + $0xe0] sm:$0xff]
  %v44 = vld [vmem:[%s0 + $0xe8] sm:$0xff]
  %v45 = vld [vmem:[%s0 + $0xf0] sm:$0xff]
  %v46 = vld [vmem:[%s0 + $0xf8] sm:$0xff]
  %v47 = vld [vmem:[%s0 + $0x100] sm:$0xff]
  %v48 = vld [vmem:[%s0 + $0x108] sm:$0xff]
  %v49 = vld [vmem:[%s0 + $0x110] sm:$0xff]
  %v50 = vld [vmem:[%s0 + $0x118] sm:$0xff]
  %v51 = vld [vmem:[%s0 + $0x120] sm:$0xff]
  %v52 = vld [vmem:[%s0 + $0x128] sm:$0xff]
  %v53 = vld [vmem:[%s0 + $0x130] sm:$0xff]
  %v54 = vld [vmem:[%s0 + $0x138] sm:$0xff]
  %v55 = vld [vmem:[%s0 + $0x140] sm:$0xff]
  %v56 = vld [vmem:[%s0 + $0x148] sm:$0xff]
  %v57 = vld [vmem:[%s0 + $0x150] sm:$0xff]
  %v58 = vld [vmem:[%s0 + $0x158] sm:$0xff]
  %v59 = vld [vmem:[%s0 + $0x160] sm:$0xff]
  %v60 = vld [vmem:[%s0 + $0x168] sm:$0xff]
  %v61 = vld [vmem:[%s0 + $0x170] sm:$0xff]
  %v62 = vld [vmem:[%s0 + $0x178] sm:$0xff]
  %v63 = vld [vmem:[%s0 + $0x180] sm:$0xff]
  %v64 = vld [vmem:[%s0 + $0x188] sm:$0xff]
  %v65 = vld [vmem:[%s0 + $0x190] sm:$0xff]
  %v66 = vld [vmem:[%s0 + $0x198] sm:$0xff]
  %v67 = vld [vmem:[%s0 + $0x1a0] sm:$0xff]
  %v68 = vld [vmem:[%s0 + $0x1a8] sm:$0xff]
  %v69 = vld [vmem:[%s0 + $0x1b0] sm:$0xff]
  %v70 = vld [vmem:[%s0 + $0x1b8] sm:$0xff]
  %v71 = vld [vmem:[%s0 + $0x1c0] sm:$0xff]
  %v72 = vld [vmem:[%s0 + $0x1c8] sm:$0xff]
  %v73 = vld [vmem:[%s0 + $0x1d0] sm:$0xff]
  %v74 = vld [vmem:[%s0 + $0x1d8] sm:$0xff]
  %v75 = vld [vmem:[%s0 + $0x1e0] sm:$0xff]
  %v76 = vld [vmem:[%s0 + $0x1e8] sm:$0xff]
  %v77 = vld [vmem:[%s0 + $0x1f0] sm:$0xff]
  %v78 = vld [vmem:[%s0 + $0x1f8] sm:$0xff]
  %v79 = vld [vmem:[%s1] sm:$0xf]
  %v80 = vld [vmem:[%s1 + $0x4] sm:$0xf]
  %v81 = vld [vmem:[%s1 + $0x8] sm:$0xf]
  %v82 = vld [vmem:[%s1 + $0xc] sm:$0xf]
  %v83 = vld [vmem:[%s1 + $0x10] sm:$0xf]
  %v84 = vld [vmem:[%s1 + $0x14] sm:$0xf]
  %v85 = vld [vmem:[%s1 + $0x18] sm:$0xf]
  %v86 = vld [vmem:[%s1 + $0x1c] sm:$0xf]
  %v87 = vld [vmem:[%s1 + $0x20] sm:$0xf]
  %v88 = vld [vmem:[%s1 + $0x24] sm:$0xf]
  %v89 = vld [vmem:[%s1 + $0x28] sm:$0xf]
  %v90 = vld [vmem:[%s1 + $0x2c] sm:$0xf]
  %v91 = vld [vmem:[%s1 + $0x30] sm:$0xf]
  %v92 = vld [vmem:[%s1 + $0x34] sm:$0xf]
  %v93 = vld [vmem:[%s1 + $0x38] sm:$0xf]
  %v94 = vld [vmem:[%s1 + $0x3c] sm:$0xf]
  %v95 = vld [vmem:[%s1 + $0x40] sm:$0xf]
  %v96 = vld [vmem:[%s1 + $0x44] sm:$0xf]
  %v97 = vld [vmem:[%s1 + $0x48] sm:$0xf]
  %v98 = vld [vmem:[%s1 + $0x4c] sm:$0xf]
  %v99 = vld [vmem:[%s1 + $0x50] sm:$0xf]
  %v100 = vld [vmem:[%s1 + $0x54] sm:$0xf]
  %v101 = vld [vmem:[%s1 + $0x58] sm:$0xf]
  %v102 = vld [vmem:[%s1 + $0x5c] sm:$0xf]
  %v103 = vld [vmem:[%s1 + $0x60] sm:$0xf]
  %v104 = vld [vmem:[%s1 + $0x64] sm:$0xf]
  %v105 = vld [vmem:[%s1 + $0x68] sm:$0xf]
  %v106 = vld [vmem:[%s1 + $0x6c] sm:$0xf]
  %v107 = vld [vmem:[%s1 + $0x70] sm:$0xf]
  %v108 = vld [vmem:[%s1 + $0x74] sm:$0xf]
  %v109 = vld [vmem:[%s1 + $0x78] sm:$0xf]
  %v110 = vld [vmem:[%s1 + $0x7c] sm:$0xf]
  %v111 = vld [vmem:[%s1 + $0x80] sm:$0xf]
  %v112 = vld [vmem:[%s1 + $0x84] sm:$0xf]
  %v113 = vld [vmem:[%s1 + $0x88] sm:$0xf]
  %v114 = vld [vmem:[%s1 + $0x8c] sm:$0xf]
  %v115 = vld [vmem:[%s1 + $0x90] sm:$0xf]
  %v116 = vld [vmem:[%s1 + $0x94] sm:$0xf]
  %v117 = vld [vmem:[%s1 + $0x98] sm:$0xf]
  %v118 = vld [vmem:[%s1 + $0x9c] sm:$0xf]
  %v119 = vld [vmem:[%s1 + $0xa0] sm:$0xf]
  %v120 = vld [vmem:[%s1 + $0xa4] sm:$0xf]
  %v121 = vld [vmem:[%s1 + $0xa8] sm:$0xf]
  %v122 = vld [vmem:[%s1 + $0xac] sm:$0xf]
  %v123 = vld [vmem:[%s1 + $0xb0] sm:$0xf]
  %v124 = vld [vmem:[%s1 + $0xb4] sm:$0xf]
  %v125 = vld [vmem:[%s1 + $0xb8] sm:$0xf]
  %v126 = vld [vmem:[%s1 + $0xbc] sm:$0xf]
  %v127 = vld [vmem:[%s1 + $0xc0] sm:$0xf]
  %v128 = vld [vmem:[%s1 + $0xc4] sm:$0xf]
  %v129 = vld [vmem:[%s1 + $0xc8] sm:$0xf]
  %v130 = vld [vmem:[%s1 + $0xcc] sm:$0xf]
  %v131 = vld [vmem:[%s1 + $0xd0] sm:$0xf]
  %v132 = vld [vmem:[%s1 + $0xd4] sm:$0xf]
  %v133 = vld [vmem:[%s1 + $0xd8] sm:$0xf]
  %v134 = vld [vmem:[%s1 + $0xdc] sm:$0xf]
  %v135 = vld [vmem:[%s1 + $0xe0] sm:$0xf]
  %v136 = vld [vmem:[%s1 + $0xe4] sm:$0xf]
  %v137 = vld [vmem:[%s1 + $0xe8] sm:$0xf]
  %v138 = vld [vmem:[%s1 + $0xec] sm:$0xf]
  %v139 = vld [vmem:[%s1 + $0xf0] sm:$0xf]
  %v140 = vld [vmem:[%s1 + $0xf4] sm:$0xf]
  %v141 = vld [vmem:[%s1 + $0xf8] sm:$0xf]
  %v142 = vld [vmem:[%s1 + $0xfc] sm:$0xf]
  %v143 = vld [vmem:[%s1 + $0x100] sm:$0xf]
  %v144 = vld [vmem:[%s1 + $0x104] sm:$0xf]
  %v145 = vld [vmem:[%s1 + $0x108] sm:$0xf]
  %v146 = vld [vmem:[%s1 + $0x10c] sm:$0xf]
  %v147 = vld [vmem:[%s1 + $0x110] sm:$0xf]
  %v148 = vld [vmem:[%s1 + $0x114] sm:$0xf]
  %v149 = vld [vmem:[%s1 + $0x118] sm:$0xf]
  %v150 = vld [vmem:[%s1 + $0x11c] sm:$0xf]
  %v151 = vld [vmem:[%s1 + $0x120] sm:$0xf]
  %v152 = vld [vmem:[%s1 + $0x124] sm:$0xf]
  %v153 = vld [vmem:[%s1 + $0x128] sm:$0xf]
  %v154 = vld [vmem:[%s1 + $0x12c] sm:$0xf]
  %v155 = vld [vmem:[%s1 + $0x130] sm:$0xf]
  %v156 = vld [vmem:[%s1 + $0x134] sm:$0xf]
  %v157 = vld [vmem:[%s1 + $0x138] sm:$0xf]
  %v158 = vld [vmem:[%s1 + $0x13c] sm:$0xf]
  %v159 = vld [vmem:[%s1 + $0x140] sm:$0xf]
  %v160 = vld [vmem:[%s1 + $0x144] sm:$0xf]
  %v161 = vld [vmem:[%s1 + $0x148] sm:$0xf]
  %v162 = vld [vmem:[%s1 + $0x14c] sm:$0xf]
  %v163 = vld [vmem:[%s1 + $0x150] sm:$0xf]
  %v164 = vld [vmem:[%s1 + $0x154] sm:$0xf]
  %v165 = vld [vmem:[%s1 + $0x158] sm:$0xf]
  %v166 = vld [vmem:[%s1 + $0x15c] sm:$0xf]
  %v167 = vld [vmem:[%s1 + $0x160] sm:$0xf]
  %v168 = vld [vmem:[%s1 + $0x164] sm:$0xf]
  %v169 = vld [vmem:[%s1 + $0x168] sm:$0xf]
  %v170 = vld [vmem:[%s1 + $0x16c] sm:$0xf]
  %v171 = vld [vmem:[%s1 + $0x170] sm:$0xf]
  %v172 = vld [vmem:[%s1 + $0x174] sm:$0xf]
  %v173 = vld [vmem:[%s1 + $0x178] sm:$0xf]
  %v174 = vld [vmem:[%s1 + $0x17c] sm:$0xf]
  %v175 = vld [vmem:[%s1 + $0x180] sm:$0xf]
  %v176 = vld [vmem:[%s1 + $0x184] sm:$0xf]
  %v177 = vld [vmem:[%s1 + $0x188] sm:$0xf]
  %v178 = vld [vmem:[%s1 + $0x18c] sm:$0xf]
  %v179 = vld [vmem:[%s1 + $0x190] sm:$0xf]
  %v180 = vld [vmem:[%s1 + $0x194] sm:$0xf]
  %v181 = vld [vmem:[%s1 + $0x198] sm:$0xf]
  %v182 = vld [vmem:[%s1 + $0x19c] sm:$0xf]
  %v183 = vld [vmem:[%s1 + $0x1a0] sm:$0xf]
  %v184 = vld [vmem:[%s1 + $0x1a4] sm:$0xf]
  %v185 = vld [vmem:[%s1 + $0x1a8] sm:$0xf]
  %v186 = vld [vmem:[%s1 + $0x1ac] sm:$0xf]
  %v187 = vld [vmem:[%s1 + $0x1b0] sm:$0xf]
  %v188 = vld [vmem:[%s1 + $0x1b4] sm:$0xf]
  %v189 = vld [vmem:[%s1 + $0x1b8] sm:$0xf]
  %v190 = vld [vmem:[%s1 + $0x1bc] sm:$0xf]
  %v191 = vld [vmem:[%s1 + $0x1c0] sm:$0xf]
  %v192 = vld [vmem:[%s1 + $0x1c4] sm:$0xf]
  %v193 = vld [vmem:[%s1 + $0x1c8] sm:$0xf]
  %v194 = vld [vmem:[%s1 + $0x1cc] sm:$0xf]
  %v195 = vld [vmem:[%s1 + $0x1d0] sm:$0xf]
  %v196 = vld [vmem:[%s1 + $0x1d4] sm:$0xf]
  %v197 = vld [vmem:[%s1 + $0x1d8] sm:$0xf]
  %v198 = vld [vmem:[%s1 + $0x1dc] sm:$0xf]
  %v199 = vld [vmem:[%s1 + $0x1e0] sm:$0xf]
  %v200 = vld [vmem:[%s1 + $0x1e4] sm:$0xf]
  %v201 = vld [vmem:[%s1 + $0x1e8] sm:$0xf]
  %v202 = vld [vmem:[%s1 + $0x1ec] sm:$0xf]
  %v203 = vld [vmem:[%s1 + $0x1f0] sm:$0xf]
  %v204 = vld [vmem:[%s1 + $0x1f4] sm:$0xf]
  %v205 = vld [vmem:[%s1 + $0x1f8] sm:$0xf]
  %v206 = vld [vmem:[%s1 + $0x1fc] sm:$0xf]
  %v207 = vld [vmem:[%s2] sm:$0x1]
  %v209 = vlaneseq
  %v210 = vshrl.u32 %v209, 7
  %v211 = vsub.s32 0, %v210
  %v212 = vrot.slane %v207, %v211
  %v278 = vunpack.c.l.b16 %v15
  %v279 = vunpack.c.h.b16 %v15
  %v280 = vunpack.c.l.b16 %v16
  %v281 = vunpack.c.h.b16 %v16
  %v282 = vunpack.c.l.b16 %v17
  %v283 = vunpack.c.h.b16 %v17
  %v284 = vunpack.c.l.b16 %v18
  %v285 = vunpack.c.h.b16 %v18
  %v286 = vunpack.c.l.b16 %v19
  %v287 = vunpack.c.h.b16 %v19
  %v288 = vunpack.c.l.b16 %v20
  %v289 = vunpack.c.h.b16 %v20
  %v290 = vunpack.c.l.b16 %v21
  %v291 = vunpack.c.h.b16 %v21
  %v292 = vunpack.c.l.b16 %v22
  %v293 = vunpack.c.h.b16 %v22
  %v294 = vunpack.c.l.b16 %v23
  %v295 = vunpack.c.h.b16 %v23
  %v296 = vunpack.c.l.b16 %v24
  %v297 = vunpack.c.h.b16 %v24
  %v298 = vunpack.c.l.b16 %v25
  %v299 = vunpack.c.h.b16 %v25
  %v300 = vunpack.c.l.b16 %v26
  %v301 = vunpack.c.h.b16 %v26
  %v302 = vunpack.c.l.b16 %v27
  %v303 = vunpack.c.h.b16 %v27
  %v304 = vunpack.c.l.b16 %v28
  %v305 = vunpack.c.h.b16 %v28
  %v306 = vunpack.c.l.b16 %v29
  %v307 = vunpack.c.h.b16 %v29
  %v308 = vunpack.c.l.b16 %v30
  %v309 = vunpack.c.h.b16 %v30
  %v310 = vunpack.c.l.b16 %v31
  %v311 = vunpack.c.h.b16 %v31
  %v312 = vunpack.c.l.b16 %v32
  %v313 = vunpack.c.h.b16 %v32
  %v314 = vunpack.c.l.b16 %v33
  %v315 = vunpack.c.h.b16 %v33
  %v316 = vunpack.c.l.b16 %v34
  %v317 = vunpack.c.h.b16 %v34
  %v318 = vunpack.c.l.b16 %v35
  %v319 = vunpack.c.h.b16 %v35
  %v320 = vunpack.c.l.b16 %v36
  %v321 = vunpack.c.h.b16 %v36
  %v322 = vunpack.c.l.b16 %v37
  %v323 = vunpack.c.h.b16 %v37
  %v324 = vunpack.c.l.b16 %v38
  %v325 = vunpack.c.h.b16 %v38
  %v326 = vunpack.c.l.b16 %v39
  %v327 = vunpack.c.h.b16 %v39
  %v328 = vunpack.c.l.b16 %v40
  %v329 = vunpack.c.h.b16 %v40
  %v330 = vunpack.c.l.b16 %v41
  %v331 = vunpack.c.h.b16 %v41
  %v332 = vunpack.c.l.b16 %v42
  %v333 = vunpack.c.h.b16 %v42
  %v334 = vunpack.c.l.b16 %v43
  %v335 = vunpack.c.h.b16 %v43
  %v336 = vunpack.c.l.b16 %v44
  %v337 = vunpack.c.h.b16 %v44
  %v338 = vunpack.c.l.b16 %v45
  %v339 = vunpack.c.h.b16 %v45
  %v340 = vunpack.c.l.b16 %v46
  %v341 = vunpack.c.h.b16 %v46
  %v342 = vunpack.c.l.b16 %v47
  %v343 = vunpack.c.h.b16 %v47
  %v344 = vunpack.c.l.b16 %v48
  %v345 = vunpack.c.h.b16 %v48
  %v346 = vunpack.c.l.b16 %v49
  %v347 = vunpack.c.h.b16 %v49
  %v348 = vunpack.c.l.b16 %v50
  %v349 = vunpack.c.h.b16 %v50
  %v350 = vunpack.c.l.b16 %v51
  %v351 = vunpack.c.h.b16 %v51
  %v352 = vunpack.c.l.b16 %v52
  %v353 = vunpack.c.h.b16 %v52
  %v354 = vunpack.c.l.b16 %v53
  %v355 = vunpack.c.h.b16 %v53
  %v356 = vunpack.c.l.b16 %v54
  %v357 = vunpack.c.h.b16 %v54
  %v358 = vunpack.c.l.b16 %v55
  %v359 = vunpack.c.h.b16 %v55
  %v360 = vunpack.c.l.b16 %v56
  %v361 = vunpack.c.h.b16 %v56
  %v362 = vunpack.c.l.b16 %v57
  %v363 = vunpack.c.h.b16 %v57
  %v364 = vunpack.c.l.b16 %v58
  %v365 = vunpack.c.h.b16 %v58
  %v366 = vunpack.c.l.b16 %v59
  %v367 = vunpack.c.h.b16 %v59
  %v368 = vunpack.c.l.b16 %v60
  %v369 = vunpack.c.h.b16 %v60
  %v370 = vunpack.c.l.b16 %v61
  %v371 = vunpack.c.h.b16 %v61
  %v372 = vunpack.c.l.b16 %v62
  %v373 = vunpack.c.h.b16 %v62
  %v374 = vunpack.c.l.b16 %v63
  %v375 = vunpack.c.h.b16 %v63
  %v376 = vunpack.c.l.b16 %v64
  %v377 = vunpack.c.h.b16 %v64
  %v378 = vunpack.c.l.b16 %v65
  %v379 = vunpack.c.h.b16 %v65
  %v380 = vunpack.c.l.b16 %v66
  %v381 = vunpack.c.h.b16 %v66
  %v382 = vunpack.c.l.b16 %v67
  %v383 = vunpack.c.h.b16 %v67
  %v384 = vunpack.c.l.b16 %v68
  %v385 = vunpack.c.h.b16 %v68
  %v386 = vunpack.c.l.b16 %v69
  %v387 = vunpack.c.h.b16 %v69
  %v388 = vunpack.c.l.b16 %v70
  %v389 = vunpack.c.h.b16 %v70
  %v390 = vunpack.c.l.b16 %v71
  %v391 = vunpack.c.h.b16 %v71
  %v392 = vunpack.c.l.b16 %v72
  %v393 = vunpack.c.h.b16 %v72
  %v394 = vunpack.c.l.b16 %v73
  %v395 = vunpack.c.h.b16 %v73
  %v396 = vunpack.c.l.b16 %v74
  %v397 = vunpack.c.h.b16 %v74
  %v398 = vunpack.c.l.b16 %v75
  %v399 = vunpack.c.h.b16 %v75
  %v400 = vunpack.c.l.b16 %v76
  %v401 = vunpack.c.h.b16 %v76
  %v402 = vunpack.c.l.b16 %v77
  %v403 = vunpack.c.h.b16 %v77
  %v404 = vunpack.c.l.b16 %v78
  %v405 = vunpack.c.h.b16 %v78
  %v406 = vpack.c.b16 %v286, %v278
  %v407 = vpack.c.b16 %v287, %v279
  %v408 = vpack.c.b16 %v288, %v280
  %v409 = vpack.c.b16 %v289, %v281
  %v410 = vpack.c.b16 %v290, %v282
  %v411 = vpack.c.b16 %v291, %v283
  %v412 = vpack.c.b16 %v292, %v284
  %v413 = vpack.c.b16 %v293, %v285
  %v414 = vpack.c.b16 %v302, %v294
  %v415 = vpack.c.b16 %v303, %v295
  %v416 = vpack.c.b16 %v304, %v296
  %v417 = vpack.c.b16 %v305, %v297
  %v418 = vpack.c.b16 %v306, %v298
  %v419 = vpack.c.b16 %v307, %v299
  %v420 = vpack.c.b16 %v308, %v300
  %v421 = vpack.c.b16 %v309, %v301
  %v422 = vpack.c.b16 %v318, %v310
  %v423 = vpack.c.b16 %v319, %v311
  %v424 = vpack.c.b16 %v320, %v312
  %v425 = vpack.c.b16 %v321, %v313
  %v426 = vpack.c.b16 %v322, %v314
  %v427 = vpack.c.b16 %v323, %v315
  %v428 = vpack.c.b16 %v324, %v316
  %v429 = vpack.c.b16 %v325, %v317
  %v430 = vpack.c.b16 %v334, %v326
  %v431 = vpack.c.b16 %v335, %v327
  %v432 = vpack.c.b16 %v336, %v328
  %v433 = vpack.c.b16 %v337, %v329
  %v434 = vpack.c.b16 %v338, %v330
  %v435 = vpack.c.b16 %v339, %v331
  %v436 = vpack.c.b16 %v340, %v332
  %v437 = vpack.c.b16 %v341, %v333
  %v438 = vpack.c.b16 %v350, %v342
  %v439 = vpack.c.b16 %v351, %v343
  %v440 = vpack.c.b16 %v352, %v344
  %v441 = vpack.c.b16 %v353, %v345
  %v442 = vpack.c.b16 %v354, %v346
  %v443 = vpack.c.b16 %v355, %v347
  %v444 = vpack.c.b16 %v356, %v348
  %v445 = vpack.c.b16 %v357, %v349
  %v446 = vpack.c.b16 %v366, %v358
  %v447 = vpack.c.b16 %v367, %v359
  %v448 = vpack.c.b16 %v368, %v360
  %v449 = vpack.c.b16 %v369, %v361
  %v450 = vpack.c.b16 %v370, %v362
  %v451 = vpack.c.b16 %v371, %v363
  %v452 = vpack.c.b16 %v372, %v364
  %v453 = vpack.c.b16 %v373, %v365
  %v454 = vpack.c.b16 %v382, %v374
  %v455 = vpack.c.b16 %v383, %v375
  %v456 = vpack.c.b16 %v384, %v376
  %v457 = vpack.c.b16 %v385, %v377
  %v458 = vpack.c.b16 %v386, %v378
  %v459 = vpack.c.b16 %v387, %v379
  %v460 = vpack.c.b16 %v388, %v380
  %v461 = vpack.c.b16 %v389, %v381
  %v462 = vpack.c.b16 %v398, %v390
  %v463 = vpack.c.b16 %v399, %v391
  %v464 = vpack.c.b16 %v400, %v392
  %v465 = vpack.c.b16 %v401, %v393
  %v466 = vpack.c.b16 %v402, %v394
  %v467 = vpack.c.b16 %v403, %v395
  %v468 = vpack.c.b16 %v404, %v396
  %v469 = vpack.c.b16 %v405, %v397
  %v662 = vunpack.c.l.b16 %v79
  %v663 = vunpack.c.l.b16 %v80
  %v664 = vunpack.c.l.b16 %v81
  %v665 = vunpack.c.l.b16 %v82
  %v666 = vunpack.c.l.b16 %v83
  %v667 = vunpack.c.l.b16 %v84
  %v668 = vunpack.c.l.b16 %v85
  %v669 = vunpack.c.l.b16 %v86
  %v670 = vunpack.c.l.b16 %v87
  %v671 = vunpack.c.l.b16 %v88
  %v672 = vunpack.c.l.b16 %v89
  %v673 = vunpack.c.l.b16 %v90
  %v674 = vunpack.c.l.b16 %v91
  %v675 = vunpack.c.l.b16 %v92
  %v676 = vunpack.c.l.b16 %v93
  %v677 = vunpack.c.l.b16 %v94
  %v678 = vunpack.c.l.b16 %v95
  %v679 = vunpack.c.l.b16 %v96
  %v680 = vunpack.c.l.b16 %v97
  %v681 = vunpack.c.l.b16 %v98
  %v682 = vunpack.c.l.b16 %v99
  %v683 = vunpack.c.l.b16 %v100
  %v684 = vunpack.c.l.b16 %v101
  %v685 = vunpack.c.l.b16 %v102
  %v686 = vunpack.c.l.b16 %v103
  %v687 = vunpack.c.l.b16 %v104
  %v688 = vunpack.c.l.b16 %v105
  %v689 = vunpack.c.l.b16 %v106
  %v690 = vunpack.c.l.b16 %v107
  %v691 = vunpack.c.l.b16 %v108
  %v692 = vunpack.c.l.b16 %v109
  %v693 = vunpack.c.l.b16 %v110
  %v694 = vunpack.c.l.b16 %v111
  %v695 = vunpack.c.l.b16 %v112
  %v696 = vunpack.c.l.b16 %v113
  %v697 = vunpack.c.l.b16 %v114
  %v698 = vunpack.c.l.b16 %v115
  %v699 = vunpack.c.l.b16 %v116
  %v700 = vunpack.c.l.b16 %v117
  %v701 = vunpack.c.l.b16 %v118
  %v702 = vunpack.c.l.b16 %v119
  %v703 = vunpack.c.l.b16 %v120
  %v704 = vunpack.c.l.b16 %v121
  %v705 = vunpack.c.l.b16 %v122
  %v706 = vunpack.c.l.b16 %v123
  %v707 = vunpack.c.l.b16 %v124
  %v708 = vunpack.c.l.b16 %v125
  %v709 = vunpack.c.l.b16 %v126
  %v710 = vunpack.c.l.b16 %v127
  %v711 = vunpack.c.l.b16 %v128
  %v712 = vunpack.c.l.b16 %v129
  %v713 = vunpack.c.l.b16 %v130
  %v714 = vunpack.c.l.b16 %v131
  %v715 = vunpack.c.l.b16 %v132
  %v716 = vunpack.c.l.b16 %v133
  %v717 = vunpack.c.l.b16 %v134
  %v718 = vunpack.c.l.b16 %v135
  %v719 = vunpack.c.l.b16 %v136
  %v720 = vunpack.c.l.b16 %v137
  %v721 = vunpack.c.l.b16 %v138
  %v722 = vunpack.c.l.b16 %v139
  %v723 = vunpack.c.l.b16 %v140
  %v724 = vunpack.c.l.b16 %v141
  %v725 = vunpack.c.l.b16 %v142
  %v726 = vunpack.c.l.b16 %v143
  %v727 = vunpack.c.l.b16 %v144
  %v728 = vunpack.c.l.b16 %v145
  %v729 = vunpack.c.l.b16 %v146
  %v730 = vunpack.c.l.b16 %v147
  %v731 = vunpack.c.l.b16 %v148
  %v732 = vunpack.c.l.b16 %v149
  %v733 = vunpack.c.l.b16 %v150
  %v734 = vunpack.c.l.b16 %v151
  %v735 = vunpack.c.l.b16 %v152
  %v736 = vunpack.c.l.b16 %v153
  %v737 = vunpack.c.l.b16 %v154
  %v738 = vunpack.c.l.b16 %v155
  %v739 = vunpack.c.l.b16 %v156
  %v740 = vunpack.c.l.b16 %v157
  %v741 = vunpack.c.l.b16 %v158
  %v742 = vunpack.c.l.b16 %v159
  %v743 = vunpack.c.l.b16 %v160
  %v744 = vunpack.c.l.b16 %v161
  %v745 = vunpack.c.l.b16 %v162
  %v746 = vunpack.c.l.b16 %v163
  %v747 = vunpack.c.l.b16 %v164
  %v748 = vunpack.c.l.b16 %v165
  %v749 = vunpack.c.l.b16 %v166
  %v750 = vunpack.c.l.b16 %v167
  %v751 = vunpack.c.l.b16 %v168
  %v752 = vunpack.c.l.b16 %v169
  %v753 = vunpack.c.l.b16 %v170
  %v754 = vunpack.c.l.b16 %v171
  %v755 = vunpack.c.l.b16 %v172
  %v756 = vunpack.c.l.b16 %v173
  %v757 = vunpack.c.l.b16 %v174
  %v758 = vunpack.c.l.b16 %v175
  %v759 = vunpack.c.l.b16 %v176
  %v760 = vunpack.c.l.b16 %v177
  %v761 = vunpack.c.l.b16 %v178
  %v762 = vunpack.c.l.b16 %v179
  %v763 = vunpack.c.l.b16 %v180
  %v764 = vunpack.c.l.b16 %v181
  %v765 = vunpack.c.l.b16 %v182
  %v766 = vunpack.c.l.b16 %v183
  %v767 = vunpack.c.l.b16 %v184
  %v768 = vunpack.c.l.b16 %v185
  %v769 = vunpack.c.l.b16 %v186
  %v770 = vunpack.c.l.b16 %v187
  %v771 = vunpack.c.l.b16 %v188
  %v772 = vunpack.c.l.b16 %v189
  %v773 = vunpack.c.l.b16 %v190
  %v774 = vunpack.c.l.b16 %v191
  %v775 = vunpack.c.l.b16 %v192
  %v776 = vunpack.c.l.b16 %v193
  %v777 = vunpack.c.l.b16 %v194
  %v778 = vunpack.c.l.b16 %v195
  %v779 = vunpack.c.l.b16 %v196
  %v780 = vunpack.c.l.b16 %v197
  %v781 = vunpack.c.l.b16 %v198
  %v782 = vunpack.c.l.b16 %v199
  %v783 = vunpack.c.l.b16 %v200
  %v784 = vunpack.c.l.b16 %v201
  %v785 = vunpack.c.l.b16 %v202
  %v786 = vunpack.c.l.b16 %v203
  %v787 = vunpack.c.l.b16 %v204
  %v788 = vunpack.c.l.b16 %v205
  %v789 = vunpack.c.l.b16 %v206
  %v790 = vpack.c.b16 %v663, %v662
  %v791 = vpack.c.b16 %v665, %v664
  %v792 = vpack.c.b16 %v667, %v666
  %v793 = vpack.c.b16 %v669, %v668
  %v794 = vpack.c.b16 %v671, %v670
  %v795 = vpack.c.b16 %v673, %v672
  %v796 = vpack.c.b16 %v675, %v674
  %v797 = vpack.c.b16 %v677, %v676
  %v798 = vpack.c.b16 %v679, %v678
  %v799 = vpack.c.b16 %v681, %v680
  %v800 = vpack.c.b16 %v683, %v682
  %v801 = vpack.c.b16 %v685, %v684
  %v802 = vpack.c.b16 %v687, %v686
  %v803 = vpack.c.b16 %v689, %v688
  %v804 = vpack.c.b16 %v691, %v690
  %v805 = vpack.c.b16 %v693, %v692
  %v806 = vpack.c.b16 %v695, %v694
  %v807 = vpack.c.b16 %v697, %v696
  %v808 = vpack.c.b16 %v699, %v698
  %v809 = vpack.c.b16 %v701, %v700
  %v810 = vpack.c.b16 %v703, %v702
  %v811 = vpack.c.b16 %v705, %v704
  %v812 = vpack.c.b16 %v707, %v706
  %v813 = vpack.c.b16 %v709, %v708
  %v814 = vpack.c.b16 %v711, %v710
  %v815 = vpack.c.b16 %v713, %v712
  %v816 = vpack.c.b16 %v715, %v714
  %v817 = vpack.c.b16 %v717, %v716
  %v818 = vpack.c.b16 %v719, %v718
  %v819 = vpack.c.b16 %v721, %v720
  %v820 = vpack.c.b16 %v723, %v722
  %v821 = vpack.c.b16 %v725, %v724
  %v822 = vpack.c.b16 %v727, %v726
  %v823 = vpack.c.b16 %v729, %v728
  %v824 = vpack.c.b16 %v731, %v730
  %v825 = vpack.c.b16 %v733, %v732
  %v826 = vpack.c.b16 %v735, %v734
  %v827 = vpack.c.b16 %v737, %v736
  %v828 = vpack.c.b16 %v739, %v738
  %v829 = vpack.c.b16 %v741, %v740
  %v830 = vpack.c.b16 %v743, %v742
  %v831 = vpack.c.b16 %v745, %v744
  %v832 = vpack.c.b16 %v747, %v746
  %v833 = vpack.c.b16 %v749, %v748
  %v834 = vpack.c.b16 %v751, %v750
  %v835 = vpack.c.b16 %v753, %v752
  %v836 = vpack.c.b16 %v755, %v754
  %v837 = vpack.c.b16 %v757, %v756
  %v838 = vpack.c.b16 %v759, %v758
  %v839 = vpack.c.b16 %v761, %v760
  %v840 = vpack.c.b16 %v763, %v762
  %v841 = vpack.c.b16 %v765, %v764
  %v842 = vpack.c.b16 %v767, %v766
  %v843 = vpack.c.b16 %v769, %v768
  %v844 = vpack.c.b16 %v771, %v770
  %v845 = vpack.c.b16 %v773, %v772
  %v846 = vpack.c.b16 %v775, %v774
  %v847 = vpack.c.b16 %v777, %v776
  %v848 = vpack.c.b16 %v779, %v778
  %v849 = vpack.c.b16 %v781, %v780
  %v850 = vpack.c.b16 %v783, %v782
  %v851 = vpack.c.b16 %v785, %v784
  %v852 = vpack.c.b16 %v787, %v786
  %v853 = vpack.c.b16 %v789, %v788
  %918 = vmatprep.subr.bf16.mxu0 0
  %919 = vmatpush1.bf16.msra.mxu0 %v790
  %920 = vmatprep.subr.bf16.mxu0 0
  %921 = vmatpush1.bf16.msra.mxu0 %v791
  %922 = vmatprep.subr.bf16.mxu0 0
  %923 = vmatpush1.bf16.msra.mxu0 %v792
  %924 = vmatprep.subr.bf16.mxu0 0
  %925 = vmatpush1.bf16.msra.mxu0 %v793
  %926 = vmatprep.subr.bf16.mxu0 0
  %927 = vmatpush1.bf16.msra.mxu0 %v794
  %928 = vmatprep.subr.bf16.mxu0 0
  %929 = vmatpush1.bf16.msra.mxu0 %v795
  %930 = vmatprep.subr.bf16.mxu0 0
  %931 = vmatpush1.bf16.msra.mxu0 %v796
  %932 = vmatprep.subr.bf16.mxu0 0
  %933 = vmatpush1.bf16.msra.mxu0 %v797
  %934 = vmatprep.subr.bf16.mxu0 0
  %935 = vmatpush1.bf16.msra.mxu0 %v798
  %936 = vmatprep.subr.bf16.mxu0 0
  %937 = vmatpush1.bf16.msra.mxu0 %v799
  %938 = vmatprep.subr.bf16.mxu0 0
  %939 = vmatpush1.bf16.msra.mxu0 %v800
  %940 = vmatprep.subr.bf16.mxu0 0
  %941 = vmatpush1.bf16.msra.mxu0 %v801
  %942 = vmatprep.subr.bf16.mxu0 0
  %943 = vmatpush1.bf16.msra.mxu0 %v802
  %944 = vmatprep.subr.bf16.mxu0 0
  %945 = vmatpush1.bf16.msra.mxu0 %v803
  %946 = vmatprep.subr.bf16.mxu0 0
  %947 = vmatpush1.bf16.msra.mxu0 %v804
  %948 = vmatprep.subr.bf16.mxu0 0
  %949 = vmatpush1.bf16.msra.mxu0 %v805
  %950 = vmatprep.mubr.bf16.mxu0 %v407
  %951 = vmatmul.mubr.bf16.gmra.mrb[0].mxu0 %v406
  %v952 = vpop.f32.mrb[0].mxu0
  %v953 = vadd.f32 %v212, %v952
  %v954 = vpop.f32.mrb[0].mxu0
  %v955 = vpop.f32.mrb[0].mxu0
  %v956 = vadd.f32 %v212, %v955
  %v957 = vpop.f32.mrb[0].mxu0
  %958 = vmatprep.mubr.bf16.mxu0 %v415
  %959 = vmatmul.mubr.bf16.gmra.mrb[0].mxu0 %v414
  %v960 = vpop.f32.mrb[0].mxu0
  %v961 = vadd.f32 %v212, %v960
  %v962 = vpop.f32.mrb[0].mxu0
  %v963 = vpop.f32.mrb[0].mxu0
  %v964 = vadd.f32 %v212, %v963
  %v965 = vpop.f32.mrb[0].mxu0
  %966 = vmatprep.mubr.bf16.mxu0 %v423
  %967 = vmatmul.mubr.bf16.gmra.mrb[0].mxu0 %v422
  %v968 = vpop.f32.mrb[0].mxu0
  %v969 = vadd.f32 %v212, %v968
  %v970 = vpop.f32.mrb[0].mxu0
  %v971 = vpop.f32.mrb[0].mxu0
  %v972 = vadd.f32 %v212, %v971
  %v973 = vpop.f32.mrb[0].mxu0
  %974 = vmatprep.mubr.bf16.mxu0 %v431
  %975 = vmatmul.mubr.bf16.gmra.mrb[0].mxu0 %v430
  %v976 = vpop.f32.mrb[0].mxu0
  %v977 = vadd.f32 %v212, %v976
  %v978 = vpop.f32.mrb[0].mxu0
  %v979 = vpop.f32.mrb[0].mxu0
  %v980 = vadd.f32 %v212, %v979
  %v981 = vpop.f32.mrb[0].mxu0
  %982 = vmatprep.mubr.bf16.mxu0 %v439
  %983 = vmatmul.mubr.bf16.gmra.mrb[0].mxu0 %v438
  %v984 = vpop.f32.mrb[0].mxu0
  %v985 = vadd.f32 %v212, %v984
  %v986 = vpop.f32.mrb[0].mxu0
  %v987 = vpop.f32.mrb[0].mxu0
  %v988 = vadd.f32 %v212, %v987
  %v989 = vpop.f32.mrb[0].mxu0
  %990 = vmatprep.mubr.bf16.mxu0 %v447
  %991 = vmatmul.mubr.bf16.gmra.mrb[0].mxu0 %v446
  %v992 = vpop.f32.mrb[0].mxu0
  %v993 = vadd.f32 %v212, %v992
  %v994 = vpop.f32.mrb[0].mxu0
  %v995 = vpop.f32.mrb[0].mxu0
  %v996 = vadd.f32 %v212, %v995
  %v997 = vpop.f32.mrb[0].mxu0
  %998 = vmatprep.mubr.bf16.mxu0 %v455
  %999 = vmatmul.mubr.bf16.gmra.mrb[0].mxu0 %v454
  %v1000 = vpop.f32.mrb[0].mxu0
  %v1001 = vadd.f32 %v212, %v1000
  %v1002 = vpop.f32.mrb[0].mxu0
  %v1003 = vpop.f32.mrb[0].mxu0
  %v1004 = vadd.f32 %v212, %v1003
  %v1005 = vpop.f32.mrb[0].mxu0
  %1006 = vmatprep.mubr.bf16.mxu0 %v463
  %1007 = vmatmul.mubr.bf16.gmra.mrb[0].mxu0 %v462
  %v1008 = vpop.f32.mrb[0].mxu0
  %v1009 = vadd.f32 %v212, %v1008
  %v1010 = vpop.f32.mrb[0].mxu0
  %v1011 = vpop.f32.mrb[0].mxu0
  %v1012 = vadd.f32 %v212, %v1011
  %v1013 = vpop.f32.mrb[0].mxu0
  %1014 = vdwg.mxu0
  %1015 = vmatprep.subr.bf16.mxu0 0
  %1016 = vmatpush1.bf16.msra.mxu0 %v806
  %1017 = vmatprep.subr.bf16.mxu0 0
  %1018 = vmatpush1.bf16.msra.mxu0 %v807
  %1019 = vmatprep.subr.bf16.mxu0 0
  %1020 = vmatpush1.bf16.msra.mxu0 %v808
  %1021 = vmatprep.subr.bf16.mxu0 0
  %1022 = vmatpush1.bf16.msra.mxu0 %v809
  %1023 = vmatprep.subr.bf16.mxu0 0
  %1024 = vmatpush1.bf16.msra.mxu0 %v810
  %1025 = vmatprep.subr.bf16.mxu0 0
  %1026 = vmatpush1.bf16.msra.mxu0 %v811
  %1027 = vmatprep.subr.bf16.mxu0 0
  %1028 = vmatpush1.bf16.msra.mxu0 %v812
  %1029 = vmatprep.subr.bf16.mxu0 0
  %1030 = vmatpush1.bf16.msra.mxu0 %v813
  %1031 = vmatprep.subr.bf16.mxu0 0
  %1032 = vmatpush1.bf16.msra.mxu0 %v814
  %1033 = vmatprep.subr.bf16.mxu0 0
  %1034 = vmatpush1.bf16.msra.mxu0 %v815
  %1035 = vmatprep.subr.bf16.mxu0 0
  %1036 = vmatpush1.bf16.msra.mxu0 %v816
  %1037 = vmatprep.subr.bf16.mxu0 0
  %1038 = vmatpush1.bf16.msra.mxu0 %v817
  %1039 = vmatprep.subr.bf16.mxu0 0
  %1040 = vmatpush1.bf16.msra.mxu0 %v818
  %1041 = vmatprep.subr.bf16.mxu0 0
  %1042 = vmatpush1.bf16.msra.mxu0 %v819
  %1043 = vmatprep.subr.bf16.mxu0 0
  %1044 = vmatpush1.bf16.msra.mxu0 %v820
  %1045 = vmatprep.subr.bf16.mxu0 0
  %1046 = vmatpush1.bf16.msra.mxu0 %v821
  %1047 = vmatprep.mubr.bf16.mxu0 %v409
  %1048 = vmatmul.mubr.bf16.gmra.mrb[0].mxu0 %v408
  %v1049 = vpop.f32.mrb[0].mxu0
  %v1050 = vadd.f32 %v953, %v1049
  %v1051 = vpop.f32.mrb[0].mxu0
  %v1052 = vpop.f32.mrb[0].mxu0
  %v1053 = vadd.f32 %v956, %v1052
  %v1054 = vpop.f32.mrb[0].mxu0
  %1055 = vmatprep.mubr.bf16.mxu0 %v417
  %1056 = vmatmul.mubr.bf16.gmra.mrb[0].mxu0 %v416
  %v1057 = vpop.f32.mrb[0].mxu0
  %v1058 = vadd.f32 %v961, %v1057
  %v1059 = vpop.f32.mrb[0].mxu0
  %v1060 = vpop.f32.mrb[0].mxu0
  %v1061 = vadd.f32 %v964, %v1060
  %v1062 = vpop.f32.mrb[0].mxu0
  %1063 = vmatprep.mubr.bf16.mxu0 %v425
  %1064 = vmatmul.mubr.bf16.gmra.mrb[0].mxu0 %v424
  %v1065 = vpop.f32.mrb[0].mxu0
  %v1066 = vadd.f32 %v969, %v1065
  %v1067 = vpop.f32.mrb[0].mxu0
  %v1068 = vpop.f32.mrb[0].mxu0
  %v1069 = vadd.f32 %v972, %v1068
  %v1070 = vpop.f32.mrb[0].mxu0
  %1071 = vmatprep.mubr.bf16.mxu0 %v433
  %1072 = vmatmul.mubr.bf16.gmra.mrb[0].mxu0 %v432
  %v1073 = vpop.f32.mrb[0].mxu0
  %v1074 = vadd.f32 %v977, %v1073
  %v1075 = vpop.f32.mrb[0].mxu0
  %v1076 = vpop.f32.mrb[0].mxu0
  %v1077 = vadd.f32 %v980, %v1076
  %v1078 = vpop.f32.mrb[0].mxu0
  %1079 = vmatprep.mubr.bf16.mxu0 %v441
  %1080 = vmatmul.mubr.bf16.gmra.mrb[0].mxu0 %v440
  %v1081 = vpop.f32.mrb[0].mxu0
  %v1082 = vadd.f32 %v985, %v1081
  %v1083 = vpop.f32.mrb[0].mxu0
  %v1084 = vpop.f32.mrb[0].mxu0
  %v1085 = vadd.f32 %v988, %v1084
  %v1086 = vpop.f32.mrb[0].mxu0
  %1087 = vmatprep.mubr.bf16.mxu0 %v449
  %1088 = vmatmul.mubr.bf16.gmra.mrb[0].mxu0 %v448
  %v1089 = vpop.f32.mrb[0].mxu0
  %v1090 = vadd.f32 %v993, %v1089
  %v1091 = vpop.f32.mrb[0].mxu0
  %v1092 = vpop.f32.mrb[0].mxu0
  %v1093 = vadd.f32 %v996, %v1092
  %v1094 = vpop.f32.mrb[0].mxu0
  %1095 = vmatprep.mubr.bf16.mxu0 %v457
  %1096 = vmatmul.mubr.bf16.gmra.mrb[0].mxu0 %v456
  %v1097 = vpop.f32.mrb[0].mxu0
  %v1098 = vadd.f32 %v1001, %v1097
  %v1099 = vpop.f32.mrb[0].mxu0
  %v1100 = vpop.f32.mrb[0].mxu0
  %v1101 = vadd.f32 %v1004, %v1100
  %v1102 = vpop.f32.mrb[0].mxu0
  %1103 = vmatprep.mubr.bf16.mxu0 %v465
  %1104 = vmatmul.mubr.bf16.gmra.mrb[0].mxu0 %v464
  %v1105 = vpop.f32.mrb[0].mxu0
  %v1106 = vadd.f32 %v1009, %v1105
  %v1107 = vpop.f32.mrb[0].mxu0
  %v1108 = vpop.f32.mrb[0].mxu0
  %v1109 = vadd.f32 %v1012, %v1108
  %v1110 = vpop.f32.mrb[0].mxu0
  %1111 = vdwg.mxu0
  %1112 = vmatprep.subr.bf16.mxu0 0
  %1113 = vmatpush1.bf16.msra.mxu0 %v822
  %1114 = vmatprep.subr.bf16.mxu0 0
  %1115 = vmatpush1.bf16.msra.mxu0 %v823
  %1116 = vmatprep.subr.bf16.mxu0 0
  %1117 = vmatpush1.bf16.msra.mxu0 %v824
  %1118 = vmatprep.subr.bf16.mxu0 0
  %1119 = vmatpush1.bf16.msra.mxu0 %v825
  %1120 = vmatprep.subr.bf16.mxu0 0
  %1121 = vmatpush1.bf16.msra.mxu0 %v826
  %1122 = vmatprep.subr.bf16.mxu0 0
  %1123 = vmatpush1.bf16.msra.mxu0 %v827
  %1124 = vmatprep.subr.bf16.mxu0 0
  %1125 = vmatpush1.bf16.msra.mxu0 %v828
  %1126 = vmatprep.subr.bf16.mxu0 0
  %1127 = vmatpush1.bf16.msra.mxu0 %v829
  %1128 = vmatprep.subr.bf16.mxu0 0
  %1129 = vmatpush1.bf16.msra.mxu0 %v830
  %1130 = vmatprep.subr.bf16.mxu0 0
  %1131 = vmatpush1.bf16.msra.mxu0 %v831
  %1132 = vmatprep.subr.bf16.mxu0 0
  %1133 = vmatpush1.bf16.msra.mxu0 %v832
  %1134 = vmatprep.subr.bf16.mxu0 0
  %1135 = vmatpush1.bf16.msra.mxu0 %v833
  %1136 = vmatprep.subr.bf16.mxu0 0
  %1137 = vmatpush1.bf16.msra.mxu0 %v834
  %1138 = vmatprep.subr.bf16.mxu0 0
  %1139 = vmatpush1.bf16.msra.mxu0 %v835
  %1140 = vmatprep.subr.bf16.mxu0 0
  %1141 = vmatpush1.bf16.msra.mxu0 %v836
  %1142 = vmatprep.subr.bf16.mxu0 0
  %1143 = vmatpush1.bf16.msra.mxu0 %v837
  %1144 = vmatprep.mubr.bf16.mxu0 %v411
  %1145 = vmatmul.mubr.bf16.gmra.mrb[0].mxu0 %v410
  %v1146 = vpop.f32.mrb[0].mxu0
  %v1147 = vadd.f32 %v1050, %v1146
  %v1148 = vpop.f32.mrb[0].mxu0
  %v1149 = vpop.f32.mrb[0].mxu0
  %v1150 = vadd.f32 %v1053, %v1149
  %v1151 = vpop.f32.mrb[0].mxu0
  %1152 = vmatprep.mubr.bf16.mxu0 %v419
  %1153 = vmatmul.mubr.bf16.gmra.mrb[0].mxu0 %v418
  %v1154 = vpop.f32.mrb[0].mxu0
  %v1155 = vadd.f32 %v1058, %v1154
  %v1156 = vpop.f32.mrb[0].mxu0
  %v1157 = vpop.f32.mrb[0].mxu0
  %v1158 = vadd.f32 %v1061, %v1157
  %v1159 = vpop.f32.mrb[0].mxu0
  %1160 = vmatprep.mubr.bf16.mxu0 %v427
  %1161 = vmatmul.mubr.bf16.gmra.mrb[0].mxu0 %v426
  %v1162 = vpop.f32.mrb[0].mxu0
  %v1163 = vadd.f32 %v1066, %v1162
  %v1164 = vpop.f32.mrb[0].mxu0
  %v1165 = vpop.f32.mrb[0].mxu0
  %v1166 = vadd.f32 %v1069, %v1165
  %v1167 = vpop.f32.mrb[0].mxu0
  %1168 = vmatprep.mubr.bf16.mxu0 %v435
  %1169 = vmatmul.mubr.bf16.gmra.mrb[0].mxu0 %v434
  %v1170 = vpop.f32.mrb[0].mxu0
  %v1171 = vadd.f32 %v1074, %v1170
  %v1172 = vpop.f32.mrb[0].mxu0
  %v1173 = vpop.f32.mrb[0].mxu0
  %v1174 = vadd.f32 %v1077, %v1173
  %v1175 = vpop.f32.mrb[0].mxu0
  %1176 = vmatprep.mubr.bf16.mxu0 %v443
  %1177 = vmatmul.mubr.bf16.gmra.mrb[0].mxu0 %v442
  %v1178 = vpop.f32.mrb[0].mxu0
  %v1179 = vadd.f32 %v1082, %v1178
  %v1180 = vpop.f32.mrb[0].mxu0
  %v1181 = vpop.f32.mrb[0].mxu0
  %v1182 = vadd.f32 %v1085, %v1181
  %v1183 = vpop.f32.mrb[0].mxu0
  %1184 = vmatprep.mubr.bf16.mxu0 %v451
  %1185 = vmatmul.mubr.bf16.gmra.mrb[0].mxu0 %v450
  %v1186 = vpop.f32.mrb[0].mxu0
  %v1187 = vadd.f32 %v1090, %v1186
  %v1188 = vpop.f32.mrb[0].mxu0
  %v1189 = vpop.f32.mrb[0].mxu0
  %v1190 = vadd.f32 %v1093, %v1189
  %v1191 = vpop.f32.mrb[0].mxu0
  %1192 = vmatprep.mubr.bf16.mxu0 %v459
  %1193 = vmatmul.mubr.bf16.gmra.mrb[0].mxu0 %v458
  %v1194 = vpop.f32.mrb[0].mxu0
  %v1195 = vadd.f32 %v1098, %v1194
  %v1196 = vpop.f32.mrb[0].mxu0
  %v1197 = vpop.f32.mrb[0].mxu0
  %v1198 = vadd.f32 %v1101, %v1197
  %v1199 = vpop.f32.mrb[0].mxu0
  %1200 = vmatprep.mubr.bf16.mxu0 %v467
  %1201 = vmatmul.mubr.bf16.gmra.mrb[0].mxu0 %v466
  %v1202 = vpop.f32.mrb[0].mxu0
  %v1203 = vadd.f32 %v1106, %v1202
  %v1204 = vpop.f32.mrb[0].mxu0
  %v1205 = vpop.f32.mrb[0].mxu0
  %v1206 = vadd.f32 %v1109, %v1205
  %v1207 = vpop.f32.mrb[0].mxu0
  %1208 = vdwg.mxu0
  %1209 = vmatprep.subr.bf16.mxu0 0
  %1210 = vmatpush1.bf16.msra.mxu0 %v838
  %1211 = vmatprep.subr.bf16.mxu0 0
  %1212 = vmatpush1.bf16.msra.mxu0 %v839
  %1213 = vmatprep.subr.bf16.mxu0 0
  %1214 = vmatpush1.bf16.msra.mxu0 %v840
  %1215 = vmatprep.subr.bf16.mxu0 0
  %1216 = vmatpush1.bf16.msra.mxu0 %v841
  %1217 = vmatprep.subr.bf16.mxu0 0
  %1218 = vmatpush1.bf16.msra.mxu0 %v842
  %1219 = vmatprep.subr.bf16.mxu0 0
  %1220 = vmatpush1.bf16.msra.mxu0 %v843
  %1221 = vmatprep.subr.bf16.mxu0 0
  %1222 = vmatpush1.bf16.msra.mxu0 %v844
  %1223 = vmatprep.subr.bf16.mxu0 0
  %1224 = vmatpush1.bf16.msra.mxu0 %v845
  %1225 = vmatprep.subr.bf16.mxu0 0
  %1226 = vmatpush1.bf16.msra.mxu0 %v846
  %1227 = vmatprep.subr.bf16.mxu0 0
  %1228 = vmatpush1.bf16.msra.mxu0 %v847
  %1229 = vmatprep.subr.bf16.mxu0 0
  %1230 = vmatpush1.bf16.msra.mxu0 %v848
  %1231 = vmatprep.subr.bf16.mxu0 0
  %1232 = vmatpush1.bf16.msra.mxu0 %v849
  %1233 = vmatprep.subr.bf16.mxu0 0
  %1234 = vmatpush1.bf16.msra.mxu0 %v850
  %1235 = vmatprep.subr.bf16.mxu0 0
  %1236 = vmatpush1.bf16.msra.mxu0 %v851
  %1237 = vmatprep.subr.bf16.mxu0 0
  %1238 = vmatpush1.bf16.msra.mxu0 %v852
  %1239 = vmatprep.subr.bf16.mxu0 0
  %1240 = vmatpush1.bf16.msra.mxu0 %v853
  %1241 = vmatprep.mubr.bf16.mxu0 %v413
  %1242 = vmatmul.mubr.bf16.gmra.mrb[0].mxu0 %v412
  %v1243 = vpop.f32.mrb[0].mxu0
  %v1244 = vadd.f32 %v1147, %v1243
  %v1245 = vpop.f32.mrb[0].mxu0
  %v1246 = vpop.f32.mrb[0].mxu0
  %v1247 = vadd.f32 %v1150, %v1246
  %v1248 = vpop.f32.mrb[0].mxu0
  %1249 = vmatprep.mubr.bf16.mxu0 %v421
  %1250 = vmatmul.mubr.bf16.gmra.mrb[0].mxu0 %v420
  %v1251 = vpop.f32.mrb[0].mxu0
  %v1252 = vadd.f32 %v1155, %v1251
  %v1253 = vpop.f32.mrb[0].mxu0
  %v1254 = vpop.f32.mrb[0].mxu0
  %v1255 = vadd.f32 %v1158, %v1254
  %v1256 = vpop.f32.mrb[0].mxu0
  %1257 = vmatprep.mubr.bf16.mxu0 %v429
  %1258 = vmatmul.mubr.bf16.gmra.mrb[0].mxu0 %v428
  %v1259 = vpop.f32.mrb[0].mxu0
  %v1260 = vadd.f32 %v1163, %v1259
  %v1261 = vpop.f32.mrb[0].mxu0
  %v1262 = vpop.f32.mrb[0].mxu0
  %v1263 = vadd.f32 %v1166, %v1262
  %v1264 = vpop.f32.mrb[0].mxu0
  %1265 = vmatprep.mubr.bf16.mxu0 %v437
  %1266 = vmatmul.mubr.bf16.gmra.mrb[0].mxu0 %v436
  %v1267 = vpop.f32.mrb[0].mxu0
  %v1268 = vadd.f32 %v1171, %v1267
  %v1269 = vpop.f32.mrb[0].mxu0
  %v1270 = vpop.f32.mrb[0].mxu0
  %v1271 = vadd.f32 %v1174, %v1270
  %v1272 = vpop.f32.mrb[0].mxu0
  %1273 = vmatprep.mubr.bf16.mxu0 %v445
  %1274 = vmatmul.mubr.bf16.gmra.mrb[0].mxu0 %v444
  %v1275 = vpop.f32.mrb[0].mxu0
  %v1276 = vadd.f32 %v1179, %v1275
  %v1277 = vpop.f32.mrb[0].mxu0
  %v1278 = vpop.f32.mrb[0].mxu0
  %v1279 = vadd.f32 %v1182, %v1278
  %v1280 = vpop.f32.mrb[0].mxu0
  %1281 = vmatprep.mubr.bf16.mxu0 %v453
  %1282 = vmatmul.mubr.bf16.gmra.mrb[0].mxu0 %v452
  %v1283 = vpop.f32.mrb[0].mxu0
  %v1284 = vadd.f32 %v1187, %v1283
  %v1285 = vpop.f32.mrb[0].mxu0
  %v1286 = vpop.f32.mrb[0].mxu0
  %v1287 = vadd.f32 %v1190, %v1286
  %v1288 = vpop.f32.mrb[0].mxu0
  %1289 = vmatprep.mubr.bf16.mxu0 %v461
  %1290 = vmatmul.mubr.bf16.gmra.mrb[0].mxu0 %v460
  %v1291 = vpop.f32.mrb[0].mxu0
  %v1292 = vadd.f32 %v1195, %v1291
  %v1293 = vpop.f32.mrb[0].mxu0
  %v1294 = vpop.f32.mrb[0].mxu0
  %v1295 = vadd.f32 %v1198, %v1294
  %v1296 = vpop.f32.mrb[0].mxu0
  %1297 = vmatprep.mubr.bf16.mxu0 %v469
  %1298 = vmatmul.mubr.bf16.gmra.mrb[0].mxu0 %v468
  %v1299 = vpop.f32.mrb[0].mxu0
  %v1300 = vadd.f32 %v1203, %v1299
  %v1301 = vpop.f32.mrb[0].mxu0
  %v1302 = vpop.f32.mrb[0].mxu0
  %v1303 = vadd.f32 %v1206, %v1302
  %v1304 = vpop.f32.mrb[0].mxu0
  %1305 = vdwg.mxu0
  %vm1306 = vcmp.gt.f32.partialorder %v1244, 0.0
  %vm1307 = vcmp.gt.f32.partialorder %v1247, 0.0
  %vm1308 = vcmp.gt.f32.partialorder %v1252, 0.0
  %vm1309 = vcmp.gt.f32.partialorder %v1255, 0.0
  %vm1310 = vcmp.gt.f32.partialorder %v1260, 0.0
  %vm1311 = vcmp.gt.f32.partialorder %v1263, 0.0
  %vm1312 = vcmp.gt.f32.partialorder %v1268, 0.0
  %vm1313 = vcmp.gt.f32.partialorder %v1271, 0.0
  %vm1314 = vcmp.gt.f32.partialorder %v1276, 0.0
  %vm1315 = vcmp.gt.f32.partialorder %v1279, 0.0
  %vm1316 = vcmp.gt.f32.partialorder %v1284, 0.0
  %vm1317 = vcmp.gt.f32.partialorder %v1287, 0.0
  %vm1318 = vcmp.gt.f32.partialorder %v1292, 0.0
  %vm1319 = vcmp.gt.f32.partialorder %v1295, 0.0
  %vm1320 = vcmp.gt.f32.partialorder %v1300, 0.0
  %vm1321 = vcmp.gt.f32.partialorder %v1303, 0.0
  %v1322 = vmin.f32 %v1244, 0.0
  %v1323 = vmin.f32 %v1247, 0.0
  %v1324 = vmin.f32 %v1252, 0.0
  %v1325 = vmin.f32 %v1255, 0.0
  %v1326 = vmin.f32 %v1260, 0.0
  %v1327 = vmin.f32 %v1263, 0.0
  %v1328 = vmin.f32 %v1268, 0.0
  %v1329 = vmin.f32 %v1271, 0.0
  %v1330 = vmin.f32 %v1276, 0.0
  %v1331 = vmin.f32 %v1279, 0.0
  %v1332 = vmin.f32 %v1284, 0.0
  %v1333 = vmin.f32 %v1287, 0.0
  %v1334 = vmin.f32 %v1292, 0.0
  %v1335 = vmin.f32 %v1295, 0.0
  %v1336 = vmin.f32 %v1300, 0.0
  %v1337 = vmin.f32 %v1303, 0.0
  %v1338 = vmul.f32 %v1322, 1.442695
  %v1339 = vpow.pop %v1338
  %v1340 = vmul.f32 %v1323, 1.442695
  %v1341 = vpow.pop %v1340
  %v1342 = vmul.f32 %v1324, 1.442695
  %v1343 = vpow.pop %v1342
  %v1344 = vmul.f32 %v1325, 1.442695
  %v1345 = vpow.pop %v1344
  %v1346 = vmul.f32 %v1326, 1.442695
  %v1347 = vpow.pop %v1346
  %v1348 = vmul.f32 %v1327, 1.442695
  %v1349 = vpow.pop %v1348
  %v1350 = vmul.f32 %v1328, 1.442695
  %v1351 = vpow.pop %v1350
  %v1352 = vmul.f32 %v1329, 1.442695
  %v1353 = vpow.pop %v1352
  %v1354 = vmul.f32 %v1330, 1.442695
  %v1355 = vpow.pop %v1354
  %v1356 = vmul.f32 %v1331, 1.442695
  %v1357 = vpow.pop %v1356
  %v1358 = vmul.f32 %v1332, 1.442695
  %v1359 = vpow.pop %v1358
  %v1360 = vmul.f32 %v1333, 1.442695
  %v1361 = vpow.pop %v1360
  %v1362 = vmul.f32 %v1334, 1.442695
  %v1363 = vpow.pop %v1362
  %v1364 = vmul.f32 %v1335, 1.442695
  %v1365 = vpow.pop %v1364
  %v1366 = vmul.f32 %v1336, 1.442695
  %v1367 = vpow.pop %v1366
  %v1368 = vmul.f32 %v1337, 1.442695
  %v1369 = vpow.pop %v1368
  %v1370 = vsub.f32 %v1339, 1.0
  %v1371 = vsub.f32 %v1341, 1.0
  %v1372 = vsub.f32 %v1343, 1.0
  %v1373 = vsub.f32 %v1345, 1.0
  %v1374 = vsub.f32 %v1347, 1.0
  %v1375 = vsub.f32 %v1349, 1.0
  %v1376 = vsub.f32 %v1351, 1.0
  %v1377 = vsub.f32 %v1353, 1.0
  %v1378 = vsub.f32 %v1355, 1.0
  %v1379 = vsub.f32 %v1357, 1.0
  %v1380 = vsub.f32 %v1359, 1.0
  %v1381 = vsub.f32 %v1361, 1.0
  %v1382 = vsub.f32 %v1363, 1.0
  %v1383 = vsub.f32 %v1365, 1.0
  %v1384 = vsub.f32 %v1367, 1.0
  %v1385 = vsub.f32 %v1369, 1.0
  %v1386 = vsel %vm1306, %v1244, %v1370
  %v1387 = vsel %vm1307, %v1247, %v1371
  %v1388 = vsel %vm1308, %v1252, %v1372
  %v1389 = vsel %vm1309, %v1255, %v1373
  %v1390 = vsel %vm1310, %v1260, %v1374
  %v1391 = vsel %vm1311, %v1263, %v1375
  %v1392 = vsel %vm1312, %v1268, %v1376
  %v1393 = vsel %vm1313, %v1271, %v1377
  %v1394 = vsel %vm1314, %v1276, %v1378
  %v1395 = vsel %vm1315, %v1279, %v1379
  %v1396 = vsel %vm1316, %v1284, %v1380
  %v1397 = vsel %vm1317, %v1287, %v1381
  %v1398 = vsel %vm1318, %v1292, %v1382
  %v1399 = vsel %vm1319, %v1295, %v1383
  %v1400 = vsel %vm1320, %v1300, %v1384
  %v1401 = vsel %vm1321, %v1303, %v1385
  %vm1402 = vcmask 523264
  %1403 = vst.msk [vmem:[%s3] sm:$0xff] %vm1402, %v1386
  %1404 = vst.msk [vmem:[%s3 + $0x8] sm:$0xff] %vm1402, %v1387
  %1405 = vst.msk [vmem:[%s3 + $0x10] sm:$0xff] %vm1402, %v1388
  %1406 = vst.msk [vmem:[%s3 + $0x18] sm:$0xff] %vm1402, %v1389
  %1407 = vst.msk [vmem:[%s3 + $0x20] sm:$0xff] %vm1402, %v1390
  %1408 = vst.msk [vmem:[%s3 + $0x28] sm:$0xff] %vm1402, %v1391
  %1409 = vst.msk [vmem:[%s3 + $0x30] sm:$0xff] %vm1402, %v1392
  %1410 = vst.msk [vmem:[%s3 + $0x38] sm:$0xff] %vm1402, %v1393
  %1411 = vst.msk [vmem:[%s3 + $0x40] sm:$0xff] %vm1402, %v1394
  %1412 = vst.msk [vmem:[%s3 + $0x48] sm:$0xff] %vm1402, %v1395
  %1413 = vst.msk [vmem:[%s3 + $0x50] sm:$0xff] %vm1402, %v1396
  %1414 = vst.msk [vmem:[%s3 + $0x58] sm:$0xff] %vm1402, %v1397
  %1415 = vst.msk [vmem:[%s3 + $0x60] sm:$0xff] %vm1402, %v1398
  %1416 = vst.msk [vmem:[%s3 + $0x68] sm:$0xff] %vm1402, %v1399
  %1417 = vst.msk [vmem:[%s3 + $0x70] sm:$0xff] %vm1402, %v1400
  %1418 = vst.msk [vmem:[%s3 + $0x78] sm:$0xff] %vm1402, %v1401
  // Predicated region
  $region14: #{pctnet_forward.11} parent=0 // pred_check
    _
  $region15: #{pctnet_forward.11} parent=0 // pred_check_branch
    %1420 = sbr.rel (0) target = $region17
  $region16: #{pctnet_forward.11} parent=0 // pred_region
    _
  $region17: #{pctnet_forward.11} parent=0 // pred_fallthru
    _
  // Predicated region
  $region18: #{pctnet_forward.11} parent=0 // pred_check
    _
  $region19: #{pctnet_forward.11} parent=0 // pred_check_branch
    %1422 = sbr.rel (0) target = $region21
  $region20: #{pctnet_forward.11} parent=0 // pred_region
    _
  $region21: #{pctnet_forward.11} parent=0 // pred_fallthru
    _

// kernel: pctnet_forward.12
$region0: #{pctnet_forward.12}
  #allocation0 [shape = 'u32[]', space=smem, size = 0x4, offset = 0x4, fixed_abs, tag = 'smem constant byte address 0x4 - core index']
  #allocation1 [shape = 'u32[144,128]{1,0:T(1,128)}', space=vmem, size = 0x12000, scoped, tag = 'internal scratch']
  %s0 = inlined_call_operand.vmem [shape: bf16[32,1024], index: 0, kind: input, shape index: {}]
  %s1 = inlined_call_operand.vmem [shape: bf16[1024,128], index: 1, kind: input, shape index: {}]
  %s2 = inlined_call_operand.vmem [shape: f32[1,128], index: 2, kind: input, shape index: {}]
  %s3 = inlined_call_operand.vmem [shape: f32[32,128], index: 3, kind: output, shape index: {}]
  %s4 = sld [smem:[#allocation0]]
  $region22: #{pctnet_forward.12} parent=0
    _
  %s6 = ssub.s32 1, %s4
  %s7 = scalar_select 0, %s6, %s4
  // Predicated region
  $region2: #{pctnet_forward.12} parent=0 // pred_check
    _
  $region3: #{pctnet_forward.12} parent=0 // pred_check_branch
    %9 = sbr.rel (0) target = $region5
  $region4: #{pctnet_forward.12} parent=0 // pred_region
    _
  $region5: #{pctnet_forward.12} parent=0 // pred_fallthru
    _
  // Predicated region
  $region6: #{pctnet_forward.12} parent=0 // pred_check
    _
  $region7: #{pctnet_forward.12} parent=0 // pred_check_branch
    %11 = sbr.rel (0) target = $region9
  $region8: #{pctnet_forward.12} parent=0 // pred_region
    _
  $region9: #{pctnet_forward.12} parent=0 // pred_fallthru
    _
  // Predicated region
  $region10: #{pctnet_forward.12} parent=0 // pred_check
    _
  $region11: #{pctnet_forward.12} parent=0 // pred_check_branch
    %13 = sbr.rel (0) target = $region13
  $region12: #{pctnet_forward.12} parent=0 // pred_region
    _
  $region13: #{pctnet_forward.12} parent=0 // pred_fallthru
    _
  %v15 = vld [vmem:[%s0] sm:$0xff]
  %v16 = vld [vmem:[%s0 + $0x8] sm:$0xff]
  %v17 = vld [vmem:[%s0 + $0x10] sm:$0xff]
  %v18 = vld [vmem:[%s0 + $0x18] sm:$0xff]
  %v19 = vld [vmem:[%s0 + $0x20] sm:$0xff]
  %v20 = vld [vmem:[%s0 + $0x28] sm:$0xff]
  %v21 = vld [vmem:[%s0 + $0x30] sm:$0xff]
  %v22 = vld [vmem:[%s0 + $0x38] sm:$0xff]
  %v23 = vld [vmem:[%s0 + $0x40] sm:$0xff]
  %v24 = vld [vmem:[%s0 + $0x48] sm:$0xff]
  %v25 = vld [vmem:[%s0 + $0x50] sm:$0xff]
  %v26 = vld [vmem:[%s0 + $0x58] sm:$0xff]
  %v27 = vld [vmem:[%s0 + $0x60] sm:$0xff]
  %v28 = vld [vmem:[%s0 + $0x68] sm:$0xff]
  %v29 = vld [vmem:[%s0 + $0x70] sm:$0xff]
  %v30 = vld [vmem:[%s0 + $0x78] sm:$0xff]
  %v31 = vld [vmem:[%s1] sm:$0xf]
  %v32 = vld [vmem:[%s1 + $0x4] sm:$0xf]
  %v33 = vld [vmem:[%s1 + $0x8] sm:$0xf]
  %v34 = vld [vmem:[%s1 + $0xc] sm:$0xf]
  %v35 = vld [vmem:[%s1 + $0x10] sm:$0xf]
  %v36 = vld [vmem:[%s1 + $0x14] sm:$0xf]
  %v37 = vld [vmem:[%s1 + $0x18] sm:$0xf]
  %v38 = vld [vmem:[%s1 + $0x1c] sm:$0xf]
  %v39 = vld [vmem:[%s1 + $0x20] sm:$0xf]
  %v40 = vld [vmem:[%s1 + $0x24] sm:$0xf]
  %v41 = vld [vmem:[%s1 + $0x28] sm:$0xf]
  %v42 = vld [vmem:[%s1 + $0x2c] sm:$0xf]
  %v43 = vld [vmem:[%s1 + $0x30] sm:$0xf]
  %v44 = vld [vmem:[%s1 + $0x34] sm:$0xf]
  %v45 = vld [vmem:[%s1 + $0x38] sm:$0xf]
  %v46 = vld [vmem:[%s1 + $0x3c] sm:$0xf]
  %v47 = vld [vmem:[%s1 + $0x40] sm:$0xf]
  %v48 = vld [vmem:[%s1 + $0x44] sm:$0xf]
  %v49 = vld [vmem:[%s1 + $0x48] sm:$0xf]
  %v50 = vld [vmem:[%s1 + $0x4c] sm:$0xf]
  %v51 = vld [vmem:[%s1 + $0x50] sm:$0xf]
  %v52 = vld [vmem:[%s1 + $0x54] sm:$0xf]
  %v53 = vld [vmem:[%s1 + $0x58] sm:$0xf]
  %v54 = vld [vmem:[%s1 + $0x5c] sm:$0xf]
  %v55 = vld [vmem:[%s1 + $0x60] sm:$0xf]
  %v56 = vld [vmem:[%s1 + $0x64] sm:$0xf]
  %v57 = vld [vmem:[%s1 + $0x68] sm:$0xf]
  %v58 = vld [vmem:[%s1 + $0x6c] sm:$0xf]
  %v59 = vld [vmem:[%s1 + $0x70] sm:$0xf]
  %v60 = vld [vmem:[%s1 + $0x74] sm:$0xf]
  %v61 = vld [vmem:[%s1 + $0x78] sm:$0xf]
  %v62 = vld [vmem:[%s1 + $0x7c] sm:$0xf]
  %v63 = vld [vmem:[%s1 + $0x80] sm:$0xf]
  %v64 = vld [vmem:[%s1 + $0x84] sm:$0xf]
  %v65 = vld [vmem:[%s1 + $0x88] sm:$0xf]
  %v66 = vld [vmem:[%s1 + $0x8c] sm:$0xf]
  %v67 = vld [vmem:[%s1 + $0x90] sm:$0xf]
  %v68 = vld [vmem:[%s1 + $0x94] sm:$0xf]
  %v69 = vld [vmem:[%s1 + $0x98] sm:$0xf]
  %v70 = vld [vmem:[%s1 + $0x9c] sm:$0xf]
  %v71 = vld [vmem:[%s1 + $0xa0] sm:$0xf]
  %v72 = vld [vmem:[%s1 + $0xa4] sm:$0xf]
  %v73 = vld [vmem:[%s1 + $0xa8] sm:$0xf]
  %v74 = vld [vmem:[%s1 + $0xac] sm:$0xf]
  %v75 = vld [vmem:[%s1 + $0xb0] sm:$0xf]
  %v76 = vld [vmem:[%s1 + $0xb4] sm:$0xf]
  %v77 = vld [vmem:[%s1 + $0xb8] sm:$0xf]
  %v78 = vld [vmem:[%s1 + $0xbc] sm:$0xf]
  %v79 = vld [vmem:[%s1 + $0xc0] sm:$0xf]
  %v80 = vld [vmem:[%s1 + $0xc4] sm:$0xf]
  %v81 = vld [vmem:[%s1 + $0xc8] sm:$0xf]
  %v82 = vld [vmem:[%s1 + $0xcc] sm:$0xf]
  %v83 = vld [vmem:[%s1 + $0xd0] sm:$0xf]
  %v84 = vld [vmem:[%s1 + $0xd4] sm:$0xf]
  %v85 = vld [vmem:[%s1 + $0xd8] sm:$0xf]
  %v86 = vld [vmem:[%s1 + $0xdc] sm:$0xf]
  %v87 = vld [vmem:[%s1 + $0xe0] sm:$0xf]
  %v88 = vld [vmem:[%s1 + $0xe4] sm:$0xf]
  %v89 = vld [vmem:[%s1 + $0xe8] sm:$0xf]
  %v90 = vld [vmem:[%s1 + $0xec] sm:$0xf]
  %v91 = vld [vmem:[%s1 + $0xf0] sm:$0xf]
  %v92 = vld [vmem:[%s1 + $0xf4] sm:$0xf]
  %v93 = vld [vmem:[%s1 + $0xf8] sm:$0xf]
  %v94 = vld [vmem:[%s1 + $0xfc] sm:$0xf]
  %v95 = vld [vmem:[%s1 + $0x100] sm:$0xf]
  %v96 = vld [vmem:[%s1 + $0x104] sm:$0xf]
  %v97 = vld [vmem:[%s1 + $0x108] sm:$0xf]
  %v98 = vld [vmem:[%s1 + $0x10c] sm:$0xf]
  %v99 = vld [vmem:[%s1 + $0x110] sm:$0xf]
  %v100 = vld [vmem:[%s1 + $0x114] sm:$0xf]
  %v101 = vld [vmem:[%s1 + $0x118] sm:$0xf]
  %v102 = vld [vmem:[%s1 + $0x11c] sm:$0xf]
  %v103 = vld [vmem:[%s1 + $0x120] sm:$0xf]
  %v104 = vld [vmem:[%s1 + $0x124] sm:$0xf]
  %v105 = vld [vmem:[%s1 + $0x128] sm:$0xf]
  %v106 = vld [vmem:[%s1 + $0x12c] sm:$0xf]
  %v107 = vld [vmem:[%s1 + $0x130] sm:$0xf]
  %v108 = vld [vmem:[%s1 + $0x134] sm:$0xf]
  %v109 = vld [vmem:[%s1 + $0x138] sm:$0xf]
  %v110 = vld [vmem:[%s1 + $0x13c] sm:$0xf]
  %v111 = vld [vmem:[%s1 + $0x140] sm:$0xf]
  %v112 = vld [vmem:[%s1 + $0x144] sm:$0xf]
  %v113 = vld [vmem:[%s1 + $0x148] sm:$0xf]
  %v114 = vld [vmem:[%s1 + $0x14c] sm:$0xf]
  %v115 = vld [vmem:[%s1 + $0x150] sm:$0xf]
  %v116 = vld [vmem:[%s1 + $0x154] sm:$0xf]
  %v117 = vld [vmem:[%s1 + $0x158] sm:$0xf]
  %v118 = vld [vmem:[%s1 + $0x15c] sm:$0xf]
  %v119 = vld [vmem:[%s1 + $0x160] sm:$0xf]
  %v120 = vld [vmem:[%s1 + $0x164] sm:$0xf]
  %v121 = vld [vmem:[%s1 + $0x168] sm:$0xf]
  %v122 = vld [vmem:[%s1 + $0x16c] sm:$0xf]
  %v123 = vld [vmem:[%s1 + $0x170] sm:$0xf]
  %v124 = vld [vmem:[%s1 + $0x174] sm:$0xf]
  %v125 = vld [vmem:[%s1 + $0x178] sm:$0xf]
  %v126 = vld [vmem:[%s1 + $0x17c] sm:$0xf]
  %v127 = vld [vmem:[%s1 + $0x180] sm:$0xf]
  %v128 = vld [vmem:[%s1 + $0x184] sm:$0xf]
  %v129 = vld [vmem:[%s1 + $0x188] sm:$0xf]
  %v130 = vld [vmem:[%s1 + $0x18c] sm:$0xf]
  %v131 = vld [vmem:[%s1 + $0x190] sm:$0xf]
  %v132 = vld [vmem:[%s1 + $0x194] sm:$0xf]
  %v133 = vld [vmem:[%s1 + $0x198] sm:$0xf]
  %v134 = vld [vmem:[%s1 + $0x19c] sm:$0xf]
  %v135 = vld [vmem:[%s1 + $0x1a0] sm:$0xf]
  %v136 = vld [vmem:[%s1 + $0x1a4] sm:$0xf]
  %v137 = vld [vmem:[%s1 + $0x1a8] sm:$0xf]
  %v138 = vld [vmem:[%s1 + $0x1ac] sm:$0xf]
  %v139 = vld [vmem:[%s1 + $0x1b0] sm:$0xf]
  %v140 = vld [vmem:[%s1 + $0x1b4] sm:$0xf]
  %v141 = vld [vmem:[%s1 + $0x1b8] sm:$0xf]
  %v142 = vld [vmem:[%s1 + $0x1bc] sm:$0xf]
  %v143 = vld [vmem:[%s1 + $0x1c0] sm:$0xf]
  %v144 = vld [vmem:[%s1 + $0x1c4] sm:$0xf]
  %v145 = vld [vmem:[%s1 + $0x1c8] sm:$0xf]
  %v146 = vld [vmem:[%s1 + $0x1cc] sm:$0xf]
  %v147 = vld [vmem:[%s1 + $0x1d0] sm:$0xf]
  %v148 = vld [vmem:[%s1 + $0x1d4] sm:$0xf]
  %v149 = vld [vmem:[%s1 + $0x1d8] sm:$0xf]
  %v150 = vld [vmem:[%s1 + $0x1dc] sm:$0xf]
  %v151 = vld [vmem:[%s1 + $0x1e0] sm:$0xf]
  %v152 = vld [vmem:[%s1 + $0x1e4] sm:$0xf]
  %v153 = vld [vmem:[%s1 + $0x1e8] sm:$0xf]
  %v154 = vld [vmem:[%s1 + $0x1ec] sm:$0xf]
  %v155 = vld [vmem:[%s1 + $0x1f0] sm:$0xf]
  %v156 = vld [vmem:[%s1 + $0x1f4] sm:$0xf]
  %v157 = vld [vmem:[%s1 + $0x1f8] sm:$0xf]
  %v158 = vld [vmem:[%s1 + $0x1fc] sm:$0xf]
  %v159 = vld [vmem:[%s2] sm:$0x1]
  %v161 = vlaneseq
  %v162 = vshrl.u32 %v161, 7
  %v163 = vsub.s32 0, %v162
  %v164 = vrot.slane %v159, %v163
  %v182 = vunpack.c.l.b16 %v15
  %v183 = vunpack.c.h.b16 %v15
  %v184 = vunpack.c.l.b16 %v16
  %v185 = vunpack.c.h.b16 %v16
  %v186 = vunpack.c.l.b16 %v17
  %v187 = vunpack.c.h.b16 %v17
  %v188 = vunpack.c.l.b16 %v18
  %v189 = vunpack.c.h.b16 %v18
  %v190 = vunpack.c.l.b16 %v19
  %v191 = vunpack.c.h.b16 %v19
  %v192 = vunpack.c.l.b16 %v20
  %v193 = vunpack.c.h.b16 %v20
  %v194 = vunpack.c.l.b16 %v21
  %v195 = vunpack.c.h.b16 %v21
  %v196 = vunpack.c.l.b16 %v22
  %v197 = vunpack.c.h.b16 %v22
  %v198 = vunpack.c.l.b16 %v23
  %v199 = vunpack.c.h.b16 %v23
  %v200 = vunpack.c.l.b16 %v24
  %v201 = vunpack.c.h.b16 %v24
  %v202 = vunpack.c.l.b16 %v25
  %v203 = vunpack.c.h.b16 %v25
  %v204 = vunpack.c.l.b16 %v26
  %v205 = vunpack.c.h.b16 %v26
  %v206 = vunpack.c.l.b16 %v27
  %v207 = vunpack.c.h.b16 %v27
  %v208 = vunpack.c.l.b16 %v28
  %v209 = vunpack.c.h.b16 %v28
  %v210 = vunpack.c.l.b16 %v29
  %v211 = vunpack.c.h.b16 %v29
  %v212 = vunpack.c.l.b16 %v30
  %v213 = vunpack.c.h.b16 %v30
  %v214 = vpack.c.b16 %v190, %v182
  %v215 = vpack.c.b16 %v191, %v183
  %v216 = vpack.c.b16 %v192, %v184
  %v217 = vpack.c.b16 %v193, %v185
  %v218 = vpack.c.b16 %v194, %v186
  %v219 = vpack.c.b16 %v195, %v187
  %v220 = vpack.c.b16 %v196, %v188
  %v221 = vpack.c.b16 %v197, %v189
  %v222 = vpack.c.b16 %v206, %v198
  %v223 = vpack.c.b16 %v207, %v199
  %v224 = vpack.c.b16 %v208, %v200
  %v225 = vpack.c.b16 %v209, %v201
  %v226 = vpack.c.b16 %v210, %v202
  %v227 = vpack.c.b16 %v211, %v203
  %v228 = vpack.c.b16 %v212, %v204
  %v229 = vpack.c.b16 %v213, %v205
  %v374 = vunpack.c.l.b16 %v31
  %v375 = vunpack.c.l.b16 %v32
  %v376 = vunpack.c.l.b16 %v33
  %v377 = vunpack.c.l.b16 %v34
  %v378 = vunpack.c.l.b16 %v35
  %v379 = vunpack.c.l.b16 %v36
  %v380 = vunpack.c.l.b16 %v37
  %v381 = vunpack.c.l.b16 %v38
  %v382 = vunpack.c.l.b16 %v39
  %v383 = vunpack.c.l.b16 %v40
  %v384 = vunpack.c.l.b16 %v41
  %v385 = vunpack.c.l.b16 %v42
  %v386 = vunpack.c.l.b16 %v43
  %v387 = vunpack.c.l.b16 %v44
  %v388 = vunpack.c.l.b16 %v45
  %v389 = vunpack.c.l.b16 %v46
  %v390 = vunpack.c.l.b16 %v47
  %v391 = vunpack.c.l.b16 %v48
  %v392 = vunpack.c.l.b16 %v49
  %v393 = vunpack.c.l.b16 %v50
  %v394 = vunpack.c.l.b16 %v51
  %v395 = vunpack.c.l.b16 %v52
  %v396 = vunpack.c.l.b16 %v53
  %v397 = vunpack.c.l.b16 %v54
  %v398 = vunpack.c.l.b16 %v55
  %v399 = vunpack.c.l.b16 %v56
  %v400 = vunpack.c.l.b16 %v57
  %v401 = vunpack.c.l.b16 %v58
  %v402 = vunpack.c.l.b16 %v59
  %v403 = vunpack.c.l.b16 %v60
  %v404 = vunpack.c.l.b16 %v61
  %v405 = vunpack.c.l.b16 %v62
  %v406 = vunpack.c.l.b16 %v63
  %v407 = vunpack.c.l.b16 %v64
  %v408 = vunpack.c.l.b16 %v65
  %v409 = vunpack.c.l.b16 %v66
  %v410 = vunpack.c.l.b16 %v67
  %v411 = vunpack.c.l.b16 %v68
  %v412 = vunpack.c.l.b16 %v69
  %v413 = vunpack.c.l.b16 %v70
  %v414 = vunpack.c.l.b16 %v71
  %v415 = vunpack.c.l.b16 %v72
  %v416 = vunpack.c.l.b16 %v73
  %v417 = vunpack.c.l.b16 %v74
  %v418 = vunpack.c.l.b16 %v75
  %v419 = vunpack.c.l.b16 %v76
  %v420 = vunpack.c.l.b16 %v77
  %v421 = vunpack.c.l.b16 %v78
  %v422 = vunpack.c.l.b16 %v79
  %v423 = vunpack.c.l.b16 %v80
  %v424 = vunpack.c.l.b16 %v81
  %v425 = vunpack.c.l.b16 %v82
  %v426 = vunpack.c.l.b16 %v83
  %v427 = vunpack.c.l.b16 %v84
  %v428 = vunpack.c.l.b16 %v85
  %v429 = vunpack.c.l.b16 %v86
  %v430 = vunpack.c.l.b16 %v87
  %v431 = vunpack.c.l.b16 %v88
  %v432 = vunpack.c.l.b16 %v89
  %v433 = vunpack.c.l.b16 %v90
  %v434 = vunpack.c.l.b16 %v91
  %v435 = vunpack.c.l.b16 %v92
  %v436 = vunpack.c.l.b16 %v93
  %v437 = vunpack.c.l.b16 %v94
  %v438 = vunpack.c.l.b16 %v95
  %v439 = vunpack.c.l.b16 %v96
  %v440 = vunpack.c.l.b16 %v97
  %v441 = vunpack.c.l.b16 %v98
  %v442 = vunpack.c.l.b16 %v99
  %v443 = vunpack.c.l.b16 %v100
  %v444 = vunpack.c.l.b16 %v101
  %v445 = vunpack.c.l.b16 %v102
  %v446 = vunpack.c.l.b16 %v103
  %v447 = vunpack.c.l.b16 %v104
  %v448 = vunpack.c.l.b16 %v105
  %v449 = vunpack.c.l.b16 %v106
  %v450 = vunpack.c.l.b16 %v107
  %v451 = vunpack.c.l.b16 %v108
  %v452 = vunpack.c.l.b16 %v109
  %v453 = vunpack.c.l.b16 %v110
  %v454 = vunpack.c.l.b16 %v111
  %v455 = vunpack.c.l.b16 %v112
  %v456 = vunpack.c.l.b16 %v113
  %v457 = vunpack.c.l.b16 %v114
  %v458 = vunpack.c.l.b16 %v115
  %v459 = vunpack.c.l.b16 %v116
  %v460 = vunpack.c.l.b16 %v117
  %v461 = vunpack.c.l.b16 %v118
  %v462 = vunpack.c.l.b16 %v119
  %v463 = vunpack.c.l.b16 %v120
  %v464 = vunpack.c.l.b16 %v121
  %v465 = vunpack.c.l.b16 %v122
  %v466 = vunpack.c.l.b16 %v123
  %v467 = vunpack.c.l.b16 %v124
  %v468 = vunpack.c.l.b16 %v125
  %v469 = vunpack.c.l.b16 %v126
  %v470 = vunpack.c.l.b16 %v127
  %v471 = vunpack.c.l.b16 %v128
  %v472 = vunpack.c.l.b16 %v129
  %v473 = vunpack.c.l.b16 %v130
  %v474 = vunpack.c.l.b16 %v131
  %v475 = vunpack.c.l.b16 %v132
  %v476 = vunpack.c.l.b16 %v133
  %v477 = vunpack.c.l.b16 %v134
  %v478 = vunpack.c.l.b16 %v135
  %v479 = vunpack.c.l.b16 %v136
  %v480 = vunpack.c.l.b16 %v137
  %v481 = vunpack.c.l.b16 %v138
  %v482 = vunpack.c.l.b16 %v139
  %v483 = vunpack.c.l.b16 %v140
  %v484 = vunpack.c.l.b16 %v141
  %v485 = vunpack.c.l.b16 %v142
  %v486 = vunpack.c.l.b16 %v143
  %v487 = vunpack.c.l.b16 %v144
  %v488 = vunpack.c.l.b16 %v145
  %v489 = vunpack.c.l.b16 %v146
  %v490 = vunpack.c.l.b16 %v147
  %v491 = vunpack.c.l.b16 %v148
  %v492 = vunpack.c.l.b16 %v149
  %v493 = vunpack.c.l.b16 %v150
  %v494 = vunpack.c.l.b16 %v151
  %v495 = vunpack.c.l.b16 %v152
  %v496 = vunpack.c.l.b16 %v153
  %v497 = vunpack.c.l.b16 %v154
  %v498 = vunpack.c.l.b16 %v155
  %v499 = vunpack.c.l.b16 %v156
  %v500 = vunpack.c.l.b16 %v157
  %v501 = vunpack.c.l.b16 %v158
  %v502 = vpack.c.b16 %v375, %v374
  %v503 = vpack.c.b16 %v377, %v376
  %v504 = vpack.c.b16 %v379, %v378
  %v505 = vpack.c.b16 %v381, %v380
  %v506 = vpack.c.b16 %v383, %v382
  %v507 = vpack.c.b16 %v385, %v384
  %v508 = vpack.c.b16 %v387, %v386
  %v509 = vpack.c.b16 %v389, %v388
  %v510 = vpack.c.b16 %v391, %v390
  %v511 = vpack.c.b16 %v393, %v392
  %v512 = vpack.c.b16 %v395, %v394
  %v513 = vpack.c.b16 %v397, %v396
  %v514 = vpack.c.b16 %v399, %v398
  %v515 = vpack.c.b16 %v401, %v400
  %v516 = vpack.c.b16 %v403, %v402
  %v517 = vpack.c.b16 %v405, %v404
  %v518 = vpack.c.b16 %v407, %v406
  %v519 = vpack.c.b16 %v409, %v408
  %v520 = vpack.c.b16 %v411, %v410
  %v521 = vpack.c.b16 %v413, %v412
  %v522 = vpack.c.b16 %v415, %v414
  %v523 = vpack.c.b16 %v417, %v416
  %v524 = vpack.c.b16 %v419, %v418
  %v525 = vpack.c.b16 %v421, %v420
  %v526 = vpack.c.b16 %v423, %v422
  %v527 = vpack.c.b16 %v425, %v424
  %v528 = vpack.c.b16 %v427, %v426
  %v529 = vpack.c.b16 %v429, %v428
  %v530 = vpack.c.b16 %v431, %v430
  %v531 = vpack.c.b16 %v433, %v432
  %v532 = vpack.c.b16 %v435, %v434
  %v533 = vpack.c.b16 %v437, %v436
  %v534 = vpack.c.b16 %v439, %v438
  %v535 = vpack.c.b16 %v441, %v440
  %v536 = vpack.c.b16 %v443, %v442
  %v537 = vpack.c.b16 %v445, %v444
  %v538 = vpack.c.b16 %v447, %v446
  %v539 = vpack.c.b16 %v449, %v448
  %v540 = vpack.c.b16 %v451, %v450
  %v541 = vpack.c.b16 %v453, %v452
  %v542 = vpack.c.b16 %v455, %v454
  %v543 = vpack.c.b16 %v457, %v456
  %v544 = vpack.c.b16 %v459, %v458
  %v545 = vpack.c.b16 %v461, %v460
  %v546 = vpack.c.b16 %v463, %v462
  %v547 = vpack.c.b16 %v465, %v464
  %v548 = vpack.c.b16 %v467, %v466
  %v549 = vpack.c.b16 %v469, %v468
  %v550 = vpack.c.b16 %v471, %v470
  %v551 = vpack.c.b16 %v473, %v472
  %v552 = vpack.c.b16 %v475, %v474
  %v553 = vpack.c.b16 %v477, %v476
  %v554 = vpack.c.b16 %v479, %v478
  %v555 = vpack.c.b16 %v481, %v480
  %v556 = vpack.c.b16 %v483, %v482
  %v557 = vpack.c.b16 %v485, %v484
  %v558 = vpack.c.b16 %v487, %v486
  %v559 = vpack.c.b16 %v489, %v488
  %v560 = vpack.c.b16 %v491, %v490
  %v561 = vpack.c.b16 %v493, %v492
  %v562 = vpack.c.b16 %v495, %v494
  %v563 = vpack.c.b16 %v497, %v496
  %v564 = vpack.c.b16 %v499, %v498
  %v565 = vpack.c.b16 %v501, %v500
  %630 = vmatprep.subr.bf16.mxu0 0
  %631 = vmatpush1.bf16.msra.mxu0 %v502
  %632 = vmatprep.subr.bf16.mxu0 0
  %633 = vmatpush1.bf16.msra.mxu0 %v503
  %634 = vmatprep.subr.bf16.mxu0 0
  %635 = vmatpush1.bf16.msra.mxu0 %v504
  %636 = vmatprep.subr.bf16.mxu0 0
  %637 = vmatpush1.bf16.msra.mxu0 %v505
  %638 = vmatprep.subr.bf16.mxu0 0
  %639 = vmatpush1.bf16.msra.mxu0 %v506
  %640 = vmatprep.subr.bf16.mxu0 0
  %641 = vmatpush1.bf16.msra.mxu0 %v507
  %642 = vmatprep.subr.bf16.mxu0 0
  %643 = vmatpush1.bf16.msra.mxu0 %v508
  %644 = vmatprep.subr.bf16.mxu0 0
  %645 = vmatpush1.bf16.msra.mxu0 %v509
  %646 = vmatprep.subr.bf16.mxu0 0
  %647 = vmatpush1.bf16.msra.mxu0 %v510
  %648 = vmatprep.subr.bf16.mxu0 0
  %649 = vmatpush1.bf16.msra.mxu0 %v511
  %650 = vmatprep.subr.bf16.mxu0 0
  %651 = vmatpush1.bf16.msra.mxu0 %v512
  %652 = vmatprep.subr.bf16.mxu0 0
  %653 = vmatpush1.bf16.msra.mxu0 %v513
  %654 = vmatprep.subr.bf16.mxu0 0
  %655 = vmatpush1.bf16.msra.mxu0 %v514
  %656 = vmatprep.subr.bf16.mxu0 0
  %657 = vmatpush1.bf16.msra.mxu0 %v515
  %658 = vmatprep.subr.bf16.mxu0 0
  %659 = vmatpush1.bf16.msra.mxu0 %v516
  %660 = vmatprep.subr.bf16.mxu0 0
  %661 = vmatpush1.bf16.msra.mxu0 %v517
  %662 = vmatprep.mubr.bf16.mxu0 %v215
  %663 = vmatmul.mubr.bf16.gmra.mrb[0].mxu0 %v214
  %v664 = vpop.f32.mrb[0].mxu0
  %v665 = vadd.f32 %v164, %v664
  %v666 = vpop.f32.mrb[0].mxu0
  %v667 = vpop.f32.mrb[0].mxu0
  %v668 = vadd.f32 %v164, %v667
  %v669 = vpop.f32.mrb[0].mxu0
  %670 = vmatprep.mubr.bf16.mxu0 %v223
  %671 = vmatmul.mubr.bf16.gmra.mrb[0].mxu0 %v222
  %v672 = vpop.f32.mrb[0].mxu0
  %v673 = vadd.f32 %v164, %v672
  %v674 = vpop.f32.mrb[0].mxu0
  %v675 = vpop.f32.mrb[0].mxu0
  %v676 = vadd.f32 %v164, %v675
  %v677 = vpop.f32.mrb[0].mxu0
  %678 = vdwg.mxu0
  %679 = vmatprep.subr.bf16.mxu0 0
  %680 = vmatpush1.bf16.msra.mxu0 %v518
  %681 = vmatprep.subr.bf16.mxu0 0
  %682 = vmatpush1.bf16.msra.mxu0 %v519
  %683 = vmatprep.subr.bf16.mxu0 0
  %684 = vmatpush1.bf16.msra.mxu0 %v520
  %685 = vmatprep.subr.bf16.mxu0 0
  %686 = vmatpush1.bf16.msra.mxu0 %v521
  %687 = vmatprep.subr.bf16.mxu0 0
  %688 = vmatpush1.bf16.msra.mxu0 %v522
  %689 = vmatprep.subr.bf16.mxu0 0
  %690 = vmatpush1.bf16.msra.mxu0 %v523
  %691 = vmatprep.subr.bf16.mxu0 0
  %692 = vmatpush1.bf16.msra.mxu0 %v524
  %693 = vmatprep.subr.bf16.mxu0 0
  %694 = vmatpush1.bf16.msra.mxu0 %v525
  %695 = vmatprep.subr.bf16.mxu0 0
  %696 = vmatpush1.bf16.msra.mxu0 %v526
  %697 = vmatprep.subr.bf16.mxu0 0
  %698 = vmatpush1.bf16.msra.mxu0 %v527
  %699 = vmatprep.subr.bf16.mxu0 0
  %700 = vmatpush1.bf16.msra.mxu0 %v528
  %701 = vmatprep.subr.bf16.mxu0 0
  %702 = vmatpush1.bf16.msra.mxu0 %v529
  %703 = vmatprep.subr.bf16.mxu0 0
  %704 = vmatpush1.bf16.msra.mxu0 %v530
  %705 = vmatprep.subr.bf16.mxu0 0
  %706 = vmatpush1.bf16.msra.mxu0 %v531
  %707 = vmatprep.subr.bf16.mxu0 0
  %708 = vmatpush1.bf16.msra.mxu0 %v532
  %709 = vmatprep.subr.bf16.mxu0 0
  %710 = vmatpush1.bf16.msra.mxu0 %v533
  %711 = vmatprep.mubr.bf16.mxu0 %v217
  %712 = vmatmul.mubr.bf16.gmra.mrb[0].mxu0 %v216
  %v713 = vpop.f32.mrb[0].mxu0
  %v714 = vadd.f32 %v665, %v713
  %v715 = vpop.f32.mrb[0].mxu0
  %v716 = vpop.f32.mrb[0].mxu0
  %v717 = vadd.f32 %v668, %v716
  %v718 = vpop.f32.mrb[0].mxu0
  %719 = vmatprep.mubr.bf16.mxu0 %v225
  %720 = vmatmul.mubr.bf16.gmra.mrb[0].mxu0 %v224
  %v721 = vpop.f32.mrb[0].mxu0
  %v722 = vadd.f32 %v673, %v721
  %v723 = vpop.f32.mrb[0].mxu0
  %v724 = vpop.f32.mrb[0].mxu0
  %v725 = vadd.f32 %v676, %v724
  %v726 = vpop.f32.mrb[0].mxu0
  %727 = vdwg.mxu0
  %728 = vmatprep.subr.bf16.mxu0 0
  %729 = vmatpush1.bf16.msra.mxu0 %v534
  %730 = vmatprep.subr.bf16.mxu0 0
  %731 = vmatpush1.bf16.msra.mxu0 %v535
  %732 = vmatprep.subr.bf16.mxu0 0
  %733 = vmatpush1.bf16.msra.mxu0 %v536
  %734 = vmatprep.subr.bf16.mxu0 0
  %735 = vmatpush1.bf16.msra.mxu0 %v537
  %736 = vmatprep.subr.bf16.mxu0 0
  %737 = vmatpush1.bf16.msra.mxu0 %v538
  %738 = vmatprep.subr.bf16.mxu0 0
  %739 = vmatpush1.bf16.msra.mxu0 %v539
  %740 = vmatprep.subr.bf16.mxu0 0
  %741 = vmatpush1.bf16.msra.mxu0 %v540
  %742 = vmatprep.subr.bf16.mxu0 0
  %743 = vmatpush1.bf16.msra.mxu0 %v541
  %744 = vmatprep.subr.bf16.mxu0 0
  %745 = vmatpush1.bf16.msra.mxu0 %v542
  %746 = vmatprep.subr.bf16.mxu0 0
  %747 = vmatpush1.bf16.msra.mxu0 %v543
  %748 = vmatprep.subr.bf16.mxu0 0
  %749 = vmatpush1.bf16.msra.mxu0 %v544
  %750 = vmatprep.subr.bf16.mxu0 0
  %751 = vmatpush1.bf16.msra.mxu0 %v545
  %752 = vmatprep.subr.bf16.mxu0 0
  %753 = vmatpush1.bf16.msra.mxu0 %v546
  %754 = vmatprep.subr.bf16.mxu0 0
  %755 = vmatpush1.bf16.msra.mxu0 %v547
  %756 = vmatprep.subr.bf16.mxu0 0
  %757 = vmatpush1.bf16.msra.mxu0 %v548
  %758 = vmatprep.subr.bf16.mxu0 0
  %759 = vmatpush1.bf16.msra.mxu0 %v549
  %760 = vmatprep.mubr.bf16.mxu0 %v219
  %761 = vmatmul.mubr.bf16.gmra.mrb[0].mxu0 %v218
  %v762 = vpop.f32.mrb[0].mxu0
  %v763 = vadd.f32 %v714, %v762
  %v764 = vpop.f32.mrb[0].mxu0
  %v765 = vpop.f32.mrb[0].mxu0
  %v766 = vadd.f32 %v717, %v765
  %v767 = vpop.f32.mrb[0].mxu0
  %768 = vmatprep.mubr.bf16.mxu0 %v227
  %769 = vmatmul.mubr.bf16.gmra.mrb[0].mxu0 %v226
  %v770 = vpop.f32.mrb[0].mxu0
  %v771 = vadd.f32 %v722, %v770
  %v772 = vpop.f32.mrb[0].mxu0
  %v773 = vpop.f32.mrb[0].mxu0
  %v774 = vadd.f32 %v725, %v773
  %v775 = vpop.f32.mrb[0].mxu0
  %776 = vdwg.mxu0
  %777 = vmatprep.subr.bf16.mxu0 0
  %778 = vmatpush1.bf16.msra.mxu0 %v550
  %779 = vmatprep.subr.bf16.mxu0 0
  %780 = vmatpush1.bf16.msra.mxu0 %v551
  %781 = vmatprep.subr.bf16.mxu0 0
  %782 = vmatpush1.bf16.msra.mxu0 %v552
  %783 = vmatprep.subr.bf16.mxu0 0
  %784 = vmatpush1.bf16.msra.mxu0 %v553
  %785 = vmatprep.subr.bf16.mxu0 0
  %786 = vmatpush1.bf16.msra.mxu0 %v554
  %787 = vmatprep.subr.bf16.mxu0 0
  %788 = vmatpush1.bf16.msra.mxu0 %v555
  %789 = vmatprep.subr.bf16.mxu0 0
  %790 = vmatpush1.bf16.msra.mxu0 %v556
  %791 = vmatprep.subr.bf16.mxu0 0
  %792 = vmatpush1.bf16.msra.mxu0 %v557
  %793 = vmatprep.subr.bf16.mxu0 0
  %794 = vmatpush1.bf16.msra.mxu0 %v558
  %795 = vmatprep.subr.bf16.mxu0 0
  %796 = vmatpush1.bf16.msra.mxu0 %v559
  %797 = vmatprep.subr.bf16.mxu0 0
  %798 = vmatpush1.bf16.msra.mxu0 %v560
  %799 = vmatprep.subr.bf16.mxu0 0
  %800 = vmatpush1.bf16.msra.mxu0 %v561
  %801 = vmatprep.subr.bf16.mxu0 0
  %802 = vmatpush1.bf16.msra.mxu0 %v562
  %803 = vmatprep.subr.bf16.mxu0 0
  %804 = vmatpush1.bf16.msra.mxu0 %v563
  %805 = vmatprep.subr.bf16.mxu0 0
  %806 = vmatpush1.bf16.msra.mxu0 %v564
  %807 = vmatprep.subr.bf16.mxu0 0
  %808 = vmatpush1.bf16.msra.mxu0 %v565
  %809 = vmatprep.mubr.bf16.mxu0 %v221
  %810 = vmatmul.mubr.bf16.gmra.mrb[0].mxu0 %v220
  %v811 = vpop.f32.mrb[0].mxu0
  %v812 = vadd.f32 %v763, %v811
  %v813 = vpop.f32.mrb[0].mxu0
  %v814 = vpop.f32.mrb[0].mxu0
  %v815 = vadd.f32 %v766, %v814
  %v816 = vpop.f32.mrb[0].mxu0
  %817 = vmatprep.mubr.bf16.mxu0 %v229
  %818 = vmatmul.mubr.bf16.gmra.mrb[0].mxu0 %v228
  %v819 = vpop.f32.mrb[0].mxu0
  %v820 = vadd.f32 %v771, %v819
  %v821 = vpop.f32.mrb[0].mxu0
  %v822 = vpop.f32.mrb[0].mxu0
  %v823 = vadd.f32 %v774, %v822
  %v824 = vpop.f32.mrb[0].mxu0
  %825 = vdwg.mxu0
  %vm826 = vcmp.gt.f32.partialorder %v812, 0.0
  %vm827 = vcmp.gt.f32.partialorder %v815, 0.0
  %vm828 = vcmp.gt.f32.partialorder %v820, 0.0
  %vm829 = vcmp.gt.f32.partialorder %v823, 0.0
  %v830 = vmin.f32 %v812, 0.0
  %v831 = vmin.f32 %v815, 0.0
  %v832 = vmin.f32 %v820, 0.0
  %v833 = vmin.f32 %v823, 0.0
  %v834 = vmul.f32 %v830, 1.442695
  %v835 = vpow.pop %v834
  %v836 = vmul.f32 %v831, 1.442695
  %v837 = vpow.pop %v836
  %v838 = vmul.f32 %v832, 1.442695
  %v839 = vpow.pop %v838
  %v840 = vmul.f32 %v833, 1.442695
  %v841 = vpow.pop %v840
  %v842 = vsub.f32 %v835, 1.0
  %v843 = vsub.f32 %v837, 1.0
  %v844 = vsub.f32 %v839, 1.0
  %v845 = vsub.f32 %v841, 1.0
  %v846 = vsel %vm826, %v812, %v842
  %v847 = vsel %vm827, %v815, %v843
  %v848 = vsel %vm828, %v820, %v844
  %v849 = vsel %vm829, %v823, %v845
  %850 = vst [vmem:[%s3] sm:$0xff] %v846
  %851 = vst [vmem:[%s3 + $0x8] sm:$0xff] %v847
  %852 = vst [vmem:[%s3 + $0x10] sm:$0xff] %v848
  %853 = vst [vmem:[%s3 + $0x18] sm:$0xff] %v849
  // Predicated region
  $region14: #{pctnet_forward.12} parent=0 // pred_check
    _
  $region15: #{pctnet_forward.12} parent=0 // pred_check_branch
    %855 = sbr.rel (0) target = $region17
  $region16: #{pctnet_forward.12} parent=0 // pred_region
    _
  $region17: #{pctnet_forward.12} parent=0 // pred_fallthru
    _
  // Predicated region
  $region18: #{pctnet_forward.12} parent=0 // pred_check
    _
  $region19: #{pctnet_forward.12} parent=0 // pred_check_branch
    %857 = sbr.rel (0) target = $region21
  $region20: #{pctnet_forward.12} parent=0 // pred_region
    _
  $region21: #{pctnet_forward.12} parent=0 // pred_fallthru
    _

// kernel: pctnet_forward.13
$region0: #{pctnet_forward.13}
  #allocation0 [shape = 'u32[]', space=smem, size = 0x4, offset = 0x4, fixed_abs, tag = 'smem constant byte address 0x4 - core index']
  #allocation1 [shape = 'u32[144,128]{1,0:T(1,128)}', space=vmem, size = 0x12000, scoped, tag = 'internal scratch']
  %s0 = inlined_call_operand.vmem [shape: bf16[2,2048], index: 0, kind: input, shape index: {}]
  %s1 = inlined_call_operand.vmem [shape: bf16[2048,128], index: 1, kind: input, shape index: {}]
  %s2 = inlined_call_operand.vmem [shape: f32[1,128], index: 2, kind: input, shape index: {}]
  %s3 = inlined_call_operand.vmem [shape: f32[2,128], index: 3, kind: output, shape index: {}]
  %s4 = sld [smem:[#allocation0]]
  $region22: #{pctnet_forward.13} parent=0
    _
  %s6 = ssub.s32 1, %s4
  %s7 = scalar_select 0, %s6, %s4
  // Predicated region
  $region2: #{pctnet_forward.13} parent=0 // pred_check
    _
  $region3: #{pctnet_forward.13} parent=0 // pred_check_branch
    %9 = sbr.rel (0) target = $region5
  $region4: #{pctnet_forward.13} parent=0 // pred_region
    _
  $region5: #{pctnet_forward.13} parent=0 // pred_fallthru
    _
  // Predicated region
  $region6: #{pctnet_forward.13} parent=0 // pred_check
    _
  $region7: #{pctnet_forward.13} parent=0 // pred_check_branch
    %11 = sbr.rel (0) target = $region9
  $region8: #{pctnet_forward.13} parent=0 // pred_region
    _
  $region9: #{pctnet_forward.13} parent=0 // pred_fallthru
    _
  // Predicated region
  $region10: #{pctnet_forward.13} parent=0 // pred_check
    _
  $region11: #{pctnet_forward.13} parent=0 // pred_check_branch
    %13 = sbr.rel (0) target = $region13
  $region12: #{pctnet_forward.13} parent=0 // pred_region
    _
  $region13: #{pctnet_forward.13} parent=0 // pred_fallthru
    _
  %v15 = vld [vmem:[%s0] sm:$0xff]
  %v16 = vld [vmem:[%s0 + $0x8] sm:$0xff]
  %v17 = vld [vmem:[%s1] sm:$0xf]
  %v18 = vld [vmem:[%s1 + $0x4] sm:$0xf]
  %v19 = vld [vmem:[%s1 + $0x8] sm:$0xf]
  %v20 = vld [vmem:[%s1 + $0xc] sm:$0xf]
  %v21 = vld [vmem:[%s1 + $0x10] sm:$0xf]
  %v22 = vld [vmem:[%s1 + $0x14] sm:$0xf]
  %v23 = vld [vmem:[%s1 + $0x18] sm:$0xf]
  %v24 = vld [vmem:[%s1 + $0x1c] sm:$0xf]
  %v25 = vld [vmem:[%s1 + $0x20] sm:$0xf]
  %v26 = vld [vmem:[%s1 + $0x24] sm:$0xf]
  %v27 = vld [vmem:[%s1 + $0x28] sm:$0xf]
  %v28 = vld [vmem:[%s1 + $0x2c] sm:$0xf]
  %v29 = vld [vmem:[%s1 + $0x30] sm:$0xf]
  %v30 = vld [vmem:[%s1 + $0x34] sm:$0xf]
  %v31 = vld [vmem:[%s1 + $0x38] sm:$0xf]
  %v32 = vld [vmem:[%s1 + $0x3c] sm:$0xf]
  %v33 = vld [vmem:[%s1 + $0x40] sm:$0xf]
  %v34 = vld [vmem:[%s1 + $0x44] sm:$0xf]
  %v35 = vld [vmem:[%s1 + $0x48] sm:$0xf]
  %v36 = vld [vmem:[%s1 + $0x4c] sm:$0xf]
  %v37 = vld [vmem:[%s1 + $0x50] sm:$0xf]
  %v38 = vld [vmem:[%s1 + $0x54] sm:$0xf]
  %v39 = vld [vmem:[%s1 + $0x58] sm:$0xf]
  %v40 = vld [vmem:[%s1 + $0x5c] sm:$0xf]
  %v41 = vld [vmem:[%s1 + $0x60] sm:$0xf]
  %v42 = vld [vmem:[%s1 + $0x64] sm:$0xf]
  %v43 = vld [vmem:[%s1 + $0x68] sm:$0xf]
  %v44 = vld [vmem:[%s1 + $0x6c] sm:$0xf]
  %v45 = vld [vmem:[%s1 + $0x70] sm:$0xf]
  %v46 = vld [vmem:[%s1 + $0x74] sm:$0xf]
  %v47 = vld [vmem:[%s1 + $0x78] sm:$0xf]
  %v48 = vld [vmem:[%s1 + $0x7c] sm:$0xf]
  %v49 = vld [vmem:[%s1 + $0x80] sm:$0xf]
  %v50 = vld [vmem:[%s1 + $0x84] sm:$0xf]
  %v51 = vld [vmem:[%s1 + $0x88] sm:$0xf]
  %v52 = vld [vmem:[%s1 + $0x8c] sm:$0xf]
  %v53 = vld [vmem:[%s1 + $0x90] sm:$0xf]
  %v54 = vld [vmem:[%s1 + $0x94] sm:$0xf]
  %v55 = vld [vmem:[%s1 + $0x98] sm:$0xf]
  %v56 = vld [vmem:[%s1 + $0x9c] sm:$0xf]
  %v57 = vld [vmem:[%s1 + $0xa0] sm:$0xf]
  %v58 = vld [vmem:[%s1 + $0xa4] sm:$0xf]
  %v59 = vld [vmem:[%s1 + $0xa8] sm:$0xf]
  %v60 = vld [vmem:[%s1 + $0xac] sm:$0xf]
  %v61 = vld [vmem:[%s1 + $0xb0] sm:$0xf]
  %v62 = vld [vmem:[%s1 + $0xb4] sm:$0xf]
  %v63 = vld [vmem:[%s1 + $0xb8] sm:$0xf]
  %v64 = vld [vmem:[%s1 + $0xbc] sm:$0xf]
  %v65 = vld [vmem:[%s1 + $0xc0] sm:$0xf]
  %v66 = vld [vmem:[%s1 + $0xc4] sm:$0xf]
  %v67 = vld [vmem:[%s1 + $0xc8] sm:$0xf]
  %v68 = vld [vmem:[%s1 + $0xcc] sm:$0xf]
  %v69 = vld [vmem:[%s1 + $0xd0] sm:$0xf]
  %v70 = vld [vmem:[%s1 + $0xd4] sm:$0xf]
  %v71 = vld [vmem:[%s1 + $0xd8] sm:$0xf]
  %v72 = vld [vmem:[%s1 + $0xdc] sm:$0xf]
  %v73 = vld [vmem:[%s1 + $0xe0] sm:$0xf]
  %v74 = vld [vmem:[%s1 + $0xe4] sm:$0xf]
  %v75 = vld [vmem:[%s1 + $0xe8] sm:$0xf]
  %v76 = vld [vmem:[%s1 + $0xec] sm:$0xf]
  %v77 = vld [vmem:[%s1 + $0xf0] sm:$0xf]
  %v78 = vld [vmem:[%s1 + $0xf4] sm:$0xf]
  %v79 = vld [vmem:[%s1 + $0xf8] sm:$0xf]
  %v80 = vld [vmem:[%s1 + $0xfc] sm:$0xf]
  %v81 = vld [vmem:[%s1 + $0x100] sm:$0xf]
  %v82 = vld [vmem:[%s1 + $0x104] sm:$0xf]
  %v83 = vld [vmem:[%s1 + $0x108] sm:$0xf]
  %v84 = vld [vmem:[%s1 + $0x10c] sm:$0xf]
  %v85 = vld [vmem:[%s1 + $0x110] sm:$0xf]
  %v86 = vld [vmem:[%s1 + $0x114] sm:$0xf]
  %v87 = vld [vmem:[%s1 + $0x118] sm:$0xf]
  %v88 = vld [vmem:[%s1 + $0x11c] sm:$0xf]
  %v89 = vld [vmem:[%s1 + $0x120] sm:$0xf]
  %v90 = vld [vmem:[%s1 + $0x124] sm:$0xf]
  %v91 = vld [vmem:[%s1 + $0x128] sm:$0xf]
  %v92 = vld [vmem:[%s1 + $0x12c] sm:$0xf]
  %v93 = vld [vmem:[%s1 + $0x130] sm:$0xf]
  %v94 = vld [vmem:[%s1 + $0x134] sm:$0xf]
  %v95 = vld [vmem:[%s1 + $0x138] sm:$0xf]
  %v96 = vld [vmem:[%s1 + $0x13c] sm:$0xf]
  %v97 = vld [vmem:[%s1 + $0x140] sm:$0xf]
  %v98 = vld [vmem:[%s1 + $0x144] sm:$0xf]
  %v99 = vld [vmem:[%s1 + $0x148] sm:$0xf]
  %v100 = vld [vmem:[%s1 + $0x14c] sm:$0xf]
  %v101 = vld [vmem:[%s1 + $0x150] sm:$0xf]
  %v102 = vld [vmem:[%s1 + $0x154] sm:$0xf]
  %v103 = vld [vmem:[%s1 + $0x158] sm:$0xf]
  %v104 = vld [vmem:[%s1 + $0x15c] sm:$0xf]
  %v105 = vld [vmem:[%s1 + $0x160] sm:$0xf]
  %v106 = vld [vmem:[%s1 + $0x164] sm:$0xf]
  %v107 = vld [vmem:[%s1 + $0x168] sm:$0xf]
  %v108 = vld [vmem:[%s1 + $0x16c] sm:$0xf]
  %v109 = vld [vmem:[%s1 + $0x170] sm:$0xf]
  %v110 = vld [vmem:[%s1 + $0x174] sm:$0xf]
  %v111 = vld [vmem:[%s1 + $0x178] sm:$0xf]
  %v112 = vld [vmem:[%s1 + $0x17c] sm:$0xf]
  %v113 = vld [vmem:[%s1 + $0x180] sm:$0xf]
  %v114 = vld [vmem:[%s1 + $0x184] sm:$0xf]
  %v115 = vld [vmem:[%s1 + $0x188] sm:$0xf]
  %v116 = vld [vmem:[%s1 + $0x18c] sm:$0xf]
  %v117 = vld [vmem:[%s1 + $0x190] sm:$0xf]
  %v118 = vld [vmem:[%s1 + $0x194] sm:$0xf]
  %v119 = vld [vmem:[%s1 + $0x198] sm:$0xf]
  %v120 = vld [vmem:[%s1 + $0x19c] sm:$0xf]
  %v121 = vld [vmem:[%s1 + $0x1a0] sm:$0xf]
  %v122 = vld [vmem:[%s1 + $0x1a4] sm:$0xf]
  %v123 = vld [vmem:[%s1 + $0x1a8] sm:$0xf]
  %v124 = vld [vmem:[%s1 + $0x1ac] sm:$0xf]
  %v125 = vld [vmem:[%s1 + $0x1b0] sm:$0xf]
  %v126 = vld [vmem:[%s1 + $0x1b4] sm:$0xf]
  %v127 = vld [vmem:[%s1 + $0x1b8] sm:$0xf]
  %v128 = vld [vmem:[%s1 + $0x1bc] sm:$0xf]
  %v129 = vld [vmem:[%s1 + $0x1c0] sm:$0xf]
  %v130 = vld [vmem:[%s1 + $0x1c4] sm:$0xf]
  %v131 = vld [vmem:[%s1 + $0x1c8] sm:$0xf]
  %v132 = vld [vmem:[%s1 + $0x1cc] sm:$0xf]
  %v133 = vld [vmem:[%s1 + $0x1d0] sm:$0xf]
  %v134 = vld [vmem:[%s1 + $0x1d4] sm:$0xf]
  %v135 = vld [vmem:[%s1 + $0x1d8] sm:$0xf]
  %v136 = vld [vmem:[%s1 + $0x1dc] sm:$0xf]
  %v137 = vld [vmem:[%s1 + $0x1e0] sm:$0xf]
  %v138 = vld [vmem:[%s1 + $0x1e4] sm:$0xf]
  %v139 = vld [vmem:[%s1 + $0x1e8] sm:$0xf]
  %v140 = vld [vmem:[%s1 + $0x1ec] sm:$0xf]
  %v141 = vld [vmem:[%s1 + $0x1f0] sm:$0xf]
  %v142 = vld [vmem:[%s1 + $0x1f4] sm:$0xf]
  %v143 = vld [vmem:[%s1 + $0x1f8] sm:$0xf]
  %v144 = vld [vmem:[%s1 + $0x1fc] sm:$0xf]
  %v145 = vld [vmem:[%s1 + $0x200] sm:$0xf]
  %v146 = vld [vmem:[%s1 + $0x204] sm:$0xf]
  %v147 = vld [vmem:[%s1 + $0x208] sm:$0xf]
  %v148 = vld [vmem:[%s1 + $0x20c] sm:$0xf]
  %v149 = vld [vmem:[%s1 + $0x210] sm:$0xf]
  %v150 = vld [vmem:[%s1 + $0x214] sm:$0xf]
  %v151 = vld [vmem:[%s1 + $0x218] sm:$0xf]
  %v152 = vld [vmem:[%s1 + $0x21c] sm:$0xf]
  %v153 = vld [vmem:[%s1 + $0x220] sm:$0xf]
  %v154 = vld [vmem:[%s1 + $0x224] sm:$0xf]
  %v155 = vld [vmem:[%s1 + $0x228] sm:$0xf]
  %v156 = vld [vmem:[%s1 + $0x22c] sm:$0xf]
  %v157 = vld [vmem:[%s1 + $0x230] sm:$0xf]
  %v158 = vld [vmem:[%s1 + $0x234] sm:$0xf]
  %v159 = vld [vmem:[%s1 + $0x238] sm:$0xf]
  %v160 = vld [vmem:[%s1 + $0x23c] sm:$0xf]
  %v161 = vld [vmem:[%s1 + $0x240] sm:$0xf]
  %v162 = vld [vmem:[%s1 + $0x244] sm:$0xf]
  %v163 = vld [vmem:[%s1 + $0x248] sm:$0xf]
  %v164 = vld [vmem:[%s1 + $0x24c] sm:$0xf]
  %v165 = vld [vmem:[%s1 + $0x250] sm:$0xf]
  %v166 = vld [vmem:[%s1 + $0x254] sm:$0xf]
  %v167 = vld [vmem:[%s1 + $0x258] sm:$0xf]
  %v168 = vld [vmem:[%s1 + $0x25c] sm:$0xf]
  %v169 = vld [vmem:[%s1 + $0x260] sm:$0xf]
  %v170 = vld [vmem:[%s1 + $0x264] sm:$0xf]
  %v171 = vld [vmem:[%s1 + $0x268] sm:$0xf]
  %v172 = vld [vmem:[%s1 + $0x26c] sm:$0xf]
  %v173 = vld [vmem:[%s1 + $0x270] sm:$0xf]
  %v174 = vld [vmem:[%s1 + $0x274] sm:$0xf]
  %v175 = vld [vmem:[%s1 + $0x278] sm:$0xf]
  %v176 = vld [vmem:[%s1 + $0x27c] sm:$0xf]
  %v177 = vld [vmem:[%s1 + $0x280] sm:$0xf]
  %v178 = vld [vmem:[%s1 + $0x284] sm:$0xf]
  %v179 = vld [vmem:[%s1 + $0x288] sm:$0xf]
  %v180 = vld [vmem:[%s1 + $0x28c] sm:$0xf]
  %v181 = vld [vmem:[%s1 + $0x290] sm:$0xf]
  %v182 = vld [vmem:[%s1 + $0x294] sm:$0xf]
  %v183 = vld [vmem:[%s1 + $0x298] sm:$0xf]
  %v184 = vld [vmem:[%s1 + $0x29c] sm:$0xf]
  %v185 = vld [vmem:[%s1 + $0x2a0] sm:$0xf]
  %v186 = vld [vmem:[%s1 + $0x2a4] sm:$0xf]
  %v187 = vld [vmem:[%s1 + $0x2a8] sm:$0xf]
  %v188 = vld [vmem:[%s1 + $0x2ac] sm:$0xf]
  %v189 = vld [vmem:[%s1 + $0x2b0] sm:$0xf]
  %v190 = vld [vmem:[%s1 + $0x2b4] sm:$0xf]
  %v191 = vld [vmem:[%s1 + $0x2b8] sm:$0xf]
  %v192 = vld [vmem:[%s1 + $0x2bc] sm:$0xf]
  %v193 = vld [vmem:[%s1 + $0x2c0] sm:$0xf]
  %v194 = vld [vmem:[%s1 + $0x2c4] sm:$0xf]
  %v195 = vld [vmem:[%s1 + $0x2c8] sm:$0xf]
  %v196 = vld [vmem:[%s1 + $0x2cc] sm:$0xf]
  %v197 = vld [vmem:[%s1 + $0x2d0] sm:$0xf]
  %v198 = vld [vmem:[%s1 + $0x2d4] sm:$0xf]
  %v199 = vld [vmem:[%s1 + $0x2d8] sm:$0xf]
  %v200 = vld [vmem:[%s1 + $0x2dc] sm:$0xf]
  %v201 = vld [vmem:[%s1 + $0x2e0] sm:$0xf]
  %v202 = vld [vmem:[%s1 + $0x2e4] sm:$0xf]
  %v203 = vld [vmem:[%s1 + $0x2e8] sm:$0xf]
  %v204 = vld [vmem:[%s1 + $0x2ec] sm:$0xf]
  %v205 = vld [vmem:[%s1 + $0x2f0] sm:$0xf]
  %v206 = vld [vmem:[%s1 + $0x2f4] sm:$0xf]
  %v207 = vld [vmem:[%s1 + $0x2f8] sm:$0xf]
  %v208 = vld [vmem:[%s1 + $0x2fc] sm:$0xf]
  %v209 = vld [vmem:[%s1 + $0x300] sm:$0xf]
  %v210 = vld [vmem:[%s1 + $0x304] sm:$0xf]
  %v211 = vld [vmem:[%s1 + $0x308] sm:$0xf]
  %v212 = vld [vmem:[%s1 + $0x30c] sm:$0xf]
  %v213 = vld [vmem:[%s1 + $0x310] sm:$0xf]
  %v214 = vld [vmem:[%s1 + $0x314] sm:$0xf]
  %v215 = vld [vmem:[%s1 + $0x318] sm:$0xf]
  %v216 = vld [vmem:[%s1 + $0x31c] sm:$0xf]
  %v217 = vld [vmem:[%s1 + $0x320] sm:$0xf]
  %v218 = vld [vmem:[%s1 + $0x324] sm:$0xf]
  %v219 = vld [vmem:[%s1 + $0x328] sm:$0xf]
  %v220 = vld [vmem:[%s1 + $0x32c] sm:$0xf]
  %v221 = vld [vmem:[%s1 + $0x330] sm:$0xf]
  %v222 = vld [vmem:[%s1 + $0x334] sm:$0xf]
  %v223 = vld [vmem:[%s1 + $0x338] sm:$0xf]
  %v224 = vld [vmem:[%s1 + $0x33c] sm:$0xf]
  %v225 = vld [vmem:[%s1 + $0x340] sm:$0xf]
  %v226 = vld [vmem:[%s1 + $0x344] sm:$0xf]
  %v227 = vld [vmem:[%s1 + $0x348] sm:$0xf]
  %v228 = vld [vmem:[%s1 + $0x34c] sm:$0xf]
  %v229 = vld [vmem:[%s1 + $0x350] sm:$0xf]
  %v230 = vld [vmem:[%s1 + $0x354] sm:$0xf]
  %v231 = vld [vmem:[%s1 + $0x358] sm:$0xf]
  %v232 = vld [vmem:[%s1 + $0x35c] sm:$0xf]
  %v233 = vld [vmem:[%s1 + $0x360] sm:$0xf]
  %v234 = vld [vmem:[%s1 + $0x364] sm:$0xf]
  %v235 = vld [vmem:[%s1 + $0x368] sm:$0xf]
  %v236 = vld [vmem:[%s1 + $0x36c] sm:$0xf]
  %v237 = vld [vmem:[%s1 + $0x370] sm:$0xf]
  %v238 = vld [vmem:[%s1 + $0x374] sm:$0xf]
  %v239 = vld [vmem:[%s1 + $0x378] sm:$0xf]
  %v240 = vld [vmem:[%s1 + $0x37c] sm:$0xf]
  %v241 = vld [vmem:[%s1 + $0x380] sm:$0xf]
  %v242 = vld [vmem:[%s1 + $0x384] sm:$0xf]
  %v243 = vld [vmem:[%s1 + $0x388] sm:$0xf]
  %v244 = vld [vmem:[%s1 + $0x38c] sm:$0xf]
  %v245 = vld [vmem:[%s1 + $0x390] sm:$0xf]
  %v246 = vld [vmem:[%s1 + $0x394] sm:$0xf]
  %v247 = vld [vmem:[%s1 + $0x398] sm:$0xf]
  %v248 = vld [vmem:[%s1 + $0x39c] sm:$0xf]
  %v249 = vld [vmem:[%s1 + $0x3a0] sm:$0xf]
  %v250 = vld [vmem:[%s1 + $0x3a4] sm:$0xf]
  %v251 = vld [vmem:[%s1 + $0x3a8] sm:$0xf]
  %v252 = vld [vmem:[%s1 + $0x3ac] sm:$0xf]
  %v253 = vld [vmem:[%s1 + $0x3b0] sm:$0xf]
  %v254 = vld [vmem:[%s1 + $0x3b4] sm:$0xf]
  %v255 = vld [vmem:[%s1 + $0x3b8] sm:$0xf]
  %v256 = vld [vmem:[%s1 + $0x3bc] sm:$0xf]
  %v257 = vld [vmem:[%s1 + $0x3c0] sm:$0xf]
  %v258 = vld [vmem:[%s1 + $0x3c4] sm:$0xf]
  %v259 = vld [vmem:[%s1 + $0x3c8] sm:$0xf]
  %v260 = vld [vmem:[%s1 + $0x3cc] sm:$0xf]
  %v261 = vld [vmem:[%s1 + $0x3d0] sm:$0xf]
  %v262 = vld [vmem:[%s1 + $0x3d4] sm:$0xf]
  %v263 = vld [vmem:[%s1 + $0x3d8] sm:$0xf]
  %v264 = vld [vmem:[%s1 + $0x3dc] sm:$0xf]
  %v265 = vld [vmem:[%s1 + $0x3e0] sm:$0xf]
  %v266 = vld [vmem:[%s1 + $0x3e4] sm:$0xf]
  %v267 = vld [vmem:[%s1 + $0x3e8] sm:$0xf]
  %v268 = vld [vmem:[%s1 + $0x3ec] sm:$0xf]
  %v269 = vld [vmem:[%s1 + $0x3f0] sm:$0xf]
  %v270 = vld [vmem:[%s1 + $0x3f4] sm:$0xf]
  %v271 = vld [vmem:[%s1 + $0x3f8] sm:$0xf]
  %v272 = vld [vmem:[%s1 + $0x3fc] sm:$0xf]
  %v273 = vld [vmem:[%s2] sm:$0x1]
  %v275 = vlaneseq
  %v276 = vshrl.u32 %v275, 7
  %v277 = vsub.s32 0, %v276
  %v278 = vrot.slane %v273, %v277
  %v282 = vcombine.high %v15, %v15
  %v284 = vunpack.c.l.s4 1966171168
  %v285 = vunpack.c.0.s8 %v284
  %v286 = vlaneseq
  %v287 = vshrl.u32 %v286, 7
  %v288 = vsub.s32 %v285, %v287
  %v289 = vrot.slane %v15, %v288
  %v291 = vunpack.c.l.s4 1966171168
  %v292 = vunpack.c.0.s8 %v291
  %v293 = vlaneseq
  %v294 = vshrl.u32 %v293, 7
  %v295 = vsub.s32 %v292, %v294
  %v296 = vrot.slane %v282, %v295
  %v297 = vcombine.high %v289, %v289
  %v298 = vcombine.high %v296, %v296
  %v300 = vunpack.c.l.s4 1966171168
  %v301 = vunpack.c.0.s8 %v300
  %v302 = vlaneseq
  %v303 = vshrl.u32 %v302, 7
  %v304 = vsub.s32 %v301, %v303
  %v305 = vrot.slane %v289, %v304
  %v307 = vunpack.c.l.s4 1966171168
  %v308 = vunpack.c.0.s8 %v307
  %v309 = vlaneseq
  %v310 = vshrl.u32 %v309, 7
  %v311 = vsub.s32 %v308, %v310
  %v312 = vrot.slane %v296, %v311
  %v314 = vunpack.c.l.s4 1966171168
  %v315 = vunpack.c.0.s8 %v314
  %v316 = vlaneseq
  %v317 = vshrl.u32 %v316, 7
  %v318 = vsub.s32 %v315, %v317
  %v319 = vrot.slane %v297, %v318
  %v321 = vunpack.c.l.s4 1966171168
  %v322 = vunpack.c.0.s8 %v321
  %v323 = vlaneseq
  %v324 = vshrl.u32 %v323, 7
  %v325 = vsub.s32 %v322, %v324
  %v326 = vrot.slane %v298, %v325
  %v327 = vcombine.high %v305, %v305
  %v328 = vcombine.high %v312, %v312
  %v329 = vcombine.high %v319, %v319
  %v330 = vcombine.high %v326, %v326
  %v331 = vcombine.high %v16, %v16
  %v333 = vunpack.c.l.s4 1966171168
  %v334 = vunpack.c.0.s8 %v333
  %v335 = vlaneseq
  %v336 = vshrl.u32 %v335, 7
  %v337 = vsub.s32 %v334, %v336
  %v338 = vrot.slane %v16, %v337
  %v340 = vunpack.c.l.s4 1966171168
  %v341 = vunpack.c.0.s8 %v340
  %v342 = vlaneseq
  %v343 = vshrl.u32 %v342, 7
  %v344 = vsub.s32 %v341, %v343
  %v345 = vrot.slane %v331, %v344
  %v346 = vcombine.high %v338, %v338
  %v347 = vcombine.high %v345, %v345
  %v349 = vunpack.c.l.s4 1966171168
  %v350 = vunpack.c.0.s8 %v349
  %v351 = vlaneseq
  %v352 = vshrl.u32 %v351, 7
  %v353 = vsub.s32 %v350, %v352
  %v354 = vrot.slane %v338, %v353
  %v356 = vunpack.c.l.s4 1966171168
  %v357 = vunpack.c.0.s8 %v356
  %v358 = vlaneseq
  %v359 = vshrl.u32 %v358, 7
  %v360 = vsub.s32 %v357, %v359
  %v361 = vrot.slane %v345, %v360
  %v363 = vunpack.c.l.s4 1966171168
  %v364 = vunpack.c.0.s8 %v363
  %v365 = vlaneseq
  %v366 = vshrl.u32 %v365, 7
  %v367 = vsub.s32 %v364, %v366
  %v368 = vrot.slane %v346, %v367
  %v370 = vunpack.c.l.s4 1966171168
  %v371 = vunpack.c.0.s8 %v370
  %v372 = vlaneseq
  %v373 = vshrl.u32 %v372, 7
  %v374 = vsub.s32 %v371, %v373
  %v375 = vrot.slane %v347, %v374
  %v376 = vcombine.high %v354, %v354
  %v377 = vcombine.high %v361, %v361
  %v378 = vcombine.high %v368, %v368
  %v379 = vcombine.high %v375, %v375
  %v652 = vunpack.c.l.b16 %v17
  %v653 = vunpack.c.l.b16 %v18
  %v654 = vunpack.c.l.b16 %v19
  %v655 = vunpack.c.l.b16 %v20
  %v656 = vunpack.c.l.b16 %v21
  %v657 = vunpack.c.l.b16 %v22
  %v658 = vunpack.c.l.b16 %v23
  %v659 = vunpack.c.l.b16 %v24
  %v660 = vunpack.c.l.b16 %v25
  %v661 = vunpack.c.l.b16 %v26
  %v662 = vunpack.c.l.b16 %v27
  %v663 = vunpack.c.l.b16 %v28
  %v664 = vunpack.c.l.b16 %v29
  %v665 = vunpack.c.l.b16 %v30
  %v666 = vunpack.c.l.b16 %v31
  %v667 = vunpack.c.l.b16 %v32
  %v668 = vunpack.c.l.b16 %v33
  %v669 = vunpack.c.l.b16 %v34
  %v670 = vunpack.c.l.b16 %v35
  %v671 = vunpack.c.l.b16 %v36
  %v672 = vunpack.c.l.b16 %v37
  %v673 = vunpack.c.l.b16 %v38
  %v674 = vunpack.c.l.b16 %v39
  %v675 = vunpack.c.l.b16 %v40
  %v676 = vunpack.c.l.b16 %v41
  %v677 = vunpack.c.l.b16 %v42
  %v678 = vunpack.c.l.b16 %v43
  %v679 = vunpack.c.l.b16 %v44
  %v680 = vunpack.c.l.b16 %v45
  %v681 = vunpack.c.l.b16 %v46
  %v682 = vunpack.c.l.b16 %v47
  %v683 = vunpack.c.l.b16 %v48
  %v684 = vunpack.c.l.b16 %v49
  %v685 = vunpack.c.l.b16 %v50
  %v686 = vunpack.c.l.b16 %v51
  %v687 = vunpack.c.l.b16 %v52
  %v688 = vunpack.c.l.b16 %v53
  %v689 = vunpack.c.l.b16 %v54
  %v690 = vunpack.c.l.b16 %v55
  %v691 = vunpack.c.l.b16 %v56
  %v692 = vunpack.c.l.b16 %v57
  %v693 = vunpack.c.l.b16 %v58
  %v694 = vunpack.c.l.b16 %v59
  %v695 = vunpack.c.l.b16 %v60
  %v696 = vunpack.c.l.b16 %v61
  %v697 = vunpack.c.l.b16 %v62
  %v698 = vunpack.c.l.b16 %v63
  %v699 = vunpack.c.l.b16 %v64
  %v700 = vunpack.c.l.b16 %v65
  %v701 = vunpack.c.l.b16 %v66
  %v702 = vunpack.c.l.b16 %v67
  %v703 = vunpack.c.l.b16 %v68
  %v704 = vunpack.c.l.b16 %v69
  %v705 = vunpack.c.l.b16 %v70
  %v706 = vunpack.c.l.b16 %v71
  %v707 = vunpack.c.l.b16 %v72
  %v708 = vunpack.c.l.b16 %v73
  %v709 = vunpack.c.l.b16 %v74
  %v710 = vunpack.c.l.b16 %v75
  %v711 = vunpack.c.l.b16 %v76
  %v712 = vunpack.c.l.b16 %v77
  %v713 = vunpack.c.l.b16 %v78
  %v714 = vunpack.c.l.b16 %v79
  %v715 = vunpack.c.l.b16 %v80
  %v716 = vunpack.c.l.b16 %v81
  %v717 = vunpack.c.l.b16 %v82
  %v718 = vunpack.c.l.b16 %v83
  %v719 = vunpack.c.l.b16 %v84
  %v720 = vunpack.c.l.b16 %v85
  %v721 = vunpack.c.l.b16 %v86
  %v722 = vunpack.c.l.b16 %v87
  %v723 = vunpack.c.l.b16 %v88
  %v724 = vunpack.c.l.b16 %v89
  %v725 = vunpack.c.l.b16 %v90
  %v726 = vunpack.c.l.b16 %v91
  %v727 = vunpack.c.l.b16 %v92
  %v728 = vunpack.c.l.b16 %v93
  %v729 = vunpack.c.l.b16 %v94
  %v730 = vunpack.c.l.b16 %v95
  %v731 = vunpack.c.l.b16 %v96
  %v732 = vunpack.c.l.b16 %v97
  %v733 = vunpack.c.l.b16 %v98
  %v734 = vunpack.c.l.b16 %v99
  %v735 = vunpack.c.l.b16 %v100
  %v736 = vunpack.c.l.b16 %v101
  %v737 = vunpack.c.l.b16 %v102
  %v738 = vunpack.c.l.b16 %v103
  %v739 = vunpack.c.l.b16 %v104
  %v740 = vunpack.c.l.b16 %v105
  %v741 = vunpack.c.l.b16 %v106
  %v742 = vunpack.c.l.b16 %v107
  %v743 = vunpack.c.l.b16 %v108
  %v744 = vunpack.c.l.b16 %v109
  %v745 = vunpack.c.l.b16 %v110
  %v746 = vunpack.c.l.b16 %v111
  %v747 = vunpack.c.l.b16 %v112
  %v748 = vunpack.c.l.b16 %v113
  %v749 = vunpack.c.l.b16 %v114
  %v750 = vunpack.c.l.b16 %v115
  %v751 = vunpack.c.l.b16 %v116
  %v752 = vunpack.c.l.b16 %v117
  %v753 = vunpack.c.l.b16 %v118
  %v754 = vunpack.c.l.b16 %v119
  %v755 = vunpack.c.l.b16 %v120
  %v756 = vunpack.c.l.b16 %v121
  %v757 = vunpack.c.l.b16 %v122
  %v758 = vunpack.c.l.b16 %v123
  %v759 = vunpack.c.l.b16 %v124
  %v760 = vunpack.c.l.b16 %v125
  %v761 = vunpack.c.l.b16 %v126
  %v762 = vunpack.c.l.b16 %v127
  %v763 = vunpack.c.l.b16 %v128
  %v764 = vunpack.c.l.b16 %v129
  %v765 = vunpack.c.l.b16 %v130
  %v766 = vunpack.c.l.b16 %v131
  %v767 = vunpack.c.l.b16 %v132
  %v768 = vunpack.c.l.b16 %v133
  %v769 = vunpack.c.l.b16 %v134
  %v770 = vunpack.c.l.b16 %v135
  %v771 = vunpack.c.l.b16 %v136
  %v772 = vunpack.c.l.b16 %v137
  %v773 = vunpack.c.l.b16 %v138
  %v774 = vunpack.c.l.b16 %v139
  %v775 = vunpack.c.l.b16 %v140
  %v776 = vunpack.c.l.b16 %v141
  %v777 = vunpack.c.l.b16 %v142
  %v778 = vunpack.c.l.b16 %v143
  %v779 = vunpack.c.l.b16 %v144
  %v780 = vunpack.c.l.b16 %v145
  %v781 = vunpack.c.l.b16 %v146
  %v782 = vunpack.c.l.b16 %v147
  %v783 = vunpack.c.l.b16 %v148
  %v784 = vunpack.c.l.b16 %v149
  %v785 = vunpack.c.l.b16 %v150
  %v786 = vunpack.c.l.b16 %v151
  %v787 = vunpack.c.l.b16 %v152
  %v788 = vunpack.c.l.b16 %v153
  %v789 = vunpack.c.l.b16 %v154
  %v790 = vunpack.c.l.b16 %v155
  %v791 = vunpack.c.l.b16 %v156
  %v792 = vunpack.c.l.b16 %v157
  %v793 = vunpack.c.l.b16 %v158
  %v794 = vunpack.c.l.b16 %v159
  %v795 = vunpack.c.l.b16 %v160
  %v796 = vunpack.c.l.b16 %v161
  %v797 = vunpack.c.l.b16 %v162
  %v798 = vunpack.c.l.b16 %v163
  %v799 = vunpack.c.l.b16 %v164
  %v800 = vunpack.c.l.b16 %v165
  %v801 = vunpack.c.l.b16 %v166
  %v802 = vunpack.c.l.b16 %v167
  %v803 = vunpack.c.l.b16 %v168
  %v804 = vunpack.c.l.b16 %v169
  %v805 = vunpack.c.l.b16 %v170
  %v806 = vunpack.c.l.b16 %v171
  %v807 = vunpack.c.l.b16 %v172
  %v808 = vunpack.c.l.b16 %v173
  %v809 = vunpack.c.l.b16 %v174
  %v810 = vunpack.c.l.b16 %v175
  %v811 = vunpack.c.l.b16 %v176
  %v812 = vunpack.c.l.b16 %v177
  %v813 = vunpack.c.l.b16 %v178
  %v814 = vunpack.c.l.b16 %v179
  %v815 = vunpack.c.l.b16 %v180
  %v816 = vunpack.c.l.b16 %v181
  %v817 = vunpack.c.l.b16 %v182
  %v818 = vunpack.c.l.b16 %v183
  %v819 = vunpack.c.l.b16 %v184
  %v820 = vunpack.c.l.b16 %v185
  %v821 = vunpack.c.l.b16 %v186
  %v822 = vunpack.c.l.b16 %v187
  %v823 = vunpack.c.l.b16 %v188
  %v824 = vunpack.c.l.b16 %v189
  %v825 = vunpack.c.l.b16 %v190
  %v826 = vunpack.c.l.b16 %v191
  %v827 = vunpack.c.l.b16 %v192
  %v828 = vunpack.c.l.b16 %v193
  %v829 = vunpack.c.l.b16 %v194
  %v830 = vunpack.c.l.b16 %v195
  %v831 = vunpack.c.l.b16 %v196
  %v832 = vunpack.c.l.b16 %v197
  %v833 = vunpack.c.l.b16 %v198
  %v834 = vunpack.c.l.b16 %v199
  %v835 = vunpack.c.l.b16 %v200
  %v836 = vunpack.c.l.b16 %v201
  %v837 = vunpack.c.l.b16 %v202
  %v838 = vunpack.c.l.b16 %v203
  %v839 = vunpack.c.l.b16 %v204
  %v840 = vunpack.c.l.b16 %v205
  %v841 = vunpack.c.l.b16 %v206
  %v842 = vunpack.c.l.b16 %v207
  %v843 = vunpack.c.l.b16 %v208
  %v844 = vunpack.c.l.b16 %v209
  %v845 = vunpack.c.l.b16 %v210
  %v846 = vunpack.c.l.b16 %v211
  %v847 = vunpack.c.l.b16 %v212
  %v848 = vunpack.c.l.b16 %v213
  %v849 = vunpack.c.l.b16 %v214
  %v850 = vunpack.c.l.b16 %v215
  %v851 = vunpack.c.l.b16 %v216
  %v852 = vunpack.c.l.b16 %v217
  %v853 = vunpack.c.l.b16 %v218
  %v854 = vunpack.c.l.b16 %v219
  %v855 = vunpack.c.l.b16 %v220
  %v856 = vunpack.c.l.b16 %v221
  %v857 = vunpack.c.l.b16 %v222
  %v858 = vunpack.c.l.b16 %v223
  %v859 = vunpack.c.l.b16 %v224
  %v860 = vunpack.c.l.b16 %v225
  %v861 = vunpack.c.l.b16 %v226
  %v862 = vunpack.c.l.b16 %v227
  %v863 = vunpack.c.l.b16 %v228
  %v864 = vunpack.c.l.b16 %v229
  %v865 = vunpack.c.l.b16 %v230
  %v866 = vunpack.c.l.b16 %v231
  %v867 = vunpack.c.l.b16 %v232
  %v868 = vunpack.c.l.b16 %v233
  %v869 = vunpack.c.l.b16 %v234
  %v870 = vunpack.c.l.b16 %v235
  %v871 = vunpack.c.l.b16 %v236
  %v872 = vunpack.c.l.b16 %v237
  %v873 = vunpack.c.l.b16 %v238
  %v874 = vunpack.c.l.b16 %v239
  %v875 = vunpack.c.l.b16 %v240
  %v876 = vunpack.c.l.b16 %v241
  %v877 = vunpack.c.l.b16 %v242
  %v878 = vunpack.c.l.b16 %v243
  %v879 = vunpack.c.l.b16 %v244
  %v880 = vunpack.c.l.b16 %v245
  %v881 = vunpack.c.l.b16 %v246
  %v882 = vunpack.c.l.b16 %v247
  %v883 = vunpack.c.l.b16 %v248
  %v884 = vunpack.c.l.b16 %v249
  %v885 = vunpack.c.l.b16 %v250
  %v886 = vunpack.c.l.b16 %v251
  %v887 = vunpack.c.l.b16 %v252
  %v888 = vunpack.c.l.b16 %v253
  %v889 = vunpack.c.l.b16 %v254
  %v890 = vunpack.c.l.b16 %v255
  %v891 = vunpack.c.l.b16 %v256
  %v892 = vunpack.c.l.b16 %v257
  %v893 = vunpack.c.l.b16 %v258
  %v894 = vunpack.c.l.b16 %v259
  %v895 = vunpack.c.l.b16 %v260
  %v896 = vunpack.c.l.b16 %v261
  %v897 = vunpack.c.l.b16 %v262
  %v898 = vunpack.c.l.b16 %v263
  %v899 = vunpack.c.l.b16 %v264
  %v900 = vunpack.c.l.b16 %v265
  %v901 = vunpack.c.l.b16 %v266
  %v902 = vunpack.c.l.b16 %v267
  %v903 = vunpack.c.l.b16 %v268
  %v904 = vunpack.c.l.b16 %v269
  %v905 = vunpack.c.l.b16 %v270
  %v906 = vunpack.c.l.b16 %v271
  %v907 = vunpack.c.l.b16 %v272
  %v908 = vpack.c.b16 %v653, %v652
  %v909 = vpack.c.b16 %v655, %v654
  %v910 = vpack.c.b16 %v657, %v656
  %v911 = vpack.c.b16 %v659, %v658
  %v912 = vpack.c.b16 %v661, %v660
  %v913 = vpack.c.b16 %v663, %v662
  %v914 = vpack.c.b16 %v665, %v664
  %v915 = vpack.c.b16 %v667, %v666
  %v916 = vpack.c.b16 %v669, %v668
  %v917 = vpack.c.b16 %v671, %v670
  %v918 = vpack.c.b16 %v673, %v672
  %v919 = vpack.c.b16 %v675, %v674
  %v920 = vpack.c.b16 %v677, %v676
  %v921 = vpack.c.b16 %v679, %v678
  %v922 = vpack.c.b16 %v681, %v680
  %v923 = vpack.c.b16 %v683, %v682
  %v924 = vpack.c.b16 %v685, %v684
  %v925 = vpack.c.b16 %v687, %v686
  %v926 = vpack.c.b16 %v689, %v688
  %v927 = vpack.c.b16 %v691, %v690
  %v928 = vpack.c.b16 %v693, %v692
  %v929 = vpack.c.b16 %v695, %v694
  %v930 = vpack.c.b16 %v697, %v696
  %v931 = vpack.c.b16 %v699, %v698
  %v932 = vpack.c.b16 %v701, %v700
  %v933 = vpack.c.b16 %v703, %v702
  %v934 = vpack.c.b16 %v705, %v704
  %v935 = vpack.c.b16 %v707, %v706
  %v936 = vpack.c.b16 %v709, %v708
  %v937 = vpack.c.b16 %v711, %v710
  %v938 = vpack.c.b16 %v713, %v712
  %v939 = vpack.c.b16 %v715, %v714
  %v940 = vpack.c.b16 %v717, %v716
  %v941 = vpack.c.b16 %v719, %v718
  %v942 = vpack.c.b16 %v721, %v720
  %v943 = vpack.c.b16 %v723, %v722
  %v944 = vpack.c.b16 %v725, %v724
  %v945 = vpack.c.b16 %v727, %v726
  %v946 = vpack.c.b16 %v729, %v728
  %v947 = vpack.c.b16 %v731, %v730
  %v948 = vpack.c.b16 %v733, %v732
  %v949 = vpack.c.b16 %v735, %v734
  %v950 = vpack.c.b16 %v737, %v736
  %v951 = vpack.c.b16 %v739, %v738
  %v952 = vpack.c.b16 %v741, %v740
  %v953 = vpack.c.b16 %v743, %v742
  %v954 = vpack.c.b16 %v745, %v744
  %v955 = vpack.c.b16 %v747, %v746
  %v956 = vpack.c.b16 %v749, %v748
  %v957 = vpack.c.b16 %v751, %v750
  %v958 = vpack.c.b16 %v753, %v752
  %v959 = vpack.c.b16 %v755, %v754
  %v960 = vpack.c.b16 %v757, %v756
  %v961 = vpack.c.b16 %v759, %v758
  %v962 = vpack.c.b16 %v761, %v760
  %v963 = vpack.c.b16 %v763, %v762
  %v964 = vpack.c.b16 %v765, %v764
  %v965 = vpack.c.b16 %v767, %v766
  %v966 = vpack.c.b16 %v769, %v768
  %v967 = vpack.c.b16 %v771, %v770
  %v968 = vpack.c.b16 %v773, %v772
  %v969 = vpack.c.b16 %v775, %v774
  %v970 = vpack.c.b16 %v777, %v776
  %v971 = vpack.c.b16 %v779, %v778
  %v972 = vpack.c.b16 %v781, %v780
  %v973 = vpack.c.b16 %v783, %v782
  %v974 = vpack.c.b16 %v785, %v784
  %v975 = vpack.c.b16 %v787, %v786
  %v976 = vpack.c.b16 %v789, %v788
  %v977 = vpack.c.b16 %v791, %v790
  %v978 = vpack.c.b16 %v793, %v792
  %v979 = vpack.c.b16 %v795, %v794
  %v980 = vpack.c.b16 %v797, %v796
  %v981 = vpack.c.b16 %v799, %v798
  %v982 = vpack.c.b16 %v801, %v800
  %v983 = vpack.c.b16 %v803, %v802
  %v984 = vpack.c.b16 %v805, %v804
  %v985 = vpack.c.b16 %v807, %v806
  %v986 = vpack.c.b16 %v809, %v808
  %v987 = vpack.c.b16 %v811, %v810
  %v988 = vpack.c.b16 %v813, %v812
  %v989 = vpack.c.b16 %v815, %v814
  %v990 = vpack.c.b16 %v817, %v816
  %v991 = vpack.c.b16 %v819, %v818
  %v992 = vpack.c.b16 %v821, %v820
  %v993 = vpack.c.b16 %v823, %v822
  %v994 = vpack.c.b16 %v825, %v824
  %v995 = vpack.c.b16 %v827, %v826
  %v996 = vpack.c.b16 %v829, %v828
  %v997 = vpack.c.b16 %v831, %v830
  %v998 = vpack.c.b16 %v833, %v832
  %v999 = vpack.c.b16 %v835, %v834
  %v1000 = vpack.c.b16 %v837, %v836
  %v1001 = vpack.c.b16 %v839, %v838
  %v1002 = vpack.c.b16 %v841, %v840
  %v1003 = vpack.c.b16 %v843, %v842
  %v1004 = vpack.c.b16 %v845, %v844
  %v1005 = vpack.c.b16 %v847, %v846
  %v1006 = vpack.c.b16 %v849, %v848
  %v1007 = vpack.c.b16 %v851, %v850
  %v1008 = vpack.c.b16 %v853, %v852
  %v1009 = vpack.c.b16 %v855, %v854
  %v1010 = vpack.c.b16 %v857, %v856
  %v1011 = vpack.c.b16 %v859, %v858
  %v1012 = vpack.c.b16 %v861, %v860
  %v1013 = vpack.c.b16 %v863, %v862
  %v1014 = vpack.c.b16 %v865, %v864
  %v1015 = vpack.c.b16 %v867, %v866
  %v1016 = vpack.c.b16 %v869, %v868
  %v1017 = vpack.c.b16 %v871, %v870
  %v1018 = vpack.c.b16 %v873, %v872
  %v1019 = vpack.c.b16 %v875, %v874
  %v1020 = vpack.c.b16 %v877, %v876
  %v1021 = vpack.c.b16 %v879, %v878
  %v1022 = vpack.c.b16 %v881, %v880
  %v1023 = vpack.c.b16 %v883, %v882
  %v1024 = vpack.c.b16 %v885, %v884
  %v1025 = vpack.c.b16 %v887, %v886
  %v1026 = vpack.c.b16 %v889, %v888
  %v1027 = vpack.c.b16 %v891, %v890
  %v1028 = vpack.c.b16 %v893, %v892
  %v1029 = vpack.c.b16 %v895, %v894
  %v1030 = vpack.c.b16 %v897, %v896
  %v1031 = vpack.c.b16 %v899, %v898
  %v1032 = vpack.c.b16 %v901, %v900
  %v1033 = vpack.c.b16 %v903, %v902
  %v1034 = vpack.c.b16 %v905, %v904
  %v1035 = vpack.c.b16 %v907, %v906
  %1164 = vmatprep.subr.bf16.mxu0 0
  %1165 = vmatpush1.bf16.msra.mxu0 %v908
  %1166 = vmatprep.subr.bf16.mxu0 0
  %1167 = vmatpush1.bf16.msra.mxu0 %v909
  %1168 = vmatprep.subr.bf16.mxu0 0
  %1169 = vmatpush1.bf16.msra.mxu0 %v910
  %1170 = vmatprep.subr.bf16.mxu0 0
  %1171 = vmatpush1.bf16.msra.mxu0 %v911
  %1172 = vmatprep.subr.bf16.mxu0 0
  %1173 = vmatpush1.bf16.msra.mxu0 %v912
  %1174 = vmatprep.subr.bf16.mxu0 0
  %1175 = vmatpush1.bf16.msra.mxu0 %v913
  %1176 = vmatprep.subr.bf16.mxu0 0
  %1177 = vmatpush1.bf16.msra.mxu0 %v914
  %1178 = vmatprep.subr.bf16.mxu0 0
  %1179 = vmatpush1.bf16.msra.mxu0 %v915
  %1180 = vmatprep.subr.bf16.mxu0 0
  %1181 = vmatpush1.bf16.msra.mxu0 %v916
  %1182 = vmatprep.subr.bf16.mxu0 0
  %1183 = vmatpush1.bf16.msra.mxu0 %v917
  %1184 = vmatprep.subr.bf16.mxu0 0
  %1185 = vmatpush1.bf16.msra.mxu0 %v918
  %1186 = vmatprep.subr.bf16.mxu0 0
  %1187 = vmatpush1.bf16.msra.mxu0 %v919
  %1188 = vmatprep.subr.bf16.mxu0 0
  %1189 = vmatpush1.bf16.msra.mxu0 %v920
  %1190 = vmatprep.subr.bf16.mxu0 0
  %1191 = vmatpush1.bf16.msra.mxu0 %v921
  %1192 = vmatprep.subr.bf16.mxu0 0
  %1193 = vmatpush1.bf16.msra.mxu0 %v922
  %1194 = vmatprep.subr.bf16.mxu0 0
  %1195 = vmatpush1.bf16.msra.mxu0 %v923
  %1196 = vmatprep.mubr.bf16.mxu0 %v319
  %1197 = vmatmul.mubr.bf16.gmra.mrb[0].mxu0 %v305
  %v1198 = vpop.f32.mrb[0].mxu0
  %v1199 = vadd.f32 %v278, %v1198
  %v1200 = vpop.f32.mrb[0].mxu0
  %v1201 = vpop.f32.mrb[0].mxu0
  %v1202 = vpop.f32.mrb[0].mxu0
  %1203 = vdwg.mxu0
  %1204 = vmatprep.subr.bf16.mxu0 0
  %1205 = vmatpush1.bf16.msra.mxu0 %v924
  %1206 = vmatprep.subr.bf16.mxu0 0
  %1207 = vmatpush1.bf16.msra.mxu0 %v925
  %1208 = vmatprep.subr.bf16.mxu0 0
  %1209 = vmatpush1.bf16.msra.mxu0 %v926
  %1210 = vmatprep.subr.bf16.mxu0 0
  %1211 = vmatpush1.bf16.msra.mxu0 %v927
  %1212 = vmatprep.subr.bf16.mxu0 0
  %1213 = vmatpush1.bf16.msra.mxu0 %v928
  %1214 = vmatprep.subr.bf16.mxu0 0
  %1215 = vmatpush1.bf16.msra.mxu0 %v929
  %1216 = vmatprep.subr.bf16.mxu0 0
  %1217 = vmatpush1.bf16.msra.mxu0 %v930
  %1218 = vmatprep.subr.bf16.mxu0 0
  %1219 = vmatpush1.bf16.msra.mxu0 %v931
  %1220 = vmatprep.subr.bf16.mxu0 0
  %1221 = vmatpush1.bf16.msra.mxu0 %v932
  %1222 = vmatprep.subr.bf16.mxu0 0
  %1223 = vmatpush1.bf16.msra.mxu0 %v933
  %1224 = vmatprep.subr.bf16.mxu0 0
  %1225 = vmatpush1.bf16.msra.mxu0 %v934
  %1226 = vmatprep.subr.bf16.mxu0 0
  %1227 = vmatpush1.bf16.msra.mxu0 %v935
  %1228 = vmatprep.subr.bf16.mxu0 0
  %1229 = vmatpush1.bf16.msra.mxu0 %v936
  %1230 = vmatprep.subr.bf16.mxu0 0
  %1231 = vmatpush1.bf16.msra.mxu0 %v937
  %1232 = vmatprep.subr.bf16.mxu0 0
  %1233 = vmatpush1.bf16.msra.mxu0 %v938
  %1234 = vmatprep.subr.bf16.mxu0 0
  %1235 = vmatpush1.bf16.msra.mxu0 %v939
  %1236 = vmatprep.mubr.bf16.mxu0 %v329
  %1237 = vmatmul.mubr.bf16.gmra.mrb[0].mxu0 %v327
  %v1238 = vpop.f32.mrb[0].mxu0
  %v1239 = vadd.f32 %v1199, %v1238
  %v1240 = vpop.f32.mrb[0].mxu0
  %v1241 = vpop.f32.mrb[0].mxu0
  %v1242 = vpop.f32.mrb[0].mxu0
  %1243 = vdwg.mxu0
  %1244 = vmatprep.subr.bf16.mxu0 0
  %1245 = vmatpush1.bf16.msra.mxu0 %v940
  %1246 = vmatprep.subr.bf16.mxu0 0
  %1247 = vmatpush1.bf16.msra.mxu0 %v941
  %1248 = vmatprep.subr.bf16.mxu0 0
  %1249 = vmatpush1.bf16.msra.mxu0 %v942
  %1250 = vmatprep.subr.bf16.mxu0 0
  %1251 = vmatpush1.bf16.msra.mxu0 %v943
  %1252 = vmatprep.subr.bf16.mxu0 0
  %1253 = vmatpush1.bf16.msra.mxu0 %v944
  %1254 = vmatprep.subr.bf16.mxu0 0
  %1255 = vmatpush1.bf16.msra.mxu0 %v945
  %1256 = vmatprep.subr.bf16.mxu0 0
  %1257 = vmatpush1.bf16.msra.mxu0 %v946
  %1258 = vmatprep.subr.bf16.mxu0 0
  %1259 = vmatpush1.bf16.msra.mxu0 %v947
  %1260 = vmatprep.subr.bf16.mxu0 0
  %1261 = vmatpush1.bf16.msra.mxu0 %v948
  %1262 = vmatprep.subr.bf16.mxu0 0
  %1263 = vmatpush1.bf16.msra.mxu0 %v949
  %1264 = vmatprep.subr.bf16.mxu0 0
  %1265 = vmatpush1.bf16.msra.mxu0 %v950
  %1266 = vmatprep.subr.bf16.mxu0 0
  %1267 = vmatpush1.bf16.msra.mxu0 %v951
  %1268 = vmatprep.subr.bf16.mxu0 0
  %1269 = vmatpush1.bf16.msra.mxu0 %v952
  %1270 = vmatprep.subr.bf16.mxu0 0
  %1271 = vmatpush1.bf16.msra.mxu0 %v953
  %1272 = vmatprep.subr.bf16.mxu0 0
  %1273 = vmatpush1.bf16.msra.mxu0 %v954
  %1274 = vmatprep.subr.bf16.mxu0 0
  %1275 = vmatpush1.bf16.msra.mxu0 %v955
  %1276 = vmatprep.mubr.bf16.mxu0 %v326
  %1277 = vmatmul.mubr.bf16.gmra.mrb[0].mxu0 %v312
  %v1278 = vpop.f32.mrb[0].mxu0
  %v1279 = vadd.f32 %v1239, %v1278
  %v1280 = vpop.f32.mrb[0].mxu0
  %v1281 = vpop.f32.mrb[0].mxu0
  %v1282 = vpop.f32.mrb[0].mxu0
  %1283 = vdwg.mxu0
  %1284 = vmatprep.subr.bf16.mxu0 0
  %1285 = vmatpush1.bf16.msra.mxu0 %v956
  %1286 = vmatprep.subr.bf16.mxu0 0
  %1287 = vmatpush1.bf16.msra.mxu0 %v957
  %1288 = vmatprep.subr.bf16.mxu0 0
  %1289 = vmatpush1.bf16.msra.mxu0 %v958
  %1290 = vmatprep.subr.bf16.mxu0 0
  %1291 = vmatpush1.bf16.msra.mxu0 %v959
  %1292 = vmatprep.subr.bf16.mxu0 0
  %1293 = vmatpush1.bf16.msra.mxu0 %v960
  %1294 = vmatprep.subr.bf16.mxu0 0
  %1295 = vmatpush1.bf16.msra.mxu0 %v961
  %1296 = vmatprep.subr.bf16.mxu0 0
  %1297 = vmatpush1.bf16.msra.mxu0 %v962
  %1298 = vmatprep.subr.bf16.mxu0 0
  %1299 = vmatpush1.bf16.msra.mxu0 %v963
  %1300 = vmatprep.subr.bf16.mxu0 0
  %1301 = vmatpush1.bf16.msra.mxu0 %v964
  %1302 = vmatprep.subr.bf16.mxu0 0
  %1303 = vmatpush1.bf16.msra.mxu0 %v965
  %1304 = vmatprep.subr.bf16.mxu0 0
  %1305 = vmatpush1.bf16.msra.mxu0 %v966
  %1306 = vmatprep.subr.bf16.mxu0 0
  %1307 = vmatpush1.bf16.msra.mxu0 %v967
  %1308 = vmatprep.subr.bf16.mxu0 0
  %1309 = vmatpush1.bf16.msra.mxu0 %v968
  %1310 = vmatprep.subr.bf16.mxu0 0
  %1311 = vmatpush1.bf16.msra.mxu0 %v969
  %1312 = vmatprep.subr.bf16.mxu0 0
  %1313 = vmatpush1.bf16.msra.mxu0 %v970
  %1314 = vmatprep.subr.bf16.mxu0 0
  %1315 = vmatpush1.bf16.msra.mxu0 %v971
  %1316 = vmatprep.mubr.bf16.mxu0 %v330
  %1317 = vmatmul.mubr.bf16.gmra.mrb[0].mxu0 %v328
  %v1318 = vpop.f32.mrb[0].mxu0
  %v1319 = vadd.f32 %v1279, %v1318
  %v1320 = vpop.f32.mrb[0].mxu0
  %v1321 = vpop.f32.mrb[0].mxu0
  %v1322 = vpop.f32.mrb[0].mxu0
  %1323 = vdwg.mxu0
  %1324 = vmatprep.subr.bf16.mxu0 0
  %1325 = vmatpush1.bf16.msra.mxu0 %v972
  %1326 = vmatprep.subr.bf16.mxu0 0
  %1327 = vmatpush1.bf16.msra.mxu0 %v973
  %1328 = vmatprep.subr.bf16.mxu0 0
  %1329 = vmatpush1.bf16.msra.mxu0 %v974
  %1330 = vmatprep.subr.bf16.mxu0 0
  %1331 = vmatpush1.bf16.msra.mxu0 %v975
  %1332 = vmatprep.subr.bf16.mxu0 0
  %1333 = vmatpush1.bf16.msra.mxu0 %v976
  %1334 = vmatprep.subr.bf16.mxu0 0
  %1335 = vmatpush1.bf16.msra.mxu0 %v977
  %1336 = vmatprep.subr.bf16.mxu0 0
  %1337 = vmatpush1.bf16.msra.mxu0 %v978
  %1338 = vmatprep.subr.bf16.mxu0 0
  %1339 = vmatpush1.bf16.msra.mxu0 %v979
  %1340 = vmatprep.subr.bf16.mxu0 0
  %1341 = vmatpush1.bf16.msra.mxu0 %v980
  %1342 = vmatprep.subr.bf16.mxu0 0
  %1343 = vmatpush1.bf16.msra.mxu0 %v981
  %1344 = vmatprep.subr.bf16.mxu0 0
  %1345 = vmatpush1.bf16.msra.mxu0 %v982
  %1346 = vmatprep.subr.bf16.mxu0 0
  %1347 = vmatpush1.bf16.msra.mxu0 %v983
  %1348 = vmatprep.subr.bf16.mxu0 0
  %1349 = vmatpush1.bf16.msra.mxu0 %v984
  %1350 = vmatprep.subr.bf16.mxu0 0
  %1351 = vmatpush1.bf16.msra.mxu0 %v985
  %1352 = vmatprep.subr.bf16.mxu0 0
  %1353 = vmatpush1.bf16.msra.mxu0 %v986
  %1354 = vmatprep.subr.bf16.mxu0 0
  %1355 = vmatpush1.bf16.msra.mxu0 %v987
  %1356 = vmatprep.mubr.bf16.mxu0 %v368
  %1357 = vmatmul.mubr.bf16.gmra.mrb[0].mxu0 %v354
  %v1358 = vpop.f32.mrb[0].mxu0
  %v1359 = vadd.f32 %v1319, %v1358
  %v1360 = vpop.f32.mrb[0].mxu0
  %v1361 = vpop.f32.mrb[0].mxu0
  %v1362 = vpop.f32.mrb[0].mxu0
  %1363 = vdwg.mxu0
  %1364 = vmatprep.subr.bf16.mxu0 0
  %1365 = vmatpush1.bf16.msra.mxu0 %v988
  %1366 = vmatprep.subr.bf16.mxu0 0
  %1367 = vmatpush1.bf16.msra.mxu0 %v989
  %1368 = vmatprep.subr.bf16.mxu0 0
  %1369 = vmatpush1.bf16.msra.mxu0 %v990
  %1370 = vmatprep.subr.bf16.mxu0 0
  %1371 = vmatpush1.bf16.msra.mxu0 %v991
  %1372 = vmatprep.subr.bf16.mxu0 0
  %1373 = vmatpush1.bf16.msra.mxu0 %v992
  %1374 = vmatprep.subr.bf16.mxu0 0
  %1375 = vmatpush1.bf16.msra.mxu0 %v993
  %1376 = vmatprep.subr.bf16.mxu0 0
  %1377 = vmatpush1.bf16.msra.mxu0 %v994
  %1378 = vmatprep.subr.bf16.mxu0 0
  %1379 = vmatpush1.bf16.msra.mxu0 %v995
  %1380 = vmatprep.subr.bf16.mxu0 0
  %1381 = vmatpush1.bf16.msra.mxu0 %v996
  %1382 = vmatprep.subr.bf16.mxu0 0
  %1383 = vmatpush1.bf16.msra.mxu0 %v997
  %1384 = vmatprep.subr.bf16.mxu0 0
  %1385 = vmatpush1.bf16.msra.mxu0 %v998
  %1386 = vmatprep.subr.bf16.mxu0 0
  %1387 = vmatpush1.bf16.msra.mxu0 %v999
  %1388 = vmatprep.subr.bf16.mxu0 0
  %1389 = vmatpush1.bf16.msra.mxu0 %v1000
  %1390 = vmatprep.subr.bf16.mxu0 0
  %1391 = vmatpush1.bf16.msra.mxu0 %v1001
  %1392 = vmatprep.subr.bf16.mxu0 0
  %1393 = vmatpush1.bf16.msra.mxu0 %v1002
  %1394 = vmatprep.subr.bf16.mxu0 0
  %1395 = vmatpush1.bf16.msra.mxu0 %v1003
  %1396 = vmatprep.mubr.bf16.mxu0 %v378
  %1397 = vmatmul.mubr.bf16.gmra.mrb[0].mxu0 %v376
  %v1398 = vpop.f32.mrb[0].mxu0
  %v1399 = vadd.f32 %v1359, %v1398
  %v1400 = vpop.f32.mrb[0].mxu0
  %v1401 = vpop.f32.mrb[0].mxu0
  %v1402 = vpop.f32.mrb[0].mxu0
  %1403 = vdwg.mxu0
  %1404 = vmatprep.subr.bf16.mxu0 0
  %1405 = vmatpush1.bf16.msra.mxu0 %v1004
  %1406 = vmatprep.subr.bf16.mxu0 0
  %1407 = vmatpush1.bf16.msra.mxu0 %v1005
  %1408 = vmatprep.subr.bf16.mxu0 0
  %1409 = vmatpush1.bf16.msra.mxu0 %v1006
  %1410 = vmatprep.subr.bf16.mxu0 0
  %1411 = vmatpush1.bf16.msra.mxu0 %v1007
  %1412 = vmatprep.subr.bf16.mxu0 0
  %1413 = vmatpush1.bf16.msra.mxu0 %v1008
  %1414 = vmatprep.subr.bf16.mxu0 0
  %1415 = vmatpush1.bf16.msra.mxu0 %v1009
  %1416 = vmatprep.subr.bf16.mxu0 0
  %1417 = vmatpush1.bf16.msra.mxu0 %v1010
  %1418 = vmatprep.subr.bf16.mxu0 0
  %1419 = vmatpush1.bf16.msra.mxu0 %v1011
  %1420 = vmatprep.subr.bf16.mxu0 0
  %1421 = vmatpush1.bf16.msra.mxu0 %v1012
  %1422 = vmatprep.subr.bf16.mxu0 0
  %1423 = vmatpush1.bf16.msra.mxu0 %v1013
  %1424 = vmatprep.subr.bf16.mxu0 0
  %1425 = vmatpush1.bf16.msra.mxu0 %v1014
  %1426 = vmatprep.subr.bf16.mxu0 0
  %1427 = vmatpush1.bf16.msra.mxu0 %v1015
  %1428 = vmatprep.subr.bf16.mxu0 0
  %1429 = vmatpush1.bf16.msra.mxu0 %v1016
  %1430 = vmatprep.subr.bf16.mxu0 0
  %1431 = vmatpush1.bf16.msra.mxu0 %v1017
  %1432 = vmatprep.subr.bf16.mxu0 0
  %1433 = vmatpush1.bf16.msra.mxu0 %v1018
  %1434 = vmatprep.subr.bf16.mxu0 0
  %1435 = vmatpush1.bf16.msra.mxu0 %v1019
  %1436 = vmatprep.mubr.bf16.mxu0 %v375
  %1437 = vmatmul.mubr.bf16.gmra.mrb[0].mxu0 %v361
  %v1438 = vpop.f32.mrb[0].mxu0
  %v1439 = vadd.f32 %v1399, %v1438
  %v1440 = vpop.f32.mrb[0].mxu0
  %v1441 = vpop.f32.mrb[0].mxu0
  %v1442 = vpop.f32.mrb[0].mxu0
  %1443 = vdwg.mxu0
  %1444 = vmatprep.subr.bf16.mxu0 0
  %1445 = vmatpush1.bf16.msra.mxu0 %v1020
  %1446 = vmatprep.subr.bf16.mxu0 0
  %1447 = vmatpush1.bf16.msra.mxu0 %v1021
  %1448 = vmatprep.subr.bf16.mxu0 0
  %1449 = vmatpush1.bf16.msra.mxu0 %v1022
  %1450 = vmatprep.subr.bf16.mxu0 0
  %1451 = vmatpush1.bf16.msra.mxu0 %v1023
  %1452 = vmatprep.subr.bf16.mxu0 0
  %1453 = vmatpush1.bf16.msra.mxu0 %v1024
  %1454 = vmatprep.subr.bf16.mxu0 0
  %1455 = vmatpush1.bf16.msra.mxu0 %v1025
  %1456 = vmatprep.subr.bf16.mxu0 0
  %1457 = vmatpush1.bf16.msra.mxu0 %v1026
  %1458 = vmatprep.subr.bf16.mxu0 0
  %1459 = vmatpush1.bf16.msra.mxu0 %v1027
  %1460 = vmatprep.subr.bf16.mxu0 0
  %1461 = vmatpush1.bf16.msra.mxu0 %v1028
  %1462 = vmatprep.subr.bf16.mxu0 0
  %1463 = vmatpush1.bf16.msra.mxu0 %v1029
  %1464 = vmatprep.subr.bf16.mxu0 0
  %1465 = vmatpush1.bf16.msra.mxu0 %v1030
  %1466 = vmatprep.subr.bf16.mxu0 0
  %1467 = vmatpush1.bf16.msra.mxu0 %v1031
  %1468 = vmatprep.subr.bf16.mxu0 0
  %1469 = vmatpush1.bf16.msra.mxu0 %v1032
  %1470 = vmatprep.subr.bf16.mxu0 0
  %1471 = vmatpush1.bf16.msra.mxu0 %v1033
  %1472 = vmatprep.subr.bf16.mxu0 0
  %1473 = vmatpush1.bf16.msra.mxu0 %v1034
  %1474 = vmatprep.subr.bf16.mxu0 0
  %1475 = vmatpush1.bf16.msra.mxu0 %v1035
  %1476 = vmatprep.mubr.bf16.mxu0 %v379
  %1477 = vmatmul.mubr.bf16.gmra.mrb[0].mxu0 %v377
  %v1478 = vpop.f32.mrb[0].mxu0
  %v1479 = vadd.f32 %v1439, %v1478
  %v1480 = vpop.f32.mrb[0].mxu0
  %v1481 = vpop.f32.mrb[0].mxu0
  %v1482 = vpop.f32.mrb[0].mxu0
  %1483 = vdwg.mxu0
  %vm1484 = vcmp.gt.f32.partialorder %v1479, 0.0
  %v1485 = vmin.f32 %v1479, 0.0
  %v1486 = vmul.f32 %v1485, 1.442695
  %v1487 = vpow.pop %v1486
  %v1488 = vsub.f32 %v1487, 1.0
  %v1489 = vsel %vm1484, %v1479, %v1488
  %1490 = vst [vmem:[%s3] sm:$0x3] %v1489
  // Predicated region
  $region14: #{pctnet_forward.13} parent=0 // pred_check
    _
  $region15: #{pctnet_forward.13} parent=0 // pred_check_branch
    %1492 = sbr.rel (0) target = $region17
  $region16: #{pctnet_forward.13} parent=0 // pred_region
    _
  $region17: #{pctnet_forward.13} parent=0 // pred_fallthru
    _
  // Predicated region
  $region18: #{pctnet_forward.13} parent=0 // pred_check
    _
  $region19: #{pctnet_forward.13} parent=0 // pred_check_branch
    %1494 = sbr.rel (0) target = $region21
  $region20: #{pctnet_forward.13} parent=0 // pred_region
    _
  $region21: #{pctnet_forward.13} parent=0 // pred_fallthru
    _

// kernel: tile.23
$region0: #{tile.23}
  #allocation0 [shape = 's32[1]{0}', space=sflag, size = 0x4, scoped, tag = 'scoped memory for tile.23']
  %s0 = inlined_call_operand.vmem [shape: f32[128], index: 0, kind: input, shape index: {}]
  %s1 = inlined_call_operand.vmem [shape: f32[4,128], index: 1, kind: output, shape index: {}]
  // Predicated region
  $region2: #{tile.23} parent=0 // pred_check
    _
  $region3: #{tile.23} parent=0 // pred_check_branch
    %3 = sbr.rel (0) target = $region5
  $region4: #{tile.23} parent=0 // pred_region
    _
  $region5: #{tile.23} parent=0 // pred_fallthru
    _
  %v4 = vld [vmem:[%s0] ss:$0 sm:$0xff]
  %5 = vst [vmem:[%s1] sm:$0xf] %v4

// kernel: pctnet_forward.14
$region0: #{pctnet_forward.14}
  #allocation0 [shape = 'u32[]', space=smem, size = 0x4, offset = 0x4, fixed_abs, tag = 'smem constant byte address 0x4 - core index']
  #allocation1 [shape = 'u32[144,128]{1,0:T(1,128)}', space=vmem, size = 0x12000, scoped, tag = 'internal scratch']
  %s0 = inlined_call_operand.vmem [shape: bf16[8,512], index: 0, kind: input, shape index: {}]
  %s1 = inlined_call_operand.vmem [shape: bf16[512,512], index: 1, kind: input, shape index: {}]
  %s2 = inlined_call_operand.vmem [shape: f32[1,512], index: 2, kind: input, shape index: {}]
  %s3 = inlined_call_operand.vmem [shape: f32[8,512], index: 3, kind: output, shape index: {}]
  %s4 = sld [smem:[#allocation0]]
  $region22: #{pctnet_forward.14} parent=0
    _
  %s6 = ssub.s32 1, %s4
  %s7 = scalar_select 0, %s6, %s4
  // Predicated region
  $region2: #{pctnet_forward.14} parent=0 // pred_check
    _
  $region3: #{pctnet_forward.14} parent=0 // pred_check_branch
    %9 = sbr.rel (0) target = $region5
  $region4: #{pctnet_forward.14} parent=0 // pred_region
    _
  $region5: #{pctnet_forward.14} parent=0 // pred_fallthru
    _
  // Predicated region
  $region6: #{pctnet_forward.14} parent=0 // pred_check
    _
  $region7: #{pctnet_forward.14} parent=0 // pred_check_branch
    %11 = sbr.rel (0) target = $region9
  $region8: #{pctnet_forward.14} parent=0 // pred_region
    _
  $region9: #{pctnet_forward.14} parent=0 // pred_fallthru
    _
  // Predicated region
  $region10: #{pctnet_forward.14} parent=0 // pred_check
    _
  $region11: #{pctnet_forward.14} parent=0 // pred_check_branch
    %13 = sbr.rel (0) target = $region13
  $region12: #{pctnet_forward.14} parent=0 // pred_region
    _
  $region13: #{pctnet_forward.14} parent=0 // pred_fallthru
    _
  %v14 = vld [vmem:[%s0] sm:$0xff]
  %v15 = vld [vmem:[%s0 + $0x8] sm:$0xff]
  %v16 = vld [vmem:[%s1] sm:$0xff]
  %v17 = vld [vmem:[%s1 + $0x8] sm:$0xff]
  %v18 = vld [vmem:[%s1 + $0x10] sm:$0xff]
  %v19 = vld [vmem:[%s1 + $0x18] sm:$0xff]
  %v20 = vld [vmem:[%s1 + $0x20] sm:$0xff]
  %v21 = vld [vmem:[%s1 + $0x28] sm:$0xff]
  %v22 = vld [vmem:[%s1 + $0x30] sm:$0xff]
  %v23 = vld [vmem:[%s1 + $0x38] sm:$0xff]
  %v24 = vld [vmem:[%s1 + $0x40] sm:$0xff]
  %v25 = vld [vmem:[%s1 + $0x48] sm:$0xff]
  %v26 = vld [vmem:[%s1 + $0x50] sm:$0xff]
  %v27 = vld [vmem:[%s1 + $0x58] sm:$0xff]
  %v28 = vld [vmem:[%s1 + $0x60] sm:$0xff]
  %v29 = vld [vmem:[%s1 + $0x68] sm:$0xff]
  %v30 = vld [vmem:[%s1 + $0x70] sm:$0xff]
  %v31 = vld [vmem:[%s1 + $0x78] sm:$0xff]
  %v32 = vld [vmem:[%s1 + $0x80] sm:$0xff]
  %v33 = vld [vmem:[%s1 + $0x88] sm:$0xff]
  %v34 = vld [vmem:[%s1 + $0x90] sm:$0xff]
  %v35 = vld [vmem:[%s1 + $0x98] sm:$0xff]
  %v36 = vld [vmem:[%s1 + $0xa0] sm:$0xff]
  %v37 = vld [vmem:[%s1 + $0xa8] sm:$0xff]
  %v38 = vld [vmem:[%s1 + $0xb0] sm:$0xff]
  %v39 = vld [vmem:[%s1 + $0xb8] sm:$0xff]
  %v40 = vld [vmem:[%s1 + $0xc0] sm:$0xff]
  %v41 = vld [vmem:[%s1 + $0xc8] sm:$0xff]
  %v42 = vld [vmem:[%s1 + $0xd0] sm:$0xff]
  %v43 = vld [vmem:[%s1 + $0xd8] sm:$0xff]
  %v44 = vld [vmem:[%s1 + $0xe0] sm:$0xff]
  %v45 = vld [vmem:[%s1 + $0xe8] sm:$0xff]
  %v46 = vld [vmem:[%s1 + $0xf0] sm:$0xff]
  %v47 = vld [vmem:[%s1 + $0xf8] sm:$0xff]
  %v48 = vld [vmem:[%s1 + $0x100] sm:$0xff]
  %v49 = vld [vmem:[%s1 + $0x108] sm:$0xff]
  %v50 = vld [vmem:[%s1 + $0x110] sm:$0xff]
  %v51 = vld [vmem:[%s1 + $0x118] sm:$0xff]
  %v52 = vld [vmem:[%s1 + $0x120] sm:$0xff]
  %v53 = vld [vmem:[%s1 + $0x128] sm:$0xff]
  %v54 = vld [vmem:[%s1 + $0x130] sm:$0xff]
  %v55 = vld [vmem:[%s1 + $0x138] sm:$0xff]
  %v56 = vld [vmem:[%s1 + $0x140] sm:$0xff]
  %v57 = vld [vmem:[%s1 + $0x148] sm:$0xff]
  %v58 = vld [vmem:[%s1 + $0x150] sm:$0xff]
  %v59 = vld [vmem:[%s1 + $0x158] sm:$0xff]
  %v60 = vld [vmem:[%s1 + $0x160] sm:$0xff]
  %v61 = vld [vmem:[%s1 + $0x168] sm:$0xff]
  %v62 = vld [vmem:[%s1 + $0x170] sm:$0xff]
  %v63 = vld [vmem:[%s1 + $0x178] sm:$0xff]
  %v64 = vld [vmem:[%s1 + $0x180] sm:$0xff]
  %v65 = vld [vmem:[%s1 + $0x188] sm:$0xff]
  %v66 = vld [vmem:[%s1 + $0x190] sm:$0xff]
  %v67 = vld [vmem:[%s1 + $0x198] sm:$0xff]
  %v68 = vld [vmem:[%s1 + $0x1a0] sm:$0xff]
  %v69 = vld [vmem:[%s1 + $0x1a8] sm:$0xff]
  %v70 = vld [vmem:[%s1 + $0x1b0] sm:$0xff]
  %v71 = vld [vmem:[%s1 + $0x1b8] sm:$0xff]
  %v72 = vld [vmem:[%s1 + $0x1c0] sm:$0xff]
  %v73 = vld [vmem:[%s1 + $0x1c8] sm:$0xff]
  %v74 = vld [vmem:[%s1 + $0x1d0] sm:$0xff]
  %v75 = vld [vmem:[%s1 + $0x1d8] sm:$0xff]
  %v76 = vld [vmem:[%s1 + $0x1e0] sm:$0xff]
  %v77 = vld [vmem:[%s1 + $0x1e8] sm:$0xff]
  %v78 = vld [vmem:[%s1 + $0x1f0] sm:$0xff]
  %v79 = vld [vmem:[%s1 + $0x1f8] sm:$0xff]
  %v80 = vld [vmem:[%s1 + $0x200] sm:$0xff]
  %v81 = vld [vmem:[%s1 + $0x208] sm:$0xff]
  %v82 = vld [vmem:[%s1 + $0x210] sm:$0xff]
  %v83 = vld [vmem:[%s1 + $0x218] sm:$0xff]
  %v84 = vld [vmem:[%s1 + $0x220] sm:$0xff]
  %v85 = vld [vmem:[%s1 + $0x228] sm:$0xff]
  %v86 = vld [vmem:[%s1 + $0x230] sm:$0xff]
  %v87 = vld [vmem:[%s1 + $0x238] sm:$0xff]
  %v88 = vld [vmem:[%s1 + $0x240] sm:$0xff]
  %v89 = vld [vmem:[%s1 + $0x248] sm:$0xff]
  %v90 = vld [vmem:[%s1 + $0x250] sm:$0xff]
  %v91 = vld [vmem:[%s1 + $0x258] sm:$0xff]
  %v92 = vld [vmem:[%s1 + $0x260] sm:$0xff]
  %v93 = vld [vmem:[%s1 + $0x268] sm:$0xff]
  %v94 = vld [vmem:[%s1 + $0x270] sm:$0xff]
  %v95 = vld [vmem:[%s1 + $0x278] sm:$0xff]
  %v96 = vld [vmem:[%s1 + $0x280] sm:$0xff]
  %v97 = vld [vmem:[%s1 + $0x288] sm:$0xff]
  %v98 = vld [vmem:[%s1 + $0x290] sm:$0xff]
  %v99 = vld [vmem:[%s1 + $0x298] sm:$0xff]
  %v100 = vld [vmem:[%s1 + $0x2a0] sm:$0xff]
  %v101 = vld [vmem:[%s1 + $0x2a8] sm:$0xff]
  %v102 = vld [vmem:[%s1 + $0x2b0] sm:$0xff]
  %v103 = vld [vmem:[%s1 + $0x2b8] sm:$0xff]
  %v104 = vld [vmem:[%s1 + $0x2c0] sm:$0xff]
  %v105 = vld [vmem:[%s1 + $0x2c8] sm:$0xff]
  %v106 = vld [vmem:[%s1 + $0x2d0] sm:$0xff]
  %v107 = vld [vmem:[%s1 + $0x2d8] sm:$0xff]
  %v108 = vld [vmem:[%s1 + $0x2e0] sm:$0xff]
  %v109 = vld [vmem:[%s1 + $0x2e8] sm:$0xff]
  %v110 = vld [vmem:[%s1 + $0x2f0] sm:$0xff]
  %v111 = vld [vmem:[%s1 + $0x2f8] sm:$0xff]
  %v112 = vld [vmem:[%s1 + $0x300] sm:$0xff]
  %v113 = vld [vmem:[%s1 + $0x308] sm:$0xff]
  %v114 = vld [vmem:[%s1 + $0x310] sm:$0xff]
  %v115 = vld [vmem:[%s1 + $0x318] sm:$0xff]
  %v116 = vld [vmem:[%s1 + $0x320] sm:$0xff]
  %v117 = vld [vmem:[%s1 + $0x328] sm:$0xff]
  %v118 = vld [vmem:[%s1 + $0x330] sm:$0xff]
  %v119 = vld [vmem:[%s1 + $0x338] sm:$0xff]
  %v120 = vld [vmem:[%s1 + $0x340] sm:$0xff]
  %v121 = vld [vmem:[%s1 + $0x348] sm:$0xff]
  %v122 = vld [vmem:[%s1 + $0x350] sm:$0xff]
  %v123 = vld [vmem:[%s1 + $0x358] sm:$0xff]
  %v124 = vld [vmem:[%s1 + $0x360] sm:$0xff]
  %v125 = vld [vmem:[%s1 + $0x368] sm:$0xff]
  %v126 = vld [vmem:[%s1 + $0x370] sm:$0xff]
  %v127 = vld [vmem:[%s1 + $0x378] sm:$0xff]
  %v128 = vld [vmem:[%s1 + $0x380] sm:$0xff]
  %v129 = vld [vmem:[%s1 + $0x388] sm:$0xff]
  %v130 = vld [vmem:[%s1 + $0x390] sm:$0xff]
  %v131 = vld [vmem:[%s1 + $0x398] sm:$0xff]
  %v132 = vld [vmem:[%s1 + $0x3a0] sm:$0xff]
  %v133 = vld [vmem:[%s1 + $0x3a8] sm:$0xff]
  %v134 = vld [vmem:[%s1 + $0x3b0] sm:$0xff]
  %v135 = vld [vmem:[%s1 + $0x3b8] sm:$0xff]
  %v136 = vld [vmem:[%s1 + $0x3c0] sm:$0xff]
  %v137 = vld [vmem:[%s1 + $0x3c8] sm:$0xff]
  %v138 = vld [vmem:[%s1 + $0x3d0] sm:$0xff]
  %v139 = vld [vmem:[%s1 + $0x3d8] sm:$0xff]
  %v140 = vld [vmem:[%s1 + $0x3e0] sm:$0xff]
  %v141 = vld [vmem:[%s1 + $0x3e8] sm:$0xff]
  %v142 = vld [vmem:[%s1 + $0x3f0] sm:$0xff]
  %v143 = vld [vmem:[%s1 + $0x3f8] sm:$0xff]
  %v144 = vld [vmem:[%s2] sm:$0xf]
  %v146 = vlaneseq
  %v147 = vshrl.u32 %v146, 7
  %v148 = vsub.s32 0, %v147
  %v149 = vrot.slane %v144, %v148
  %v150 = vlaneseq
  %v151 = vshrl.u32 %v150, 7
  %v152 = vsub.s32 1, %v151
  %v153 = vrot.slane %v144, %v152
  %v154 = vlaneseq
  %v155 = vshrl.u32 %v154, 7
  %v156 = vsub.s32 2, %v155
  %v157 = vrot.slane %v144, %v156
  %v158 = vlaneseq
  %v159 = vshrl.u32 %v158, 7
  %v160 = vsub.s32 3, %v159
  %v161 = vrot.slane %v144, %v160
  %v168 = vunpack.c.l.b16 %v14
  %v169 = vunpack.c.h.b16 %v14
  %v170 = vunpack.c.l.b16 %v15
  %v171 = vunpack.c.h.b16 %v15
  %v172 = vpack.c.b16 %v168, %v168
  %v173 = vpack.c.b16 %v169, %v169
  %v174 = vpack.c.b16 %v170, %v170
  %v175 = vpack.c.b16 %v171, %v171
  %v308 = vunpack.c.l.b16 %v16
  %v309 = vunpack.c.h.b16 %v16
  %v310 = vunpack.c.l.b16 %v17
  %v311 = vunpack.c.h.b16 %v17
  %v312 = vunpack.c.l.b16 %v18
  %v313 = vunpack.c.h.b16 %v18
  %v314 = vunpack.c.l.b16 %v19
  %v315 = vunpack.c.h.b16 %v19
  %v316 = vunpack.c.l.b16 %v20
  %v317 = vunpack.c.h.b16 %v20
  %v318 = vunpack.c.l.b16 %v21
  %v319 = vunpack.c.h.b16 %v21
  %v320 = vunpack.c.l.b16 %v22
  %v321 = vunpack.c.h.b16 %v22
  %v322 = vunpack.c.l.b16 %v23
  %v323 = vunpack.c.h.b16 %v23
  %v324 = vunpack.c.l.b16 %v24
  %v325 = vunpack.c.h.b16 %v24
  %v326 = vunpack.c.l.b16 %v25
  %v327 = vunpack.c.h.b16 %v25
  %v328 = vunpack.c.l.b16 %v26
  %v329 = vunpack.c.h.b16 %v26
  %v330 = vunpack.c.l.b16 %v27
  %v331 = vunpack.c.h.b16 %v27
  %v332 = vunpack.c.l.b16 %v28
  %v333 = vunpack.c.h.b16 %v28
  %v334 = vunpack.c.l.b16 %v29
  %v335 = vunpack.c.h.b16 %v29
  %v336 = vunpack.c.l.b16 %v30
  %v337 = vunpack.c.h.b16 %v30
  %v338 = vunpack.c.l.b16 %v31
  %v339 = vunpack.c.h.b16 %v31
  %v340 = vunpack.c.l.b16 %v32
  %v341 = vunpack.c.h.b16 %v32
  %v342 = vunpack.c.l.b16 %v33
  %v343 = vunpack.c.h.b16 %v33
  %v344 = vunpack.c.l.b16 %v34
  %v345 = vunpack.c.h.b16 %v34
  %v346 = vunpack.c.l.b16 %v35
  %v347 = vunpack.c.h.b16 %v35
  %v348 = vunpack.c.l.b16 %v36
  %v349 = vunpack.c.h.b16 %v36
  %v350 = vunpack.c.l.b16 %v37
  %v351 = vunpack.c.h.b16 %v37
  %v352 = vunpack.c.l.b16 %v38
  %v353 = vunpack.c.h.b16 %v38
  %v354 = vunpack.c.l.b16 %v39
  %v355 = vunpack.c.h.b16 %v39
  %v356 = vunpack.c.l.b16 %v40
  %v357 = vunpack.c.h.b16 %v40
  %v358 = vunpack.c.l.b16 %v41
  %v359 = vunpack.c.h.b16 %v41
  %v360 = vunpack.c.l.b16 %v42
  %v361 = vunpack.c.h.b16 %v42
  %v362 = vunpack.c.l.b16 %v43
  %v363 = vunpack.c.h.b16 %v43
  %v364 = vunpack.c.l.b16 %v44
  %v365 = vunpack.c.h.b16 %v44
  %v366 = vunpack.c.l.b16 %v45
  %v367 = vunpack.c.h.b16 %v45
  %v368 = vunpack.c.l.b16 %v46
  %v369 = vunpack.c.h.b16 %v46
  %v370 = vunpack.c.l.b16 %v47
  %v371 = vunpack.c.h.b16 %v47
  %v372 = vunpack.c.l.b16 %v48
  %v373 = vunpack.c.h.b16 %v48
  %v374 = vunpack.c.l.b16 %v49
  %v375 = vunpack.c.h.b16 %v49
  %v376 = vunpack.c.l.b16 %v50
  %v377 = vunpack.c.h.b16 %v50
  %v378 = vunpack.c.l.b16 %v51
  %v379 = vunpack.c.h.b16 %v51
  %v380 = vunpack.c.l.b16 %v52
  %v381 = vunpack.c.h.b16 %v52
  %v382 = vunpack.c.l.b16 %v53
  %v383 = vunpack.c.h.b16 %v53
  %v384 = vunpack.c.l.b16 %v54
  %v385 = vunpack.c.h.b16 %v54
  %v386 = vunpack.c.l.b16 %v55
  %v387 = vunpack.c.h.b16 %v55
  %v388 = vunpack.c.l.b16 %v56
  %v389 = vunpack.c.h.b16 %v56
  %v390 = vunpack.c.l.b16 %v57
  %v391 = vunpack.c.h.b16 %v57
  %v392 = vunpack.c.l.b16 %v58
  %v393 = vunpack.c.h.b16 %v58
  %v394 = vunpack.c.l.b16 %v59
  %v395 = vunpack.c.h.b16 %v59
  %v396 = vunpack.c.l.b16 %v60
  %v397 = vunpack.c.h.b16 %v60
  %v398 = vunpack.c.l.b16 %v61
  %v399 = vunpack.c.h.b16 %v61
  %v400 = vunpack.c.l.b16 %v62
  %v401 = vunpack.c.h.b16 %v62
  %v402 = vunpack.c.l.b16 %v63
  %v403 = vunpack.c.h.b16 %v63
  %v404 = vunpack.c.l.b16 %v64
  %v405 = vunpack.c.h.b16 %v64
  %v406 = vunpack.c.l.b16 %v65
  %v407 = vunpack.c.h.b16 %v65
  %v408 = vunpack.c.l.b16 %v66
  %v409 = vunpack.c.h.b16 %v66
  %v410 = vunpack.c.l.b16 %v67
  %v411 = vunpack.c.h.b16 %v67
  %v412 = vunpack.c.l.b16 %v68
  %v413 = vunpack.c.h.b16 %v68
  %v414 = vunpack.c.l.b16 %v69
  %v415 = vunpack.c.h.b16 %v69
  %v416 = vunpack.c.l.b16 %v70
  %v417 = vunpack.c.h.b16 %v70
  %v418 = vunpack.c.l.b16 %v71
  %v419 = vunpack.c.h.b16 %v71
  %v420 = vunpack.c.l.b16 %v72
  %v421 = vunpack.c.h.b16 %v72
  %v422 = vunpack.c.l.b16 %v73
  %v423 = vunpack.c.h.b16 %v73
  %v424 = vunpack.c.l.b16 %v74
  %v425 = vunpack.c.h.b16 %v74
  %v426 = vunpack.c.l.b16 %v75
  %v427 = vunpack.c.h.b16 %v75
  %v428 = vunpack.c.l.b16 %v76
  %v429 = vunpack.c.h.b16 %v76
  %v430 = vunpack.c.l.b16 %v77
  %v431 = vunpack.c.h.b16 %v77
  %v432 = vunpack.c.l.b16 %v78
  %v433 = vunpack.c.h.b16 %v78
  %v434 = vunpack.c.l.b16 %v79
  %v435 = vunpack.c.h.b16 %v79
  %v436 = vunpack.c.l.b16 %v80
  %v437 = vunpack.c.h.b16 %v80
  %v438 = vunpack.c.l.b16 %v81
  %v439 = vunpack.c.h.b16 %v81
  %v440 = vunpack.c.l.b16 %v82
  %v441 = vunpack.c.h.b16 %v82
  %v442 = vunpack.c.l.b16 %v83
  %v443 = vunpack.c.h.b16 %v83
  %v444 = vunpack.c.l.b16 %v84
  %v445 = vunpack.c.h.b16 %v84
  %v446 = vunpack.c.l.b16 %v85
  %v447 = vunpack.c.h.b16 %v85
  %v448 = vunpack.c.l.b16 %v86
  %v449 = vunpack.c.h.b16 %v86
  %v450 = vunpack.c.l.b16 %v87
  %v451 = vunpack.c.h.b16 %v87
  %v452 = vunpack.c.l.b16 %v88
  %v453 = vunpack.c.h.b16 %v88
  %v454 = vunpack.c.l.b16 %v89
  %v455 = vunpack.c.h.b16 %v89
  %v456 = vunpack.c.l.b16 %v90
  %v457 = vunpack.c.h.b16 %v90
  %v458 = vunpack.c.l.b16 %v91
  %v459 = vunpack.c.h.b16 %v91
  %v460 = vunpack.c.l.b16 %v92
  %v461 = vunpack.c.h.b16 %v92
  %v462 = vunpack.c.l.b16 %v93
  %v463 = vunpack.c.h.b16 %v93
  %v464 = vunpack.c.l.b16 %v94
  %v465 = vunpack.c.h.b16 %v94
  %v466 = vunpack.c.l.b16 %v95
  %v467 = vunpack.c.h.b16 %v95
  %v468 = vunpack.c.l.b16 %v96
  %v469 = vunpack.c.h.b16 %v96
  %v470 = vunpack.c.l.b16 %v97
  %v471 = vunpack.c.h.b16 %v97
  %v472 = vunpack.c.l.b16 %v98
  %v473 = vunpack.c.h.b16 %v98
  %v474 = vunpack.c.l.b16 %v99
  %v475 = vunpack.c.h.b16 %v99
  %v476 = vunpack.c.l.b16 %v100
  %v477 = vunpack.c.h.b16 %v100
  %v478 = vunpack.c.l.b16 %v101
  %v479 = vunpack.c.h.b16 %v101
  %v480 = vunpack.c.l.b16 %v102
  %v481 = vunpack.c.h.b16 %v102
  %v482 = vunpack.c.l.b16 %v103
  %v483 = vunpack.c.h.b16 %v103
  %v484 = vunpack.c.l.b16 %v104
  %v485 = vunpack.c.h.b16 %v104
  %v486 = vunpack.c.l.b16 %v105
  %v487 = vunpack.c.h.b16 %v105
  %v488 = vunpack.c.l.b16 %v106
  %v489 = vunpack.c.h.b16 %v106
  %v490 = vunpack.c.l.b16 %v107
  %v491 = vunpack.c.h.b16 %v107
  %v492 = vunpack.c.l.b16 %v108
  %v493 = vunpack.c.h.b16 %v108
  %v494 = vunpack.c.l.b16 %v109
  %v495 = vunpack.c.h.b16 %v109
  %v496 = vunpack.c.l.b16 %v110
  %v497 = vunpack.c.h.b16 %v110
  %v498 = vunpack.c.l.b16 %v111
  %v499 = vunpack.c.h.b16 %v111
  %v500 = vunpack.c.l.b16 %v112
  %v501 = vunpack.c.h.b16 %v112
  %v502 = vunpack.c.l.b16 %v113
  %v503 = vunpack.c.h.b16 %v113
  %v504 = vunpack.c.l.b16 %v114
  %v505 = vunpack.c.h.b16 %v114
  %v506 = vunpack.c.l.b16 %v115
  %v507 = vunpack.c.h.b16 %v115
  %v508 = vunpack.c.l.b16 %v116
  %v509 = vunpack.c.h.b16 %v116
  %v510 = vunpack.c.l.b16 %v117
  %v511 = vunpack.c.h.b16 %v117
  %v512 = vunpack.c.l.b16 %v118
  %v513 = vunpack.c.h.b16 %v118
  %v514 = vunpack.c.l.b16 %v119
  %v515 = vunpack.c.h.b16 %v119
  %v516 = vunpack.c.l.b16 %v120
  %v517 = vunpack.c.h.b16 %v120
  %v518 = vunpack.c.l.b16 %v121
  %v519 = vunpack.c.h.b16 %v121
  %v520 = vunpack.c.l.b16 %v122
  %v521 = vunpack.c.h.b16 %v122
  %v522 = vunpack.c.l.b16 %v123
  %v523 = vunpack.c.h.b16 %v123
  %v524 = vunpack.c.l.b16 %v124
  %v525 = vunpack.c.h.b16 %v124
  %v526 = vunpack.c.l.b16 %v125
  %v527 = vunpack.c.h.b16 %v125
  %v528 = vunpack.c.l.b16 %v126
  %v529 = vunpack.c.h.b16 %v126
  %v530 = vunpack.c.l.b16 %v127
  %v531 = vunpack.c.h.b16 %v127
  %v532 = vunpack.c.l.b16 %v128
  %v533 = vunpack.c.h.b16 %v128
  %v534 = vunpack.c.l.b16 %v129
  %v535 = vunpack.c.h.b16 %v129
  %v536 = vunpack.c.l.b16 %v130
  %v537 = vunpack.c.h.b16 %v130
  %v538 = vunpack.c.l.b16 %v131
  %v539 = vunpack.c.h.b16 %v131
  %v540 = vunpack.c.l.b16 %v132
  %v541 = vunpack.c.h.b16 %v132
  %v542 = vunpack.c.l.b16 %v133
  %v543 = vunpack.c.h.b16 %v133
  %v544 = vunpack.c.l.b16 %v134
  %v545 = vunpack.c.h.b16 %v134
  %v546 = vunpack.c.l.b16 %v135
  %v547 = vunpack.c.h.b16 %v135
  %v548 = vunpack.c.l.b16 %v136
  %v549 = vunpack.c.h.b16 %v136
  %v550 = vunpack.c.l.b16 %v137
  %v551 = vunpack.c.h.b16 %v137
  %v552 = vunpack.c.l.b16 %v138
  %v553 = vunpack.c.h.b16 %v138
  %v554 = vunpack.c.l.b16 %v139
  %v555 = vunpack.c.h.b16 %v139
  %v556 = vunpack.c.l.b16 %v140
  %v557 = vunpack.c.h.b16 %v140
  %v558 = vunpack.c.l.b16 %v141
  %v559 = vunpack.c.h.b16 %v141
  %v560 = vunpack.c.l.b16 %v142
  %v561 = vunpack.c.h.b16 %v142
  %v562 = vunpack.c.l.b16 %v143
  %v563 = vunpack.c.h.b16 %v143
  %v564 = vpack.c.b16 %v312, %v308
  %v565 = vpack.c.b16 %v313, %v309
  %v566 = vpack.c.b16 %v314, %v310
  %v567 = vpack.c.b16 %v315, %v311
  %v568 = vpack.c.b16 %v320, %v316
  %v569 = vpack.c.b16 %v321, %v317
  %v570 = vpack.c.b16 %v322, %v318
  %v571 = vpack.c.b16 %v323, %v319
  %v572 = vpack.c.b16 %v328, %v324
  %v573 = vpack.c.b16 %v329, %v325
  %v574 = vpack.c.b16 %v330, %v326
  %v575 = vpack.c.b16 %v331, %v327
  %v576 = vpack.c.b16 %v336, %v332
  %v577 = vpack.c.b16 %v337, %v333
  %v578 = vpack.c.b16 %v338, %v334
  %v579 = vpack.c.b16 %v339, %v335
  %v580 = vpack.c.b16 %v344, %v340
  %v581 = vpack.c.b16 %v345, %v341
  %v582 = vpack.c.b16 %v346, %v342
  %v583 = vpack.c.b16 %v347, %v343
  %v584 = vpack.c.b16 %v352, %v348
  %v585 = vpack.c.b16 %v353, %v349
  %v586 = vpack.c.b16 %v354, %v350
  %v587 = vpack.c.b16 %v355, %v351
  %v588 = vpack.c.b16 %v360, %v356
  %v589 = vpack.c.b16 %v361, %v357
  %v590 = vpack.c.b16 %v362, %v358
  %v591 = vpack.c.b16 %v363, %v359
  %v592 = vpack.c.b16 %v368, %v364
  %v593 = vpack.c.b16 %v369, %v365
  %v594 = vpack.c.b16 %v370, %v366
  %v595 = vpack.c.b16 %v371, %v367
  %v596 = vpack.c.b16 %v376, %v372
  %v597 = vpack.c.b16 %v377, %v373
  %v598 = vpack.c.b16 %v378, %v374
  %v599 = vpack.c.b16 %v379, %v375
  %v600 = vpack.c.b16 %v384, %v380
  %v601 = vpack.c.b16 %v385, %v381
  %v602 = vpack.c.b16 %v386, %v382
  %v603 = vpack.c.b16 %v387, %v383
  %v604 = vpack.c.b16 %v392, %v388
  %v605 = vpack.c.b16 %v393, %v389
  %v606 = vpack.c.b16 %v394, %v390
  %v607 = vpack.c.b16 %v395, %v391
  %v608 = vpack.c.b16 %v400, %v396
  %v609 = vpack.c.b16 %v401, %v397
  %v610 = vpack.c.b16 %v402, %v398
  %v611 = vpack.c.b16 %v403, %v399
  %v612 = vpack.c.b16 %v408, %v404
  %v613 = vpack.c.b16 %v409, %v405
  %v614 = vpack.c.b16 %v410, %v406
  %v615 = vpack.c.b16 %v411, %v407
  %v616 = vpack.c.b16 %v416, %v412
  %v617 = vpack.c.b16 %v417, %v413
  %v618 = vpack.c.b16 %v418, %v414
  %v619 = vpack.c.b16 %v419, %v415
  %v620 = vpack.c.b16 %v424, %v420
  %v621 = vpack.c.b16 %v425, %v421
  %v622 = vpack.c.b16 %v426, %v422
  %v623 = vpack.c.b16 %v427, %v423
  %v624 = vpack.c.b16 %v432, %v428
  %v625 = vpack.c.b16 %v433, %v429
  %v626 = vpack.c.b16 %v434, %v430
  %v627 = vpack.c.b16 %v435, %v431
  %v628 = vpack.c.b16 %v440, %v436
  %v629 = vpack.c.b16 %v441, %v437
  %v630 = vpack.c.b16 %v442, %v438
  %v631 = vpack.c.b16 %v443, %v439
  %v632 = vpack.c.b16 %v448, %v444
  %v633 = vpack.c.b16 %v449, %v445
  %v634 = vpack.c.b16 %v450, %v446
  %v635 = vpack.c.b16 %v451, %v447
  %v636 = vpack.c.b16 %v456, %v452
  %v637 = vpack.c.b16 %v457, %v453
  %v638 = vpack.c.b16 %v458, %v454
  %v639 = vpack.c.b16 %v459, %v455
  %v640 = vpack.c.b16 %v464, %v460
  %v641 = vpack.c.b16 %v465, %v461
  %v642 = vpack.c.b16 %v466, %v462
  %v643 = vpack.c.b16 %v467, %v463
  %v644 = vpack.c.b16 %v472, %v468
  %v645 = vpack.c.b16 %v473, %v469
  %v646 = vpack.c.b16 %v474, %v470
  %v647 = vpack.c.b16 %v475, %v471
  %v648 = vpack.c.b16 %v480, %v476
  %v649 = vpack.c.b16 %v481, %v477
  %v650 = vpack.c.b16 %v482, %v478
  %v651 = vpack.c.b16 %v483, %v479
  %v652 = vpack.c.b16 %v488, %v484
  %v653 = vpack.c.b16 %v489, %v485
  %v654 = vpack.c.b16 %v490, %v486
  %v655 = vpack.c.b16 %v491, %v487
  %v656 = vpack.c.b16 %v496, %v492
  %v657 = vpack.c.b16 %v497, %v493
  %v658 = vpack.c.b16 %v498, %v494
  %v659 = vpack.c.b16 %v499, %v495
  %v660 = vpack.c.b16 %v504, %v500
  %v661 = vpack.c.b16 %v505, %v501
  %v662 = vpack.c.b16 %v506, %v502
  %v663 = vpack.c.b16 %v507, %v503
  %v664 = vpack.c.b16 %v512, %v508
  %v665 = vpack.c.b16 %v513, %v509
  %v666 = vpack.c.b16 %v514, %v510
  %v667 = vpack.c.b16 %v515, %v511
  %v668 = vpack.c.b16 %v520, %v516
  %v669 = vpack.c.b16 %v521, %v517
  %v670 = vpack.c.b16 %v522, %v518
  %v671 = vpack.c.b16 %v523, %v519
  %v672 = vpack.c.b16 %v528, %v524
  %v673 = vpack.c.b16 %v529, %v525
  %v674 = vpack.c.b16 %v530, %v526
  %v675 = vpack.c.b16 %v531, %v527
  %v676 = vpack.c.b16 %v536, %v532
  %v677 = vpack.c.b16 %v537, %v533
  %v678 = vpack.c.b16 %v538, %v534
  %v679 = vpack.c.b16 %v539, %v535
  %v680 = vpack.c.b16 %v544, %v540
  %v681 = vpack.c.b16 %v545, %v541
  %v682 = vpack.c.b16 %v546, %v542
  %v683 = vpack.c.b16 %v547, %v543
  %v684 = vpack.c.b16 %v552, %v548
  %v685 = vpack.c.b16 %v553, %v549
  %v686 = vpack.c.b16 %v554, %v550
  %v687 = vpack.c.b16 %v555, %v551
  %v688 = vpack.c.b16 %v560, %v556
  %v689 = vpack.c.b16 %v561, %v557
  %v690 = vpack.c.b16 %v562, %v558
  %v691 = vpack.c.b16 %v563, %v559
  %820 = vmatprep.subr.bf16.mxu0 %v565
  %821 = vmatpush1.bf16.msra.mxu0 %v564
  %822 = vmatprep.subr.bf16.mxu0 %v569
  %823 = vmatpush1.bf16.msra.mxu0 %v568
  %824 = vmatprep.subr.bf16.mxu0 %v573
  %825 = vmatpush1.bf16.msra.mxu0 %v572
  %826 = vmatprep.subr.bf16.mxu0 %v577
  %827 = vmatpush1.bf16.msra.mxu0 %v576
  %828 = vmatprep.subr.bf16.mxu0 %v581
  %829 = vmatpush1.bf16.msra.mxu0 %v580
  %830 = vmatprep.subr.bf16.mxu0 %v585
  %831 = vmatpush1.bf16.msra.mxu0 %v584
  %832 = vmatprep.subr.bf16.mxu0 %v589
  %833 = vmatpush1.bf16.msra.mxu0 %v588
  %834 = vmatprep.subr.bf16.mxu0 %v593
  %835 = vmatpush1.bf16.msra.mxu0 %v592
  %836 = vmatprep.subr.bf16.mxu0 %v597
  %837 = vmatpush1.bf16.msra.mxu0 %v596
  %838 = vmatprep.subr.bf16.mxu0 %v601
  %839 = vmatpush1.bf16.msra.mxu0 %v600
  %840 = vmatprep.subr.bf16.mxu0 %v605
  %841 = vmatpush1.bf16.msra.mxu0 %v604
  %842 = vmatprep.subr.bf16.mxu0 %v609
  %843 = vmatpush1.bf16.msra.mxu0 %v608
  %844 = vmatprep.subr.bf16.mxu0 %v613
  %845 = vmatpush1.bf16.msra.mxu0 %v612
  %846 = vmatprep.subr.bf16.mxu0 %v617
  %847 = vmatpush1.bf16.msra.mxu0 %v616
  %848 = vmatprep.subr.bf16.mxu0 %v621
  %849 = vmatpush1.bf16.msra.mxu0 %v620
  %850 = vmatprep.subr.bf16.mxu0 %v625
  %851 = vmatpush1.bf16.msra.mxu0 %v624
  %852 = vmatprep.mubr.bf16.mxu0 %v173
  %853 = vmatmul.mubr.bf16.gmra.mrb[0].mxu0 %v172
  %v854 = vpop.f32.mrb[0].mxu0
  %v855 = vadd.f32 %v149, %v854
  %v856 = vpop.f32.mrb[0].mxu0
  %v857 = vadd.f32 %v153, %v856
  %v858 = vpop.f32.mrb[0].mxu0
  %v859 = vpop.f32.mrb[0].mxu0
  %860 = vdwg.mxu0
  %861 = vmatprep.subr.bf16.mxu0 %v629
  %862 = vmatpush1.bf16.msra.mxu0 %v628
  %863 = vmatprep.subr.bf16.mxu0 %v633
  %864 = vmatpush1.bf16.msra.mxu0 %v632
  %865 = vmatprep.subr.bf16.mxu0 %v637
  %866 = vmatpush1.bf16.msra.mxu0 %v636
  %867 = vmatprep.subr.bf16.mxu0 %v641
  %868 = vmatpush1.bf16.msra.mxu0 %v640
  %869 = vmatprep.subr.bf16.mxu0 %v645
  %870 = vmatpush1.bf16.msra.mxu0 %v644
  %871 = vmatprep.subr.bf16.mxu0 %v649
  %872 = vmatpush1.bf16.msra.mxu0 %v648
  %873 = vmatprep.subr.bf16.mxu0 %v653
  %874 = vmatpush1.bf16.msra.mxu0 %v652
  %875 = vmatprep.subr.bf16.mxu0 %v657
  %876 = vmatpush1.bf16.msra.mxu0 %v656
  %877 = vmatprep.subr.bf16.mxu0 %v661
  %878 = vmatpush1.bf16.msra.mxu0 %v660
  %879 = vmatprep.subr.bf16.mxu0 %v665
  %880 = vmatpush1.bf16.msra.mxu0 %v664
  %881 = vmatprep.subr.bf16.mxu0 %v669
  %882 = vmatpush1.bf16.msra.mxu0 %v668
  %883 = vmatprep.subr.bf16.mxu0 %v673
  %884 = vmatpush1.bf16.msra.mxu0 %v672
  %885 = vmatprep.subr.bf16.mxu0 %v677
  %886 = vmatpush1.bf16.msra.mxu0 %v676
  %887 = vmatprep.subr.bf16.mxu0 %v681
  %888 = vmatpush1.bf16.msra.mxu0 %v680
  %889 = vmatprep.subr.bf16.mxu0 %v685
  %890 = vmatpush1.bf16.msra.mxu0 %v684
  %891 = vmatprep.subr.bf16.mxu0 %v689
  %892 = vmatpush1.bf16.msra.mxu0 %v688
  %893 = vmatprep.mubr.bf16.mxu0 %v175
  %894 = vmatmul.mubr.bf16.gmra.mrb[0].mxu0 %v174
  %v895 = vpop.f32.mrb[0].mxu0
  %v896 = vadd.f32 %v855, %v895
  %v897 = vpop.f32.mrb[0].mxu0
  %v898 = vadd.f32 %v857, %v897
  %v899 = vpop.f32.mrb[0].mxu0
  %v900 = vpop.f32.mrb[0].mxu0
  %901 = vdwg.mxu0
  %902 = vmatprep.subr.bf16.mxu0 %v567
  %903 = vmatpush1.bf16.msra.mxu0 %v566
  %904 = vmatprep.subr.bf16.mxu0 %v571
  %905 = vmatpush1.bf16.msra.mxu0 %v570
  %906 = vmatprep.subr.bf16.mxu0 %v575
  %907 = vmatpush1.bf16.msra.mxu0 %v574
  %908 = vmatprep.subr.bf16.mxu0 %v579
  %909 = vmatpush1.bf16.msra.mxu0 %v578
  %910 = vmatprep.subr.bf16.mxu0 %v583
  %911 = vmatpush1.bf16.msra.mxu0 %v582
  %912 = vmatprep.subr.bf16.mxu0 %v587
  %913 = vmatpush1.bf16.msra.mxu0 %v586
  %914 = vmatprep.subr.bf16.mxu0 %v591
  %915 = vmatpush1.bf16.msra.mxu0 %v590
  %916 = vmatprep.subr.bf16.mxu0 %v595
  %917 = vmatpush1.bf16.msra.mxu0 %v594
  %918 = vmatprep.subr.bf16.mxu0 %v599
  %919 = vmatpush1.bf16.msra.mxu0 %v598
  %920 = vmatprep.subr.bf16.mxu0 %v603
  %921 = vmatpush1.bf16.msra.mxu0 %v602
  %922 = vmatprep.subr.bf16.mxu0 %v607
  %923 = vmatpush1.bf16.msra.mxu0 %v606
  %924 = vmatprep.subr.bf16.mxu0 %v611
  %925 = vmatpush1.bf16.msra.mxu0 %v610
  %926 = vmatprep.subr.bf16.mxu0 %v615
  %927 = vmatpush1.bf16.msra.mxu0 %v614
  %928 = vmatprep.subr.bf16.mxu0 %v619
  %929 = vmatpush1.bf16.msra.mxu0 %v618
  %930 = vmatprep.subr.bf16.mxu0 %v623
  %931 = vmatpush1.bf16.msra.mxu0 %v622
  %932 = vmatprep.subr.bf16.mxu0 %v627
  %933 = vmatpush1.bf16.msra.mxu0 %v626
  %934 = vmatprep.mubr.bf16.mxu0 %v173
  %935 = vmatmul.mubr.bf16.gmra.mrb[0].mxu0 %v172
  %v936 = vpop.f32.mrb[0].mxu0
  %v937 = vadd.f32 %v157, %v936
  %v938 = vpop.f32.mrb[0].mxu0
  %v939 = vadd.f32 %v161, %v938
  %v940 = vpop.f32.mrb[0].mxu0
  %v941 = vpop.f32.mrb[0].mxu0
  %942 = vdwg.mxu0
  %943 = vmatprep.subr.bf16.mxu0 %v631
  %944 = vmatpush1.bf16.msra.mxu0 %v630
  %945 = vmatprep.subr.bf16.mxu0 %v635
  %946 = vmatpush1.bf16.msra.mxu0 %v634
  %947 = vmatprep.subr.bf16.mxu0 %v639
  %948 = vmatpush1.bf16.msra.mxu0 %v638
  %949 = vmatprep.subr.bf16.mxu0 %v643
  %950 = vmatpush1.bf16.msra.mxu0 %v642
  %951 = vmatprep.subr.bf16.mxu0 %v647
  %952 = vmatpush1.bf16.msra.mxu0 %v646
  %953 = vmatprep.subr.bf16.mxu0 %v651
  %954 = vmatpush1.bf16.msra.mxu0 %v650
  %955 = vmatprep.subr.bf16.mxu0 %v655
  %956 = vmatpush1.bf16.msra.mxu0 %v654
  %957 = vmatprep.subr.bf16.mxu0 %v659
  %958 = vmatpush1.bf16.msra.mxu0 %v658
  %959 = vmatprep.subr.bf16.mxu0 %v663
  %960 = vmatpush1.bf16.msra.mxu0 %v662
  %961 = vmatprep.subr.bf16.mxu0 %v667
  %962 = vmatpush1.bf16.msra.mxu0 %v666
  %963 = vmatprep.subr.bf16.mxu0 %v671
  %964 = vmatpush1.bf16.msra.mxu0 %v670
  %965 = vmatprep.subr.bf16.mxu0 %v675
  %966 = vmatpush1.bf16.msra.mxu0 %v674
  %967 = vmatprep.subr.bf16.mxu0 %v679
  %968 = vmatpush1.bf16.msra.mxu0 %v678
  %969 = vmatprep.subr.bf16.mxu0 %v683
  %970 = vmatpush1.bf16.msra.mxu0 %v682
  %971 = vmatprep.subr.bf16.mxu0 %v687
  %972 = vmatpush1.bf16.msra.mxu0 %v686
  %973 = vmatprep.subr.bf16.mxu0 %v691
  %974 = vmatpush1.bf16.msra.mxu0 %v690
  %975 = vmatprep.mubr.bf16.mxu0 %v175
  %976 = vmatmul.mubr.bf16.gmra.mrb[0].mxu0 %v174
  %v977 = vpop.f32.mrb[0].mxu0
  %v978 = vadd.f32 %v937, %v977
  %v979 = vpop.f32.mrb[0].mxu0
  %v980 = vadd.f32 %v939, %v979
  %v981 = vpop.f32.mrb[0].mxu0
  %v982 = vpop.f32.mrb[0].mxu0
  %983 = vdwg.mxu0
  %vm984 = vcmp.gt.f32.partialorder %v896, 0.0
  %vm985 = vcmp.gt.f32.partialorder %v898, 0.0
  %vm986 = vcmp.gt.f32.partialorder %v978, 0.0
  %vm987 = vcmp.gt.f32.partialorder %v980, 0.0
  %v988 = vmin.f32 %v896, 0.0
  %v989 = vmin.f32 %v898, 0.0
  %v990 = vmin.f32 %v978, 0.0
  %v991 = vmin.f32 %v980, 0.0
  %v992 = vmul.f32 %v988, 1.442695
  %v993 = vpow.pop %v992
  %v994 = vmul.f32 %v989, 1.442695
  %v995 = vpow.pop %v994
  %v996 = vmul.f32 %v990, 1.442695
  %v997 = vpow.pop %v996
  %v998 = vmul.f32 %v991, 1.442695
  %v999 = vpow.pop %v998
  %v1000 = vsub.f32 %v993, 1.0
  %v1001 = vsub.f32 %v995, 1.0
  %v1002 = vsub.f32 %v997, 1.0
  %v1003 = vsub.f32 %v999, 1.0
  %v1004 = vsel %vm984, %v896, %v1000
  %v1005 = vsel %vm985, %v898, %v1001
  %v1006 = vsel %vm986, %v978, %v1002
  %v1007 = vsel %vm987, %v980, %v1003
  %1008 = vst [vmem:[%s3] sm:$0xff] %v1004
  %1009 = vst [vmem:[%s3 + $0x8] sm:$0xff] %v1005
  %1010 = vst [vmem:[%s3 + $0x10] sm:$0xff] %v1006
  %1011 = vst [vmem:[%s3 + $0x18] sm:$0xff] %v1007
  // Predicated region
  $region14: #{pctnet_forward.14} parent=0 // pred_check
    _
  $region15: #{pctnet_forward.14} parent=0 // pred_check_branch
    %1013 = sbr.rel (0) target = $region17
  $region16: #{pctnet_forward.14} parent=0 // pred_region
    _
  $region17: #{pctnet_forward.14} parent=0 // pred_fallthru
    _
  // Predicated region
  $region18: #{pctnet_forward.14} parent=0 // pred_check
    _
  $region19: #{pctnet_forward.14} parent=0 // pred_check_branch
    %1015 = sbr.rel (0) target = $region21
  $region20: #{pctnet_forward.14} parent=0 // pred_region
    _
  $region21: #{pctnet_forward.14} parent=0 // pred_fallthru
    _

// kernel: tile.28
$region0: #{tile.28}
  #allocation0 [shape = 's32[1]{0}', space=sflag, size = 0x4, scoped, tag = 'scoped memory for tile.28']
  %s0 = inlined_call_operand.vmem [shape: f32[64], index: 0, kind: input, shape index: {}]
  %s1 = inlined_call_operand.vmem [shape: f32[4,64], index: 1, kind: output, shape index: {}]
  // Predicated region
  $region2: #{tile.28} parent=0 // pred_check
    _
  $region3: #{tile.28} parent=0 // pred_check_branch
    %3 = sbr.rel (0) target = $region5
  $region4: #{tile.28} parent=0 // pred_region
    _
  $region5: #{tile.28} parent=0 // pred_fallthru
    _
  %v4 = vld [vmem:[%s0] ss:$0 sm:$0xff]
  %5 = vst [vmem:[%s1] sm:$0xf] %v4

// kernel: tile.29
$region0: #{tile.29}
  %s0 = inlined_call_operand.vmem [shape: f32[4,64], index: 0, kind: input, shape index: {}]
  %s1 = inlined_call_operand.vmem [shape: f32[1,256], index: 1, kind: output, shape index: {}]
  $region1: #{tile.29} parent=0
    #allocation0 [shape = 'u8[8192]{0}', space=vmem, size = 0x2000, scoped, tag = 'scoped mem for output reshape']
    #allocation1 [shape = 'u8[4096]{0}', space=vmem, size = 0x1000, scoped, tag = 'scoped mem for input reshape']
    %s3 = sshllo.u32 0, 4
    %v4 = vld [vmem:[%s0] sm:%s3]
    %5 = vst [vmem:[#allocation1] sm:%s3] %v4
    %s6 = smov 3
    %v7 = vld [vmem:[#allocation1] ss:$2 sm:%s6]
    %vm8 = vcmask 523264
    %9 = vst.msk [vmem:[#allocation0] ss:$8 sm:$0x3] %vm8, %v7
    %s10 = scalar_lea.vmem [#allocation1], 1
    %s11 = smov 3
    %v12 = vld [vmem:[%s10] ss:$2 sm:%s11]
    %13 = vrot.lane.b32.xlu0 %v12, 64
    %v14 = vpop.permute.xlu0 %13
    %vm15 = vcmask 1048064
    %16 = vst.msk [vmem:[#allocation0] ss:$8 sm:$0x3] %vm15, %v14
    %s18 = sshllo.u32 0, 1
    %v20 = vld [vmem:[#allocation0] sm:%s18]
    %s21 = sshllo.u32 0, 1
    %22 = vst [vmem:[%s1] sm:%s21] %v20
    %s23 = scalar_lea.vmem [#allocation0], 8
    %v24 = vld [vmem:[%s23] sm:%s18]
    %s25 = sshllo.u32 0, 1
    %s26 = scalar_lea.vmem %s1, 1
    %27 = vst [vmem:[%s26] sm:%s25] %v24

// kernel: pctnet_forward.15
$region0: #{pctnet_forward.15}
  #allocation0 [shape = 'u32[]', space=smem, size = 0x4, offset = 0x4, fixed_abs, tag = 'smem constant byte address 0x4 - core index']
  #allocation1 [shape = 'u32[144,128]{1,0:T(1,128)}', space=vmem, size = 0x12000, scoped, tag = 'internal scratch']
  %s0 = inlined_call_operand.vmem [shape: bf16[50,512], index: 0, kind: input, shape index: {}]
  %s1 = inlined_call_operand.vmem [shape: bf16[512,256], index: 1, kind: input, shape index: {}]
  %s2 = inlined_call_operand.vmem [shape: f32[1,256], index: 2, kind: input, shape index: {}]
  %s3 = inlined_call_operand.vmem [shape: f32[50,256], index: 3, kind: output, shape index: {}]
  %s4 = sld [smem:[#allocation0]]
  $region22: #{pctnet_forward.15} parent=0
    _
  %s6 = ssub.s32 1, %s4
  %s7 = scalar_select 0, %s6, %s4
  // Predicated region
  $region2: #{pctnet_forward.15} parent=0 // pred_check
    _
  $region3: #{pctnet_forward.15} parent=0 // pred_check_branch
    %9 = sbr.rel (0) target = $region5
  $region4: #{pctnet_forward.15} parent=0 // pred_region
    _
  $region5: #{pctnet_forward.15} parent=0 // pred_fallthru
    _
  // Predicated region
  $region6: #{pctnet_forward.15} parent=0 // pred_check
    _
  $region7: #{pctnet_forward.15} parent=0 // pred_check_branch
    %11 = sbr.rel (0) target = $region9
  $region8: #{pctnet_forward.15} parent=0 // pred_region
    _
  $region9: #{pctnet_forward.15} parent=0 // pred_fallthru
    _
  // Predicated region
  $region10: #{pctnet_forward.15} parent=0 // pred_check
    _
  $region11: #{pctnet_forward.15} parent=0 // pred_check_branch
    %13 = sbr.rel (0) target = $region13
  $region12: #{pctnet_forward.15} parent=0 // pred_region
    _
  $region13: #{pctnet_forward.15} parent=0 // pred_fallthru
    _
  %v14 = vld [vmem:[%s0] sm:$0xff]
  %v15 = vld [vmem:[%s0 + $0x8] sm:$0xff]
  %v16 = vld [vmem:[%s0 + $0x10] sm:$0xff]
  %v17 = vld [vmem:[%s0 + $0x18] sm:$0xff]
  %v18 = vld [vmem:[%s0 + $0x20] sm:$0xff]
  %v19 = vld [vmem:[%s0 + $0x28] sm:$0xff]
  %v20 = vld [vmem:[%s0 + $0x30] sm:$0xff]
  %v21 = vld [vmem:[%s0 + $0x38] sm:$0xff]
  %v22 = vld [vmem:[%s0 + $0x40] sm:$0xff]
  %v23 = vld [vmem:[%s0 + $0x48] sm:$0xff]
  %v24 = vld [vmem:[%s0 + $0x50] sm:$0xff]
  %v25 = vld [vmem:[%s0 + $0x58] sm:$0xff]
  %v26 = vld [vmem:[%s0 + $0x60] sm:$0x11]
  %v27 = vld [vmem:[%s0 + $0x68] sm:$0x11]
  %v28 = vld [vmem:[%s1] sm:$0xff]
  %v29 = vld [vmem:[%s1 + $0x8] sm:$0xff]
  %v30 = vld [vmem:[%s1 + $0x10] sm:$0xff]
  %v31 = vld [vmem:[%s1 + $0x18] sm:$0xff]
  %v32 = vld [vmem:[%s1 + $0x20] sm:$0xff]
  %v33 = vld [vmem:[%s1 + $0x28] sm:$0xff]
  %v34 = vld [vmem:[%s1 + $0x30] sm:$0xff]
  %v35 = vld [vmem:[%s1 + $0x38] sm:$0xff]
  %v36 = vld [vmem:[%s1 + $0x40] sm:$0xff]
  %v37 = vld [vmem:[%s1 + $0x48] sm:$0xff]
  %v38 = vld [vmem:[%s1 + $0x50] sm:$0xff]
  %v39 = vld [vmem:[%s1 + $0x58] sm:$0xff]
  %v40 = vld [vmem:[%s1 + $0x60] sm:$0xff]
  %v41 = vld [vmem:[%s1 + $0x68] sm:$0xff]
  %v42 = vld [vmem:[%s1 + $0x70] sm:$0xff]
  %v43 = vld [vmem:[%s1 + $0x78] sm:$0xff]
  %v44 = vld [vmem:[%s1 + $0x80] sm:$0xff]
  %v45 = vld [vmem:[%s1 + $0x88] sm:$0xff]
  %v46 = vld [vmem:[%s1 + $0x90] sm:$0xff]
  %v47 = vld [vmem:[%s1 + $0x98] sm:$0xff]
  %v48 = vld [vmem:[%s1 + $0xa0] sm:$0xff]
  %v49 = vld [vmem:[%s1 + $0xa8] sm:$0xff]
  %v50 = vld [vmem:[%s1 + $0xb0] sm:$0xff]
  %v51 = vld [vmem:[%s1 + $0xb8] sm:$0xff]
  %v52 = vld [vmem:[%s1 + $0xc0] sm:$0xff]
  %v53 = vld [vmem:[%s1 + $0xc8] sm:$0xff]
  %v54 = vld [vmem:[%s1 + $0xd0] sm:$0xff]
  %v55 = vld [vmem:[%s1 + $0xd8] sm:$0xff]
  %v56 = vld [vmem:[%s1 + $0xe0] sm:$0xff]
  %v57 = vld [vmem:[%s1 + $0xe8] sm:$0xff]
  %v58 = vld [vmem:[%s1 + $0xf0] sm:$0xff]
  %v59 = vld [vmem:[%s1 + $0xf8] sm:$0xff]
  %v60 = vld [vmem:[%s1 + $0x100] sm:$0xff]
  %v61 = vld [vmem:[%s1 + $0x108] sm:$0xff]
  %v62 = vld [vmem:[%s1 + $0x110] sm:$0xff]
  %v63 = vld [vmem:[%s1 + $0x118] sm:$0xff]
  %v64 = vld [vmem:[%s1 + $0x120] sm:$0xff]
  %v65 = vld [vmem:[%s1 + $0x128] sm:$0xff]
  %v66 = vld [vmem:[%s1 + $0x130] sm:$0xff]
  %v67 = vld [vmem:[%s1 + $0x138] sm:$0xff]
  %v68 = vld [vmem:[%s1 + $0x140] sm:$0xff]
  %v69 = vld [vmem:[%s1 + $0x148] sm:$0xff]
  %v70 = vld [vmem:[%s1 + $0x150] sm:$0xff]
  %v71 = vld [vmem:[%s1 + $0x158] sm:$0xff]
  %v72 = vld [vmem:[%s1 + $0x160] sm:$0xff]
  %v73 = vld [vmem:[%s1 + $0x168] sm:$0xff]
  %v74 = vld [vmem:[%s1 + $0x170] sm:$0xff]
  %v75 = vld [vmem:[%s1 + $0x178] sm:$0xff]
  %v76 = vld [vmem:[%s1 + $0x180] sm:$0xff]
  %v77 = vld [vmem:[%s1 + $0x188] sm:$0xff]
  %v78 = vld [vmem:[%s1 + $0x190] sm:$0xff]
  %v79 = vld [vmem:[%s1 + $0x198] sm:$0xff]
  %v80 = vld [vmem:[%s1 + $0x1a0] sm:$0xff]
  %v81 = vld [vmem:[%s1 + $0x1a8] sm:$0xff]
  %v82 = vld [vmem:[%s1 + $0x1b0] sm:$0xff]
  %v83 = vld [vmem:[%s1 + $0x1b8] sm:$0xff]
  %v84 = vld [vmem:[%s1 + $0x1c0] sm:$0xff]
  %v85 = vld [vmem:[%s1 + $0x1c8] sm:$0xff]
  %v86 = vld [vmem:[%s1 + $0x1d0] sm:$0xff]
  %v87 = vld [vmem:[%s1 + $0x1d8] sm:$0xff]
  %v88 = vld [vmem:[%s1 + $0x1e0] sm:$0xff]
  %v89 = vld [vmem:[%s1 + $0x1e8] sm:$0xff]
  %v90 = vld [vmem:[%s1 + $0x1f0] sm:$0xff]
  %v91 = vld [vmem:[%s1 + $0x1f8] sm:$0xff]
  %v92 = vld [vmem:[%s2] sm:$0x3]
  %v94 = vlaneseq
  %v95 = vshrl.u32 %v94, 7
  %v96 = vsub.s32 0, %v95
  %v97 = vrot.slane %v92, %v96
  %v98 = vlaneseq
  %v99 = vshrl.u32 %v98, 7
  %v100 = vsub.s32 1, %v99
  %v101 = vrot.slane %v92, %v100
  %v118 = vunpack.c.l.b16 %v14
  %v119 = vunpack.c.h.b16 %v14
  %v120 = vunpack.c.l.b16 %v15
  %v121 = vunpack.c.h.b16 %v15
  %v122 = vunpack.c.l.b16 %v16
  %v123 = vunpack.c.h.b16 %v16
  %v124 = vunpack.c.l.b16 %v17
  %v125 = vunpack.c.h.b16 %v17
  %v126 = vunpack.c.l.b16 %v18
  %v127 = vunpack.c.h.b16 %v18
  %v128 = vunpack.c.l.b16 %v19
  %v129 = vunpack.c.h.b16 %v19
  %v130 = vunpack.c.l.b16 %v20
  %v131 = vunpack.c.h.b16 %v20
  %v132 = vunpack.c.l.b16 %v21
  %v133 = vunpack.c.h.b16 %v21
  %v134 = vunpack.c.l.b16 %v22
  %v135 = vunpack.c.h.b16 %v22
  %v136 = vunpack.c.l.b16 %v23
  %v137 = vunpack.c.h.b16 %v23
  %v138 = vunpack.c.l.b16 %v24
  %v139 = vunpack.c.h.b16 %v24
  %v140 = vunpack.c.l.b16 %v25
  %v141 = vunpack.c.h.b16 %v25
  %v142 = vunpack.c.l.b16 %v26
  %v143 = vunpack.c.h.b16 %v26
  %v144 = vunpack.c.l.b16 %v27
  %v145 = vunpack.c.h.b16 %v27
  %v146 = vpack.c.b16 %v122, %v118
  %v147 = vpack.c.b16 %v123, %v119
  %v148 = vpack.c.b16 %v124, %v120
  %v149 = vpack.c.b16 %v125, %v121
  %v150 = vpack.c.b16 %v130, %v126
  %v151 = vpack.c.b16 %v131, %v127
  %v152 = vpack.c.b16 %v132, %v128
  %v153 = vpack.c.b16 %v133, %v129
  %v154 = vpack.c.b16 %v138, %v134
  %v155 = vpack.c.b16 %v139, %v135
  %v156 = vpack.c.b16 %v140, %v136
  %v157 = vpack.c.b16 %v141, %v137
  %v158 = vpack.c.b16 %v142, %v142
  %v159 = vpack.c.b16 %v143, %v143
  %v160 = vpack.c.b16 %v144, %v144
  %v161 = vpack.c.b16 %v145, %v145
  %v242 = vunpack.c.l.b16 %v28
  %v243 = vunpack.c.h.b16 %v28
  %v244 = vunpack.c.l.b16 %v29
  %v245 = vunpack.c.h.b16 %v29
  %v246 = vunpack.c.l.b16 %v30
  %v247 = vunpack.c.h.b16 %v30
  %v248 = vunpack.c.l.b16 %v31
  %v249 = vunpack.c.h.b16 %v31
  %v250 = vunpack.c.l.b16 %v32
  %v251 = vunpack.c.h.b16 %v32
  %v252 = vunpack.c.l.b16 %v33
  %v253 = vunpack.c.h.b16 %v33
  %v254 = vunpack.c.l.b16 %v34
  %v255 = vunpack.c.h.b16 %v34
  %v256 = vunpack.c.l.b16 %v35
  %v257 = vunpack.c.h.b16 %v35
  %v258 = vunpack.c.l.b16 %v36
  %v259 = vunpack.c.h.b16 %v36
  %v260 = vunpack.c.l.b16 %v37
  %v261 = vunpack.c.h.b16 %v37
  %v262 = vunpack.c.l.b16 %v38
  %v263 = vunpack.c.h.b16 %v38
  %v264 = vunpack.c.l.b16 %v39
  %v265 = vunpack.c.h.b16 %v39
  %v266 = vunpack.c.l.b16 %v40
  %v267 = vunpack.c.h.b16 %v40
  %v268 = vunpack.c.l.b16 %v41
  %v269 = vunpack.c.h.b16 %v41
  %v270 = vunpack.c.l.b16 %v42
  %v271 = vunpack.c.h.b16 %v42
  %v272 = vunpack.c.l.b16 %v43
  %v273 = vunpack.c.h.b16 %v43
  %v274 = vunpack.c.l.b16 %v44
  %v275 = vunpack.c.h.b16 %v44
  %v276 = vunpack.c.l.b16 %v45
  %v277 = vunpack.c.h.b16 %v45
  %v278 = vunpack.c.l.b16 %v46
  %v279 = vunpack.c.h.b16 %v46
  %v280 = vunpack.c.l.b16 %v47
  %v281 = vunpack.c.h.b16 %v47
  %v282 = vunpack.c.l.b16 %v48
  %v283 = vunpack.c.h.b16 %v48
  %v284 = vunpack.c.l.b16 %v49
  %v285 = vunpack.c.h.b16 %v49
  %v286 = vunpack.c.l.b16 %v50
  %v287 = vunpack.c.h.b16 %v50
  %v288 = vunpack.c.l.b16 %v51
  %v289 = vunpack.c.h.b16 %v51
  %v290 = vunpack.c.l.b16 %v52
  %v291 = vunpack.c.h.b16 %v52
  %v292 = vunpack.c.l.b16 %v53
  %v293 = vunpack.c.h.b16 %v53
  %v294 = vunpack.c.l.b16 %v54
  %v295 = vunpack.c.h.b16 %v54
  %v296 = vunpack.c.l.b16 %v55
  %v297 = vunpack.c.h.b16 %v55
  %v298 = vunpack.c.l.b16 %v56
  %v299 = vunpack.c.h.b16 %v56
  %v300 = vunpack.c.l.b16 %v57
  %v301 = vunpack.c.h.b16 %v57
  %v302 = vunpack.c.l.b16 %v58
  %v303 = vunpack.c.h.b16 %v58
  %v304 = vunpack.c.l.b16 %v59
  %v305 = vunpack.c.h.b16 %v59
  %v306 = vunpack.c.l.b16 %v60
  %v307 = vunpack.c.h.b16 %v60
  %v308 = vunpack.c.l.b16 %v61
  %v309 = vunpack.c.h.b16 %v61
  %v310 = vunpack.c.l.b16 %v62
  %v311 = vunpack.c.h.b16 %v62
  %v312 = vunpack.c.l.b16 %v63
  %v313 = vunpack.c.h.b16 %v63
  %v314 = vunpack.c.l.b16 %v64
  %v315 = vunpack.c.h.b16 %v64
  %v316 = vunpack.c.l.b16 %v65
  %v317 = vunpack.c.h.b16 %v65
  %v318 = vunpack.c.l.b16 %v66
  %v319 = vunpack.c.h.b16 %v66
  %v320 = vunpack.c.l.b16 %v67
  %v321 = vunpack.c.h.b16 %v67
  %v322 = vunpack.c.l.b16 %v68
  %v323 = vunpack.c.h.b16 %v68
  %v324 = vunpack.c.l.b16 %v69
  %v325 = vunpack.c.h.b16 %v69
  %v326 = vunpack.c.l.b16 %v70
  %v327 = vunpack.c.h.b16 %v70
  %v328 = vunpack.c.l.b16 %v71
  %v329 = vunpack.c.h.b16 %v71
  %v330 = vunpack.c.l.b16 %v72
  %v331 = vunpack.c.h.b16 %v72
  %v332 = vunpack.c.l.b16 %v73
  %v333 = vunpack.c.h.b16 %v73
  %v334 = vunpack.c.l.b16 %v74
  %v335 = vunpack.c.h.b16 %v74
  %v336 = vunpack.c.l.b16 %v75
  %v337 = vunpack.c.h.b16 %v75
  %v338 = vunpack.c.l.b16 %v76
  %v339 = vunpack.c.h.b16 %v76
  %v340 = vunpack.c.l.b16 %v77
  %v341 = vunpack.c.h.b16 %v77
  %v342 = vunpack.c.l.b16 %v78
  %v343 = vunpack.c.h.b16 %v78
  %v344 = vunpack.c.l.b16 %v79
  %v345 = vunpack.c.h.b16 %v79
  %v346 = vunpack.c.l.b16 %v80
  %v347 = vunpack.c.h.b16 %v80
  %v348 = vunpack.c.l.b16 %v81
  %v349 = vunpack.c.h.b16 %v81
  %v350 = vunpack.c.l.b16 %v82
  %v351 = vunpack.c.h.b16 %v82
  %v352 = vunpack.c.l.b16 %v83
  %v353 = vunpack.c.h.b16 %v83
  %v354 = vunpack.c.l.b16 %v84
  %v355 = vunpack.c.h.b16 %v84
  %v356 = vunpack.c.l.b16 %v85
  %v357 = vunpack.c.h.b16 %v85
  %v358 = vunpack.c.l.b16 %v86
  %v359 = vunpack.c.h.b16 %v86
  %v360 = vunpack.c.l.b16 %v87
  %v361 = vunpack.c.h.b16 %v87
  %v362 = vunpack.c.l.b16 %v88
  %v363 = vunpack.c.h.b16 %v88
  %v364 = vunpack.c.l.b16 %v89
  %v365 = vunpack.c.h.b16 %v89
  %v366 = vunpack.c.l.b16 %v90
  %v367 = vunpack.c.h.b16 %v90
  %v368 = vunpack.c.l.b16 %v91
  %v369 = vunpack.c.h.b16 %v91
  %v370 = vpack.c.b16 %v244, %v242
  %v371 = vpack.c.b16 %v245, %v243
  %v372 = vpack.c.b16 %v248, %v246
  %v373 = vpack.c.b16 %v249, %v247
  %v374 = vpack.c.b16 %v252, %v250
  %v375 = vpack.c.b16 %v253, %v251
  %v376 = vpack.c.b16 %v256, %v254
  %v377 = vpack.c.b16 %v257, %v255
  %v378 = vpack.c.b16 %v260, %v258
  %v379 = vpack.c.b16 %v261, %v259
  %v380 = vpack.c.b16 %v264, %v262
  %v381 = vpack.c.b16 %v265, %v263
  %v382 = vpack.c.b16 %v268, %v266
  %v383 = vpack.c.b16 %v269, %v267
  %v384 = vpack.c.b16 %v272, %v270
  %v385 = vpack.c.b16 %v273, %v271
  %v386 = vpack.c.b16 %v276, %v274
  %v387 = vpack.c.b16 %v277, %v275
  %v388 = vpack.c.b16 %v280, %v278
  %v389 = vpack.c.b16 %v281, %v279
  %v390 = vpack.c.b16 %v284, %v282
  %v391 = vpack.c.b16 %v285, %v283
  %v392 = vpack.c.b16 %v288, %v286
  %v393 = vpack.c.b16 %v289, %v287
  %v394 = vpack.c.b16 %v292, %v290
  %v395 = vpack.c.b16 %v293, %v291
  %v396 = vpack.c.b16 %v296, %v294
  %v397 = vpack.c.b16 %v297, %v295
  %v398 = vpack.c.b16 %v300, %v298
  %v399 = vpack.c.b16 %v301, %v299
  %v400 = vpack.c.b16 %v304, %v302
  %v401 = vpack.c.b16 %v305, %v303
  %v402 = vpack.c.b16 %v308, %v306
  %v403 = vpack.c.b16 %v309, %v307
  %v404 = vpack.c.b16 %v312, %v310
  %v405 = vpack.c.b16 %v313, %v311
  %v406 = vpack.c.b16 %v316, %v314
  %v407 = vpack.c.b16 %v317, %v315
  %v408 = vpack.c.b16 %v320, %v318
  %v409 = vpack.c.b16 %v321, %v319
  %v410 = vpack.c.b16 %v324, %v322
  %v411 = vpack.c.b16 %v325, %v323
  %v412 = vpack.c.b16 %v328, %v326
  %v413 = vpack.c.b16 %v329, %v327
  %v414 = vpack.c.b16 %v332, %v330
  %v415 = vpack.c.b16 %v333, %v331
  %v416 = vpack.c.b16 %v336, %v334
  %v417 = vpack.c.b16 %v337, %v335
  %v418 = vpack.c.b16 %v340, %v338
  %v419 = vpack.c.b16 %v341, %v339
  %v420 = vpack.c.b16 %v344, %v342
  %v421 = vpack.c.b16 %v345, %v343
  %v422 = vpack.c.b16 %v348, %v346
  %v423 = vpack.c.b16 %v349, %v347
  %v424 = vpack.c.b16 %v352, %v350
  %v425 = vpack.c.b16 %v353, %v351
  %v426 = vpack.c.b16 %v356, %v354
  %v427 = vpack.c.b16 %v357, %v355
  %v428 = vpack.c.b16 %v360, %v358
  %v429 = vpack.c.b16 %v361, %v359
  %v430 = vpack.c.b16 %v364, %v362
  %v431 = vpack.c.b16 %v365, %v363
  %v432 = vpack.c.b16 %v368, %v366
  %v433 = vpack.c.b16 %v369, %v367
  %498 = vmatprep.subr.bf16.mxu0 %v371
  %499 = vmatpush1.bf16.msra.mxu0 %v370
  %500 = vmatprep.subr.bf16.mxu0 %v373
  %501 = vmatpush1.bf16.msra.mxu0 %v372
  %502 = vmatprep.subr.bf16.mxu0 %v375
  %503 = vmatpush1.bf16.msra.mxu0 %v374
  %504 = vmatprep.subr.bf16.mxu0 %v377
  %505 = vmatpush1.bf16.msra.mxu0 %v376
  %506 = vmatprep.subr.bf16.mxu0 %v379
  %507 = vmatpush1.bf16.msra.mxu0 %v378
  %508 = vmatprep.subr.bf16.mxu0 %v381
  %509 = vmatpush1.bf16.msra.mxu0 %v380
  %510 = vmatprep.subr.bf16.mxu0 %v383
  %511 = vmatpush1.bf16.msra.mxu0 %v382
  %512 = vmatprep.subr.bf16.mxu0 %v385
  %513 = vmatpush1.bf16.msra.mxu0 %v384
  %514 = vmatprep.subr.bf16.mxu0 %v387
  %515 = vmatpush1.bf16.msra.mxu0 %v386
  %516 = vmatprep.subr.bf16.mxu0 %v389
  %517 = vmatpush1.bf16.msra.mxu0 %v388
  %518 = vmatprep.subr.bf16.mxu0 %v391
  %519 = vmatpush1.bf16.msra.mxu0 %v390
  %520 = vmatprep.subr.bf16.mxu0 %v393
  %521 = vmatpush1.bf16.msra.mxu0 %v392
  %522 = vmatprep.subr.bf16.mxu0 %v395
  %523 = vmatpush1.bf16.msra.mxu0 %v394
  %524 = vmatprep.subr.bf16.mxu0 %v397
  %525 = vmatpush1.bf16.msra.mxu0 %v396
  %526 = vmatprep.subr.bf16.mxu0 %v399
  %527 = vmatpush1.bf16.msra.mxu0 %v398
  %528 = vmatprep.subr.bf16.mxu0 %v401
  %529 = vmatpush1.bf16.msra.mxu0 %v400
  %530 = vmatprep.mubr.bf16.mxu0 %v147
  %531 = vmatmul.mubr.bf16.gmra.mrb[0].mxu0 %v146
  %v532 = vpop.f32.mrb[0].mxu0
  %v533 = vadd.f32 %v97, %v532
  %v534 = vpop.f32.mrb[0].mxu0
  %v535 = vadd.f32 %v101, %v534
  %v536 = vpop.f32.mrb[0].mxu0
  %v537 = vadd.f32 %v97, %v536
  %v538 = vpop.f32.mrb[0].mxu0
  %v539 = vadd.f32 %v101, %v538
  %540 = vmatprep.mubr.bf16.mxu0 %v151
  %541 = vmatmul.mubr.bf16.gmra.mrb[0].mxu0 %v150
  %v542 = vpop.f32.mrb[0].mxu0
  %v543 = vadd.f32 %v97, %v542
  %v544 = vpop.f32.mrb[0].mxu0
  %v545 = vadd.f32 %v101, %v544
  %v546 = vpop.f32.mrb[0].mxu0
  %v547 = vadd.f32 %v97, %v546
  %v548 = vpop.f32.mrb[0].mxu0
  %v549 = vadd.f32 %v101, %v548
  %550 = vmatprep.mubr.bf16.mxu0 %v155
  %551 = vmatmul.mubr.bf16.gmra.mrb[0].mxu0 %v154
  %v552 = vpop.f32.mrb[0].mxu0
  %v553 = vadd.f32 %v97, %v552
  %v554 = vpop.f32.mrb[0].mxu0
  %v555 = vadd.f32 %v101, %v554
  %v556 = vpop.f32.mrb[0].mxu0
  %v557 = vadd.f32 %v97, %v556
  %v558 = vpop.f32.mrb[0].mxu0
  %v559 = vadd.f32 %v101, %v558
  %560 = vmatprep.mubr.bf16.mxu0 %v159
  %561 = vmatmul.mubr.bf16.gmra.mrb[0].mxu0 %v158
  %v562 = vpop.f32.mrb[0].mxu0
  %v563 = vadd.f32 %v97, %v562
  %v564 = vpop.f32.mrb[0].mxu0
  %v565 = vadd.f32 %v101, %v564
  %v566 = vpop.f32.mrb[0].mxu0
  %v567 = vpop.f32.mrb[0].mxu0
  %568 = vdwg.mxu0
  %569 = vmatprep.subr.bf16.mxu0 %v403
  %570 = vmatpush1.bf16.msra.mxu0 %v402
  %571 = vmatprep.subr.bf16.mxu0 %v405
  %572 = vmatpush1.bf16.msra.mxu0 %v404
  %573 = vmatprep.subr.bf16.mxu0 %v407
  %574 = vmatpush1.bf16.msra.mxu0 %v406
  %575 = vmatprep.subr.bf16.mxu0 %v409
  %576 = vmatpush1.bf16.msra.mxu0 %v408
  %577 = vmatprep.subr.bf16.mxu0 %v411
  %578 = vmatpush1.bf16.msra.mxu0 %v410
  %579 = vmatprep.subr.bf16.mxu0 %v413
  %580 = vmatpush1.bf16.msra.mxu0 %v412
  %581 = vmatprep.subr.bf16.mxu0 %v415
  %582 = vmatpush1.bf16.msra.mxu0 %v414
  %583 = vmatprep.subr.bf16.mxu0 %v417
  %584 = vmatpush1.bf16.msra.mxu0 %v416
  %585 = vmatprep.subr.bf16.mxu0 %v419
  %586 = vmatpush1.bf16.msra.mxu0 %v418
  %587 = vmatprep.subr.bf16.mxu0 %v421
  %588 = vmatpush1.bf16.msra.mxu0 %v420
  %589 = vmatprep.subr.bf16.mxu0 %v423
  %590 = vmatpush1.bf16.msra.mxu0 %v422
  %591 = vmatprep.subr.bf16.mxu0 %v425
  %592 = vmatpush1.bf16.msra.mxu0 %v424
  %593 = vmatprep.subr.bf16.mxu0 %v427
  %594 = vmatpush1.bf16.msra.mxu0 %v426
  %595 = vmatprep.subr.bf16.mxu0 %v429
  %596 = vmatpush1.bf16.msra.mxu0 %v428
  %597 = vmatprep.subr.bf16.mxu0 %v431
  %598 = vmatpush1.bf16.msra.mxu0 %v430
  %599 = vmatprep.subr.bf16.mxu0 %v433
  %600 = vmatpush1.bf16.msra.mxu0 %v432
  %601 = vmatprep.mubr.bf16.mxu0 %v149
  %602 = vmatmul.mubr.bf16.gmra.mrb[0].mxu0 %v148
  %v603 = vpop.f32.mrb[0].mxu0
  %v604 = vadd.f32 %v533, %v603
  %v605 = vpop.f32.mrb[0].mxu0
  %v606 = vadd.f32 %v535, %v605
  %v607 = vpop.f32.mrb[0].mxu0
  %v608 = vadd.f32 %v537, %v607
  %v609 = vpop.f32.mrb[0].mxu0
  %v610 = vadd.f32 %v539, %v609
  %611 = vmatprep.mubr.bf16.mxu0 %v153
  %612 = vmatmul.mubr.bf16.gmra.mrb[0].mxu0 %v152
  %v613 = vpop.f32.mrb[0].mxu0
  %v614 = vadd.f32 %v543, %v613
  %v615 = vpop.f32.mrb[0].mxu0
  %v616 = vadd.f32 %v545, %v615
  %v617 = vpop.f32.mrb[0].mxu0
  %v618 = vadd.f32 %v547, %v617
  %v619 = vpop.f32.mrb[0].mxu0
  %v620 = vadd.f32 %v549, %v619
  %621 = vmatprep.mubr.bf16.mxu0 %v157
  %622 = vmatmul.mubr.bf16.gmra.mrb[0].mxu0 %v156
  %v623 = vpop.f32.mrb[0].mxu0
  %v624 = vadd.f32 %v553, %v623
  %v625 = vpop.f32.mrb[0].mxu0
  %v626 = vadd.f32 %v555, %v625
  %v627 = vpop.f32.mrb[0].mxu0
  %v628 = vadd.f32 %v557, %v627
  %v629 = vpop.f32.mrb[0].mxu0
  %v630 = vadd.f32 %v559, %v629
  %631 = vmatprep.mubr.bf16.mxu0 %v161
  %632 = vmatmul.mubr.bf16.gmra.mrb[0].mxu0 %v160
  %v633 = vpop.f32.mrb[0].mxu0
  %v634 = vadd.f32 %v563, %v633
  %v635 = vpop.f32.mrb[0].mxu0
  %v636 = vadd.f32 %v565, %v635
  %v637 = vpop.f32.mrb[0].mxu0
  %v638 = vpop.f32.mrb[0].mxu0
  %639 = vdwg.mxu0
  %vm640 = vcmp.gt.f32.partialorder %v604, 0.0
  %vm641 = vcmp.gt.f32.partialorder %v606, 0.0
  %vm642 = vcmp.gt.f32.partialorder %v608, 0.0
  %vm643 = vcmp.gt.f32.partialorder %v610, 0.0
  %vm644 = vcmp.gt.f32.partialorder %v614, 0.0
  %vm645 = vcmp.gt.f32.partialorder %v616, 0.0
  %vm646 = vcmp.gt.f32.partialorder %v618, 0.0
  %vm647 = vcmp.gt.f32.partialorder %v620, 0.0
  %vm648 = vcmp.gt.f32.partialorder %v624, 0.0
  %vm649 = vcmp.gt.f32.partialorder %v626, 0.0
  %vm650 = vcmp.gt.f32.partialorder %v628, 0.0
  %vm651 = vcmp.gt.f32.partialorder %v630, 0.0
  %vm652 = vcmp.gt.f32.partialorder %v634, 0.0
  %vm653 = vcmp.gt.f32.partialorder %v636, 0.0
  %v654 = vmin.f32 %v604, 0.0
  %v655 = vmin.f32 %v606, 0.0
  %v656 = vmin.f32 %v608, 0.0
  %v657 = vmin.f32 %v610, 0.0
  %v658 = vmin.f32 %v614, 0.0
  %v659 = vmin.f32 %v616, 0.0
  %v660 = vmin.f32 %v618, 0.0
  %v661 = vmin.f32 %v620, 0.0
  %v662 = vmin.f32 %v624, 0.0
  %v663 = vmin.f32 %v626, 0.0
  %v664 = vmin.f32 %v628, 0.0
  %v665 = vmin.f32 %v630, 0.0
  %v666 = vmin.f32 %v634, 0.0
  %v667 = vmin.f32 %v636, 0.0
  %v668 = vmul.f32 %v654, 1.442695
  %v669 = vpow.pop %v668
  %v670 = vmul.f32 %v655, 1.442695
  %v671 = vpow.pop %v670
  %v672 = vmul.f32 %v656, 1.442695
  %v673 = vpow.pop %v672
  %v674 = vmul.f32 %v657, 1.442695
  %v675 = vpow.pop %v674
  %v676 = vmul.f32 %v658, 1.442695
  %v677 = vpow.pop %v676
  %v678 = vmul.f32 %v659, 1.442695
  %v679 = vpow.pop %v678
  %v680 = vmul.f32 %v660, 1.442695
  %v681 = vpow.pop %v680
  %v682 = vmul.f32 %v661, 1.442695
  %v683 = vpow.pop %v682
  %v684 = vmul.f32 %v662, 1.442695
  %v685 = vpow.pop %v684
  %v686 = vmul.f32 %v663, 1.442695
  %v687 = vpow.pop %v686
  %v688 = vmul.f32 %v664, 1.442695
  %v689 = vpow.pop %v688
  %v690 = vmul.f32 %v665, 1.442695
  %v691 = vpow.pop %v690
  %v692 = vmul.f32 %v666, 1.442695
  %v693 = vpow.pop %v692
  %v694 = vmul.f32 %v667, 1.442695
  %v695 = vpow.pop %v694
  %v696 = vsub.f32 %v669, 1.0
  %v697 = vsub.f32 %v671, 1.0
  %v698 = vsub.f32 %v673, 1.0
  %v699 = vsub.f32 %v675, 1.0
  %v700 = vsub.f32 %v677, 1.0
  %v701 = vsub.f32 %v679, 1.0
  %v702 = vsub.f32 %v681, 1.0
  %v703 = vsub.f32 %v683, 1.0
  %v704 = vsub.f32 %v685, 1.0
  %v705 = vsub.f32 %v687, 1.0
  %v706 = vsub.f32 %v689, 1.0
  %v707 = vsub.f32 %v691, 1.0
  %v708 = vsub.f32 %v693, 1.0
  %v709 = vsub.f32 %v695, 1.0
  %v710 = vsel %vm640, %v604, %v696
  %v711 = vsel %vm641, %v606, %v697
  %v712 = vsel %vm642, %v608, %v698
  %v713 = vsel %vm643, %v610, %v699
  %v714 = vsel %vm644, %v614, %v700
  %v715 = vsel %vm645, %v616, %v701
  %v716 = vsel %vm646, %v618, %v702
  %v717 = vsel %vm647, %v620, %v703
  %v718 = vsel %vm648, %v624, %v704
  %v719 = vsel %vm649, %v626, %v705
  %v720 = vsel %vm650, %v628, %v706
  %v721 = vsel %vm651, %v630, %v707
  %v722 = vsel %vm652, %v634, %v708
  %v723 = vsel %vm653, %v636, %v709
  %724 = vst [vmem:[%s3] sm:$0xff] %v710
  %725 = vst [vmem:[%s3 + $0x8] sm:$0xff] %v711
  %726 = vst [vmem:[%s3 + $0x10] sm:$0xff] %v712
  %727 = vst [vmem:[%s3 + $0x18] sm:$0xff] %v713
  %728 = vst [vmem:[%s3 + $0x20] sm:$0xff] %v714
  %729 = vst [vmem:[%s3 + $0x28] sm:$0xff] %v715
  %730 = vst [vmem:[%s3 + $0x30] sm:$0xff] %v716
  %731 = vst [vmem:[%s3 + $0x38] sm:$0xff] %v717
  %732 = vst [vmem:[%s3 + $0x40] sm:$0xff] %v718
  %733 = vst [vmem:[%s3 + $0x48] sm:$0xff] %v719
  %734 = vst [vmem:[%s3 + $0x50] sm:$0xff] %v720
  %735 = vst [vmem:[%s3 + $0x58] sm:$0xff] %v721
  %736 = vst [vmem:[%s3 + $0x60] sm:$0x3] %v722
  %737 = vst [vmem:[%s3 + $0x68] sm:$0x3] %v723
  // Predicated region
  $region14: #{pctnet_forward.15} parent=0 // pred_check
    _
  $region15: #{pctnet_forward.15} parent=0 // pred_check_branch
    %739 = sbr.rel (0) target = $region17
  $region16: #{pctnet_forward.15} parent=0 // pred_region
    _
  $region17: #{pctnet_forward.15} parent=0 // pred_fallthru
    _
  // Predicated region
  $region18: #{pctnet_forward.15} parent=0 // pred_check
    _
  $region19: #{pctnet_forward.15} parent=0 // pred_check_branch
    %741 = sbr.rel (0) target = $region21
  $region20: #{pctnet_forward.15} parent=0 // pred_region
    _
  $region21: #{pctnet_forward.15} parent=0 // pred_fallthru
    _

// kernel: pctnet_forward.16
$region0: #{pctnet_forward.16}
  #allocation0 [shape = 'u32[]', space=smem, size = 0x4, offset = 0x4, fixed_abs, tag = 'smem constant byte address 0x4 - core index']
  #allocation1 [shape = 'u32[144,128]{1,0:T(1,128)}', space=vmem, size = 0x12000, scoped, tag = 'internal scratch']
  %s0 = inlined_call_operand.vmem [shape: bf16[162,256], index: 0, kind: input, shape index: {}]
  %s1 = inlined_call_operand.vmem [shape: bf16[256,256], index: 1, kind: input, shape index: {}]
  %s2 = inlined_call_operand.vmem [shape: f32[1,256], index: 2, kind: input, shape index: {}]
  %s3 = inlined_call_operand.vmem [shape: f32[162,256], index: 3, kind: output, shape index: {}]
  %s4 = sld [smem:[#allocation0]]
  $region22: #{pctnet_forward.16} parent=0
    _
  %s6 = ssub.s32 1, %s4
  %s7 = scalar_select 0, %s6, %s4
  // Predicated region
  $region2: #{pctnet_forward.16} parent=0 // pred_check
    _
  $region3: #{pctnet_forward.16} parent=0 // pred_check_branch
    %9 = sbr.rel (0) target = $region5
  $region4: #{pctnet_forward.16} parent=0 // pred_region
    _
  $region5: #{pctnet_forward.16} parent=0 // pred_fallthru
    _
  // Predicated region
  $region6: #{pctnet_forward.16} parent=0 // pred_check
    _
  $region7: #{pctnet_forward.16} parent=0 // pred_check_branch
    %11 = sbr.rel (0) target = $region9
  $region8: #{pctnet_forward.16} parent=0 // pred_region
    _
  $region9: #{pctnet_forward.16} parent=0 // pred_fallthru
    _
  // Predicated region
  $region10: #{pctnet_forward.16} parent=0 // pred_check
    _
  $region11: #{pctnet_forward.16} parent=0 // pred_check_branch
    %13 = sbr.rel (0) target = $region13
  $region12: #{pctnet_forward.16} parent=0 // pred_region
    _
  $region13: #{pctnet_forward.16} parent=0 // pred_fallthru
    _
  %v14 = vld [vmem:[%s0] sm:$0xff]
  %v15 = vld [vmem:[%s0 + $0x8] sm:$0xff]
  %v16 = vld [vmem:[%s0 + $0x10] sm:$0xff]
  %v17 = vld [vmem:[%s0 + $0x18] sm:$0xff]
  %v18 = vld [vmem:[%s0 + $0x20] sm:$0xff]
  %v19 = vld [vmem:[%s0 + $0x28] sm:$0xff]
  %v20 = vld [vmem:[%s0 + $0x30] sm:$0xff]
  %v21 = vld [vmem:[%s0 + $0x38] sm:$0xff]
  %v22 = vld [vmem:[%s0 + $0x40] sm:$0xff]
  %v23 = vld [vmem:[%s0 + $0x48] sm:$0xff]
  %v24 = vld [vmem:[%s0 + $0x50] sm:$0xff]
  %v25 = vld [vmem:[%s0 + $0x58] sm:$0xff]
  %v26 = vld [vmem:[%s0 + $0x60] sm:$0xff]
  %v27 = vld [vmem:[%s0 + $0x68] sm:$0xff]
  %v28 = vld [vmem:[%s0 + $0x70] sm:$0xff]
  %v29 = vld [vmem:[%s0 + $0x78] sm:$0xff]
  %v30 = vld [vmem:[%s0 + $0x80] sm:$0xff]
  %v31 = vld [vmem:[%s0 + $0x88] sm:$0xff]
  %v32 = vld [vmem:[%s0 + $0x90] sm:$0xff]
  %v33 = vld [vmem:[%s0 + $0x98] sm:$0xff]
  %v34 = vld [vmem:[%s0 + $0xa0] sm:$0x11]
  %v35 = vld [vmem:[%s1] sm:$0xff]
  %v36 = vld [vmem:[%s1 + $0x8] sm:$0xff]
  %v37 = vld [vmem:[%s1 + $0x10] sm:$0xff]
  %v38 = vld [vmem:[%s1 + $0x18] sm:$0xff]
  %v39 = vld [vmem:[%s1 + $0x20] sm:$0xff]
  %v40 = vld [vmem:[%s1 + $0x28] sm:$0xff]
  %v41 = vld [vmem:[%s1 + $0x30] sm:$0xff]
  %v42 = vld [vmem:[%s1 + $0x38] sm:$0xff]
  %v43 = vld [vmem:[%s1 + $0x40] sm:$0xff]
  %v44 = vld [vmem:[%s1 + $0x48] sm:$0xff]
  %v45 = vld [vmem:[%s1 + $0x50] sm:$0xff]
  %v46 = vld [vmem:[%s1 + $0x58] sm:$0xff]
  %v47 = vld [vmem:[%s1 + $0x60] sm:$0xff]
  %v48 = vld [vmem:[%s1 + $0x68] sm:$0xff]
  %v49 = vld [vmem:[%s1 + $0x70] sm:$0xff]
  %v50 = vld [vmem:[%s1 + $0x78] sm:$0xff]
  %v51 = vld [vmem:[%s1 + $0x80] sm:$0xff]
  %v52 = vld [vmem:[%s1 + $0x88] sm:$0xff]
  %v53 = vld [vmem:[%s1 + $0x90] sm:$0xff]
  %v54 = vld [vmem:[%s1 + $0x98] sm:$0xff]
  %v55 = vld [vmem:[%s1 + $0xa0] sm:$0xff]
  %v56 = vld [vmem:[%s1 + $0xa8] sm:$0xff]
  %v57 = vld [vmem:[%s1 + $0xb0] sm:$0xff]
  %v58 = vld [vmem:[%s1 + $0xb8] sm:$0xff]
  %v59 = vld [vmem:[%s1 + $0xc0] sm:$0xff]
  %v60 = vld [vmem:[%s1 + $0xc8] sm:$0xff]
  %v61 = vld [vmem:[%s1 + $0xd0] sm:$0xff]
  %v62 = vld [vmem:[%s1 + $0xd8] sm:$0xff]
  %v63 = vld [vmem:[%s1 + $0xe0] sm:$0xff]
  %v64 = vld [vmem:[%s1 + $0xe8] sm:$0xff]
  %v65 = vld [vmem:[%s1 + $0xf0] sm:$0xff]
  %v66 = vld [vmem:[%s1 + $0xf8] sm:$0xff]
  %v67 = vld [vmem:[%s2] sm:$0x3]
  %v69 = vlaneseq
  %v70 = vshrl.u32 %v69, 7
  %v71 = vsub.s32 0, %v70
  %v72 = vrot.slane %v67, %v71
  %v73 = vlaneseq
  %v74 = vshrl.u32 %v73, 7
  %v75 = vsub.s32 1, %v74
  %v76 = vrot.slane %v67, %v75
  %v100 = vunpack.c.l.b16 %v14
  %v101 = vunpack.c.h.b16 %v14
  %v102 = vunpack.c.l.b16 %v15
  %v103 = vunpack.c.h.b16 %v15
  %v104 = vunpack.c.l.b16 %v16
  %v105 = vunpack.c.h.b16 %v16
  %v106 = vunpack.c.l.b16 %v17
  %v107 = vunpack.c.h.b16 %v17
  %v108 = vunpack.c.l.b16 %v18
  %v109 = vunpack.c.h.b16 %v18
  %v110 = vunpack.c.l.b16 %v19
  %v111 = vunpack.c.h.b16 %v19
  %v112 = vunpack.c.l.b16 %v20
  %v113 = vunpack.c.h.b16 %v20
  %v114 = vunpack.c.l.b16 %v21
  %v115 = vunpack.c.h.b16 %v21
  %v116 = vunpack.c.l.b16 %v22
  %v117 = vunpack.c.h.b16 %v22
  %v118 = vunpack.c.l.b16 %v23
  %v119 = vunpack.c.h.b16 %v23
  %v120 = vunpack.c.l.b16 %v24
  %v121 = vunpack.c.h.b16 %v24
  %v122 = vunpack.c.l.b16 %v25
  %v123 = vunpack.c.h.b16 %v25
  %v124 = vunpack.c.l.b16 %v26
  %v125 = vunpack.c.h.b16 %v26
  %v126 = vunpack.c.l.b16 %v27
  %v127 = vunpack.c.h.b16 %v27
  %v128 = vunpack.c.l.b16 %v28
  %v129 = vunpack.c.h.b16 %v28
  %v130 = vunpack.c.l.b16 %v29
  %v131 = vunpack.c.h.b16 %v29
  %v132 = vunpack.c.l.b16 %v30
  %v133 = vunpack.c.h.b16 %v30
  %v134 = vunpack.c.l.b16 %v31
  %v135 = vunpack.c.h.b16 %v31
  %v136 = vunpack.c.l.b16 %v32
  %v137 = vunpack.c.h.b16 %v32
  %v138 = vunpack.c.l.b16 %v33
  %v139 = vunpack.c.h.b16 %v33
  %v140 = vunpack.c.l.b16 %v34
  %v141 = vunpack.c.h.b16 %v34
  %v142 = vpack.c.b16 %v102, %v100
  %v143 = vpack.c.b16 %v103, %v101
  %v144 = vpack.c.b16 %v106, %v104
  %v145 = vpack.c.b16 %v107, %v105
  %v146 = vpack.c.b16 %v110, %v108
  %v147 = vpack.c.b16 %v111, %v109
  %v148 = vpack.c.b16 %v114, %v112
  %v149 = vpack.c.b16 %v115, %v113
  %v150 = vpack.c.b16 %v118, %v116
  %v151 = vpack.c.b16 %v119, %v117
  %v152 = vpack.c.b16 %v122, %v120
  %v153 = vpack.c.b16 %v123, %v121
  %v154 = vpack.c.b16 %v126, %v124
  %v155 = vpack.c.b16 %v127, %v125
  %v156 = vpack.c.b16 %v130, %v128
  %v157 = vpack.c.b16 %v131, %v129
  %v158 = vpack.c.b16 %v134, %v132
  %v159 = vpack.c.b16 %v135, %v133
  %v160 = vpack.c.b16 %v138, %v136
  %v161 = vpack.c.b16 %v139, %v137
  %v162 = vpack.c.b16 %v140, %v140
  %v163 = vpack.c.b16 %v141, %v141
  %v218 = vunpack.c.l.b16 %v35
  %v219 = vunpack.c.h.b16 %v35
  %v220 = vunpack.c.l.b16 %v36
  %v221 = vunpack.c.h.b16 %v36
  %v222 = vunpack.c.l.b16 %v37
  %v223 = vunpack.c.h.b16 %v37
  %v224 = vunpack.c.l.b16 %v38
  %v225 = vunpack.c.h.b16 %v38
  %v226 = vunpack.c.l.b16 %v39
  %v227 = vunpack.c.h.b16 %v39
  %v228 = vunpack.c.l.b16 %v40
  %v229 = vunpack.c.h.b16 %v40
  %v230 = vunpack.c.l.b16 %v41
  %v231 = vunpack.c.h.b16 %v41
  %v232 = vunpack.c.l.b16 %v42
  %v233 = vunpack.c.h.b16 %v42
  %v234 = vunpack.c.l.b16 %v43
  %v235 = vunpack.c.h.b16 %v43
  %v236 = vunpack.c.l.b16 %v44
  %v237 = vunpack.c.h.b16 %v44
  %v238 = vunpack.c.l.b16 %v45
  %v239 = vunpack.c.h.b16 %v45
  %v240 = vunpack.c.l.b16 %v46
  %v241 = vunpack.c.h.b16 %v46
  %v242 = vunpack.c.l.b16 %v47
  %v243 = vunpack.c.h.b16 %v47
  %v244 = vunpack.c.l.b16 %v48
  %v245 = vunpack.c.h.b16 %v48
  %v246 = vunpack.c.l.b16 %v49
  %v247 = vunpack.c.h.b16 %v49
  %v248 = vunpack.c.l.b16 %v50
  %v249 = vunpack.c.h.b16 %v50
  %v250 = vunpack.c.l.b16 %v51
  %v251 = vunpack.c.h.b16 %v51
  %v252 = vunpack.c.l.b16 %v52
  %v253 = vunpack.c.h.b16 %v52
  %v254 = vunpack.c.l.b16 %v53
  %v255 = vunpack.c.h.b16 %v53
  %v256 = vunpack.c.l.b16 %v54
  %v257 = vunpack.c.h.b16 %v54
  %v258 = vunpack.c.l.b16 %v55
  %v259 = vunpack.c.h.b16 %v55
  %v260 = vunpack.c.l.b16 %v56
  %v261 = vunpack.c.h.b16 %v56
  %v262 = vunpack.c.l.b16 %v57
  %v263 = vunpack.c.h.b16 %v57
  %v264 = vunpack.c.l.b16 %v58
  %v265 = vunpack.c.h.b16 %v58
  %v266 = vunpack.c.l.b16 %v59
  %v267 = vunpack.c.h.b16 %v59
  %v268 = vunpack.c.l.b16 %v60
  %v269 = vunpack.c.h.b16 %v60
  %v270 = vunpack.c.l.b16 %v61
  %v271 = vunpack.c.h.b16 %v61
  %v272 = vunpack.c.l.b16 %v62
  %v273 = vunpack.c.h.b16 %v62
  %v274 = vunpack.c.l.b16 %v63
  %v275 = vunpack.c.h.b16 %v63
  %v276 = vunpack.c.l.b16 %v64
  %v277 = vunpack.c.h.b16 %v64
  %v278 = vunpack.c.l.b16 %v65
  %v279 = vunpack.c.h.b16 %v65
  %v280 = vunpack.c.l.b16 %v66
  %v281 = vunpack.c.h.b16 %v66
  %v282 = vpack.c.b16 %v220, %v218
  %v283 = vpack.c.b16 %v221, %v219
  %v284 = vpack.c.b16 %v224, %v222
  %v285 = vpack.c.b16 %v225, %v223
  %v286 = vpack.c.b16 %v228, %v226
  %v287 = vpack.c.b16 %v229, %v227
  %v288 = vpack.c.b16 %v232, %v230
  %v289 = vpack.c.b16 %v233, %v231
  %v290 = vpack.c.b16 %v236, %v234
  %v291 = vpack.c.b16 %v237, %v235
  %v292 = vpack.c.b16 %v240, %v238
  %v293 = vpack.c.b16 %v241, %v239
  %v294 = vpack.c.b16 %v244, %v242
  %v295 = vpack.c.b16 %v245, %v243
  %v296 = vpack.c.b16 %v248, %v246
  %v297 = vpack.c.b16 %v249, %v247
  %v298 = vpack.c.b16 %v252, %v250
  %v299 = vpack.c.b16 %v253, %v251
  %v300 = vpack.c.b16 %v256, %v254
  %v301 = vpack.c.b16 %v257, %v255
  %v302 = vpack.c.b16 %v260, %v258
  %v303 = vpack.c.b16 %v261, %v259
  %v304 = vpack.c.b16 %v264, %v262
  %v305 = vpack.c.b16 %v265, %v263
  %v306 = vpack.c.b16 %v268, %v266
  %v307 = vpack.c.b16 %v269, %v267
  %v308 = vpack.c.b16 %v272, %v270
  %v309 = vpack.c.b16 %v273, %v271
  %v310 = vpack.c.b16 %v276, %v274
  %v311 = vpack.c.b16 %v277, %v275
  %v312 = vpack.c.b16 %v280, %v278
  %v313 = vpack.c.b16 %v281, %v279
  %346 = vmatprep.subr.bf16.mxu0 %v283
  %347 = vmatpush1.bf16.msra.mxu0 %v282
  %348 = vmatprep.subr.bf16.mxu0 %v285
  %349 = vmatpush1.bf16.msra.mxu0 %v284
  %350 = vmatprep.subr.bf16.mxu0 %v287
  %351 = vmatpush1.bf16.msra.mxu0 %v286
  %352 = vmatprep.subr.bf16.mxu0 %v289
  %353 = vmatpush1.bf16.msra.mxu0 %v288
  %354 = vmatprep.subr.bf16.mxu0 %v291
  %355 = vmatpush1.bf16.msra.mxu0 %v290
  %356 = vmatprep.subr.bf16.mxu0 %v293
  %357 = vmatpush1.bf16.msra.mxu0 %v292
  %358 = vmatprep.subr.bf16.mxu0 %v295
  %359 = vmatpush1.bf16.msra.mxu0 %v294
  %360 = vmatprep.subr.bf16.mxu0 %v297
  %361 = vmatpush1.bf16.msra.mxu0 %v296
  %362 = vmatprep.subr.bf16.mxu0 %v299
  %363 = vmatpush1.bf16.msra.mxu0 %v298
  %364 = vmatprep.subr.bf16.mxu0 %v301
  %365 = vmatpush1.bf16.msra.mxu0 %v300
  %366 = vmatprep.subr.bf16.mxu0 %v303
  %367 = vmatpush1.bf16.msra.mxu0 %v302
  %368 = vmatprep.subr.bf16.mxu0 %v305
  %369 = vmatpush1.bf16.msra.mxu0 %v304
  %370 = vmatprep.subr.bf16.mxu0 %v307
  %371 = vmatpush1.bf16.msra.mxu0 %v306
  %372 = vmatprep.subr.bf16.mxu0 %v309
  %373 = vmatpush1.bf16.msra.mxu0 %v308
  %374 = vmatprep.subr.bf16.mxu0 %v311
  %375 = vmatpush1.bf16.msra.mxu0 %v310
  %376 = vmatprep.subr.bf16.mxu0 %v313
  %377 = vmatpush1.bf16.msra.mxu0 %v312
  %378 = vmatprep.mubr.bf16.mxu0 %v143
  %379 = vmatmul.mubr.bf16.gmra.mrb[0].mxu0 %v142
  %v380 = vpop.f32.mrb[0].mxu0
  %v381 = vadd.f32 %v72, %v380
  %v382 = vpop.f32.mrb[0].mxu0
  %v383 = vadd.f32 %v76, %v382
  %v384 = vpop.f32.mrb[0].mxu0
  %v385 = vadd.f32 %v72, %v384
  %v386 = vpop.f32.mrb[0].mxu0
  %v387 = vadd.f32 %v76, %v386
  %388 = vmatprep.mubr.bf16.mxu0 %v145
  %389 = vmatmul.mubr.bf16.gmra.mrb[0].mxu0 %v144
  %v390 = vpop.f32.mrb[0].mxu0
  %v391 = vadd.f32 %v72, %v390
  %v392 = vpop.f32.mrb[0].mxu0
  %v393 = vadd.f32 %v76, %v392
  %v394 = vpop.f32.mrb[0].mxu0
  %v395 = vadd.f32 %v72, %v394
  %v396 = vpop.f32.mrb[0].mxu0
  %v397 = vadd.f32 %v76, %v396
  %398 = vmatprep.mubr.bf16.mxu0 %v147
  %399 = vmatmul.mubr.bf16.gmra.mrb[0].mxu0 %v146
  %v400 = vpop.f32.mrb[0].mxu0
  %v401 = vadd.f32 %v72, %v400
  %v402 = vpop.f32.mrb[0].mxu0
  %v403 = vadd.f32 %v76, %v402
  %v404 = vpop.f32.mrb[0].mxu0
  %v405 = vadd.f32 %v72, %v404
  %v406 = vpop.f32.mrb[0].mxu0
  %v407 = vadd.f32 %v76, %v406
  %408 = vmatprep.mubr.bf16.mxu0 %v149
  %409 = vmatmul.mubr.bf16.gmra.mrb[0].mxu0 %v148
  %v410 = vpop.f32.mrb[0].mxu0
  %v411 = vadd.f32 %v72, %v410
  %v412 = vpop.f32.mrb[0].mxu0
  %v413 = vadd.f32 %v76, %v412
  %v414 = vpop.f32.mrb[0].mxu0
  %v415 = vadd.f32 %v72, %v414
  %v416 = vpop.f32.mrb[0].mxu0
  %v417 = vadd.f32 %v76, %v416
  %418 = vmatprep.mubr.bf16.mxu0 %v151
  %419 = vmatmul.mubr.bf16.gmra.mrb[0].mxu0 %v150
  %v420 = vpop.f32.mrb[0].mxu0
  %v421 = vadd.f32 %v72, %v420
  %v422 = vpop.f32.mrb[0].mxu0
  %v423 = vadd.f32 %v76, %v422
  %v424 = vpop.f32.mrb[0].mxu0
  %v425 = vadd.f32 %v72, %v424
  %v426 = vpop.f32.mrb[0].mxu0
  %v427 = vadd.f32 %v76, %v426
  %428 = vmatprep.mubr.bf16.mxu0 %v153
  %429 = vmatmul.mubr.bf16.gmra.mrb[0].mxu0 %v152
  %v430 = vpop.f32.mrb[0].mxu0
  %v431 = vadd.f32 %v72, %v430
  %v432 = vpop.f32.mrb[0].mxu0
  %v433 = vadd.f32 %v76, %v432
  %v434 = vpop.f32.mrb[0].mxu0
  %v435 = vadd.f32 %v72, %v434
  %v436 = vpop.f32.mrb[0].mxu0
  %v437 = vadd.f32 %v76, %v436
  %438 = vmatprep.mubr.bf16.mxu0 %v155
  %439 = vmatmul.mubr.bf16.gmra.mrb[0].mxu0 %v154
  %v440 = vpop.f32.mrb[0].mxu0
  %v441 = vadd.f32 %v72, %v440
  %v442 = vpop.f32.mrb[0].mxu0
  %v443 = vadd.f32 %v76, %v442
  %v444 = vpop.f32.mrb[0].mxu0
  %v445 = vadd.f32 %v72, %v444
  %v446 = vpop.f32.mrb[0].mxu0
  %v447 = vadd.f32 %v76, %v446
  %448 = vmatprep.mubr.bf16.mxu0 %v157
  %449 = vmatmul.mubr.bf16.gmra.mrb[0].mxu0 %v156
  %v450 = vpop.f32.mrb[0].mxu0
  %v451 = vadd.f32 %v72, %v450
  %v452 = vpop.f32.mrb[0].mxu0
  %v453 = vadd.f32 %v76, %v452
  %v454 = vpop.f32.mrb[0].mxu0
  %v455 = vadd.f32 %v72, %v454
  %v456 = vpop.f32.mrb[0].mxu0
  %v457 = vadd.f32 %v76, %v456
  %458 = vmatprep.mubr.bf16.mxu0 %v159
  %459 = vmatmul.mubr.bf16.gmra.mrb[0].mxu0 %v158
  %v460 = vpop.f32.mrb[0].mxu0
  %v461 = vadd.f32 %v72, %v460
  %v462 = vpop.f32.mrb[0].mxu0
  %v463 = vadd.f32 %v76, %v462
  %v464 = vpop.f32.mrb[0].mxu0
  %v465 = vadd.f32 %v72, %v464
  %v466 = vpop.f32.mrb[0].mxu0
  %v467 = vadd.f32 %v76, %v466
  %468 = vmatprep.mubr.bf16.mxu0 %v161
  %469 = vmatmul.mubr.bf16.gmra.mrb[0].mxu0 %v160
  %v470 = vpop.f32.mrb[0].mxu0
  %v471 = vadd.f32 %v72, %v470
  %v472 = vpop.f32.mrb[0].mxu0
  %v473 = vadd.f32 %v76, %v472
  %v474 = vpop.f32.mrb[0].mxu0
  %v475 = vadd.f32 %v72, %v474
  %v476 = vpop.f32.mrb[0].mxu0
  %v477 = vadd.f32 %v76, %v476
  %478 = vmatprep.mubr.bf16.mxu0 %v163
  %479 = vmatmul.mubr.bf16.gmra.mrb[0].mxu0 %v162
  %v480 = vpop.f32.mrb[0].mxu0
  %v481 = vadd.f32 %v72, %v480
  %v482 = vpop.f32.mrb[0].mxu0
  %v483 = vadd.f32 %v76, %v482
  %v484 = vpop.f32.mrb[0].mxu0
  %v485 = vpop.f32.mrb[0].mxu0
  %486 = vdwg.mxu0
  %vm487 = vcmp.gt.f32.partialorder %v381, 0.0
  %vm488 = vcmp.gt.f32.partialorder %v383, 0.0
  %vm489 = vcmp.gt.f32.partialorder %v385, 0.0
  %vm490 = vcmp.gt.f32.partialorder %v387, 0.0
  %vm491 = vcmp.gt.f32.partialorder %v391, 0.0
  %vm492 = vcmp.gt.f32.partialorder %v393, 0.0
  %vm493 = vcmp.gt.f32.partialorder %v395, 0.0
  %vm494 = vcmp.gt.f32.partialorder %v397, 0.0
  %vm495 = vcmp.gt.f32.partialorder %v401, 0.0
  %vm496 = vcmp.gt.f32.partialorder %v403, 0.0
  %vm497 = vcmp.gt.f32.partialorder %v405, 0.0
  %vm498 = vcmp.gt.f32.partialorder %v407, 0.0
  %vm499 = vcmp.gt.f32.partialorder %v411, 0.0
  %vm500 = vcmp.gt.f32.partialorder %v413, 0.0
  %vm501 = vcmp.gt.f32.partialorder %v415, 0.0
  %vm502 = vcmp.gt.f32.partialorder %v417, 0.0
  %vm503 = vcmp.gt.f32.partialorder %v421, 0.0
  %vm504 = vcmp.gt.f32.partialorder %v423, 0.0
  %vm505 = vcmp.gt.f32.partialorder %v425, 0.0
  %vm506 = vcmp.gt.f32.partialorder %v427, 0.0
  %vm507 = vcmp.gt.f32.partialorder %v431, 0.0
  %vm508 = vcmp.gt.f32.partialorder %v433, 0.0
  %vm509 = vcmp.gt.f32.partialorder %v435, 0.0
  %vm510 = vcmp.gt.f32.partialorder %v437, 0.0
  %vm511 = vcmp.gt.f32.partialorder %v441, 0.0
  %vm512 = vcmp.gt.f32.partialorder %v443, 0.0
  %vm513 = vcmp.gt.f32.partialorder %v445, 0.0
  %vm514 = vcmp.gt.f32.partialorder %v447, 0.0
  %vm515 = vcmp.gt.f32.partialorder %v451, 0.0
  %vm516 = vcmp.gt.f32.partialorder %v453, 0.0
  %vm517 = vcmp.gt.f32.partialorder %v455, 0.0
  %vm518 = vcmp.gt.f32.partialorder %v457, 0.0
  %vm519 = vcmp.gt.f32.partialorder %v461, 0.0
  %vm520 = vcmp.gt.f32.partialorder %v463, 0.0
  %vm521 = vcmp.gt.f32.partialorder %v465, 0.0
  %vm522 = vcmp.gt.f32.partialorder %v467, 0.0
  %vm523 = vcmp.gt.f32.partialorder %v471, 0.0
  %vm524 = vcmp.gt.f32.partialorder %v473, 0.0
  %vm525 = vcmp.gt.f32.partialorder %v475, 0.0
  %vm526 = vcmp.gt.f32.partialorder %v477, 0.0
  %vm527 = vcmp.gt.f32.partialorder %v481, 0.0
  %vm528 = vcmp.gt.f32.partialorder %v483, 0.0
  %v529 = vmin.f32 %v381, 0.0
  %v530 = vmin.f32 %v383, 0.0
  %v531 = vmin.f32 %v385, 0.0
  %v532 = vmin.f32 %v387, 0.0
  %v533 = vmin.f32 %v391, 0.0
  %v534 = vmin.f32 %v393, 0.0
  %v535 = vmin.f32 %v395, 0.0
  %v536 = vmin.f32 %v397, 0.0
  %v537 = vmin.f32 %v401, 0.0
  %v538 = vmin.f32 %v403, 0.0
  %v539 = vmin.f32 %v405, 0.0
  %v540 = vmin.f32 %v407, 0.0
  %v541 = vmin.f32 %v411, 0.0
  %v542 = vmin.f32 %v413, 0.0
  %v543 = vmin.f32 %v415, 0.0
  %v544 = vmin.f32 %v417, 0.0
  %v545 = vmin.f32 %v421, 0.0
  %v546 = vmin.f32 %v423, 0.0
  %v547 = vmin.f32 %v425, 0.0
  %v548 = vmin.f32 %v427, 0.0
  %v549 = vmin.f32 %v431, 0.0
  %v550 = vmin.f32 %v433, 0.0
  %v551 = vmin.f32 %v435, 0.0
  %v552 = vmin.f32 %v437, 0.0
  %v553 = vmin.f32 %v441, 0.0
  %v554 = vmin.f32 %v443, 0.0
  %v555 = vmin.f32 %v445, 0.0
  %v556 = vmin.f32 %v447, 0.0
  %v557 = vmin.f32 %v451, 0.0
  %v558 = vmin.f32 %v453, 0.0
  %v559 = vmin.f32 %v455, 0.0
  %v560 = vmin.f32 %v457, 0.0
  %v561 = vmin.f32 %v461, 0.0
  %v562 = vmin.f32 %v463, 0.0
  %v563 = vmin.f32 %v465, 0.0
  %v564 = vmin.f32 %v467, 0.0
  %v565 = vmin.f32 %v471, 0.0
  %v566 = vmin.f32 %v473, 0.0
  %v567 = vmin.f32 %v475, 0.0
  %v568 = vmin.f32 %v477, 0.0
  %v569 = vmin.f32 %v481, 0.0
  %v570 = vmin.f32 %v483, 0.0
  %v571 = vmul.f32 %v529, 1.442695
  %v572 = vpow.pop %v571
  %v573 = vmul.f32 %v530, 1.442695
  %v574 = vpow.pop %v573
  %v575 = vmul.f32 %v531, 1.442695
  %v576 = vpow.pop %v575
  %v577 = vmul.f32 %v532, 1.442695
  %v578 = vpow.pop %v577
  %v579 = vmul.f32 %v533, 1.442695
  %v580 = vpow.pop %v579
  %v581 = vmul.f32 %v534, 1.442695
  %v582 = vpow.pop %v581
  %v583 = vmul.f32 %v535, 1.442695
  %v584 = vpow.pop %v583
  %v585 = vmul.f32 %v536, 1.442695
  %v586 = vpow.pop %v585
  %v587 = vmul.f32 %v537, 1.442695
  %v588 = vpow.pop %v587
  %v589 = vmul.f32 %v538, 1.442695
  %v590 = vpow.pop %v589
  %v591 = vmul.f32 %v539, 1.442695
  %v592 = vpow.pop %v591
  %v593 = vmul.f32 %v540, 1.442695
  %v594 = vpow.pop %v593
  %v595 = vmul.f32 %v541, 1.442695
  %v596 = vpow.pop %v595
  %v597 = vmul.f32 %v542, 1.442695
  %v598 = vpow.pop %v597
  %v599 = vmul.f32 %v543, 1.442695
  %v600 = vpow.pop %v599
  %v601 = vmul.f32 %v544, 1.442695
  %v602 = vpow.pop %v601
  %v603 = vmul.f32 %v545, 1.442695
  %v604 = vpow.pop %v603
  %v605 = vmul.f32 %v546, 1.442695
  %v606 = vpow.pop %v605
  %v607 = vmul.f32 %v547, 1.442695
  %v608 = vpow.pop %v607
  %v609 = vmul.f32 %v548, 1.442695
  %v610 = vpow.pop %v609
  %v611 = vmul.f32 %v549, 1.442695
  %v612 = vpow.pop %v611
  %v613 = vmul.f32 %v550, 1.442695
  %v614 = vpow.pop %v613
  %v615 = vmul.f32 %v551, 1.442695
  %v616 = vpow.pop %v615
  %v617 = vmul.f32 %v552, 1.442695
  %v618 = vpow.pop %v617
  %v619 = vmul.f32 %v553, 1.442695
  %v620 = vpow.pop %v619
  %v621 = vmul.f32 %v554, 1.442695
  %v622 = vpow.pop %v621
  %v623 = vmul.f32 %v555, 1.442695
  %v624 = vpow.pop %v623
  %v625 = vmul.f32 %v556, 1.442695
  %v626 = vpow.pop %v625
  %v627 = vmul.f32 %v557, 1.442695
  %v628 = vpow.pop %v627
  %v629 = vmul.f32 %v558, 1.442695
  %v630 = vpow.pop %v629
  %v631 = vmul.f32 %v559, 1.442695
  %v632 = vpow.pop %v631
  %v633 = vmul.f32 %v560, 1.442695
  %v634 = vpow.pop %v633
  %v635 = vmul.f32 %v561, 1.442695
  %v636 = vpow.pop %v635
  %v637 = vmul.f32 %v562, 1.442695
  %v638 = vpow.pop %v637
  %v639 = vmul.f32 %v563, 1.442695
  %v640 = vpow.pop %v639
  %v641 = vmul.f32 %v564, 1.442695
  %v642 = vpow.pop %v641
  %v643 = vmul.f32 %v565, 1.442695
  %v644 = vpow.pop %v643
  %v645 = vmul.f32 %v566, 1.442695
  %v646 = vpow.pop %v645
  %v647 = vmul.f32 %v567, 1.442695
  %v648 = vpow.pop %v647
  %v649 = vmul.f32 %v568, 1.442695
  %v650 = vpow.pop %v649
  %v651 = vmul.f32 %v569, 1.442695
  %v652 = vpow.pop %v651
  %v653 = vmul.f32 %v570, 1.442695
  %v654 = vpow.pop %v653
  %v655 = vsub.f32 %v572, 1.0
  %v656 = vsub.f32 %v574, 1.0
  %v657 = vsub.f32 %v576, 1.0
  %v658 = vsub.f32 %v578, 1.0
  %v659 = vsub.f32 %v580, 1.0
  %v660 = vsub.f32 %v582, 1.0
  %v661 = vsub.f32 %v584, 1.0
  %v662 = vsub.f32 %v586, 1.0
  %v663 = vsub.f32 %v588, 1.0
  %v664 = vsub.f32 %v590, 1.0
  %v665 = vsub.f32 %v592, 1.0
  %v666 = vsub.f32 %v594, 1.0
  %v667 = vsub.f32 %v596, 1.0
  %v668 = vsub.f32 %v598, 1.0
  %v669 = vsub.f32 %v600, 1.0
  %v670 = vsub.f32 %v602, 1.0
  %v671 = vsub.f32 %v604, 1.0
  %v672 = vsub.f32 %v606, 1.0
  %v673 = vsub.f32 %v608, 1.0
  %v674 = vsub.f32 %v610, 1.0
  %v675 = vsub.f32 %v612, 1.0
  %v676 = vsub.f32 %v614, 1.0
  %v677 = vsub.f32 %v616, 1.0
  %v678 = vsub.f32 %v618, 1.0
  %v679 = vsub.f32 %v620, 1.0
  %v680 = vsub.f32 %v622, 1.0
  %v681 = vsub.f32 %v624, 1.0
  %v682 = vsub.f32 %v626, 1.0
  %v683 = vsub.f32 %v628, 1.0
  %v684 = vsub.f32 %v630, 1.0
  %v685 = vsub.f32 %v632, 1.0
  %v686 = vsub.f32 %v634, 1.0
  %v687 = vsub.f32 %v636, 1.0
  %v688 = vsub.f32 %v638, 1.0
  %v689 = vsub.f32 %v640, 1.0
  %v690 = vsub.f32 %v642, 1.0
  %v691 = vsub.f32 %v644, 1.0
  %v692 = vsub.f32 %v646, 1.0
  %v693 = vsub.f32 %v648, 1.0
  %v694 = vsub.f32 %v650, 1.0
  %v695 = vsub.f32 %v652, 1.0
  %v696 = vsub.f32 %v654, 1.0
  %v697 = vsel %vm487, %v381, %v655
  %v698 = vsel %vm488, %v383, %v656
  %v699 = vsel %vm489, %v385, %v657
  %v700 = vsel %vm490, %v387, %v658
  %v701 = vsel %vm491, %v391, %v659
  %v702 = vsel %vm492, %v393, %v660
  %v703 = vsel %vm493, %v395, %v661
  %v704 = vsel %vm494, %v397, %v662
  %v705 = vsel %vm495, %v401, %v663
  %v706 = vsel %vm496, %v403, %v664
  %v707 = vsel %vm497, %v405, %v665
  %v708 = vsel %vm498, %v407, %v666
  %v709 = vsel %vm499, %v411, %v667
  %v710 = vsel %vm500, %v413, %v668
  %v711 = vsel %vm501, %v415, %v669
  %v712 = vsel %vm502, %v417, %v670
  %v713 = vsel %vm503, %v421, %v671
  %v714 = vsel %vm504, %v423, %v672
  %v715 = vsel %vm505, %v425, %v673
  %v716 = vsel %vm506, %v427, %v674
  %v717 = vsel %vm507, %v431, %v675
  %v718 = vsel %vm508, %v433, %v676
  %v719 = vsel %vm509, %v435, %v677
  %v720 = vsel %vm510, %v437, %v678
  %v721 = vsel %vm511, %v441, %v679
  %v722 = vsel %vm512, %v443, %v680
  %v723 = vsel %vm513, %v445, %v681
  %v724 = vsel %vm514, %v447, %v682
  %v725 = vsel %vm515, %v451, %v683
  %v726 = vsel %vm516, %v453, %v684
  %v727 = vsel %vm517, %v455, %v685
  %v728 = vsel %vm518, %v457, %v686
  %v729 = vsel %vm519, %v461, %v687
  %v730 = vsel %vm520, %v463, %v688
  %v731 = vsel %vm521, %v465, %v689
  %v732 = vsel %vm522, %v467, %v690
  %v733 = vsel %vm523, %v471, %v691
  %v734 = vsel %vm524, %v473, %v692
  %v735 = vsel %vm525, %v475, %v693
  %v736 = vsel %vm526, %v477, %v694
  %v737 = vsel %vm527, %v481, %v695
  %v738 = vsel %vm528, %v483, %v696
  %739 = vst [vmem:[%s3] sm:$0xff] %v697
  %740 = vst [vmem:[%s3 + $0x8] sm:$0xff] %v698
  %741 = vst [vmem:[%s3 + $0x10] sm:$0xff] %v699
  %742 = vst [vmem:[%s3 + $0x18] sm:$0xff] %v700
  %743 = vst [vmem:[%s3 + $0x20] sm:$0xff] %v701
  %744 = vst [vmem:[%s3 + $0x28] sm:$0xff] %v702
  %745 = vst [vmem:[%s3 + $0x30] sm:$0xff] %v703
  %746 = vst [vmem:[%s3 + $0x38] sm:$0xff] %v704
  %747 = vst [vmem:[%s3 + $0x40] sm:$0xff] %v705
  %748 = vst [vmem:[%s3 + $0x48] sm:$0xff] %v706
  %749 = vst [vmem:[%s3 + $0x50] sm:$0xff] %v707
  %750 = vst [vmem:[%s3 + $0x58] sm:$0xff] %v708
  %751 = vst [vmem:[%s3 + $0x60] sm:$0xff] %v709
  %752 = vst [vmem:[%s3 + $0x68] sm:$0xff] %v710
  %753 = vst [vmem:[%s3 + $0x70] sm:$0xff] %v711
  %754 = vst [vmem:[%s3 + $0x78] sm:$0xff] %v712
  %755 = vst [vmem:[%s3 + $0x80] sm:$0xff] %v713
  %756 = vst [vmem:[%s3 + $0x88] sm:$0xff] %v714
  %757 = vst [vmem:[%s3 + $0x90] sm:$0xff] %v715
  %758 = vst [vmem:[%s3 + $0x98] sm:$0xff] %v716
  %759 = vst [vmem:[%s3 + $0xa0] sm:$0xff] %v717
  %760 = vst [vmem:[%s3 + $0xa8] sm:$0xff] %v718
  %761 = vst [vmem:[%s3 + $0xb0] sm:$0xff] %v719
  %762 = vst [vmem:[%s3 + $0xb8] sm:$0xff] %v720
  %763 = vst [vmem:[%s3 + $0xc0] sm:$0xff] %v721
  %764 = vst [vmem:[%s3 + $0xc8] sm:$0xff] %v722
  %765 = vst [vmem:[%s3 + $0xd0] sm:$0xff] %v723
  %766 = vst [vmem:[%s3 + $0xd8] sm:$0xff] %v724
  %767 = vst [vmem:[%s3 + $0xe0] sm:$0xff] %v725
  %768 = vst [vmem:[%s3 + $0xe8] sm:$0xff] %v726
  %769 = vst [vmem:[%s3 + $0xf0] sm:$0xff] %v727
  %770 = vst [vmem:[%s3 + $0xf8] sm:$0xff] %v728
  %771 = vst [vmem:[%s3 + $0x100] sm:$0xff] %v729
  %772 = vst [vmem:[%s3 + $0x108] sm:$0xff] %v730
  %773 = vst [vmem:[%s3 + $0x110] sm:$0xff] %v731
  %774 = vst [vmem:[%s3 + $0x118] sm:$0xff] %v732
  %775 = vst [vmem:[%s3 + $0x120] sm:$0xff] %v733
  %776 = vst [vmem:[%s3 + $0x128] sm:$0xff] %v734
  %777 = vst [vmem:[%s3 + $0x130] sm:$0xff] %v735
  %778 = vst [vmem:[%s3 + $0x138] sm:$0xff] %v736
  %779 = vst [vmem:[%s3 + $0x140] sm:$0x3] %v737
  %780 = vst [vmem:[%s3 + $0x148] sm:$0x3] %v738
  // Predicated region
  $region14: #{pctnet_forward.16} parent=0 // pred_check
    _
  $region15: #{pctnet_forward.16} parent=0 // pred_check_branch
    %782 = sbr.rel (0) target = $region17
  $region16: #{pctnet_forward.16} parent=0 // pred_region
    _
  $region17: #{pctnet_forward.16} parent=0 // pred_fallthru
    _
  // Predicated region
  $region18: #{pctnet_forward.16} parent=0 // pred_check
    _
  $region19: #{pctnet_forward.16} parent=0 // pred_check_branch
    %784 = sbr.rel (0) target = $region21
  $region20: #{pctnet_forward.16} parent=0 // pred_region
    _
  $region21: #{pctnet_forward.16} parent=0 // pred_fallthru
    _

// kernel: tile.38
$region0: #{tile.38}
  #allocation0 [shape = 's32[1]{0}', space=sflag, size = 0x4, scoped, tag = 'scoped memory for tile.38']
  %s0 = inlined_call_operand.vmem [shape: f32[32], index: 0, kind: input, shape index: {}]
  %s1 = inlined_call_operand.vmem [shape: f32[4,32], index: 1, kind: output, shape index: {}]
  // Predicated region
  $region2: #{tile.38} parent=0 // pred_check
    _
  $region3: #{tile.38} parent=0 // pred_check_branch
    %3 = sbr.rel (0) target = $region5
  $region4: #{tile.38} parent=0 // pred_region
    _
  $region5: #{tile.38} parent=0 // pred_fallthru
    _
  %v4 = vld [vmem:[%s0] ss:$0 sm:$0xff]
  %5 = vst [vmem:[%s1] sm:$0xf] %v4

// kernel: tile.39
$region0: #{tile.39}
  %s0 = inlined_call_operand.vmem [shape: f32[4,32], index: 0, kind: input, shape index: {}]
  %s1 = inlined_call_operand.vmem [shape: f32[1,128], index: 1, kind: output, shape index: {}]
  $region1: #{tile.39} parent=0
    #allocation0 [shape = 'u8[4096]{0}', space=vmem, size = 0x1000, scoped, tag = 'scoped mem for output reshape']
    #allocation1 [shape = 'u8[4096]{0}', space=vmem, size = 0x1000, scoped, tag = 'scoped mem for input reshape']
    %s3 = sshllo.u32 0, 4
    %v4 = vld [vmem:[%s0] sm:%s3]
    %5 = vst [vmem:[#allocation1] sm:%s3] %v4
    %v6 = vld [vmem:[#allocation1] sm:$0x1]
    %vm7 = vcmask 261120
    %8 = vst.msk [vmem:[#allocation0] sm:$0x1] %vm7, %v6
    %s9 = scalar_lea.vmem [#allocation1], 3
    %v10 = vld [vmem:[%s9] sm:$0x1]
    %11 = vrot.lane.b32.xlu0 %v10, 96
    %v12 = vpop.permute.xlu0 %11
    %vm13 = vcmask 1048320
    %14 = vst.msk [vmem:[#allocation0] sm:$0x1] %vm13, %v12
    %s15 = scalar_lea.vmem [#allocation1], 2
    %v16 = vld [vmem:[%s15] sm:$0x1]
    %17 = vrot.lane.b32.xlu0 %v16, 64
    %v18 = vpop.permute.xlu0 %17
    %vm19 = vcmask 785920
    %20 = vst.msk [vmem:[#allocation0] sm:$0x1] %vm19, %v18
    %s21 = scalar_lea.vmem [#allocation1], 1
    %v22 = vld [vmem:[%s21] sm:$0x1]
    %23 = vrot.lane.b32.xlu0 %v22, 32
    %v24 = vpop.permute.xlu0 %23
    %vm25 = vcmask 523520
    %26 = vst.msk [vmem:[#allocation0] sm:$0x1] %vm25, %v24
    %s28 = sshllo.u32 0, 1
    %v30 = vld [vmem:[#allocation0] sm:%s28]
    %s31 = sshllo.u32 0, 1
    %32 = vst [vmem:[%s1] sm:%s31] %v30

// kernel: pctnet_forward.17
$region0: #{pctnet_forward.17}
  #allocation0 [shape = 'u32[]', space=smem, size = 0x4, offset = 0x4, fixed_abs, tag = 'smem constant byte address 0x4 - core index']
  #allocation1 [shape = 'u32[144,128]{1,0:T(1,128)}', space=vmem, size = 0x12000, scoped, tag = 'internal scratch']
  %s0 = inlined_call_operand.vmem [shape: bf16[578,256], index: 0, kind: input, shape index: {}]
  %s1 = inlined_call_operand.vmem [shape: bf16[256,128], index: 1, kind: input, shape index: {}]
  %s2 = inlined_call_operand.vmem [shape: f32[1,128], index: 2, kind: input, shape index: {}]
  %s3 = inlined_call_operand.vmem [shape: f32[578,128], index: 3, kind: output, shape index: {}]
  %s4 = sld [smem:[#allocation0]]
  $region22: #{pctnet_forward.17} parent=0
    _
  %s6 = ssub.s32 1, %s4
  %s7 = scalar_select 0, %s6, %s4
  // Predicated region
  $region2: #{pctnet_forward.17} parent=0 // pred_check
    _
  $region3: #{pctnet_forward.17} parent=0 // pred_check_branch
    %9 = sbr.rel (0) target = $region5
  $region4: #{pctnet_forward.17} parent=0 // pred_region
    _
  $region5: #{pctnet_forward.17} parent=0 // pred_fallthru
    _
  // Predicated region
  $region6: #{pctnet_forward.17} parent=0 // pred_check
    _
  $region7: #{pctnet_forward.17} parent=0 // pred_check_branch
    %11 = sbr.rel (0) target = $region9
  $region8: #{pctnet_forward.17} parent=0 // pred_region
    _
  $region9: #{pctnet_forward.17} parent=0 // pred_fallthru
    _
  // Predicated region
  $region10: #{pctnet_forward.17} parent=0 // pred_check
    _
  $region11: #{pctnet_forward.17} parent=0 // pred_check_branch
    %13 = sbr.rel (0) target = $region13
  $region12: #{pctnet_forward.17} parent=0 // pred_region
    _
  $region13: #{pctnet_forward.17} parent=0 // pred_fallthru
    _
  %v15 = vld [vmem:[%s0] sm:$0xff]
  %v16 = vld [vmem:[%s0 + $0x8] sm:$0xff]
  %v17 = vld [vmem:[%s0 + $0x10] sm:$0xff]
  %v18 = vld [vmem:[%s0 + $0x18] sm:$0xff]
  %v19 = vld [vmem:[%s0 + $0x20] sm:$0xff]
  %v20 = vld [vmem:[%s0 + $0x28] sm:$0xff]
  %v21 = vld [vmem:[%s0 + $0x30] sm:$0xff]
  %v22 = vld [vmem:[%s0 + $0x38] sm:$0xff]
  %v23 = vld [vmem:[%s0 + $0x40] sm:$0xff]
  %v24 = vld [vmem:[%s0 + $0x48] sm:$0xff]
  %v25 = vld [vmem:[%s0 + $0x50] sm:$0xff]
  %v26 = vld [vmem:[%s0 + $0x58] sm:$0xff]
  %v27 = vld [vmem:[%s0 + $0x60] sm:$0xff]
  %v28 = vld [vmem:[%s0 + $0x68] sm:$0xff]
  %v29 = vld [vmem:[%s0 + $0x70] sm:$0xff]
  %v30 = vld [vmem:[%s0 + $0x78] sm:$0xff]
  %v31 = vld [vmem:[%s0 + $0x80] sm:$0xff]
  %v32 = vld [vmem:[%s0 + $0x88] sm:$0xff]
  %v33 = vld [vmem:[%s0 + $0x90] sm:$0xff]
  %v34 = vld [vmem:[%s0 + $0x98] sm:$0xff]
  %v35 = vld [vmem:[%s0 + $0xa0] sm:$0xff]
  %v36 = vld [vmem:[%s0 + $0xa8] sm:$0xff]
  %v37 = vld [vmem:[%s0 + $0xb0] sm:$0xff]
  %v38 = vld [vmem:[%s0 + $0xb8] sm:$0xff]
  %v39 = vld [vmem:[%s0 + $0xc0] sm:$0xff]
  %v40 = vld [vmem:[%s0 + $0xc8] sm:$0xff]
  %v41 = vld [vmem:[%s0 + $0xd0] sm:$0xff]
  %v42 = vld [vmem:[%s0 + $0xd8] sm:$0xff]
  %v43 = vld [vmem:[%s0 + $0xe0] sm:$0xff]
  %v44 = vld [vmem:[%s0 + $0xe8] sm:$0xff]
  %v45 = vld [vmem:[%s0 + $0xf0] sm:$0xff]
  %v46 = vld [vmem:[%s0 + $0xf8] sm:$0xff]
  %v47 = vld [vmem:[%s0 + $0x100] sm:$0xff]
  %v48 = vld [vmem:[%s0 + $0x108] sm:$0xff]
  %v49 = vld [vmem:[%s0 + $0x110] sm:$0xff]
  %v50 = vld [vmem:[%s0 + $0x118] sm:$0xff]
  %v51 = vld [vmem:[%s0 + $0x120] sm:$0xff]
  %v52 = vld [vmem:[%s0 + $0x128] sm:$0xff]
  %v53 = vld [vmem:[%s0 + $0x130] sm:$0xff]
  %v54 = vld [vmem:[%s0 + $0x138] sm:$0xff]
  %v55 = vld [vmem:[%s0 + $0x140] sm:$0xff]
  %v56 = vld [vmem:[%s0 + $0x148] sm:$0xff]
  %v57 = vld [vmem:[%s0 + $0x150] sm:$0xff]
  %v58 = vld [vmem:[%s0 + $0x158] sm:$0xff]
  %v59 = vld [vmem:[%s0 + $0x160] sm:$0xff]
  %v60 = vld [vmem:[%s0 + $0x168] sm:$0xff]
  %v61 = vld [vmem:[%s0 + $0x170] sm:$0xff]
  %v62 = vld [vmem:[%s0 + $0x178] sm:$0xff]
  %v63 = vld [vmem:[%s0 + $0x180] sm:$0xff]
  %v64 = vld [vmem:[%s0 + $0x188] sm:$0xff]
  %v65 = vld [vmem:[%s0 + $0x190] sm:$0xff]
  %v66 = vld [vmem:[%s0 + $0x198] sm:$0xff]
  %v67 = vld [vmem:[%s0 + $0x1a0] sm:$0xff]
  %v68 = vld [vmem:[%s0 + $0x1a8] sm:$0xff]
  %v69 = vld [vmem:[%s0 + $0x1b0] sm:$0xff]
  %v70 = vld [vmem:[%s0 + $0x1b8] sm:$0xff]
  %v71 = vld [vmem:[%s0 + $0x1c0] sm:$0xff]
  %v72 = vld [vmem:[%s0 + $0x1c8] sm:$0xff]
  %v73 = vld [vmem:[%s0 + $0x1d0] sm:$0xff]
  %v74 = vld [vmem:[%s0 + $0x1d8] sm:$0xff]
  %v75 = vld [vmem:[%s0 + $0x1e0] sm:$0xff]
  %v76 = vld [vmem:[%s0 + $0x1e8] sm:$0xff]
  %v77 = vld [vmem:[%s0 + $0x1f0] sm:$0xff]
  %v78 = vld [vmem:[%s0 + $0x1f8] sm:$0xff]
  %v79 = vld [vmem:[%s0 + $0x200] sm:$0xff]
  %v80 = vld [vmem:[%s0 + $0x208] sm:$0xff]
  %v81 = vld [vmem:[%s0 + $0x210] sm:$0xff]
  %v82 = vld [vmem:[%s0 + $0x218] sm:$0xff]
  %v83 = vld [vmem:[%s0 + $0x220] sm:$0xff]
  %v84 = vld [vmem:[%s0 + $0x228] sm:$0xff]
  %v85 = vld [vmem:[%s0 + $0x230] sm:$0xff]
  %v86 = vld [vmem:[%s0 + $0x238] sm:$0xff]
  %v87 = vld [vmem:[%s0 + $0x240] sm:$0x11]
  %v88 = vld [vmem:[%s1] sm:$0xf]
  %v89 = vld [vmem:[%s1 + $0x4] sm:$0xf]
  %v90 = vld [vmem:[%s1 + $0x8] sm:$0xf]
  %v91 = vld [vmem:[%s1 + $0xc] sm:$0xf]
  %v92 = vld [vmem:[%s1 + $0x10] sm:$0xf]
  %v93 = vld [vmem:[%s1 + $0x14] sm:$0xf]
  %v94 = vld [vmem:[%s1 + $0x18] sm:$0xf]
  %v95 = vld [vmem:[%s1 + $0x1c] sm:$0xf]
  %v96 = vld [vmem:[%s1 + $0x20] sm:$0xf]
  %v97 = vld [vmem:[%s1 + $0x24] sm:$0xf]
  %v98 = vld [vmem:[%s1 + $0x28] sm:$0xf]
  %v99 = vld [vmem:[%s1 + $0x2c] sm:$0xf]
  %v100 = vld [vmem:[%s1 + $0x30] sm:$0xf]
  %v101 = vld [vmem:[%s1 + $0x34] sm:$0xf]
  %v102 = vld [vmem:[%s1 + $0x38] sm:$0xf]
  %v103 = vld [vmem:[%s1 + $0x3c] sm:$0xf]
  %v104 = vld [vmem:[%s1 + $0x40] sm:$0xf]
  %v105 = vld [vmem:[%s1 + $0x44] sm:$0xf]
  %v106 = vld [vmem:[%s1 + $0x48] sm:$0xf]
  %v107 = vld [vmem:[%s1 + $0x4c] sm:$0xf]
  %v108 = vld [vmem:[%s1 + $0x50] sm:$0xf]
  %v109 = vld [vmem:[%s1 + $0x54] sm:$0xf]
  %v110 = vld [vmem:[%s1 + $0x58] sm:$0xf]
  %v111 = vld [vmem:[%s1 + $0x5c] sm:$0xf]
  %v112 = vld [vmem:[%s1 + $0x60] sm:$0xf]
  %v113 = vld [vmem:[%s1 + $0x64] sm:$0xf]
  %v114 = vld [vmem:[%s1 + $0x68] sm:$0xf]
  %v115 = vld [vmem:[%s1 + $0x6c] sm:$0xf]
  %v116 = vld [vmem:[%s1 + $0x70] sm:$0xf]
  %v117 = vld [vmem:[%s1 + $0x74] sm:$0xf]
  %v118 = vld [vmem:[%s1 + $0x78] sm:$0xf]
  %v119 = vld [vmem:[%s1 + $0x7c] sm:$0xf]
  %v120 = vld [vmem:[%s2] sm:$0x1]
  %v122 = vlaneseq
  %v123 = vshrl.u32 %v122, 7
  %v124 = vsub.s32 0, %v123
  %v125 = vrot.slane %v120, %v124
  %v200 = vunpack.c.l.b16 %v15
  %v201 = vunpack.c.h.b16 %v15
  %v202 = vunpack.c.l.b16 %v16
  %v203 = vunpack.c.h.b16 %v16
  %v204 = vunpack.c.l.b16 %v17
  %v205 = vunpack.c.h.b16 %v17
  %v206 = vunpack.c.l.b16 %v18
  %v207 = vunpack.c.h.b16 %v18
  %v208 = vunpack.c.l.b16 %v19
  %v209 = vunpack.c.h.b16 %v19
  %v210 = vunpack.c.l.b16 %v20
  %v211 = vunpack.c.h.b16 %v20
  %v212 = vunpack.c.l.b16 %v21
  %v213 = vunpack.c.h.b16 %v21
  %v214 = vunpack.c.l.b16 %v22
  %v215 = vunpack.c.h.b16 %v22
  %v216 = vunpack.c.l.b16 %v23
  %v217 = vunpack.c.h.b16 %v23
  %v218 = vunpack.c.l.b16 %v24
  %v219 = vunpack.c.h.b16 %v24
  %v220 = vunpack.c.l.b16 %v25
  %v221 = vunpack.c.h.b16 %v25
  %v222 = vunpack.c.l.b16 %v26
  %v223 = vunpack.c.h.b16 %v26
  %v224 = vunpack.c.l.b16 %v27
  %v225 = vunpack.c.h.b16 %v27
  %v226 = vunpack.c.l.b16 %v28
  %v227 = vunpack.c.h.b16 %v28
  %v228 = vunpack.c.l.b16 %v29
  %v229 = vunpack.c.h.b16 %v29
  %v230 = vunpack.c.l.b16 %v30
  %v231 = vunpack.c.h.b16 %v30
  %v232 = vunpack.c.l.b16 %v31
  %v233 = vunpack.c.h.b16 %v31
  %v234 = vunpack.c.l.b16 %v32
  %v235 = vunpack.c.h.b16 %v32
  %v236 = vunpack.c.l.b16 %v33
  %v237 = vunpack.c.h.b16 %v33
  %v238 = vunpack.c.l.b16 %v34
  %v239 = vunpack.c.h.b16 %v34
  %v240 = vunpack.c.l.b16 %v35
  %v241 = vunpack.c.h.b16 %v35
  %v242 = vunpack.c.l.b16 %v36
  %v243 = vunpack.c.h.b16 %v36
  %v244 = vunpack.c.l.b16 %v37
  %v245 = vunpack.c.h.b16 %v37
  %v246 = vunpack.c.l.b16 %v38
  %v247 = vunpack.c.h.b16 %v38
  %v248 = vunpack.c.l.b16 %v39
  %v249 = vunpack.c.h.b16 %v39
  %v250 = vunpack.c.l.b16 %v40
  %v251 = vunpack.c.h.b16 %v40
  %v252 = vunpack.c.l.b16 %v41
  %v253 = vunpack.c.h.b16 %v41
  %v254 = vunpack.c.l.b16 %v42
  %v255 = vunpack.c.h.b16 %v42
  %v256 = vunpack.c.l.b16 %v43
  %v257 = vunpack.c.h.b16 %v43
  %v258 = vunpack.c.l.b16 %v44
  %v259 = vunpack.c.h.b16 %v44
  %v260 = vunpack.c.l.b16 %v45
  %v261 = vunpack.c.h.b16 %v45
  %v262 = vunpack.c.l.b16 %v46
  %v263 = vunpack.c.h.b16 %v46
  %v264 = vunpack.c.l.b16 %v47
  %v265 = vunpack.c.h.b16 %v47
  %v266 = vunpack.c.l.b16 %v48
  %v267 = vunpack.c.h.b16 %v48
  %v268 = vunpack.c.l.b16 %v49
  %v269 = vunpack.c.h.b16 %v49
  %v270 = vunpack.c.l.b16 %v50
  %v271 = vunpack.c.h.b16 %v50
  %v272 = vunpack.c.l.b16 %v51
  %v273 = vunpack.c.h.b16 %v51
  %v274 = vunpack.c.l.b16 %v52
  %v275 = vunpack.c.h.b16 %v52
  %v276 = vunpack.c.l.b16 %v53
  %v277 = vunpack.c.h.b16 %v53
  %v278 = vunpack.c.l.b16 %v54
  %v279 = vunpack.c.h.b16 %v54
  %v280 = vunpack.c.l.b16 %v55
  %v281 = vunpack.c.h.b16 %v55
  %v282 = vunpack.c.l.b16 %v56
  %v283 = vunpack.c.h.b16 %v56
  %v284 = vunpack.c.l.b16 %v57
  %v285 = vunpack.c.h.b16 %v57
  %v286 = vunpack.c.l.b16 %v58
  %v287 = vunpack.c.h.b16 %v58
  %v288 = vunpack.c.l.b16 %v59
  %v289 = vunpack.c.h.b16 %v59
  %v290 = vunpack.c.l.b16 %v60
  %v291 = vunpack.c.h.b16 %v60
  %v292 = vunpack.c.l.b16 %v61
  %v293 = vunpack.c.h.b16 %v61
  %v294 = vunpack.c.l.b16 %v62
  %v295 = vunpack.c.h.b16 %v62
  %v296 = vunpack.c.l.b16 %v63
  %v297 = vunpack.c.h.b16 %v63
  %v298 = vunpack.c.l.b16 %v64
  %v299 = vunpack.c.h.b16 %v64
  %v300 = vunpack.c.l.b16 %v65
  %v301 = vunpack.c.h.b16 %v65
  %v302 = vunpack.c.l.b16 %v66
  %v303 = vunpack.c.h.b16 %v66
  %v304 = vunpack.c.l.b16 %v67
  %v305 = vunpack.c.h.b16 %v67
  %v306 = vunpack.c.l.b16 %v68
  %v307 = vunpack.c.h.b16 %v68
  %v308 = vunpack.c.l.b16 %v69
  %v309 = vunpack.c.h.b16 %v69
  %v310 = vunpack.c.l.b16 %v70
  %v311 = vunpack.c.h.b16 %v70
  %v312 = vunpack.c.l.b16 %v71
  %v313 = vunpack.c.h.b16 %v71
  %v314 = vunpack.c.l.b16 %v72
  %v315 = vunpack.c.h.b16 %v72
  %v316 = vunpack.c.l.b16 %v73
  %v317 = vunpack.c.h.b16 %v73
  %v318 = vunpack.c.l.b16 %v74
  %v319 = vunpack.c.h.b16 %v74
  %v320 = vunpack.c.l.b16 %v75
  %v321 = vunpack.c.h.b16 %v75
  %v322 = vunpack.c.l.b16 %v76
  %v323 = vunpack.c.h.b16 %v76
  %v324 = vunpack.c.l.b16 %v77
  %v325 = vunpack.c.h.b16 %v77
  %v326 = vunpack.c.l.b16 %v78
  %v327 = vunpack.c.h.b16 %v78
  %v328 = vunpack.c.l.b16 %v79
  %v329 = vunpack.c.h.b16 %v79
  %v330 = vunpack.c.l.b16 %v80
  %v331 = vunpack.c.h.b16 %v80
  %v332 = vunpack.c.l.b16 %v81
  %v333 = vunpack.c.h.b16 %v81
  %v334 = vunpack.c.l.b16 %v82
  %v335 = vunpack.c.h.b16 %v82
  %v336 = vunpack.c.l.b16 %v83
  %v337 = vunpack.c.h.b16 %v83
  %v338 = vunpack.c.l.b16 %v84
  %v339 = vunpack.c.h.b16 %v84
  %v340 = vunpack.c.l.b16 %v85
  %v341 = vunpack.c.h.b16 %v85
  %v342 = vunpack.c.l.b16 %v86
  %v343 = vunpack.c.h.b16 %v86
  %v344 = vunpack.c.l.b16 %v87
  %v345 = vunpack.c.h.b16 %v87
  %v346 = vpack.c.b16 %v202, %v200
  %v347 = vpack.c.b16 %v203, %v201
  %v348 = vpack.c.b16 %v206, %v204
  %v349 = vpack.c.b16 %v207, %v205
  %v350 = vpack.c.b16 %v210, %v208
  %v351 = vpack.c.b16 %v211, %v209
  %v352 = vpack.c.b16 %v214, %v212
  %v353 = vpack.c.b16 %v215, %v213
  %v354 = vpack.c.b16 %v218, %v216
  %v355 = vpack.c.b16 %v219, %v217
  %v356 = vpack.c.b16 %v222, %v220
  %v357 = vpack.c.b16 %v223, %v221
  %v358 = vpack.c.b16 %v226, %v224
  %v359 = vpack.c.b16 %v227, %v225
  %v360 = vpack.c.b16 %v230, %v228
  %v361 = vpack.c.b16 %v231, %v229
  %v362 = vpack.c.b16 %v234, %v232
  %v363 = vpack.c.b16 %v235, %v233
  %v364 = vpack.c.b16 %v238, %v236
  %v365 = vpack.c.b16 %v239, %v237
  %v366 = vpack.c.b16 %v242, %v240
  %v367 = vpack.c.b16 %v243, %v241
  %v368 = vpack.c.b16 %v246, %v244
  %v369 = vpack.c.b16 %v247, %v245
  %v370 = vpack.c.b16 %v250, %v248
  %v371 = vpack.c.b16 %v251, %v249
  %v372 = vpack.c.b16 %v254, %v252
  %v373 = vpack.c.b16 %v255, %v253
  %v374 = vpack.c.b16 %v258, %v256
  %v375 = vpack.c.b16 %v259, %v257
  %v376 = vpack.c.b16 %v262, %v260
  %v377 = vpack.c.b16 %v263, %v261
  %v378 = vpack.c.b16 %v266, %v264
  %v379 = vpack.c.b16 %v267, %v265
  %v380 = vpack.c.b16 %v270, %v268
  %v381 = vpack.c.b16 %v271, %v269
  %v382 = vpack.c.b16 %v274, %v272
  %v383 = vpack.c.b16 %v275, %v273
  %v384 = vpack.c.b16 %v278, %v276
  %v385 = vpack.c.b16 %v279, %v277
  %v386 = vpack.c.b16 %v282, %v280
  %v387 = vpack.c.b16 %v283, %v281
  %v388 = vpack.c.b16 %v286, %v284
  %v389 = vpack.c.b16 %v287, %v285
  %v390 = vpack.c.b16 %v290, %v288
  %v391 = vpack.c.b16 %v291, %v289
  %v392 = vpack.c.b16 %v294, %v292
  %v393 = vpack.c.b16 %v295, %v293
  %v394 = vpack.c.b16 %v298, %v296
  %v395 = vpack.c.b16 %v299, %v297
  %v396 = vpack.c.b16 %v302, %v300
  %v397 = vpack.c.b16 %v303, %v301
  %v398 = vpack.c.b16 %v306, %v304
  %v399 = vpack.c.b16 %v307, %v305
  %v400 = vpack.c.b16 %v310, %v308
  %v401 = vpack.c.b16 %v311, %v309
  %v402 = vpack.c.b16 %v314, %v312
  %v403 = vpack.c.b16 %v315, %v313
  %v404 = vpack.c.b16 %v318, %v316
  %v405 = vpack.c.b16 %v319, %v317
  %v406 = vpack.c.b16 %v322, %v320
  %v407 = vpack.c.b16 %v323, %v321
  %v408 = vpack.c.b16 %v326, %v324
  %v409 = vpack.c.b16 %v327, %v325
  %v410 = vpack.c.b16 %v330, %v328
  %v411 = vpack.c.b16 %v331, %v329
  %v412 = vpack.c.b16 %v334, %v332
  %v413 = vpack.c.b16 %v335, %v333
  %v414 = vpack.c.b16 %v338, %v336
  %v415 = vpack.c.b16 %v339, %v337
  %v416 = vpack.c.b16 %v342, %v340
  %v417 = vpack.c.b16 %v343, %v341
  %v418 = vpack.c.b16 %v344, %v344
  %v419 = vpack.c.b16 %v345, %v345
  %v526 = vunpack.c.l.b16 %v88
  %v527 = vunpack.c.l.b16 %v89
  %v528 = vunpack.c.l.b16 %v90
  %v529 = vunpack.c.l.b16 %v91
  %v530 = vunpack.c.l.b16 %v92
  %v531 = vunpack.c.l.b16 %v93
  %v532 = vunpack.c.l.b16 %v94
  %v533 = vunpack.c.l.b16 %v95
  %v534 = vunpack.c.l.b16 %v96
  %v535 = vunpack.c.l.b16 %v97
  %v536 = vunpack.c.l.b16 %v98
  %v537 = vunpack.c.l.b16 %v99
  %v538 = vunpack.c.l.b16 %v100
  %v539 = vunpack.c.l.b16 %v101
  %v540 = vunpack.c.l.b16 %v102
  %v541 = vunpack.c.l.b16 %v103
  %v542 = vunpack.c.l.b16 %v104
  %v543 = vunpack.c.l.b16 %v105
  %v544 = vunpack.c.l.b16 %v106
  %v545 = vunpack.c.l.b16 %v107
  %v546 = vunpack.c.l.b16 %v108
  %v547 = vunpack.c.l.b16 %v109
  %v548 = vunpack.c.l.b16 %v110
  %v549 = vunpack.c.l.b16 %v111
  %v550 = vunpack.c.l.b16 %v112
  %v551 = vunpack.c.l.b16 %v113
  %v552 = vunpack.c.l.b16 %v114
  %v553 = vunpack.c.l.b16 %v115
  %v554 = vunpack.c.l.b16 %v116
  %v555 = vunpack.c.l.b16 %v117
  %v556 = vunpack.c.l.b16 %v118
  %v557 = vunpack.c.l.b16 %v119
  %v558 = vpack.c.b16 %v527, %v526
  %v559 = vpack.c.b16 %v529, %v528
  %v560 = vpack.c.b16 %v531, %v530
  %v561 = vpack.c.b16 %v533, %v532
  %v562 = vpack.c.b16 %v535, %v534
  %v563 = vpack.c.b16 %v537, %v536
  %v564 = vpack.c.b16 %v539, %v538
  %v565 = vpack.c.b16 %v541, %v540
  %v566 = vpack.c.b16 %v543, %v542
  %v567 = vpack.c.b16 %v545, %v544
  %v568 = vpack.c.b16 %v547, %v546
  %v569 = vpack.c.b16 %v549, %v548
  %v570 = vpack.c.b16 %v551, %v550
  %v571 = vpack.c.b16 %v553, %v552
  %v572 = vpack.c.b16 %v555, %v554
  %v573 = vpack.c.b16 %v557, %v556
  %590 = vmatprep.subr.bf16.mxu0 0
  %591 = vmatpush1.bf16.msra.mxu0 %v558
  %592 = vmatprep.subr.bf16.mxu0 0
  %593 = vmatpush1.bf16.msra.mxu0 %v559
  %594 = vmatprep.subr.bf16.mxu0 0
  %595 = vmatpush1.bf16.msra.mxu0 %v560
  %596 = vmatprep.subr.bf16.mxu0 0
  %597 = vmatpush1.bf16.msra.mxu0 %v561
  %598 = vmatprep.subr.bf16.mxu0 0
  %599 = vmatpush1.bf16.msra.mxu0 %v562
  %600 = vmatprep.subr.bf16.mxu0 0
  %601 = vmatpush1.bf16.msra.mxu0 %v563
  %602 = vmatprep.subr.bf16.mxu0 0
  %603 = vmatpush1.bf16.msra.mxu0 %v564
  %604 = vmatprep.subr.bf16.mxu0 0
  %605 = vmatpush1.bf16.msra.mxu0 %v565
  %606 = vmatprep.subr.bf16.mxu0 0
  %607 = vmatpush1.bf16.msra.mxu0 %v566
  %608 = vmatprep.subr.bf16.mxu0 0
  %609 = vmatpush1.bf16.msra.mxu0 %v567
  %610 = vmatprep.subr.bf16.mxu0 0
  %611 = vmatpush1.bf16.msra.mxu0 %v568
  %612 = vmatprep.subr.bf16.mxu0 0
  %613 = vmatpush1.bf16.msra.mxu0 %v569
  %614 = vmatprep.subr.bf16.mxu0 0
  %615 = vmatpush1.bf16.msra.mxu0 %v570
  %616 = vmatprep.subr.bf16.mxu0 0
  %617 = vmatpush1.bf16.msra.mxu0 %v571
  %618 = vmatprep.subr.bf16.mxu0 0
  %619 = vmatpush1.bf16.msra.mxu0 %v572
  %620 = vmatprep.subr.bf16.mxu0 0
  %621 = vmatpush1.bf16.msra.mxu0 %v573
  %622 = vmatprep.mubr.bf16.mxu0 %v347
  %623 = vmatmul.mubr.bf16.gmra.mrb[0].mxu0 %v346
  %v624 = vpop.f32.mrb[0].mxu0
  %v625 = vadd.f32 %v125, %v624
  %v626 = vpop.f32.mrb[0].mxu0
  %v627 = vpop.f32.mrb[0].mxu0
  %v628 = vadd.f32 %v125, %v627
  %v629 = vpop.f32.mrb[0].mxu0
  %630 = vmatprep.mubr.bf16.mxu0 %v349
  %631 = vmatmul.mubr.bf16.gmra.mrb[0].mxu0 %v348
  %v632 = vpop.f32.mrb[0].mxu0
  %v633 = vadd.f32 %v125, %v632
  %v634 = vpop.f32.mrb[0].mxu0
  %v635 = vpop.f32.mrb[0].mxu0
  %v636 = vadd.f32 %v125, %v635
  %v637 = vpop.f32.mrb[0].mxu0
  %638 = vmatprep.mubr.bf16.mxu0 %v351
  %639 = vmatmul.mubr.bf16.gmra.mrb[0].mxu0 %v350
  %v640 = vpop.f32.mrb[0].mxu0
  %v641 = vadd.f32 %v125, %v640
  %v642 = vpop.f32.mrb[0].mxu0
  %v643 = vpop.f32.mrb[0].mxu0
  %v644 = vadd.f32 %v125, %v643
  %v645 = vpop.f32.mrb[0].mxu0
  %646 = vmatprep.mubr.bf16.mxu0 %v353
  %647 = vmatmul.mubr.bf16.gmra.mrb[0].mxu0 %v352
  %v648 = vpop.f32.mrb[0].mxu0
  %v649 = vadd.f32 %v125, %v648
  %v650 = vpop.f32.mrb[0].mxu0
  %v651 = vpop.f32.mrb[0].mxu0
  %v652 = vadd.f32 %v125, %v651
  %v653 = vpop.f32.mrb[0].mxu0
  %654 = vmatprep.mubr.bf16.mxu0 %v355
  %655 = vmatmul.mubr.bf16.gmra.mrb[0].mxu0 %v354
  %v656 = vpop.f32.mrb[0].mxu0
  %v657 = vadd.f32 %v125, %v656
  %v658 = vpop.f32.mrb[0].mxu0
  %v659 = vpop.f32.mrb[0].mxu0
  %v660 = vadd.f32 %v125, %v659
  %v661 = vpop.f32.mrb[0].mxu0
  %662 = vmatprep.mubr.bf16.mxu0 %v357
  %663 = vmatmul.mubr.bf16.gmra.mrb[0].mxu0 %v356
  %v664 = vpop.f32.mrb[0].mxu0
  %v665 = vadd.f32 %v125, %v664
  %v666 = vpop.f32.mrb[0].mxu0
  %v667 = vpop.f32.mrb[0].mxu0
  %v668 = vadd.f32 %v125, %v667
  %v669 = vpop.f32.mrb[0].mxu0
  %670 = vmatprep.mubr.bf16.mxu0 %v359
  %671 = vmatmul.mubr.bf16.gmra.mrb[0].mxu0 %v358
  %v672 = vpop.f32.mrb[0].mxu0
  %v673 = vadd.f32 %v125, %v672
  %v674 = vpop.f32.mrb[0].mxu0
  %v675 = vpop.f32.mrb[0].mxu0
  %v676 = vadd.f32 %v125, %v675
  %v677 = vpop.f32.mrb[0].mxu0
  %678 = vmatprep.mubr.bf16.mxu0 %v361
  %679 = vmatmul.mubr.bf16.gmra.mrb[0].mxu0 %v360
  %v680 = vpop.f32.mrb[0].mxu0
  %v681 = vadd.f32 %v125, %v680
  %v682 = vpop.f32.mrb[0].mxu0
  %v683 = vpop.f32.mrb[0].mxu0
  %v684 = vadd.f32 %v125, %v683
  %v685 = vpop.f32.mrb[0].mxu0
  %686 = vmatprep.mubr.bf16.mxu0 %v363
  %687 = vmatmul.mubr.bf16.gmra.mrb[0].mxu0 %v362
  %v688 = vpop.f32.mrb[0].mxu0
  %v689 = vadd.f32 %v125, %v688
  %v690 = vpop.f32.mrb[0].mxu0
  %v691 = vpop.f32.mrb[0].mxu0
  %v692 = vadd.f32 %v125, %v691
  %v693 = vpop.f32.mrb[0].mxu0
  %694 = vmatprep.mubr.bf16.mxu0 %v365
  %695 = vmatmul.mubr.bf16.gmra.mrb[0].mxu0 %v364
  %v696 = vpop.f32.mrb[0].mxu0
  %v697 = vadd.f32 %v125, %v696
  %v698 = vpop.f32.mrb[0].mxu0
  %v699 = vpop.f32.mrb[0].mxu0
  %v700 = vadd.f32 %v125, %v699
  %v701 = vpop.f32.mrb[0].mxu0
  %702 = vmatprep.mubr.bf16.mxu0 %v367
  %703 = vmatmul.mubr.bf16.gmra.mrb[0].mxu0 %v366
  %v704 = vpop.f32.mrb[0].mxu0
  %v705 = vadd.f32 %v125, %v704
  %v706 = vpop.f32.mrb[0].mxu0
  %v707 = vpop.f32.mrb[0].mxu0
  %v708 = vadd.f32 %v125, %v707
  %v709 = vpop.f32.mrb[0].mxu0
  %710 = vmatprep.mubr.bf16.mxu0 %v369
  %711 = vmatmul.mubr.bf16.gmra.mrb[0].mxu0 %v368
  %v712 = vpop.f32.mrb[0].mxu0
  %v713 = vadd.f32 %v125, %v712
  %v714 = vpop.f32.mrb[0].mxu0
  %v715 = vpop.f32.mrb[0].mxu0
  %v716 = vadd.f32 %v125, %v715
  %v717 = vpop.f32.mrb[0].mxu0
  %718 = vmatprep.mubr.bf16.mxu0 %v371
  %719 = vmatmul.mubr.bf16.gmra.mrb[0].mxu0 %v370
  %v720 = vpop.f32.mrb[0].mxu0
  %v721 = vadd.f32 %v125, %v720
  %v722 = vpop.f32.mrb[0].mxu0
  %v723 = vpop.f32.mrb[0].mxu0
  %v724 = vadd.f32 %v125, %v723
  %v725 = vpop.f32.mrb[0].mxu0
  %726 = vmatprep.mubr.bf16.mxu0 %v373
  %727 = vmatmul.mubr.bf16.gmra.mrb[0].mxu0 %v372
  %v728 = vpop.f32.mrb[0].mxu0
  %v729 = vadd.f32 %v125, %v728
  %v730 = vpop.f32.mrb[0].mxu0
  %v731 = vpop.f32.mrb[0].mxu0
  %v732 = vadd.f32 %v125, %v731
  %v733 = vpop.f32.mrb[0].mxu0
  %734 = vmatprep.mubr.bf16.mxu0 %v375
  %735 = vmatmul.mubr.bf16.gmra.mrb[0].mxu0 %v374
  %v736 = vpop.f32.mrb[0].mxu0
  %v737 = vadd.f32 %v125, %v736
  %v738 = vpop.f32.mrb[0].mxu0
  %v739 = vpop.f32.mrb[0].mxu0
  %v740 = vadd.f32 %v125, %v739
  %v741 = vpop.f32.mrb[0].mxu0
  %742 = vmatprep.mubr.bf16.mxu0 %v377
  %743 = vmatmul.mubr.bf16.gmra.mrb[0].mxu0 %v376
  %v744 = vpop.f32.mrb[0].mxu0
  %v745 = vadd.f32 %v125, %v744
  %v746 = vpop.f32.mrb[0].mxu0
  %v747 = vpop.f32.mrb[0].mxu0
  %v748 = vadd.f32 %v125, %v747
  %v749 = vpop.f32.mrb[0].mxu0
  %750 = vmatprep.mubr.bf16.mxu0 %v379
  %751 = vmatmul.mubr.bf16.gmra.mrb[0].mxu0 %v378
  %v752 = vpop.f32.mrb[0].mxu0
  %v753 = vadd.f32 %v125, %v752
  %v754 = vpop.f32.mrb[0].mxu0
  %v755 = vpop.f32.mrb[0].mxu0
  %v756 = vadd.f32 %v125, %v755
  %v757 = vpop.f32.mrb[0].mxu0
  %758 = vmatprep.mubr.bf16.mxu0 %v381
  %759 = vmatmul.mubr.bf16.gmra.mrb[0].mxu0 %v380
  %v760 = vpop.f32.mrb[0].mxu0
  %v761 = vadd.f32 %v125, %v760
  %v762 = vpop.f32.mrb[0].mxu0
  %v763 = vpop.f32.mrb[0].mxu0
  %v764 = vadd.f32 %v125, %v763
  %v765 = vpop.f32.mrb[0].mxu0
  %766 = vmatprep.mubr.bf16.mxu0 %v383
  %767 = vmatmul.mubr.bf16.gmra.mrb[0].mxu0 %v382
  %v768 = vpop.f32.mrb[0].mxu0
  %v769 = vadd.f32 %v125, %v768
  %v770 = vpop.f32.mrb[0].mxu0
  %v771 = vpop.f32.mrb[0].mxu0
  %v772 = vadd.f32 %v125, %v771
  %v773 = vpop.f32.mrb[0].mxu0
  %774 = vmatprep.mubr.bf16.mxu0 %v385
  %775 = vmatmul.mubr.bf16.gmra.mrb[0].mxu0 %v384
  %v776 = vpop.f32.mrb[0].mxu0
  %v777 = vadd.f32 %v125, %v776
  %v778 = vpop.f32.mrb[0].mxu0
  %v779 = vpop.f32.mrb[0].mxu0
  %v780 = vadd.f32 %v125, %v779
  %v781 = vpop.f32.mrb[0].mxu0
  %782 = vmatprep.mubr.bf16.mxu0 %v387
  %783 = vmatmul.mubr.bf16.gmra.mrb[0].mxu0 %v386
  %v784 = vpop.f32.mrb[0].mxu0
  %v785 = vadd.f32 %v125, %v784
  %v786 = vpop.f32.mrb[0].mxu0
  %v787 = vpop.f32.mrb[0].mxu0
  %v788 = vadd.f32 %v125, %v787
  %v789 = vpop.f32.mrb[0].mxu0
  %790 = vmatprep.mubr.bf16.mxu0 %v389
  %791 = vmatmul.mubr.bf16.gmra.mrb[0].mxu0 %v388
  %v792 = vpop.f32.mrb[0].mxu0
  %v793 = vadd.f32 %v125, %v792
  %v794 = vpop.f32.mrb[0].mxu0
  %v795 = vpop.f32.mrb[0].mxu0
  %v796 = vadd.f32 %v125, %v795
  %v797 = vpop.f32.mrb[0].mxu0
  %798 = vmatprep.mubr.bf16.mxu0 %v391
  %799 = vmatmul.mubr.bf16.gmra.mrb[0].mxu0 %v390
  %v800 = vpop.f32.mrb[0].mxu0
  %v801 = vadd.f32 %v125, %v800
  %v802 = vpop.f32.mrb[0].mxu0
  %v803 = vpop.f32.mrb[0].mxu0
  %v804 = vadd.f32 %v125, %v803
  %v805 = vpop.f32.mrb[0].mxu0
  %806 = vmatprep.mubr.bf16.mxu0 %v393
  %807 = vmatmul.mubr.bf16.gmra.mrb[0].mxu0 %v392
  %v808 = vpop.f32.mrb[0].mxu0
  %v809 = vadd.f32 %v125, %v808
  %v810 = vpop.f32.mrb[0].mxu0
  %v811 = vpop.f32.mrb[0].mxu0
  %v812 = vadd.f32 %v125, %v811
  %v813 = vpop.f32.mrb[0].mxu0
  %814 = vmatprep.mubr.bf16.mxu0 %v395
  %815 = vmatmul.mubr.bf16.gmra.mrb[0].mxu0 %v394
  %v816 = vpop.f32.mrb[0].mxu0
  %v817 = vadd.f32 %v125, %v816
  %v818 = vpop.f32.mrb[0].mxu0
  %v819 = vpop.f32.mrb[0].mxu0
  %v820 = vadd.f32 %v125, %v819
  %v821 = vpop.f32.mrb[0].mxu0
  %822 = vmatprep.mubr.bf16.mxu0 %v397
  %823 = vmatmul.mubr.bf16.gmra.mrb[0].mxu0 %v396
  %v824 = vpop.f32.mrb[0].mxu0
  %v825 = vadd.f32 %v125, %v824
  %v826 = vpop.f32.mrb[0].mxu0
  %v827 = vpop.f32.mrb[0].mxu0
  %v828 = vadd.f32 %v125, %v827
  %v829 = vpop.f32.mrb[0].mxu0
  %830 = vmatprep.mubr.bf16.mxu0 %v399
  %831 = vmatmul.mubr.bf16.gmra.mrb[0].mxu0 %v398
  %v832 = vpop.f32.mrb[0].mxu0
  %v833 = vadd.f32 %v125, %v832
  %v834 = vpop.f32.mrb[0].mxu0
  %v835 = vpop.f32.mrb[0].mxu0
  %v836 = vadd.f32 %v125, %v835
  %v837 = vpop.f32.mrb[0].mxu0
  %838 = vmatprep.mubr.bf16.mxu0 %v401
  %839 = vmatmul.mubr.bf16.gmra.mrb[0].mxu0 %v400
  %v840 = vpop.f32.mrb[0].mxu0
  %v841 = vadd.f32 %v125, %v840
  %v842 = vpop.f32.mrb[0].mxu0
  %v843 = vpop.f32.mrb[0].mxu0
  %v844 = vadd.f32 %v125, %v843
  %v845 = vpop.f32.mrb[0].mxu0
  %846 = vmatprep.mubr.bf16.mxu0 %v403
  %847 = vmatmul.mubr.bf16.gmra.mrb[0].mxu0 %v402
  %v848 = vpop.f32.mrb[0].mxu0
  %v849 = vadd.f32 %v125, %v848
  %v850 = vpop.f32.mrb[0].mxu0
  %v851 = vpop.f32.mrb[0].mxu0
  %v852 = vadd.f32 %v125, %v851
  %v853 = vpop.f32.mrb[0].mxu0
  %854 = vmatprep.mubr.bf16.mxu0 %v405
  %855 = vmatmul.mubr.bf16.gmra.mrb[0].mxu0 %v404
  %v856 = vpop.f32.mrb[0].mxu0
  %v857 = vadd.f32 %v125, %v856
  %v858 = vpop.f32.mrb[0].mxu0
  %v859 = vpop.f32.mrb[0].mxu0
  %v860 = vadd.f32 %v125, %v859
  %v861 = vpop.f32.mrb[0].mxu0
  %862 = vmatprep.mubr.bf16.mxu0 %v407
  %863 = vmatmul.mubr.bf16.gmra.mrb[0].mxu0 %v406
  %v864 = vpop.f32.mrb[0].mxu0
  %v865 = vadd.f32 %v125, %v864
  %v866 = vpop.f32.mrb[0].mxu0
  %v867 = vpop.f32.mrb[0].mxu0
  %v868 = vadd.f32 %v125, %v867
  %v869 = vpop.f32.mrb[0].mxu0
  %870 = vmatprep.mubr.bf16.mxu0 %v409
  %871 = vmatmul.mubr.bf16.gmra.mrb[0].mxu0 %v408
  %v872 = vpop.f32.mrb[0].mxu0
  %v873 = vadd.f32 %v125, %v872
  %v874 = vpop.f32.mrb[0].mxu0
  %v875 = vpop.f32.mrb[0].mxu0
  %v876 = vadd.f32 %v125, %v875
  %v877 = vpop.f32.mrb[0].mxu0
  %878 = vmatprep.mubr.bf16.mxu0 %v411
  %879 = vmatmul.mubr.bf16.gmra.mrb[0].mxu0 %v410
  %v880 = vpop.f32.mrb[0].mxu0
  %v881 = vadd.f32 %v125, %v880
  %v882 = vpop.f32.mrb[0].mxu0
  %v883 = vpop.f32.mrb[0].mxu0
  %v884 = vadd.f32 %v125, %v883
  %v885 = vpop.f32.mrb[0].mxu0
  %886 = vmatprep.mubr.bf16.mxu0 %v413
  %887 = vmatmul.mubr.bf16.gmra.mrb[0].mxu0 %v412
  %v888 = vpop.f32.mrb[0].mxu0
  %v889 = vadd.f32 %v125, %v888
  %v890 = vpop.f32.mrb[0].mxu0
  %v891 = vpop.f32.mrb[0].mxu0
  %v892 = vadd.f32 %v125, %v891
  %v893 = vpop.f32.mrb[0].mxu0
  %894 = vmatprep.mubr.bf16.mxu0 %v415
  %895 = vmatmul.mubr.bf16.gmra.mrb[0].mxu0 %v414
  %v896 = vpop.f32.mrb[0].mxu0
  %v897 = vadd.f32 %v125, %v896
  %v898 = vpop.f32.mrb[0].mxu0
  %v899 = vpop.f32.mrb[0].mxu0
  %v900 = vadd.f32 %v125, %v899
  %v901 = vpop.f32.mrb[0].mxu0
  %902 = vmatprep.mubr.bf16.mxu0 %v417
  %903 = vmatmul.mubr.bf16.gmra.mrb[0].mxu0 %v416
  %v904 = vpop.f32.mrb[0].mxu0
  %v905 = vadd.f32 %v125, %v904
  %v906 = vpop.f32.mrb[0].mxu0
  %v907 = vpop.f32.mrb[0].mxu0
  %v908 = vadd.f32 %v125, %v907
  %v909 = vpop.f32.mrb[0].mxu0
  %910 = vmatprep.mubr.bf16.mxu0 %v419
  %911 = vmatmul.mubr.bf16.gmra.mrb[0].mxu0 %v418
  %v912 = vpop.f32.mrb[0].mxu0
  %v913 = vadd.f32 %v125, %v912
  %v914 = vpop.f32.mrb[0].mxu0
  %v915 = vpop.f32.mrb[0].mxu0
  %v916 = vpop.f32.mrb[0].mxu0
  %917 = vdwg.mxu0
  %vm918 = vcmp.gt.f32.partialorder %v625, 0.0
  %vm919 = vcmp.gt.f32.partialorder %v628, 0.0
  %vm920 = vcmp.gt.f32.partialorder %v633, 0.0
  %vm921 = vcmp.gt.f32.partialorder %v636, 0.0
  %vm922 = vcmp.gt.f32.partialorder %v641, 0.0
  %vm923 = vcmp.gt.f32.partialorder %v644, 0.0
  %vm924 = vcmp.gt.f32.partialorder %v649, 0.0
  %vm925 = vcmp.gt.f32.partialorder %v652, 0.0
  %vm926 = vcmp.gt.f32.partialorder %v657, 0.0
  %vm927 = vcmp.gt.f32.partialorder %v660, 0.0
  %vm928 = vcmp.gt.f32.partialorder %v665, 0.0
  %vm929 = vcmp.gt.f32.partialorder %v668, 0.0
  %vm930 = vcmp.gt.f32.partialorder %v673, 0.0
  %vm931 = vcmp.gt.f32.partialorder %v676, 0.0
  %vm932 = vcmp.gt.f32.partialorder %v681, 0.0
  %vm933 = vcmp.gt.f32.partialorder %v684, 0.0
  %vm934 = vcmp.gt.f32.partialorder %v689, 0.0
  %vm935 = vcmp.gt.f32.partialorder %v692, 0.0
  %vm936 = vcmp.gt.f32.partialorder %v697, 0.0
  %vm937 = vcmp.gt.f32.partialorder %v700, 0.0
  %vm938 = vcmp.gt.f32.partialorder %v705, 0.0
  %vm939 = vcmp.gt.f32.partialorder %v708, 0.0
  %vm940 = vcmp.gt.f32.partialorder %v713, 0.0
  %vm941 = vcmp.gt.f32.partialorder %v716, 0.0
  %vm942 = vcmp.gt.f32.partialorder %v721, 0.0
  %vm943 = vcmp.gt.f32.partialorder %v724, 0.0
  %vm944 = vcmp.gt.f32.partialorder %v729, 0.0
  %vm945 = vcmp.gt.f32.partialorder %v732, 0.0
  %vm946 = vcmp.gt.f32.partialorder %v737, 0.0
  %vm947 = vcmp.gt.f32.partialorder %v740, 0.0
  %vm948 = vcmp.gt.f32.partialorder %v745, 0.0
  %vm949 = vcmp.gt.f32.partialorder %v748, 0.0
  %vm950 = vcmp.gt.f32.partialorder %v753, 0.0
  %vm951 = vcmp.gt.f32.partialorder %v756, 0.0
  %vm952 = vcmp.gt.f32.partialorder %v761, 0.0
  %vm953 = vcmp.gt.f32.partialorder %v764, 0.0
  %vm954 = vcmp.gt.f32.partialorder %v769, 0.0
  %vm955 = vcmp.gt.f32.partialorder %v772, 0.0
  %vm956 = vcmp.gt.f32.partialorder %v777, 0.0
  %vm957 = vcmp.gt.f32.partialorder %v780, 0.0
  %vm958 = vcmp.gt.f32.partialorder %v785, 0.0
  %vm959 = vcmp.gt.f32.partialorder %v788, 0.0
  %vm960 = vcmp.gt.f32.partialorder %v793, 0.0
  %vm961 = vcmp.gt.f32.partialorder %v796, 0.0
  %vm962 = vcmp.gt.f32.partialorder %v801, 0.0
  %vm963 = vcmp.gt.f32.partialorder %v804, 0.0
  %vm964 = vcmp.gt.f32.partialorder %v809, 0.0
  %vm965 = vcmp.gt.f32.partialorder %v812, 0.0
  %vm966 = vcmp.gt.f32.partialorder %v817, 0.0
  %vm967 = vcmp.gt.f32.partialorder %v820, 0.0
  %vm968 = vcmp.gt.f32.partialorder %v825, 0.0
  %vm969 = vcmp.gt.f32.partialorder %v828, 0.0
  %vm970 = vcmp.gt.f32.partialorder %v833, 0.0
  %vm971 = vcmp.gt.f32.partialorder %v836, 0.0
  %vm972 = vcmp.gt.f32.partialorder %v841, 0.0
  %vm973 = vcmp.gt.f32.partialorder %v844, 0.0
  %vm974 = vcmp.gt.f32.partialorder %v849, 0.0
  %vm975 = vcmp.gt.f32.partialorder %v852, 0.0
  %vm976 = vcmp.gt.f32.partialorder %v857, 0.0
  %vm977 = vcmp.gt.f32.partialorder %v860, 0.0
  %vm978 = vcmp.gt.f32.partialorder %v865, 0.0
  %vm979 = vcmp.gt.f32.partialorder %v868, 0.0
  %vm980 = vcmp.gt.f32.partialorder %v873, 0.0
  %vm981 = vcmp.gt.f32.partialorder %v876, 0.0
  %vm982 = vcmp.gt.f32.partialorder %v881, 0.0
  %vm983 = vcmp.gt.f32.partialorder %v884, 0.0
  %vm984 = vcmp.gt.f32.partialorder %v889, 0.0
  %vm985 = vcmp.gt.f32.partialorder %v892, 0.0
  %vm986 = vcmp.gt.f32.partialorder %v897, 0.0
  %vm987 = vcmp.gt.f32.partialorder %v900, 0.0
  %vm988 = vcmp.gt.f32.partialorder %v905, 0.0
  %vm989 = vcmp.gt.f32.partialorder %v908, 0.0
  %vm990 = vcmp.gt.f32.partialorder %v913, 0.0
  %v991 = vmin.f32 %v625, 0.0
  %v992 = vmin.f32 %v628, 0.0
  %v993 = vmin.f32 %v633, 0.0
  %v994 = vmin.f32 %v636, 0.0
  %v995 = vmin.f32 %v641, 0.0
  %v996 = vmin.f32 %v644, 0.0
  %v997 = vmin.f32 %v649, 0.0
  %v998 = vmin.f32 %v652, 0.0
  %v999 = vmin.f32 %v657, 0.0
  %v1000 = vmin.f32 %v660, 0.0
  %v1001 = vmin.f32 %v665, 0.0
  %v1002 = vmin.f32 %v668, 0.0
  %v1003 = vmin.f32 %v673, 0.0
  %v1004 = vmin.f32 %v676, 0.0
  %v1005 = vmin.f32 %v681, 0.0
  %v1006 = vmin.f32 %v684, 0.0
  %v1007 = vmin.f32 %v689, 0.0
  %v1008 = vmin.f32 %v692, 0.0
  %v1009 = vmin.f32 %v697, 0.0
  %v1010 = vmin.f32 %v700, 0.0
  %v1011 = vmin.f32 %v705, 0.0
  %v1012 = vmin.f32 %v708, 0.0
  %v1013 = vmin.f32 %v713, 0.0
  %v1014 = vmin.f32 %v716, 0.0
  %v1015 = vmin.f32 %v721, 0.0
  %v1016 = vmin.f32 %v724, 0.0
  %v1017 = vmin.f32 %v729, 0.0
  %v1018 = vmin.f32 %v732, 0.0
  %v1019 = vmin.f32 %v737, 0.0
  %v1020 = vmin.f32 %v740, 0.0
  %v1021 = vmin.f32 %v745, 0.0
  %v1022 = vmin.f32 %v748, 0.0
  %v1023 = vmin.f32 %v753, 0.0
  %v1024 = vmin.f32 %v756, 0.0
  %v1025 = vmin.f32 %v761, 0.0
  %v1026 = vmin.f32 %v764, 0.0
  %v1027 = vmin.f32 %v769, 0.0
  %v1028 = vmin.f32 %v772, 0.0
  %v1029 = vmin.f32 %v777, 0.0
  %v1030 = vmin.f32 %v780, 0.0
  %v1031 = vmin.f32 %v785, 0.0
  %v1032 = vmin.f32 %v788, 0.0
  %v1033 = vmin.f32 %v793, 0.0
  %v1034 = vmin.f32 %v796, 0.0
  %v1035 = vmin.f32 %v801, 0.0
  %v1036 = vmin.f32 %v804, 0.0
  %v1037 = vmin.f32 %v809, 0.0
  %v1038 = vmin.f32 %v812, 0.0
  %v1039 = vmin.f32 %v817, 0.0
  %v1040 = vmin.f32 %v820, 0.0
  %v1041 = vmin.f32 %v825, 0.0
  %v1042 = vmin.f32 %v828, 0.0
  %v1043 = vmin.f32 %v833, 0.0
  %v1044 = vmin.f32 %v836, 0.0
  %v1045 = vmin.f32 %v841, 0.0
  %v1046 = vmin.f32 %v844, 0.0
  %v1047 = vmin.f32 %v849, 0.0
  %v1048 = vmin.f32 %v852, 0.0
  %v1049 = vmin.f32 %v857, 0.0
  %v1050 = vmin.f32 %v860, 0.0
  %v1051 = vmin.f32 %v865, 0.0
  %v1052 = vmin.f32 %v868, 0.0
  %v1053 = vmin.f32 %v873, 0.0
  %v1054 = vmin.f32 %v876, 0.0
  %v1055 = vmin.f32 %v881, 0.0
  %v1056 = vmin.f32 %v884, 0.0
  %v1057 = vmin.f32 %v889, 0.0
  %v1058 = vmin.f32 %v892, 0.0
  %v1059 = vmin.f32 %v897, 0.0
  %v1060 = vmin.f32 %v900, 0.0
  %v1061 = vmin.f32 %v905, 0.0
  %v1062 = vmin.f32 %v908, 0.0
  %v1063 = vmin.f32 %v913, 0.0
  %v1064 = vmul.f32 %v991, 1.442695
  %v1065 = vpow.pop %v1064
  %v1066 = vmul.f32 %v992, 1.442695
  %v1067 = vpow.pop %v1066
  %v1068 = vmul.f32 %v993, 1.442695
  %v1069 = vpow.pop %v1068
  %v1070 = vmul.f32 %v994, 1.442695
  %v1071 = vpow.pop %v1070
  %v1072 = vmul.f32 %v995, 1.442695
  %v1073 = vpow.pop %v1072
  %v1074 = vmul.f32 %v996, 1.442695
  %v1075 = vpow.pop %v1074
  %v1076 = vmul.f32 %v997, 1.442695
  %v1077 = vpow.pop %v1076
  %v1078 = vmul.f32 %v998, 1.442695
  %v1079 = vpow.pop %v1078
  %v1080 = vmul.f32 %v999, 1.442695
  %v1081 = vpow.pop %v1080
  %v1082 = vmul.f32 %v1000, 1.442695
  %v1083 = vpow.pop %v1082
  %v1084 = vmul.f32 %v1001, 1.442695
  %v1085 = vpow.pop %v1084
  %v1086 = vmul.f32 %v1002, 1.442695
  %v1087 = vpow.pop %v1086
  %v1088 = vmul.f32 %v1003, 1.442695
  %v1089 = vpow.pop %v1088
  %v1090 = vmul.f32 %v1004, 1.442695
  %v1091 = vpow.pop %v1090
  %v1092 = vmul.f32 %v1005, 1.442695
  %v1093 = vpow.pop %v1092
  %v1094 = vmul.f32 %v1006, 1.442695
  %v1095 = vpow.pop %v1094
  %v1096 = vmul.f32 %v1007, 1.442695
  %v1097 = vpow.pop %v1096
  %v1098 = vmul.f32 %v1008, 1.442695
  %v1099 = vpow.pop %v1098
  %v1100 = vmul.f32 %v1009, 1.442695
  %v1101 = vpow.pop %v1100
  %v1102 = vmul.f32 %v1010, 1.442695
  %v1103 = vpow.pop %v1102
  %v1104 = vmul.f32 %v1011, 1.442695
  %v1105 = vpow.pop %v1104
  %v1106 = vmul.f32 %v1012, 1.442695
  %v1107 = vpow.pop %v1106
  %v1108 = vmul.f32 %v1013, 1.442695
  %v1109 = vpow.pop %v1108
  %v1110 = vmul.f32 %v1014, 1.442695
  %v1111 = vpow.pop %v1110
  %v1112 = vmul.f32 %v1015, 1.442695
  %v1113 = vpow.pop %v1112
  %v1114 = vmul.f32 %v1016, 1.442695
  %v1115 = vpow.pop %v1114
  %v1116 = vmul.f32 %v1017, 1.442695
  %v1117 = vpow.pop %v1116
  %v1118 = vmul.f32 %v1018, 1.442695
  %v1119 = vpow.pop %v1118
  %v1120 = vmul.f32 %v1019, 1.442695
  %v1121 = vpow.pop %v1120
  %v1122 = vmul.f32 %v1020, 1.442695
  %v1123 = vpow.pop %v1122
  %v1124 = vmul.f32 %v1021, 1.442695
  %v1125 = vpow.pop %v1124
  %v1126 = vmul.f32 %v1022, 1.442695
  %v1127 = vpow.pop %v1126
  %v1128 = vmul.f32 %v1023, 1.442695
  %v1129 = vpow.pop %v1128
  %v1130 = vmul.f32 %v1024, 1.442695
  %v1131 = vpow.pop %v1130
  %v1132 = vmul.f32 %v1025, 1.442695
  %v1133 = vpow.pop %v1132
  %v1134 = vmul.f32 %v1026, 1.442695
  %v1135 = vpow.pop %v1134
  %v1136 = vmul.f32 %v1027, 1.442695
  %v1137 = vpow.pop %v1136
  %v1138 = vmul.f32 %v1028, 1.442695
  %v1139 = vpow.pop %v1138
  %v1140 = vmul.f32 %v1029, 1.442695
  %v1141 = vpow.pop %v1140
  %v1142 = vmul.f32 %v1030, 1.442695
  %v1143 = vpow.pop %v1142
  %v1144 = vmul.f32 %v1031, 1.442695
  %v1145 = vpow.pop %v1144
  %v1146 = vmul.f32 %v1032, 1.442695
  %v1147 = vpow.pop %v1146
  %v1148 = vmul.f32 %v1033, 1.442695
  %v1149 = vpow.pop %v1148
  %v1150 = vmul.f32 %v1034, 1.442695
  %v1151 = vpow.pop %v1150
  %v1152 = vmul.f32 %v1035, 1.442695
  %v1153 = vpow.pop %v1152
  %v1154 = vmul.f32 %v1036, 1.442695
  %v1155 = vpow.pop %v1154
  %v1156 = vmul.f32 %v1037, 1.442695
  %v1157 = vpow.pop %v1156
  %v1158 = vmul.f32 %v1038, 1.442695
  %v1159 = vpow.pop %v1158
  %v1160 = vmul.f32 %v1039, 1.442695
  %v1161 = vpow.pop %v1160
  %v1162 = vmul.f32 %v1040, 1.442695
  %v1163 = vpow.pop %v1162
  %v1164 = vmul.f32 %v1041, 1.442695
  %v1165 = vpow.pop %v1164
  %v1166 = vmul.f32 %v1042, 1.442695
  %v1167 = vpow.pop %v1166
  %v1168 = vmul.f32 %v1043, 1.442695
  %v1169 = vpow.pop %v1168
  %v1170 = vmul.f32 %v1044, 1.442695
  %v1171 = vpow.pop %v1170
  %v1172 = vmul.f32 %v1045, 1.442695
  %v1173 = vpow.pop %v1172
  %v1174 = vmul.f32 %v1046, 1.442695
  %v1175 = vpow.pop %v1174
  %v1176 = vmul.f32 %v1047, 1.442695
  %v1177 = vpow.pop %v1176
  %v1178 = vmul.f32 %v1048, 1.442695
  %v1179 = vpow.pop %v1178
  %v1180 = vmul.f32 %v1049, 1.442695
  %v1181 = vpow.pop %v1180
  %v1182 = vmul.f32 %v1050, 1.442695
  %v1183 = vpow.pop %v1182
  %v1184 = vmul.f32 %v1051, 1.442695
  %v1185 = vpow.pop %v1184
  %v1186 = vmul.f32 %v1052, 1.442695
  %v1187 = vpow.pop %v1186
  %v1188 = vmul.f32 %v1053, 1.442695
  %v1189 = vpow.pop %v1188
  %v1190 = vmul.f32 %v1054, 1.442695
  %v1191 = vpow.pop %v1190
  %v1192 = vmul.f32 %v1055, 1.442695
  %v1193 = vpow.pop %v1192
  %v1194 = vmul.f32 %v1056, 1.442695
  %v1195 = vpow.pop %v1194
  %v1196 = vmul.f32 %v1057, 1.442695
  %v1197 = vpow.pop %v1196
  %v1198 = vmul.f32 %v1058, 1.442695
  %v1199 = vpow.pop %v1198
  %v1200 = vmul.f32 %v1059, 1.442695
  %v1201 = vpow.pop %v1200
  %v1202 = vmul.f32 %v1060, 1.442695
  %v1203 = vpow.pop %v1202
  %v1204 = vmul.f32 %v1061, 1.442695
  %v1205 = vpow.pop %v1204
  %v1206 = vmul.f32 %v1062, 1.442695
  %v1207 = vpow.pop %v1206
  %v1208 = vmul.f32 %v1063, 1.442695
  %v1209 = vpow.pop %v1208
  %v1210 = vsub.f32 %v1065, 1.0
  %v1211 = vsub.f32 %v1067, 1.0
  %v1212 = vsub.f32 %v1069, 1.0
  %v1213 = vsub.f32 %v1071, 1.0
  %v1214 = vsub.f32 %v1073, 1.0
  %v1215 = vsub.f32 %v1075, 1.0
  %v1216 = vsub.f32 %v1077, 1.0
  %v1217 = vsub.f32 %v1079, 1.0
  %v1218 = vsub.f32 %v1081, 1.0
  %v1219 = vsub.f32 %v1083, 1.0
  %v1220 = vsub.f32 %v1085, 1.0
  %v1221 = vsub.f32 %v1087, 1.0
  %v1222 = vsub.f32 %v1089, 1.0
  %v1223 = vsub.f32 %v1091, 1.0
  %v1224 = vsub.f32 %v1093, 1.0
  %v1225 = vsub.f32 %v1095, 1.0
  %v1226 = vsub.f32 %v1097, 1.0
  %v1227 = vsub.f32 %v1099, 1.0
  %v1228 = vsub.f32 %v1101, 1.0
  %v1229 = vsub.f32 %v1103, 1.0
  %v1230 = vsub.f32 %v1105, 1.0
  %v1231 = vsub.f32 %v1107, 1.0
  %v1232 = vsub.f32 %v1109, 1.0
  %v1233 = vsub.f32 %v1111, 1.0
  %v1234 = vsub.f32 %v1113, 1.0
  %v1235 = vsub.f32 %v1115, 1.0
  %v1236 = vsub.f32 %v1117, 1.0
  %v1237 = vsub.f32 %v1119, 1.0
  %v1238 = vsub.f32 %v1121, 1.0
  %v1239 = vsub.f32 %v1123, 1.0
  %v1240 = vsub.f32 %v1125, 1.0
  %v1241 = vsub.f32 %v1127, 1.0
  %v1242 = vsub.f32 %v1129, 1.0
  %v1243 = vsub.f32 %v1131, 1.0
  %v1244 = vsub.f32 %v1133, 1.0
  %v1245 = vsub.f32 %v1135, 1.0
  %v1246 = vsub.f32 %v1137, 1.0
  %v1247 = vsub.f32 %v1139, 1.0
  %v1248 = vsub.f32 %v1141, 1.0
  %v1249 = vsub.f32 %v1143, 1.0
  %v1250 = vsub.f32 %v1145, 1.0
  %v1251 = vsub.f32 %v1147, 1.0
  %v1252 = vsub.f32 %v1149, 1.0
  %v1253 = vsub.f32 %v1151, 1.0
  %v1254 = vsub.f32 %v1153, 1.0
  %v1255 = vsub.f32 %v1155, 1.0
  %v1256 = vsub.f32 %v1157, 1.0
  %v1257 = vsub.f32 %v1159, 1.0
  %v1258 = vsub.f32 %v1161, 1.0
  %v1259 = vsub.f32 %v1163, 1.0
  %v1260 = vsub.f32 %v1165, 1.0
  %v1261 = vsub.f32 %v1167, 1.0
  %v1262 = vsub.f32 %v1169, 1.0
  %v1263 = vsub.f32 %v1171, 1.0
  %v1264 = vsub.f32 %v1173, 1.0
  %v1265 = vsub.f32 %v1175, 1.0
  %v1266 = vsub.f32 %v1177, 1.0
  %v1267 = vsub.f32 %v1179, 1.0
  %v1268 = vsub.f32 %v1181, 1.0
  %v1269 = vsub.f32 %v1183, 1.0
  %v1270 = vsub.f32 %v1185, 1.0
  %v1271 = vsub.f32 %v1187, 1.0
  %v1272 = vsub.f32 %v1189, 1.0
  %v1273 = vsub.f32 %v1191, 1.0
  %v1274 = vsub.f32 %v1193, 1.0
  %v1275 = vsub.f32 %v1195, 1.0
  %v1276 = vsub.f32 %v1197, 1.0
  %v1277 = vsub.f32 %v1199, 1.0
  %v1278 = vsub.f32 %v1201, 1.0
  %v1279 = vsub.f32 %v1203, 1.0
  %v1280 = vsub.f32 %v1205, 1.0
  %v1281 = vsub.f32 %v1207, 1.0
  %v1282 = vsub.f32 %v1209, 1.0
  %v1283 = vsel %vm918, %v625, %v1210
  %v1284 = vsel %vm919, %v628, %v1211
  %v1285 = vsel %vm920, %v633, %v1212
  %v1286 = vsel %vm921, %v636, %v1213
  %v1287 = vsel %vm922, %v641, %v1214
  %v1288 = vsel %vm923, %v644, %v1215
  %v1289 = vsel %vm924, %v649, %v1216
  %v1290 = vsel %vm925, %v652, %v1217
  %v1291 = vsel %vm926, %v657, %v1218
  %v1292 = vsel %vm927, %v660, %v1219
  %v1293 = vsel %vm928, %v665, %v1220
  %v1294 = vsel %vm929, %v668, %v1221
  %v1295 = vsel %vm930, %v673, %v1222
  %v1296 = vsel %vm931, %v676, %v1223
  %v1297 = vsel %vm932, %v681, %v1224
  %v1298 = vsel %vm933, %v684, %v1225
  %v1299 = vsel %vm934, %v689, %v1226
  %v1300 = vsel %vm935, %v692, %v1227
  %v1301 = vsel %vm936, %v697, %v1228
  %v1302 = vsel %vm937, %v700, %v1229
  %v1303 = vsel %vm938, %v705, %v1230
  %v1304 = vsel %vm939, %v708, %v1231
  %v1305 = vsel %vm940, %v713, %v1232
  %v1306 = vsel %vm941, %v716, %v1233
  %v1307 = vsel %vm942, %v721, %v1234
  %v1308 = vsel %vm943, %v724, %v1235
  %v1309 = vsel %vm944, %v729, %v1236
  %v1310 = vsel %vm945, %v732, %v1237
  %v1311 = vsel %vm946, %v737, %v1238
  %v1312 = vsel %vm947, %v740, %v1239
  %v1313 = vsel %vm948, %v745, %v1240
  %v1314 = vsel %vm949, %v748, %v1241
  %v1315 = vsel %vm950, %v753, %v1242
  %v1316 = vsel %vm951, %v756, %v1243
  %v1317 = vsel %vm952, %v761, %v1244
  %v1318 = vsel %vm953, %v764, %v1245
  %v1319 = vsel %vm954, %v769, %v1246
  %v1320 = vsel %vm955, %v772, %v1247
  %v1321 = vsel %vm956, %v777, %v1248
  %v1322 = vsel %vm957, %v780, %v1249
  %v1323 = vsel %vm958, %v785, %v1250
  %v1324 = vsel %vm959, %v788, %v1251
  %v1325 = vsel %vm960, %v793, %v1252
  %v1326 = vsel %vm961, %v796, %v1253
  %v1327 = vsel %vm962, %v801, %v1254
  %v1328 = vsel %vm963, %v804, %v1255
  %v1329 = vsel %vm964, %v809, %v1256
  %v1330 = vsel %vm965, %v812, %v1257
  %v1331 = vsel %vm966, %v817, %v1258
  %v1332 = vsel %vm967, %v820, %v1259
  %v1333 = vsel %vm968, %v825, %v1260
  %v1334 = vsel %vm969, %v828, %v1261
  %v1335 = vsel %vm970, %v833, %v1262
  %v1336 = vsel %vm971, %v836, %v1263
  %v1337 = vsel %vm972, %v841, %v1264
  %v1338 = vsel %vm973, %v844, %v1265
  %v1339 = vsel %vm974, %v849, %v1266
  %v1340 = vsel %vm975, %v852, %v1267
  %v1341 = vsel %vm976, %v857, %v1268
  %v1342 = vsel %vm977, %v860, %v1269
  %v1343 = vsel %vm978, %v865, %v1270
  %v1344 = vsel %vm979, %v868, %v1271
  %v1345 = vsel %vm980, %v873, %v1272
  %v1346 = vsel %vm981, %v876, %v1273
  %v1347 = vsel %vm982, %v881, %v1274
  %v1348 = vsel %vm983, %v884, %v1275
  %v1349 = vsel %vm984, %v889, %v1276
  %v1350 = vsel %vm985, %v892, %v1277
  %v1351 = vsel %vm986, %v897, %v1278
  %v1352 = vsel %vm987, %v900, %v1279
  %v1353 = vsel %vm988, %v905, %v1280
  %v1354 = vsel %vm989, %v908, %v1281
  %v1355 = vsel %vm990, %v913, %v1282
  %1356 = vst [vmem:[%s3] sm:$0xff] %v1283
  %1357 = vst [vmem:[%s3 + $0x8] sm:$0xff] %v1284
  %1358 = vst [vmem:[%s3 + $0x10] sm:$0xff] %v1285
  %1359 = vst [vmem:[%s3 + $0x18] sm:$0xff] %v1286
  %1360 = vst [vmem:[%s3 + $0x20] sm:$0xff] %v1287
  %1361 = vst [vmem:[%s3 + $0x28] sm:$0xff] %v1288
  %1362 = vst [vmem:[%s3 + $0x30] sm:$0xff] %v1289
  %1363 = vst [vmem:[%s3 + $0x38] sm:$0xff] %v1290
  %1364 = vst [vmem:[%s3 + $0x40] sm:$0xff] %v1291
  %1365 = vst [vmem:[%s3 + $0x48] sm:$0xff] %v1292
  %1366 = vst [vmem:[%s3 + $0x50] sm:$0xff] %v1293
  %1367 = vst [vmem:[%s3 + $0x58] sm:$0xff] %v1294
  %1368 = vst [vmem:[%s3 + $0x60] sm:$0xff] %v1295
  %1369 = vst [vmem:[%s3 + $0x68] sm:$0xff] %v1296
  %1370 = vst [vmem:[%s3 + $0x70] sm:$0xff] %v1297
  %1371 = vst [vmem:[%s3 + $0x78] sm:$0xff] %v1298
  %1372 = vst [vmem:[%s3 + $0x80] sm:$0xff] %v1299
  %1373 = vst [vmem:[%s3 + $0x88] sm:$0xff] %v1300
  %1374 = vst [vmem:[%s3 + $0x90] sm:$0xff] %v1301
  %1375 = vst [vmem:[%s3 + $0x98] sm:$0xff] %v1302
  %1376 = vst [vmem:[%s3 + $0xa0] sm:$0xff] %v1303
  %1377 = vst [vmem:[%s3 + $0xa8] sm:$0xff] %v1304
  %1378 = vst [vmem:[%s3 + $0xb0] sm:$0xff] %v1305
  %1379 = vst [vmem:[%s3 + $0xb8] sm:$0xff] %v1306
  %1380 = vst [vmem:[%s3 + $0xc0] sm:$0xff] %v1307
  %1381 = vst [vmem:[%s3 + $0xc8] sm:$0xff] %v1308
  %1382 = vst [vmem:[%s3 + $0xd0] sm:$0xff] %v1309
  %1383 = vst [vmem:[%s3 + $0xd8] sm:$0xff] %v1310
  %1384 = vst [vmem:[%s3 + $0xe0] sm:$0xff] %v1311
  %1385 = vst [vmem:[%s3 + $0xe8] sm:$0xff] %v1312
  %1386 = vst [vmem:[%s3 + $0xf0] sm:$0xff] %v1313
  %1387 = vst [vmem:[%s3 + $0xf8] sm:$0xff] %v1314
  %1388 = vst [vmem:[%s3 + $0x100] sm:$0xff] %v1315
  %1389 = vst [vmem:[%s3 + $0x108] sm:$0xff] %v1316
  %1390 = vst [vmem:[%s3 + $0x110] sm:$0xff] %v1317
  %1391 = vst [vmem:[%s3 + $0x118] sm:$0xff] %v1318
  %1392 = vst [vmem:[%s3 + $0x120] sm:$0xff] %v1319
  %1393 = vst [vmem:[%s3 + $0x128] sm:$0xff] %v1320
  %1394 = vst [vmem:[%s3 + $0x130] sm:$0xff] %v1321
  %1395 = vst [vmem:[%s3 + $0x138] sm:$0xff] %v1322
  %1396 = vst [vmem:[%s3 + $0x140] sm:$0xff] %v1323
  %1397 = vst [vmem:[%s3 + $0x148] sm:$0xff] %v1324
  %1398 = vst [vmem:[%s3 + $0x150] sm:$0xff] %v1325
  %1399 = vst [vmem:[%s3 + $0x158] sm:$0xff] %v1326
  %1400 = vst [vmem:[%s3 + $0x160] sm:$0xff] %v1327
  %1401 = vst [vmem:[%s3 + $0x168] sm:$0xff] %v1328
  %1402 = vst [vmem:[%s3 + $0x170] sm:$0xff] %v1329
  %1403 = vst [vmem:[%s3 + $0x178] sm:$0xff] %v1330
  %1404 = vst [vmem:[%s3 + $0x180] sm:$0xff] %v1331
  %1405 = vst [vmem:[%s3 + $0x188] sm:$0xff] %v1332
  %1406 = vst [vmem:[%s3 + $0x190] sm:$0xff] %v1333
  %1407 = vst [vmem:[%s3 + $0x198] sm:$0xff] %v1334
  %1408 = vst [vmem:[%s3 + $0x1a0] sm:$0xff] %v1335
  %1409 = vst [vmem:[%s3 + $0x1a8] sm:$0xff] %v1336
  %1410 = vst [vmem:[%s3 + $0x1b0] sm:$0xff] %v1337
  %1411 = vst [vmem:[%s3 + $0x1b8] sm:$0xff] %v1338
  %1412 = vst [vmem:[%s3 + $0x1c0] sm:$0xff] %v1339
  %1413 = vst [vmem:[%s3 + $0x1c8] sm:$0xff] %v1340
  %1414 = vst [vmem:[%s3 + $0x1d0] sm:$0xff] %v1341
  %1415 = vst [vmem:[%s3 + $0x1d8] sm:$0xff] %v1342
  %1416 = vst [vmem:[%s3 + $0x1e0] sm:$0xff] %v1343
  %1417 = vst [vmem:[%s3 + $0x1e8] sm:$0xff] %v1344
  %1418 = vst [vmem:[%s3 + $0x1f0] sm:$0xff] %v1345
  %1419 = vst [vmem:[%s3 + $0x1f8] sm:$0xff] %v1346
  %1420 = vst [vmem:[%s3 + $0x200] sm:$0xff] %v1347
  %1421 = vst [vmem:[%s3 + $0x208] sm:$0xff] %v1348
  %1422 = vst [vmem:[%s3 + $0x210] sm:$0xff] %v1349
  %1423 = vst [vmem:[%s3 + $0x218] sm:$0xff] %v1350
  %1424 = vst [vmem:[%s3 + $0x220] sm:$0xff] %v1351
  %1425 = vst [vmem:[%s3 + $0x228] sm:$0xff] %v1352
  %1426 = vst [vmem:[%s3 + $0x230] sm:$0xff] %v1353
  %1427 = vst [vmem:[%s3 + $0x238] sm:$0xff] %v1354
  %1428 = vst [vmem:[%s3 + $0x240] sm:$0x3] %v1355
  // Predicated region
  $region14: #{pctnet_forward.17} parent=0 // pred_check
    _
  $region15: #{pctnet_forward.17} parent=0 // pred_check_branch
    %1430 = sbr.rel (0) target = $region17
  $region16: #{pctnet_forward.17} parent=0 // pred_region
    _
  $region17: #{pctnet_forward.17} parent=0 // pred_fallthru
    _
  // Predicated region
  $region18: #{pctnet_forward.17} parent=0 // pred_check
    _
  $region19: #{pctnet_forward.17} parent=0 // pred_check_branch
    %1432 = sbr.rel (0) target = $region21
  $region20: #{pctnet_forward.17} parent=0 // pred_region
    _
  $region21: #{pctnet_forward.17} parent=0 // pred_fallthru
    _

// kernel: pctnet_forward.18
$region0: #{pctnet_forward.18}
  #allocation0 [shape = 'u32[]', space=smem, size = 0x4, offset = 0x4, fixed_abs, tag = 'smem constant byte address 0x4 - core index']
  #allocation1 [shape = 'u32[144,128]{1,0:T(1,128)}', space=vmem, size = 0x12000, scoped, tag = 'internal scratch']
  %s0 = inlined_call_operand.vmem [shape: f32[2,32,1024], index: 0, kind: input, shape index: {}]
  %s1 = inlined_call_operand.vmem [shape: f32[2,3,1024], index: 1, kind: input, shape index: {}]
  %s2 = inlined_call_operand.vmem [shape: f32[13,32], index: 2, kind: input, shape index: {}]
  %s3 = inlined_call_operand.vmem [shape: f32[13,1], index: 3, kind: input, shape index: {}]
  %s4 = inlined_call_operand.vmem [shape: f32[2,3,1024], index: 4, kind: output, shape index: {0}]
  %s5 = inlined_call_operand.vmem [shape: f32[2,12,1024], index: 5, kind: output, shape index: {1}]
  %s6 = inlined_call_operand.vmem [shape: f32[2,1,1024], index: 6, kind: output, shape index: {2}]
  %7 = xla_tuple %s4, %s5, %s6
  %s8 = sld [smem:[#allocation0]]
  $region65: #{pctnet_forward.18} parent=0
    _
  %s10 = ssub.s32 1, %s8
  %s11 = scalar_select 0, %s10, %s8
  loop: start=0, step=1, limit=4
  $region2: #{pctnet_forward.18} parent=0 // loop_pre_header
    _
  $region3: #{pctnet_forward.18} parent=0 // loop_header
    %s13 = sphi 0, %s17
    %p14 = scmp.ge.s32.totalorder %s13, 4
    %s20 = sphi 0, %s32
    %s21 = sphi 0, %s28
    %s22 = sphi 0, %s20
    %s23 = sphi 0, %s21
    %s24 = sphi 0, %s22
    %s25 = sphi 0, %s23
    %s37 = sphi 0, %s39
    %s40 = sphi 0, %s37
    %s41 = sphi 0, %s40
    %s57 = sphi 0, %s41
    %s65 = sphi 0, %s67
    %s68 = sphi 0, %s65
    %s69 = sphi 0, %s68
    %s85 = sphi 0, %s69
    %s89 = sphi 0, %s89
    %s91 = sphi 0, %s89
    %s92 = sphi 0, %s91
    %s106 = sphi 0, %s92
    %s110 = sphi 0, %s110
    %s112 = sphi 0, %s110
    %s113 = sphi 0, %s112
    %s127 = sphi 0, %s113
    %s135 = sphi 0, %s137
    %s138 = sphi 0, %s135
    %s139 = sphi 0, %s138
    %s155 = sphi 0, %s139
    %s163 = sphi 0, %s165
    %s166 = sphi 0, %s163
    %s167 = sphi 0, %s166
    %s183 = sphi 0, %s167
    %s191 = sphi 0, %s193
    %s194 = sphi 0, %s191
    %s195 = sphi 0, %s194
    %s211 = sphi 0, %s195
  $region4: #{pctnet_forward.18} parent=0 // loop_header_branch
    %16 = sbr.rel (%p14) target = $region8
  $region5: #{pctnet_forward.18} parent=0 // loop_body
    %s18 = ssub.s32 %s13, 1
    %s19 = ssub.s32 %s13, 2
    %s26 = sadd.s32 1, %s21
    %p27 = scmp.ge.s32.totalorder %s26, 1
    %s28 = scalar_select %p27, 0, %s26
    %s29 = sadd.s32 1, %s20
    %s30 = scalar_select %p27, %s29, %s20
    %p31 = scmp.ge.s32.totalorder %s30, 2
    %s32 = scalar_select %p31, 0, %s30
    %s33 = ssub.s32 %s20, %s32
    %s34 = ssub.s32 %s21, %s28
    %s35 = sor.u32 %s33, %s34
    %p36 = scmp.eq.s32.totalorder %s35, 0
    %s38 = sadd.s32 %s37, 1
    %s39 = scalar_select %p36, %s37, %s38
    %p42 = pneg %p36
    %p43 = scmp.eq.s32.totalorder %s13, 1
    %p44 = por %p42, %p43
    %p45 = scmp.ne.s32.totalorder %s37, %s40
    %p46 = scmp.eq.s32.totalorder %s13, 0
    %p47 = por %p45, %p46
    %p48 = scmp.ne.s32.totalorder %s37, %s40
    %p49 = scmp.eq.s32.totalorder %s18, 1
    %p50 = por %p48, %p49
    %p51 = scmp.ne.s32.totalorder %s40, %s41
    %p52 = scmp.eq.s32.totalorder %s18, 0
    %p53 = por %p51, %p52
    %p54 = scmp.ne.s32.totalorder %s40, %s41
    %p55 = scmp.eq.s32.totalorder %s19, 1
    %p56 = por %p54, %p55
    %p58 = scmp.ne.s32.totalorder %s41, %s57
    %p59 = scmp.eq.s32.totalorder %s19, 0
    %p60 = por %p58, %p59
    %s61 = ssub.s32 %s20, %s32
    %s62 = ssub.s32 %s21, %s28
    %s63 = sor.u32 %s61, %s62
    %p64 = scmp.eq.s32.totalorder %s63, 0
    %s66 = sadd.s32 %s65, 1
    %s67 = scalar_select %p64, %s65, %s66
    %p70 = pneg %p64
    %p71 = scmp.eq.s32.totalorder %s13, 1
    %p72 = por %p70, %p71
    %p73 = scmp.ne.s32.totalorder %s65, %s68
    %p74 = scmp.eq.s32.totalorder %s13, 0
    %p75 = por %p73, %p74
    %p76 = scmp.ne.s32.totalorder %s65, %s68
    %p77 = scmp.eq.s32.totalorder %s18, 1
    %p78 = por %p76, %p77
    %p79 = scmp.ne.s32.totalorder %s68, %s69
    %p80 = scmp.eq.s32.totalorder %s18, 0
    %p81 = por %p79, %p80
    %p82 = scmp.ne.s32.totalorder %s68, %s69
    %p83 = scmp.eq.s32.totalorder %s19, 1
    %p84 = por %p82, %p83
    %p86 = scmp.ne.s32.totalorder %s69, %s85
    %p87 = scmp.eq.s32.totalorder %s19, 0
    %p88 = por %p86, %p87
    %s90 = sadd.s32 %s89, 1
    %p93 = scmp.eq.s32.totalorder %s13, 1
    %p94 = scmp.ne.s32.totalorder %s89, %s91
    %p95 = scmp.eq.s32.totalorder %s13, 0
    %p96 = por %p94, %p95
    %p97 = scmp.ne.s32.totalorder %s89, %s91
    %p98 = scmp.eq.s32.totalorder %s18, 1
    %p99 = por %p97, %p98
    %p100 = scmp.ne.s32.totalorder %s91, %s92
    %p101 = scmp.eq.s32.totalorder %s18, 0
    %p102 = por %p100, %p101
    %p103 = scmp.ne.s32.totalorder %s91, %s92
    %p104 = scmp.eq.s32.totalorder %s19, 1
    %p105 = por %p103, %p104
    %p107 = scmp.ne.s32.totalorder %s92, %s106
    %p108 = scmp.eq.s32.totalorder %s19, 0
    %p109 = por %p107, %p108
    %s111 = sadd.s32 %s110, 1
    %p114 = scmp.eq.s32.totalorder %s13, 1
    %p115 = scmp.ne.s32.totalorder %s110, %s112
    %p116 = scmp.eq.s32.totalorder %s13, 0
    %p117 = por %p115, %p116
    %p118 = scmp.ne.s32.totalorder %s110, %s112
    %p119 = scmp.eq.s32.totalorder %s18, 1
    %p120 = por %p118, %p119
    %p121 = scmp.ne.s32.totalorder %s112, %s113
    %p122 = scmp.eq.s32.totalorder %s18, 0
    %p123 = por %p121, %p122
    %p124 = scmp.ne.s32.totalorder %s112, %s113
    %p125 = scmp.eq.s32.totalorder %s19, 1
    %p126 = por %p124, %p125
    %p128 = scmp.ne.s32.totalorder %s113, %s127
    %p129 = scmp.eq.s32.totalorder %s19, 0
    %p130 = por %p128, %p129
    %s131 = ssub.s32 %s20, %s32
    %s132 = ssub.s32 %s21, %s28
    %s133 = sor.u32 %s131, %s132
    %p134 = scmp.eq.s32.totalorder %s133, 0
    %s136 = sadd.s32 %s135, 1
    %s137 = scalar_select %p134, %s135, %s136
    %p140 = pneg %p134
    %p141 = scmp.eq.s32.totalorder %s13, 1
    %p142 = por %p140, %p141
    %p143 = scmp.ne.s32.totalorder %s135, %s138
    %p144 = scmp.eq.s32.totalorder %s13, 0
    %p145 = por %p143, %p144
    %p146 = scmp.ne.s32.totalorder %s135, %s138
    %p147 = scmp.eq.s32.totalorder %s18, 1
    %p148 = por %p146, %p147
    %p149 = scmp.ne.s32.totalorder %s138, %s139
    %p150 = scmp.eq.s32.totalorder %s18, 0
    %p151 = por %p149, %p150
    %p152 = scmp.ne.s32.totalorder %s138, %s139
    %p153 = scmp.eq.s32.totalorder %s19, 1
    %p154 = por %p152, %p153
    %p156 = scmp.ne.s32.totalorder %s139, %s155
    %p157 = scmp.eq.s32.totalorder %s19, 0
    %p158 = por %p156, %p157
    %s159 = ssub.s32 %s20, %s32
    %s160 = ssub.s32 %s21, %s28
    %s161 = sor.u32 %s159, %s160
    %p162 = scmp.eq.s32.totalorder %s161, 0
    %s164 = sadd.s32 %s163, 1
    %s165 = scalar_select %p162, %s163, %s164
    %p168 = pneg %p162
    %p169 = scmp.eq.s32.totalorder %s13, 1
    %p170 = por %p168, %p169
    %p171 = scmp.ne.s32.totalorder %s163, %s166
    %p172 = scmp.eq.s32.totalorder %s13, 0
    %p173 = por %p171, %p172
    %p174 = scmp.ne.s32.totalorder %s163, %s166
    %p175 = scmp.eq.s32.totalorder %s18, 1
    %p176 = por %p174, %p175
    %p177 = scmp.ne.s32.totalorder %s166, %s167
    %p178 = scmp.eq.s32.totalorder %s18, 0
    %p179 = por %p177, %p178
    %p180 = scmp.ne.s32.totalorder %s166, %s167
    %p181 = scmp.eq.s32.totalorder %s19, 1
    %p182 = por %p180, %p181
    %p184 = scmp.ne.s32.totalorder %s167, %s183
    %p185 = scmp.eq.s32.totalorder %s19, 0
    %p186 = por %p184, %p185
    %s187 = ssub.s32 %s20, %s32
    %s188 = ssub.s32 %s21, %s28
    %s189 = sor.u32 %s187, %s188
    %p190 = scmp.eq.s32.totalorder %s189, 0
    %s192 = sadd.s32 %s191, 1
    %s193 = scalar_select %p190, %s191, %s192
    %p196 = pneg %p190
    %p197 = scmp.eq.s32.totalorder %s13, 1
    %p198 = por %p196, %p197
    %p199 = scmp.ne.s32.totalorder %s191, %s194
    %p200 = scmp.eq.s32.totalorder %s13, 0
    %p201 = por %p199, %p200
    %p202 = scmp.ne.s32.totalorder %s191, %s194
    %p203 = scmp.eq.s32.totalorder %s18, 1
    %p204 = por %p202, %p203
    %p205 = scmp.ne.s32.totalorder %s194, %s195
    %p206 = scmp.eq.s32.totalorder %s18, 0
    %p207 = por %p205, %p206
    %p208 = scmp.ne.s32.totalorder %s194, %s195
    %p209 = scmp.eq.s32.totalorder %s19, 1
    %p210 = por %p208, %p209
    %p212 = scmp.ne.s32.totalorder %s195, %s211
    %p213 = scmp.eq.s32.totalorder %s19, 0
    %p214 = por %p212, %p213
    %p215 = scmp.le.s32.totalorder 1, %s13
    %p216 = scmp.lt.s32.totalorder %s13, 3
    %p217 = pnand %p215, %p216
    %p218 = pneg %p217
    // Predicated region
    $region9: #{pctnet_forward.18} parent=5 // pred_check
      _
    $region10: #{pctnet_forward.18} parent=5 // pred_check_branch
      %220 = sbr.rel (%p217) target = $region12
    $region11: #{pctnet_forward.18} parent=5 // pred_region
      %s221 = ssub.s32 %s13, 1
      // Predicated region
      $region13: #{pctnet_forward.18} parent=11 // pred_check
        %p222 = pneg %p102
      $region14: #{pctnet_forward.18} parent=11 // pred_check_branch
        %224 = sbr.rel (%p222) target = $region16
      $region15: #{pctnet_forward.18} parent=11 // pred_region
        _
      $region16: #{pctnet_forward.18} parent=11 // pred_fallthru
        _
      // Predicated region
      $region17: #{pctnet_forward.18} parent=11 // pred_check
        %p225 = pneg %p123
      $region18: #{pctnet_forward.18} parent=11 // pred_check_branch
        %227 = sbr.rel (%p225) target = $region20
      $region19: #{pctnet_forward.18} parent=11 // pred_region
        _
      $region20: #{pctnet_forward.18} parent=11 // pred_fallthru
        _
    $region12: #{pctnet_forward.18} parent=5 // pred_fallthru
      _
    %p228 = scmp.lt.s32.totalorder %s13, 2
    // Predicated region
    $region21: #{pctnet_forward.18} parent=5 // pred_check
      %p229 = pneg %p228
    $region22: #{pctnet_forward.18} parent=5 // pred_check_branch
      %231 = sbr.rel (%p229) target = $region24
    $region23: #{pctnet_forward.18} parent=5 // pred_region
      // Predicated region
      $region25: #{pctnet_forward.18} parent=23 // pred_check
        %p232 = pneg %p47
      $region26: #{pctnet_forward.18} parent=23 // pred_check_branch
        %234 = sbr.rel (%p232) target = $region28
      $region27: #{pctnet_forward.18} parent=23 // pred_region
        %s235 = smul.u32 8, %s21
        %p236 = scmp.lt.s32.totalorder %s20, 1
        %s237 = scalar_select %p236, %s20, 1
        %p238 = scmp.lt.s32.totalorder %s235, 7
        %s239 = scalar_select %p238, %s235, 7
        %s240 = smul.addr %s237, 32
        %s241 = sadd.s32 %s239, %s240
        %s242 = smul.addr %s241, 8
        %s243 = scalar_lea.vmem %s0, %s242
        %s244 = smul.u32 8, %s21
      $region28: #{pctnet_forward.18} parent=23 // pred_fallthru
        _
      // Predicated region
      $region29: #{pctnet_forward.18} parent=23 // pred_check
        %p245 = pneg %p75
      $region30: #{pctnet_forward.18} parent=23 // pred_check_branch
        %247 = sbr.rel (%p245) target = $region32
      $region31: #{pctnet_forward.18} parent=23 // pred_region
        %s248 = smul.u32 8, %s21
        %p249 = scmp.lt.s32.totalorder %s20, 1
        %s250 = scalar_select %p249, %s20, 1
        %p251 = scmp.lt.s32.totalorder %s248, 7
        %s252 = scalar_select %p251, %s248, 7
        %s253 = smul.addr %s250, 8
        %s254 = sadd.s32 %s252, %s253
        %s255 = smul.addr %s254, 4
        %s256 = scalar_lea.vmem %s1, %s255
        %s257 = smul.u32 8, %s21
      $region32: #{pctnet_forward.18} parent=23 // pred_fallthru
        _
    $region24: #{pctnet_forward.18} parent=5 // pred_fallthru
      _
    %p258 = scmp.le.s32.totalorder 1, %s13
    %p259 = scmp.lt.s32.totalorder %s13, 3
    %p260 = pnand %p258, %p259
    %p261 = pneg %p260
    // Predicated region
    $region33: #{pctnet_forward.18} parent=5 // pred_check
      _
    $region34: #{pctnet_forward.18} parent=5 // pred_check_branch
      %263 = sbr.rel (%p260) target = $region36
    $region35: #{pctnet_forward.18} parent=5 // pred_region
      %s264 = ssub.s32 %s13, 1
      %s265 = smul.u32 8, %s23
      %p266 = scmp.lt.s32.totalorder %s22, 1
      %s267 = scalar_select %p266, %s22, 1
      %p268 = scmp.lt.s32.totalorder %s265, 7
      %s269 = scalar_select %p268, %s265, 7
      %s270 = smul.addr %s267, 32
      %s271 = sadd.s32 %s269, %s270
      %s272 = smul.addr %s271, 8
      %s273 = scalar_lea.vmem %s0, %s272
      %p274 = pneg %p53
      %p275 = pneg %p50
      %s276 = smul.u32 8, %s23
      %p277 = scmp.lt.s32.totalorder %s22, 1
      %s278 = scalar_select %p277, %s22, 1
      %p279 = scmp.lt.s32.totalorder %s276, 7
      %s280 = scalar_select %p279, %s276, 7
      %s281 = smul.addr %s278, 8
      %s282 = sadd.s32 %s280, %s281
      %s283 = smul.addr %s282, 4
      %s284 = scalar_lea.vmem %s1, %s283
      %p285 = pneg %p81
      %p286 = pneg %p78
      %p287 = pneg %p102
      %p288 = pneg %p99
      %p289 = pneg %p123
      %p290 = pneg %p120
      %p291 = pneg %p151
      %p292 = pneg %p148
      %s293 = smul.u32 8, %s23
      %p294 = scmp.lt.s32.totalorder %s22, 1
      %s295 = scalar_select %p294, %s22, 1
      %p296 = scmp.lt.s32.totalorder %s293, 7
      %s297 = scalar_select %p296, %s293, 7
      %s298 = smul.addr %s295, 8
      %s299 = sadd.s32 %s297, %s298
      %s300 = smul.addr %s299, 4
      %s301 = scalar_lea.vmem %s4, %s300
      %p302 = pneg %p179
      %p303 = pneg %p176
      %s304 = smul.u32 8, %s23
      %p305 = scmp.lt.s32.totalorder %s22, 1
      %s306 = scalar_select %p305, %s22, 1
      %p307 = scmp.lt.s32.totalorder %s304, 7
      %s308 = scalar_select %p307, %s304, 7
      %s309 = smul.addr %s306, 16
      %s310 = sadd.s32 %s308, %s309
      %s311 = smul.addr %s310, 8
      %s312 = scalar_lea.vmem %s5, %s311
      %p313 = pneg %p207
      %p314 = pneg %p204
      %s315 = smul.u32 8, %s23
      %p316 = scmp.lt.s32.totalorder %s22, 1
      %s317 = scalar_select %p316, %s22, 1
      %p318 = scmp.lt.s32.totalorder %s315, 7
      %s319 = scalar_select %p318, %s315, 7
      %s320 = smul.addr %s317, 8
      %s321 = sadd.s32 %s319, %s320
      %s322 = scalar_lea.vmem %s6, %s321
      %s323 = smul.u32 8, %s23
      %p324 = scmp.lt.s32.totalorder %s22, 1
      %s325 = scalar_select %p324, %s22, 1
      %p326 = scmp.lt.s32.totalorder %s323, 7
      %s327 = scalar_select %p326, %s323, 7
      %s328 = smul.addr %s325, 32
      %s329 = sadd.s32 %s327, %s328
      %s330 = smul.addr %s329, 8
      %s331 = scalar_lea.vmem %s0, %s330
      %s332 = smul.u32 8, %s23
      %s333 = smul.u32 8, %s23
      %p334 = scmp.lt.s32.totalorder %s22, 1
      %s335 = scalar_select %p334, %s22, 1
      %p336 = scmp.lt.s32.totalorder %s333, 7
      %s337 = scalar_select %p336, %s333, 7
      %s338 = smul.addr %s335, 8
      %s339 = sadd.s32 %s337, %s338
      %s340 = smul.addr %s339, 4
      %s341 = scalar_lea.vmem %s1, %s340
      %s342 = smul.u32 8, %s23
      %s343 = smul.u32 8, %s23
      %p344 = scmp.lt.s32.totalorder %s22, 1
      %s345 = scalar_select %p344, %s22, 1
      %p346 = scmp.lt.s32.totalorder %s343, 7
      %s347 = scalar_select %p346, %s343, 7
      %s348 = smul.addr %s345, 8
      %s349 = sadd.s32 %s347, %s348
      %s350 = smul.addr %s349, 4
      %s351 = scalar_lea.vmem %s4, %s350
      %s352 = smul.u32 8, %s23
      %s353 = smul.u32 8, %s23
      %p354 = scmp.lt.s32.totalorder %s22, 1
      %s355 = scalar_select %p354, %s22, 1
      %p356 = scmp.lt.s32.totalorder %s353, 7
      %s357 = scalar_select %p356, %s353, 7
      %s358 = smul.addr %s355, 16
      %s359 = sadd.s32 %s357, %s358
      %s360 = smul.addr %s359, 8
      %s361 = scalar_lea.vmem %s5, %s360
      %s362 = smul.u32 8, %s23
      %s363 = smul.u32 8, %s23
      %p364 = scmp.lt.s32.totalorder %s22, 1
      %s365 = scalar_select %p364, %s22, 1
      %p366 = scmp.lt.s32.totalorder %s363, 7
      %s367 = scalar_select %p366, %s363, 7
      %s368 = smul.addr %s365, 8
      %s369 = sadd.s32 %s367, %s368
      %s370 = scalar_lea.vmem %s6, %s369
      %s371 = smul.u32 8, %s23
      %v372 = vld [vmem:[%s331] sm:$0xff]
      %v373 = vld [vmem:[%s331 + $0x8] sm:$0xff]
      %v374 = vld [vmem:[%s331 + $0x10] sm:$0xff]
      %v375 = vld [vmem:[%s331 + $0x18] sm:$0xff]
      %v376 = vld [vmem:[%s331 + $0x20] sm:$0xff]
      %v377 = vld [vmem:[%s331 + $0x28] sm:$0xff]
      %v378 = vld [vmem:[%s331 + $0x30] sm:$0xff]
      %v379 = vld [vmem:[%s331 + $0x38] sm:$0xff]
      %v380 = vld [vmem:[%s331 + $0x40] sm:$0xff]
      %v381 = vld [vmem:[%s331 + $0x48] sm:$0xff]
      %v382 = vld [vmem:[%s331 + $0x50] sm:$0xff]
      %v383 = vld [vmem:[%s331 + $0x58] sm:$0xff]
      %v384 = vld [vmem:[%s331 + $0x60] sm:$0xff]
      %v385 = vld [vmem:[%s331 + $0x68] sm:$0xff]
      %v386 = vld [vmem:[%s331 + $0x70] sm:$0xff]
      %v387 = vld [vmem:[%s331 + $0x78] sm:$0xff]
      %v388 = vld [vmem:[%s331 + $0x80] sm:$0xff]
      %v389 = vld [vmem:[%s331 + $0x88] sm:$0xff]
      %v390 = vld [vmem:[%s331 + $0x90] sm:$0xff]
      %v391 = vld [vmem:[%s331 + $0x98] sm:$0xff]
      %v392 = vld [vmem:[%s331 + $0xa0] sm:$0xff]
      %v393 = vld [vmem:[%s331 + $0xa8] sm:$0xff]
      %v394 = vld [vmem:[%s331 + $0xb0] sm:$0xff]
      %v395 = vld [vmem:[%s331 + $0xb8] sm:$0xff]
      %v396 = vld [vmem:[%s331 + $0xc0] sm:$0xff]
      %v397 = vld [vmem:[%s331 + $0xc8] sm:$0xff]
      %v398 = vld [vmem:[%s331 + $0xd0] sm:$0xff]
      %v399 = vld [vmem:[%s331 + $0xd8] sm:$0xff]
      %v400 = vld [vmem:[%s331 + $0xe0] sm:$0xff]
      %v401 = vld [vmem:[%s331 + $0xe8] sm:$0xff]
      %v402 = vld [vmem:[%s331 + $0xf0] sm:$0xff]
      %v403 = vld [vmem:[%s331 + $0xf8] sm:$0xff]
      %v404 = vld [vmem:[%s341] sm:$0x77]
      %v405 = vld [vmem:[%s341 + $0x8] sm:$0x77]
      %v406 = vld [vmem:[%s341 + $0x10] sm:$0x77]
      %v407 = vld [vmem:[%s341 + $0x18] sm:$0x77]
      %v408 = vld [vmem:[%s2] sm:$0xff]
      %v409 = vld [vmem:[%s2 + $0x8] sm:$0x1f]
      %v410 = vld [vmem:[%s3] sm:$0xff]
      %v411 = vld [vmem:[%s3 + $0x8] sm:$0x1f]
      %413 = vset.pattern.permute.xlu0 0
      %414 = vperm.xlu0 %413, %v410
      %v415 = vpop.permute.xlu0 %414
      %418 = vset.pattern.permute.xlu0 0
      %419 = vperm.xlu0 %418, %v411
      %v420 = vpop.permute.xlu0 %419
      %vm422 = vcmask 261120
      %v424 = vsel %vm422, %v408, 0
      %v427 = vsel %vm422, %v409, 0
      %429 = vmatprep.subr.mxu0 %v373
      %430 = vmatpush1.msra.mxu0 %v372
      %431 = vmatprep.subr.mxu0 %v381
      %432 = vmatpush1.msra.mxu0 %v380
      %433 = vmatprep.subr.mxu0 %v389
      %434 = vmatpush1.msra.mxu0 %v388
      %435 = vmatprep.subr.mxu0 %v397
      %436 = vmatpush1.msra.mxu0 %v396
      %437 = vmatprep.subr.mxu0 0.0
      %438 = vmatpush1.msra.mxu0 0.0
      %439 = vmatprep.subr.mxu0 0.0
      %440 = vmatpush1.msra.mxu0 0.0
      %441 = vmatprep.subr.mxu0 0.0
      %442 = vmatpush1.msra.mxu0 0.0
      %443 = vmatprep.subr.mxu0 0.0
      %444 = vmatpush1.msra.mxu0 0.0
      %445 = vmatprep.subr.mxu0 0.0
      %446 = vmatpush1.msra.mxu0 0.0
      %447 = vmatprep.subr.mxu0 0.0
      %448 = vmatpush1.msra.mxu0 0.0
      %449 = vmatprep.subr.mxu0 0.0
      %450 = vmatpush1.msra.mxu0 0.0
      %451 = vmatprep.subr.mxu0 0.0
      %452 = vmatpush1.msra.mxu0 0.0
      %453 = vmatprep.subr.mxu0 0.0
      %454 = vmatpush1.msra.mxu0 0.0
      %455 = vmatprep.subr.mxu0 0.0
      %456 = vmatpush1.msra.mxu0 0.0
      %457 = vmatprep.subr.mxu0 0.0
      %458 = vmatpush1.msra.mxu0 0.0
      %459 = vmatprep.subr.mxu0 0.0
      %460 = vmatpush1.msra.mxu0 0.0
      %461 = vmatprep.subr.mxu0 0.0
      %462 = vmatpush1.msra.mxu0 0.0
      %463 = vmatprep.subr.mxu0 0.0
      %464 = vmatpush1.msra.mxu0 0.0
      %465 = vmatprep.subr.mxu0 0.0
      %466 = vmatpush1.msra.mxu0 0.0
      %467 = vmatprep.subr.mxu0 0.0
      %468 = vmatpush1.msra.mxu0 0.0
      %469 = vmatprep.subr.mxu0 0.0
      %470 = vmatpush1.msra.mxu0 0.0
      %471 = vmatprep.subr.mxu0 0.0
      %472 = vmatpush1.msra.mxu0 0.0
      %473 = vmatprep.subr.mxu0 0.0
      %474 = vmatpush1.msra.mxu0 0.0
      %475 = vmatprep.subr.mxu0 0.0
      %476 = vmatpush1.msra.mxu0 0.0
      %477 = vmatprep.subr.mxu0 0.0
      %478 = vmatpush1.msra.mxu0 0.0
      %479 = vmatprep.subr.mxu0 0.0
      %480 = vmatpush1.msra.mxu0 0.0
      %481 = vmatprep.subr.mxu0 0.0
      %482 = vmatpush1.msra.mxu0 0.0
      %483 = vmatprep.subr.mxu0 0.0
      %484 = vmatpush1.msra.mxu0 0.0
      %485 = vmatprep.subr.mxu0 0.0
      %486 = vmatpush1.msra.mxu0 0.0
      %487 = vmatprep.subr.mxu0 0.0
      %488 = vmatpush1.msra.mxu0 0.0
      %489 = vmatprep.subr.mxu0 0.0
      %490 = vmatpush1.msra.mxu0 0.0
      %491 = vmatprep.subr.mxu0 0.0
      %492 = vmatpush1.msra.mxu0 0.0
      %493 = vmatprep.mubr.f32.mxu0 0.0
      %494 = vmatmul.mubr.f32.gmra.mrb[0].mxu0 %v424
      %v495 = vpop.f32.mrb[0].mxu0
      %v496 = vadd.f32 %v415, %v495
      %v497 = vpop.f32.mrb[0].mxu0
      %v498 = vadd.f32 %v415, %v497
      %499 = vmatprep.mubr.f32.mxu0 0.0
      %500 = vmatmul.mubr.f32.gmra.mrb[0].mxu0 %v427
      %v501 = vpop.f32.mrb[0].mxu0
      %v502 = vadd.f32 %v420, %v501
      %v503 = vpop.f32.mrb[0].mxu0
      %v504 = vadd.f32 %v420, %v503
      %505 = vdwg.mxu0
      %506 = vmatprep.subr.mxu0 %v375
      %507 = vmatpush1.msra.mxu0 %v374
      %508 = vmatprep.subr.mxu0 %v383
      %509 = vmatpush1.msra.mxu0 %v382
      %510 = vmatprep.subr.mxu0 %v391
      %511 = vmatpush1.msra.mxu0 %v390
      %512 = vmatprep.subr.mxu0 %v399
      %513 = vmatpush1.msra.mxu0 %v398
      %514 = vmatprep.subr.mxu0 0.0
      %515 = vmatpush1.msra.mxu0 0.0
      %516 = vmatprep.subr.mxu0 0.0
      %517 = vmatpush1.msra.mxu0 0.0
      %518 = vmatprep.subr.mxu0 0.0
      %519 = vmatpush1.msra.mxu0 0.0
      %520 = vmatprep.subr.mxu0 0.0
      %521 = vmatpush1.msra.mxu0 0.0
      %522 = vmatprep.subr.mxu0 0.0
      %523 = vmatpush1.msra.mxu0 0.0
      %524 = vmatprep.subr.mxu0 0.0
      %525 = vmatpush1.msra.mxu0 0.0
      %526 = vmatprep.subr.mxu0 0.0
      %527 = vmatpush1.msra.mxu0 0.0
      %528 = vmatprep.subr.mxu0 0.0
      %529 = vmatpush1.msra.mxu0 0.0
      %530 = vmatprep.subr.mxu0 0.0
      %531 = vmatpush1.msra.mxu0 0.0
      %532 = vmatprep.subr.mxu0 0.0
      %533 = vmatpush1.msra.mxu0 0.0
      %534 = vmatprep.subr.mxu0 0.0
      %535 = vmatpush1.msra.mxu0 0.0
      %536 = vmatprep.subr.mxu0 0.0
      %537 = vmatpush1.msra.mxu0 0.0
      %538 = vmatprep.subr.mxu0 0.0
      %539 = vmatpush1.msra.mxu0 0.0
      %540 = vmatprep.subr.mxu0 0.0
      %541 = vmatpush1.msra.mxu0 0.0
      %542 = vmatprep.subr.mxu0 0.0
      %543 = vmatpush1.msra.mxu0 0.0
      %544 = vmatprep.subr.mxu0 0.0
      %545 = vmatpush1.msra.mxu0 0.0
      %546 = vmatprep.subr.mxu0 0.0
      %547 = vmatpush1.msra.mxu0 0.0
      %548 = vmatprep.subr.mxu0 0.0
      %549 = vmatpush1.msra.mxu0 0.0
      %550 = vmatprep.subr.mxu0 0.0
      %551 = vmatpush1.msra.mxu0 0.0
      %552 = vmatprep.subr.mxu0 0.0
      %553 = vmatpush1.msra.mxu0 0.0
      %554 = vmatprep.subr.mxu0 0.0
      %555 = vmatpush1.msra.mxu0 0.0
      %556 = vmatprep.subr.mxu0 0.0
      %557 = vmatpush1.msra.mxu0 0.0
      %558 = vmatprep.subr.mxu0 0.0
      %559 = vmatpush1.msra.mxu0 0.0
      %560 = vmatprep.subr.mxu0 0.0
      %561 = vmatpush1.msra.mxu0 0.0
      %562 = vmatprep.subr.mxu0 0.0
      %563 = vmatpush1.msra.mxu0 0.0
      %564 = vmatprep.subr.mxu0 0.0
      %565 = vmatpush1.msra.mxu0 0.0
      %566 = vmatprep.subr.mxu0 0.0
      %567 = vmatpush1.msra.mxu0 0.0
      %568 = vmatprep.subr.mxu0 0.0
      %569 = vmatpush1.msra.mxu0 0.0
      %570 = vmatprep.mubr.f32.mxu0 0.0
      %571 = vmatmul.mubr.f32.gmra.mrb[0].mxu0 %v424
      %v572 = vpop.f32.mrb[0].mxu0
      %v573 = vadd.f32 %v415, %v572
      %v574 = vpop.f32.mrb[0].mxu0
      %v575 = vadd.f32 %v415, %v574
      %576 = vmatprep.mubr.f32.mxu0 0.0
      %577 = vmatmul.mubr.f32.gmra.mrb[0].mxu0 %v427
      %v578 = vpop.f32.mrb[0].mxu0
      %v579 = vadd.f32 %v420, %v578
      %v580 = vpop.f32.mrb[0].mxu0
      %v581 = vadd.f32 %v420, %v580
      %582 = vdwg.mxu0
      %583 = vmatprep.subr.mxu0 %v377
      %584 = vmatpush1.msra.mxu0 %v376
      %585 = vmatprep.subr.mxu0 %v385
      %586 = vmatpush1.msra.mxu0 %v384
      %587 = vmatprep.subr.mxu0 %v393
      %588 = vmatpush1.msra.mxu0 %v392
      %589 = vmatprep.subr.mxu0 %v401
      %590 = vmatpush1.msra.mxu0 %v400
      %591 = vmatprep.subr.mxu0 0.0
      %592 = vmatpush1.msra.mxu0 0.0
      %593 = vmatprep.subr.mxu0 0.0
      %594 = vmatpush1.msra.mxu0 0.0
      %595 = vmatprep.subr.mxu0 0.0
      %596 = vmatpush1.msra.mxu0 0.0
      %597 = vmatprep.subr.mxu0 0.0
      %598 = vmatpush1.msra.mxu0 0.0
      %599 = vmatprep.subr.mxu0 0.0
      %600 = vmatpush1.msra.mxu0 0.0
      %601 = vmatprep.subr.mxu0 0.0
      %602 = vmatpush1.msra.mxu0 0.0
      %603 = vmatprep.subr.mxu0 0.0
      %604 = vmatpush1.msra.mxu0 0.0
      %605 = vmatprep.subr.mxu0 0.0
      %606 = vmatpush1.msra.mxu0 0.0
      %607 = vmatprep.subr.mxu0 0.0
      %608 = vmatpush1.msra.mxu0 0.0
      %609 = vmatprep.subr.mxu0 0.0
      %610 = vmatpush1.msra.mxu0 0.0
      %611 = vmatprep.subr.mxu0 0.0
      %612 = vmatpush1.msra.mxu0 0.0
      %613 = vmatprep.subr.mxu0 0.0
      %614 = vmatpush1.msra.mxu0 0.0
      %615 = vmatprep.subr.mxu0 0.0
      %616 = vmatpush1.msra.mxu0 0.0
      %617 = vmatprep.subr.mxu0 0.0
      %618 = vmatpush1.msra.mxu0 0.0
      %619 = vmatprep.subr.mxu0 0.0
      %620 = vmatpush1.msra.mxu0 0.0
      %621 = vmatprep.subr.mxu0 0.0
      %622 = vmatpush1.msra.mxu0 0.0
      %623 = vmatprep.subr.mxu0 0.0
      %624 = vmatpush1.msra.mxu0 0.0
      %625 = vmatprep.subr.mxu0 0.0
      %626 = vmatpush1.msra.mxu0 0.0
      %627 = vmatprep.subr.mxu0 0.0
      %628 = vmatpush1.msra.mxu0 0.0
      %629 = vmatprep.subr.mxu0 0.0
      %630 = vmatpush1.msra.mxu0 0.0
      %631 = vmatprep.subr.mxu0 0.0
      %632 = vmatpush1.msra.mxu0 0.0
      %633 = vmatprep.subr.mxu0 0.0
      %634 = vmatpush1.msra.mxu0 0.0
      %635 = vmatprep.subr.mxu0 0.0
      %636 = vmatpush1.msra.mxu0 0.0
      %637 = vmatprep.subr.mxu0 0.0
      %638 = vmatpush1.msra.mxu0 0.0
      %639 = vmatprep.subr.mxu0 0.0
      %640 = vmatpush1.msra.mxu0 0.0
      %641 = vmatprep.subr.mxu0 0.0
      %642 = vmatpush1.msra.mxu0 0.0
      %643 = vmatprep.subr.mxu0 0.0
      %644 = vmatpush1.msra.mxu0 0.0
      %645 = vmatprep.subr.mxu0 0.0
      %646 = vmatpush1.msra.mxu0 0.0
      %647 = vmatprep.mubr.f32.mxu0 0.0
      %648 = vmatmul.mubr.f32.gmra.mrb[0].mxu0 %v424
      %v649 = vpop.f32.mrb[0].mxu0
      %v650 = vadd.f32 %v415, %v649
      %v651 = vpop.f32.mrb[0].mxu0
      %v652 = vadd.f32 %v415, %v651
      %653 = vmatprep.mubr.f32.mxu0 0.0
      %654 = vmatmul.mubr.f32.gmra.mrb[0].mxu0 %v427
      %v655 = vpop.f32.mrb[0].mxu0
      %v656 = vadd.f32 %v420, %v655
      %v657 = vpop.f32.mrb[0].mxu0
      %v658 = vadd.f32 %v420, %v657
      %659 = vdwg.mxu0
      %660 = vmatprep.subr.mxu0 %v379
      %661 = vmatpush1.msra.mxu0 %v378
      %662 = vmatprep.subr.mxu0 %v387
      %663 = vmatpush1.msra.mxu0 %v386
      %664 = vmatprep.subr.mxu0 %v395
      %665 = vmatpush1.msra.mxu0 %v394
      %666 = vmatprep.subr.mxu0 %v403
      %667 = vmatpush1.msra.mxu0 %v402
      %668 = vmatprep.subr.mxu0 0.0
      %669 = vmatpush1.msra.mxu0 0.0
      %670 = vmatprep.subr.mxu0 0.0
      %671 = vmatpush1.msra.mxu0 0.0
      %672 = vmatprep.subr.mxu0 0.0
      %673 = vmatpush1.msra.mxu0 0.0
      %674 = vmatprep.subr.mxu0 0.0
      %675 = vmatpush1.msra.mxu0 0.0
      %676 = vmatprep.subr.mxu0 0.0
      %677 = vmatpush1.msra.mxu0 0.0
      %678 = vmatprep.subr.mxu0 0.0
      %679 = vmatpush1.msra.mxu0 0.0
      %680 = vmatprep.subr.mxu0 0.0
      %681 = vmatpush1.msra.mxu0 0.0
      %682 = vmatprep.subr.mxu0 0.0
      %683 = vmatpush1.msra.mxu0 0.0
      %684 = vmatprep.subr.mxu0 0.0
      %685 = vmatpush1.msra.mxu0 0.0
      %686 = vmatprep.subr.mxu0 0.0
      %687 = vmatpush1.msra.mxu0 0.0
      %688 = vmatprep.subr.mxu0 0.0
      %689 = vmatpush1.msra.mxu0 0.0
      %690 = vmatprep.subr.mxu0 0.0
      %691 = vmatpush1.msra.mxu0 0.0
      %692 = vmatprep.subr.mxu0 0.0
      %693 = vmatpush1.msra.mxu0 0.0
      %694 = vmatprep.subr.mxu0 0.0
      %695 = vmatpush1.msra.mxu0 0.0
      %696 = vmatprep.subr.mxu0 0.0
      %697 = vmatpush1.msra.mxu0 0.0
      %698 = vmatprep.subr.mxu0 0.0
      %699 = vmatpush1.msra.mxu0 0.0
      %700 = vmatprep.subr.mxu0 0.0
      %701 = vmatpush1.msra.mxu0 0.0
      %702 = vmatprep.subr.mxu0 0.0
      %703 = vmatpush1.msra.mxu0 0.0
      %704 = vmatprep.subr.mxu0 0.0
      %705 = vmatpush1.msra.mxu0 0.0
      %706 = vmatprep.subr.mxu0 0.0
      %707 = vmatpush1.msra.mxu0 0.0
      %708 = vmatprep.subr.mxu0 0.0
      %709 = vmatpush1.msra.mxu0 0.0
      %710 = vmatprep.subr.mxu0 0.0
      %711 = vmatpush1.msra.mxu0 0.0
      %712 = vmatprep.subr.mxu0 0.0
      %713 = vmatpush1.msra.mxu0 0.0
      %714 = vmatprep.subr.mxu0 0.0
      %715 = vmatpush1.msra.mxu0 0.0
      %716 = vmatprep.subr.mxu0 0.0
      %717 = vmatpush1.msra.mxu0 0.0
      %718 = vmatprep.subr.mxu0 0.0
      %719 = vmatpush1.msra.mxu0 0.0
      %720 = vmatprep.subr.mxu0 0.0
      %721 = vmatpush1.msra.mxu0 0.0
      %722 = vmatprep.subr.mxu0 0.0
      %723 = vmatpush1.msra.mxu0 0.0
      %724 = vmatprep.mubr.f32.mxu0 0.0
      %725 = vmatmul.mubr.f32.gmra.mrb[0].mxu0 %v424
      %v726 = vpop.f32.mrb[0].mxu0
      %v727 = vadd.f32 %v415, %v726
      %v728 = vpop.f32.mrb[0].mxu0
      %v729 = vadd.f32 %v415, %v728
      %730 = vmatprep.mubr.f32.mxu0 0.0
      %731 = vmatmul.mubr.f32.gmra.mrb[0].mxu0 %v427
      %v732 = vpop.f32.mrb[0].mxu0
      %v733 = vadd.f32 %v420, %v732
      %v734 = vpop.f32.mrb[0].mxu0
      %v735 = vadd.f32 %v420, %v734
      %736 = vdwg.mxu0
      %v737 = vmul.f32 %v502, -3.0
      %v738 = vmul.f32 %v504, -3.0
      %v739 = vmul.f32 %v579, -3.0
      %v740 = vmul.f32 %v581, -3.0
      %v741 = vmul.f32 %v656, -3.0
      %v742 = vmul.f32 %v658, -3.0
      %v743 = vmul.f32 %v733, -3.0
      %v744 = vmul.f32 %v735, -3.0
      %v745 = vmul.f32 %v737, 1.442695
      %v746 = vpow.pop %v745
      %v747 = vmul.f32 %v738, 1.442695
      %v748 = vpow.pop %v747
      %v749 = vmul.f32 %v739, 1.442695
      %v750 = vpow.pop %v749
      %v751 = vmul.f32 %v740, 1.442695
      %v752 = vpow.pop %v751
      %v753 = vmul.f32 %v741, 1.442695
      %v754 = vpow.pop %v753
      %v755 = vmul.f32 %v742, 1.442695
      %v756 = vpow.pop %v755
      %v757 = vmul.f32 %v743, 1.442695
      %v758 = vpow.pop %v757
      %v759 = vmul.f32 %v744, 1.442695
      %v760 = vpow.pop %v759
      %v761 = vadd.f32 %v746, 1.0
      %v762 = vadd.f32 %v748, 1.0
      %v763 = vadd.f32 %v750, 1.0
      %v764 = vadd.f32 %v752, 1.0
      %v765 = vadd.f32 %v754, 1.0
      %v766 = vadd.f32 %v756, 1.0
      %v767 = vadd.f32 %v758, 1.0
      %v768 = vadd.f32 %v760, 1.0
      %v769 = vrcp.pop %v761
      %v770 = vmul.f32 1.0, %v769
      %v771 = vrcp.pop %v762
      %v772 = vmul.f32 1.0, %v771
      %v773 = vrcp.pop %v763
      %v774 = vmul.f32 1.0, %v773
      %v775 = vrcp.pop %v764
      %v776 = vmul.f32 1.0, %v775
      %v777 = vrcp.pop %v765
      %v778 = vmul.f32 1.0, %v777
      %v779 = vrcp.pop %v766
      %v780 = vmul.f32 1.0, %v779
      %v781 = vrcp.pop %v767
      %v782 = vmul.f32 1.0, %v781
      %v783 = vrcp.pop %v768
      %v784 = vmul.f32 1.0, %v783
      %v785 = vmul.f32 %v404, 0.229
      %v786 = vmul.f32 %v405, 0.229
      %v787 = vmul.f32 %v406, 0.229
      %v788 = vmul.f32 %v407, 0.229
      %v789 = vadd.f32 %v785, 0.485
      %v790 = vadd.f32 %v786, 0.485
      %v791 = vadd.f32 %v787, 0.485
      %v792 = vadd.f32 %v788, 0.485
      %v793 = vmul.f32 %v404, 0.224
      %v794 = vmul.f32 %v405, 0.224
      %v795 = vmul.f32 %v406, 0.224
      %v796 = vmul.f32 %v407, 0.224
      %v797 = vadd.f32 %v793, 0.456
      %v798 = vadd.f32 %v794, 0.456
      %v799 = vadd.f32 %v795, 0.456
      %v800 = vadd.f32 %v796, 0.456
      %v801 = vmul.f32 %v404, 0.225
      %v802 = vmul.f32 %v405, 0.225
      %v803 = vmul.f32 %v406, 0.225
      %v804 = vmul.f32 %v407, 0.225
      %v805 = vadd.f32 %v801, 0.406
      %v806 = vadd.f32 %v802, 0.406
      %v807 = vadd.f32 %v803, 0.406
      %v808 = vadd.f32 %v804, 0.406
      %v813 = vlaneseq
      %v814 = vshrl.u32 %v813, 7
      %v815 = vsub.s32 0, %v814
      %v816 = vrot.slane %v789, %v815
      %v817 = vlaneseq
      %v818 = vshrl.u32 %v817, 7
      %v819 = vsub.s32 4, %v818
      %v820 = vrot.slane %v789, %v819
      %v821 = vlaneseq
      %v822 = vshrl.u32 %v821, 7
      %v823 = vsub.s32 0, %v822
      %v824 = vrot.slane %v790, %v823
      %v825 = vlaneseq
      %v826 = vshrl.u32 %v825, 7
      %v827 = vsub.s32 4, %v826
      %v828 = vrot.slane %v790, %v827
      %v829 = vlaneseq
      %v830 = vshrl.u32 %v829, 7
      %v831 = vsub.s32 0, %v830
      %v832 = vrot.slane %v791, %v831
      %v833 = vlaneseq
      %v834 = vshrl.u32 %v833, 7
      %v835 = vsub.s32 4, %v834
      %v836 = vrot.slane %v791, %v835
      %v837 = vlaneseq
      %v838 = vshrl.u32 %v837, 7
      %v839 = vsub.s32 0, %v838
      %v840 = vrot.slane %v792, %v839
      %v841 = vlaneseq
      %v842 = vshrl.u32 %v841, 7
      %v843 = vsub.s32 4, %v842
      %v844 = vrot.slane %v792, %v843
      %v853 = vmul.f32 %v496, %v816
      %v854 = vmul.f32 %v498, %v820
      %v855 = vmul.f32 %v573, %v824
      %v856 = vmul.f32 %v575, %v828
      %v857 = vmul.f32 %v650, %v832
      %v858 = vmul.f32 %v652, %v836
      %v859 = vmul.f32 %v727, %v840
      %v860 = vmul.f32 %v729, %v844
      %v869 = vrot.slane %v853, 5
      %v870 = vrot.slane %v854, 5
      %v871 = vrot.slane %v855, 5
      %v872 = vrot.slane %v856, 5
      %v873 = vrot.slane %v857, 5
      %v874 = vrot.slane %v858, 5
      %v875 = vrot.slane %v859, 5
      %v876 = vrot.slane %v860, 5
      %v885 = vadd.f32 %v496, %v869
      %v886 = vadd.f32 %v498, %v870
      %v887 = vadd.f32 %v573, %v871
      %v888 = vadd.f32 %v575, %v872
      %v889 = vadd.f32 %v650, %v873
      %v890 = vadd.f32 %v652, %v874
      %v891 = vadd.f32 %v727, %v875
      %v892 = vadd.f32 %v729, %v876
      %v897 = vlaneseq
      %v898 = vshrl.u32 %v897, 7
      %v899 = vsub.s32 1, %v898
      %v900 = vrot.slane %v797, %v899
      %v901 = vlaneseq
      %v902 = vshrl.u32 %v901, 7
      %v903 = vsub.s32 5, %v902
      %v904 = vrot.slane %v797, %v903
      %v905 = vlaneseq
      %v906 = vshrl.u32 %v905, 7
      %v907 = vsub.s32 1, %v906
      %v908 = vrot.slane %v798, %v907
      %v909 = vlaneseq
      %v910 = vshrl.u32 %v909, 7
      %v911 = vsub.s32 5, %v910
      %v912 = vrot.slane %v798, %v911
      %v913 = vlaneseq
      %v914 = vshrl.u32 %v913, 7
      %v915 = vsub.s32 1, %v914
      %v916 = vrot.slane %v799, %v915
      %v917 = vlaneseq
      %v918 = vshrl.u32 %v917, 7
      %v919 = vsub.s32 5, %v918
      %v920 = vrot.slane %v799, %v919
      %v921 = vlaneseq
      %v922 = vshrl.u32 %v921, 7
      %v923 = vsub.s32 1, %v922
      %v924 = vrot.slane %v800, %v923
      %v925 = vlaneseq
      %v926 = vshrl.u32 %v925, 7
      %v927 = vsub.s32 5, %v926
      %v928 = vrot.slane %v800, %v927
      %v937 = vmul.f32 %v496, %v900
      %v938 = vmul.f32 %v498, %v904
      %v939 = vmul.f32 %v573, %v908
      %v940 = vmul.f32 %v575, %v912
      %v941 = vmul.f32 %v650, %v916
      %v942 = vmul.f32 %v652, %v920
      %v943 = vmul.f32 %v727, %v924
      %v944 = vmul.f32 %v729, %v928
      %v953 = vrot.slane %v937, 6
      %v954 = vrot.slane %v938, 6
      %v955 = vrot.slane %v939, 6
      %v956 = vrot.slane %v940, 6
      %v957 = vrot.slane %v941, 6
      %v958 = vrot.slane %v942, 6
      %v959 = vrot.slane %v943, 6
      %v960 = vrot.slane %v944, 6
      %v969 = vadd.f32 %v885, %v953
      %v970 = vadd.f32 %v886, %v954
      %v971 = vadd.f32 %v887, %v955
      %v972 = vadd.f32 %v888, %v956
      %v973 = vadd.f32 %v889, %v957
      %v974 = vadd.f32 %v890, %v958
      %v975 = vadd.f32 %v891, %v959
      %v976 = vadd.f32 %v892, %v960
      %v981 = vlaneseq
      %v982 = vshrl.u32 %v981, 7
      %v983 = vsub.s32 2, %v982
      %v984 = vrot.slane %v805, %v983
      %v985 = vlaneseq
      %v986 = vshrl.u32 %v985, 7
      %v987 = vsub.s32 6, %v986
      %v988 = vrot.slane %v805, %v987
      %v989 = vlaneseq
      %v990 = vshrl.u32 %v989, 7
      %v991 = vsub.s32 2, %v990
      %v992 = vrot.slane %v806, %v991
      %v993 = vlaneseq
      %v994 = vshrl.u32 %v993, 7
      %v995 = vsub.s32 6, %v994
      %v996 = vrot.slane %v806, %v995
      %v997 = vlaneseq
      %v998 = vshrl.u32 %v997, 7
      %v999 = vsub.s32 2, %v998
      %v1000 = vrot.slane %v807, %v999
      %v1001 = vlaneseq
      %v1002 = vshrl.u32 %v1001, 7
      %v1003 = vsub.s32 6, %v1002
      %v1004 = vrot.slane %v807, %v1003
      %v1005 = vlaneseq
      %v1006 = vshrl.u32 %v1005, 7
      %v1007 = vsub.s32 2, %v1006
      %v1008 = vrot.slane %v808, %v1007
      %v1009 = vlaneseq
      %v1010 = vshrl.u32 %v1009, 7
      %v1011 = vsub.s32 6, %v1010
      %v1012 = vrot.slane %v808, %v1011
      %v1021 = vmul.f32 %v496, %v984
      %v1022 = vmul.f32 %v498, %v988
      %v1023 = vmul.f32 %v573, %v992
      %v1024 = vmul.f32 %v575, %v996
      %v1025 = vmul.f32 %v650, %v1000
      %v1026 = vmul.f32 %v652, %v1004
      %v1027 = vmul.f32 %v727, %v1008
      %v1028 = vmul.f32 %v729, %v1012
      %v1037 = vrot.slane %v1021, 7
      %v1038 = vrot.slane %v1022, 7
      %v1039 = vrot.slane %v1023, 7
      %v1040 = vrot.slane %v1024, 7
      %v1041 = vrot.slane %v1025, 7
      %v1042 = vrot.slane %v1026, 7
      %v1043 = vrot.slane %v1027, 7
      %v1044 = vrot.slane %v1028, 7
      %v1053 = vadd.f32 %v969, %v1037
      %v1054 = vadd.f32 %v970, %v1038
      %v1055 = vadd.f32 %v971, %v1039
      %v1056 = vadd.f32 %v972, %v1040
      %v1057 = vadd.f32 %v973, %v1041
      %v1058 = vadd.f32 %v974, %v1042
      %v1059 = vadd.f32 %v975, %v1043
      %v1060 = vadd.f32 %v976, %v1044
      %v1061 = vmax.f32 %v1053, 0.0
      %v1062 = vmax.f32 %v1054, 0.0
      %v1063 = vmax.f32 %v1055, 0.0
      %v1064 = vmax.f32 %v1056, 0.0
      %v1065 = vmax.f32 %v1057, 0.0
      %v1066 = vmax.f32 %v1058, 0.0
      %v1067 = vmax.f32 %v1059, 0.0
      %v1068 = vmax.f32 %v1060, 0.0
      %v1069 = vmin.f32 %v1061, 1.0
      %v1070 = vmin.f32 %v1062, 1.0
      %v1071 = vmin.f32 %v1063, 1.0
      %v1072 = vmin.f32 %v1064, 1.0
      %v1073 = vmin.f32 %v1065, 1.0
      %v1074 = vmin.f32 %v1066, 1.0
      %v1075 = vmin.f32 %v1067, 1.0
      %v1076 = vmin.f32 %v1068, 1.0
      %v1077 = vsub.f32 %v1069, 0.485
      %v1078 = vsub.f32 %v1070, 0.485
      %v1079 = vsub.f32 %v1071, 0.485
      %v1080 = vsub.f32 %v1072, 0.485
      %v1081 = vsub.f32 %v1073, 0.485
      %v1082 = vsub.f32 %v1074, 0.485
      %v1083 = vsub.f32 %v1075, 0.485
      %v1084 = vsub.f32 %v1076, 0.485
      %v1085 = vrcp.pop 0.229
      %v1086 = vmul.f32 %v1077, %v1085
      %v1087 = vmul.f32 %v1078, %v1085
      %v1088 = vmul.f32 %v1079, %v1085
      %v1089 = vmul.f32 %v1080, %v1085
      %v1090 = vmul.f32 %v1081, %v1085
      %v1091 = vmul.f32 %v1082, %v1085
      %v1092 = vmul.f32 %v1083, %v1085
      %v1093 = vmul.f32 %v1084, %v1085
      %v1094 = vsub.f32 %v1069, 0.456
      %v1095 = vsub.f32 %v1070, 0.456
      %v1096 = vsub.f32 %v1071, 0.456
      %v1097 = vsub.f32 %v1072, 0.456
      %v1098 = vsub.f32 %v1073, 0.456
      %v1099 = vsub.f32 %v1074, 0.456
      %v1100 = vsub.f32 %v1075, 0.456
      %v1101 = vsub.f32 %v1076, 0.456
      %v1102 = vrcp.pop 0.224
      %v1103 = vmul.f32 %v1094, %v1102
      %v1104 = vmul.f32 %v1095, %v1102
      %v1105 = vmul.f32 %v1096, %v1102
      %v1106 = vmul.f32 %v1097, %v1102
      %v1107 = vmul.f32 %v1098, %v1102
      %v1108 = vmul.f32 %v1099, %v1102
      %v1109 = vmul.f32 %v1100, %v1102
      %v1110 = vmul.f32 %v1101, %v1102
      %v1111 = vmul.f32 %v502, %v816
      %v1112 = vmul.f32 %v504, %v820
      %v1113 = vmul.f32 %v579, %v824
      %v1114 = vmul.f32 %v581, %v828
      %v1115 = vmul.f32 %v656, %v832
      %v1116 = vmul.f32 %v658, %v836
      %v1117 = vmul.f32 %v733, %v840
      %v1118 = vmul.f32 %v735, %v844
      %v1127 = vrot.slane %v1111, 5
      %v1128 = vrot.slane %v1112, 5
      %v1129 = vrot.slane %v1113, 5
      %v1130 = vrot.slane %v1114, 5
      %v1131 = vrot.slane %v1115, 5
      %v1132 = vrot.slane %v1116, 5
      %v1133 = vrot.slane %v1117, 5
      %v1134 = vrot.slane %v1118, 5
      %v1143 = vadd.f32 %v502, %v1127
      %v1144 = vadd.f32 %v504, %v1128
      %v1145 = vadd.f32 %v579, %v1129
      %v1146 = vadd.f32 %v581, %v1130
      %v1147 = vadd.f32 %v656, %v1131
      %v1148 = vadd.f32 %v658, %v1132
      %v1149 = vadd.f32 %v733, %v1133
      %v1150 = vadd.f32 %v735, %v1134
      %v1151 = vmul.f32 %v502, %v900
      %v1152 = vmul.f32 %v504, %v904
      %v1153 = vmul.f32 %v579, %v908
      %v1154 = vmul.f32 %v581, %v912
      %v1155 = vmul.f32 %v656, %v916
      %v1156 = vmul.f32 %v658, %v920
      %v1157 = vmul.f32 %v733, %v924
      %v1158 = vmul.f32 %v735, %v928
      %v1167 = vrot.slane %v1151, 6
      %v1168 = vrot.slane %v1152, 6
      %v1169 = vrot.slane %v1153, 6
      %v1170 = vrot.slane %v1154, 6
      %v1171 = vrot.slane %v1155, 6
      %v1172 = vrot.slane %v1156, 6
      %v1173 = vrot.slane %v1157, 6
      %v1174 = vrot.slane %v1158, 6
      %v1183 = vadd.f32 %v1143, %v1167
      %v1184 = vadd.f32 %v1144, %v1168
      %v1185 = vadd.f32 %v1145, %v1169
      %v1186 = vadd.f32 %v1146, %v1170
      %v1187 = vadd.f32 %v1147, %v1171
      %v1188 = vadd.f32 %v1148, %v1172
      %v1189 = vadd.f32 %v1149, %v1173
      %v1190 = vadd.f32 %v1150, %v1174
      %v1191 = vmul.f32 %v502, %v984
      %v1192 = vmul.f32 %v504, %v988
      %v1193 = vmul.f32 %v579, %v992
      %v1194 = vmul.f32 %v581, %v996
      %v1195 = vmul.f32 %v656, %v1000
      %v1196 = vmul.f32 %v658, %v1004
      %v1197 = vmul.f32 %v733, %v1008
      %v1198 = vmul.f32 %v735, %v1012
      %v1207 = vrot.slane %v1191, 7
      %v1208 = vrot.slane %v1192, 7
      %v1209 = vrot.slane %v1193, 7
      %v1210 = vrot.slane %v1194, 7
      %v1211 = vrot.slane %v1195, 7
      %v1212 = vrot.slane %v1196, 7
      %v1213 = vrot.slane %v1197, 7
      %v1214 = vrot.slane %v1198, 7
      %v1223 = vadd.f32 %v1183, %v1207
      %v1224 = vadd.f32 %v1184, %v1208
      %v1225 = vadd.f32 %v1185, %v1209
      %v1226 = vadd.f32 %v1186, %v1210
      %v1227 = vadd.f32 %v1187, %v1211
      %v1228 = vadd.f32 %v1188, %v1212
      %v1229 = vadd.f32 %v1189, %v1213
      %v1230 = vadd.f32 %v1190, %v1214
      %v1231 = vmax.f32 %v1223, 0.0
      %v1232 = vmax.f32 %v1224, 0.0
      %v1233 = vmax.f32 %v1225, 0.0
      %v1234 = vmax.f32 %v1226, 0.0
      %v1235 = vmax.f32 %v1227, 0.0
      %v1236 = vmax.f32 %v1228, 0.0
      %v1237 = vmax.f32 %v1229, 0.0
      %v1238 = vmax.f32 %v1230, 0.0
      %v1239 = vmin.f32 %v1231, 1.0
      %v1240 = vmin.f32 %v1232, 1.0
      %v1241 = vmin.f32 %v1233, 1.0
      %v1242 = vmin.f32 %v1234, 1.0
      %v1243 = vmin.f32 %v1235, 1.0
      %v1244 = vmin.f32 %v1236, 1.0
      %v1245 = vmin.f32 %v1237, 1.0
      %v1246 = vmin.f32 %v1238, 1.0
      %v1247 = vsub.f32 %v1239, 0.406
      %v1248 = vsub.f32 %v1240, 0.406
      %v1249 = vsub.f32 %v1241, 0.406
      %v1250 = vsub.f32 %v1242, 0.406
      %v1251 = vsub.f32 %v1243, 0.406
      %v1252 = vsub.f32 %v1244, 0.406
      %v1253 = vsub.f32 %v1245, 0.406
      %v1254 = vsub.f32 %v1246, 0.406
      %v1255 = vrcp.pop 0.225
      %v1256 = vmul.f32 %v1247, %v1255
      %v1257 = vmul.f32 %v1248, %v1255
      %v1258 = vmul.f32 %v1249, %v1255
      %v1259 = vmul.f32 %v1250, %v1255
      %v1260 = vmul.f32 %v1251, %v1255
      %v1261 = vmul.f32 %v1252, %v1255
      %v1262 = vmul.f32 %v1253, %v1255
      %v1263 = vmul.f32 %v1254, %v1255
      %v1272 = vrot.slane %v1086, 3
      %v1273 = vrot.slane %v1087, 3
      %v1274 = vrot.slane %v1088, 3
      %v1275 = vrot.slane %v1089, 3
      %v1276 = vrot.slane %v1090, 3
      %v1277 = vrot.slane %v1091, 3
      %v1278 = vrot.slane %v1092, 3
      %v1279 = vrot.slane %v1093, 3
      %v1296 = vrot.slane %v1103, 6
      %v1297 = vrot.slane %v1104, 6
      %v1298 = vrot.slane %v1105, 6
      %v1299 = vrot.slane %v1106, 6
      %v1300 = vrot.slane %v1107, 6
      %v1301 = vrot.slane %v1108, 6
      %v1302 = vrot.slane %v1109, 6
      %v1303 = vrot.slane %v1110, 6
      %v1320 = vrot.slane %v1256, 1
      %v1321 = vrot.slane %v1257, 1
      %v1322 = vrot.slane %v1258, 1
      %v1323 = vrot.slane %v1259, 1
      %v1324 = vrot.slane %v1260, 1
      %v1325 = vrot.slane %v1261, 1
      %v1326 = vrot.slane %v1262, 1
      %v1327 = vrot.slane %v1263, 1
      %vm1336 = vcmask 1040384
      %v1337 = vsel %vm1336, %v1272, %v1296
      %v1338 = vsel %vm1336, %v1273, %v1297
      %v1339 = vsel %vm1336, %v1274, %v1298
      %v1340 = vsel %vm1336, %v1275, %v1299
      %v1341 = vsel %vm1336, %v1276, %v1300
      %v1342 = vsel %vm1336, %v1277, %v1301
      %v1343 = vsel %vm1336, %v1278, %v1302
      %v1344 = vsel %vm1336, %v1279, %v1303
      %vm1345 = vcmask 1041408
      %v1346 = vsel %vm1345, %v1337, %v1320
      %v1347 = vsel %vm1345, %v1338, %v1321
      %v1348 = vsel %vm1345, %v1339, %v1322
      %v1349 = vsel %vm1345, %v1340, %v1323
      %v1350 = vsel %vm1345, %v1341, %v1324
      %v1351 = vsel %vm1345, %v1342, %v1325
      %v1352 = vsel %vm1345, %v1343, %v1326
      %v1353 = vsel %vm1345, %v1344, %v1327
      %v1354 = vlaneseq
      %v1355 = vshrl.u32 %v1354, 7
      %v1356 = vsub.s32 4, %v1355
      %v1357 = vrot.slane %v770, %v1356
      %v1358 = vlaneseq
      %v1359 = vshrl.u32 %v1358, 7
      %v1360 = vsub.s32 4, %v1359
      %v1361 = vrot.slane %v772, %v1360
      %v1362 = vlaneseq
      %v1363 = vshrl.u32 %v1362, 7
      %v1364 = vsub.s32 4, %v1363
      %v1365 = vrot.slane %v774, %v1364
      %v1366 = vlaneseq
      %v1367 = vshrl.u32 %v1366, 7
      %v1368 = vsub.s32 4, %v1367
      %v1369 = vrot.slane %v776, %v1368
      %v1370 = vlaneseq
      %v1371 = vshrl.u32 %v1370, 7
      %v1372 = vsub.s32 4, %v1371
      %v1373 = vrot.slane %v778, %v1372
      %v1374 = vlaneseq
      %v1375 = vshrl.u32 %v1374, 7
      %v1376 = vsub.s32 4, %v1375
      %v1377 = vrot.slane %v780, %v1376
      %v1378 = vlaneseq
      %v1379 = vshrl.u32 %v1378, 7
      %v1380 = vsub.s32 4, %v1379
      %v1381 = vrot.slane %v782, %v1380
      %v1382 = vlaneseq
      %v1383 = vshrl.u32 %v1382, 7
      %v1384 = vsub.s32 4, %v1383
      %v1385 = vrot.slane %v784, %v1384
      %v1386 = vmul.f32 %v1346, %v1357
      %v1387 = vmul.f32 %v1347, %v1361
      %v1388 = vmul.f32 %v1348, %v1365
      %v1389 = vmul.f32 %v1349, %v1369
      %v1390 = vmul.f32 %v1350, %v1373
      %v1391 = vmul.f32 %v1351, %v1377
      %v1392 = vmul.f32 %v1352, %v1381
      %v1393 = vmul.f32 %v1353, %v1385
      %v1394 = vsub.f32 1.0, %v770
      %v1395 = vsub.f32 1.0, %v772
      %v1396 = vsub.f32 1.0, %v774
      %v1397 = vsub.f32 1.0, %v776
      %v1398 = vsub.f32 1.0, %v778
      %v1399 = vsub.f32 1.0, %v780
      %v1400 = vsub.f32 1.0, %v782
      %v1401 = vsub.f32 1.0, %v784
      %v1402 = vlaneseq
      %v1403 = vshrl.u32 %v1402, 7
      %v1404 = vsub.s32 4, %v1403
      %v1405 = vrot.slane %v1394, %v1404
      %v1406 = vlaneseq
      %v1407 = vshrl.u32 %v1406, 7
      %v1408 = vsub.s32 4, %v1407
      %v1409 = vrot.slane %v1395, %v1408
      %v1410 = vlaneseq
      %v1411 = vshrl.u32 %v1410, 7
      %v1412 = vsub.s32 4, %v1411
      %v1413 = vrot.slane %v1396, %v1412
      %v1414 = vlaneseq
      %v1415 = vshrl.u32 %v1414, 7
      %v1416 = vsub.s32 4, %v1415
      %v1417 = vrot.slane %v1397, %v1416
      %v1418 = vlaneseq
      %v1419 = vshrl.u32 %v1418, 7
      %v1420 = vsub.s32 4, %v1419
      %v1421 = vrot.slane %v1398, %v1420
      %v1422 = vlaneseq
      %v1423 = vshrl.u32 %v1422, 7
      %v1424 = vsub.s32 4, %v1423
      %v1425 = vrot.slane %v1399, %v1424
      %v1426 = vlaneseq
      %v1427 = vshrl.u32 %v1426, 7
      %v1428 = vsub.s32 4, %v1427
      %v1429 = vrot.slane %v1400, %v1428
      %v1430 = vlaneseq
      %v1431 = vshrl.u32 %v1430, 7
      %v1432 = vsub.s32 4, %v1431
      %v1433 = vrot.slane %v1401, %v1432
      %v1442 = vcombine.low %v1405, %v1409
      %v1443 = vcombine.low %v1413, %v1417
      %v1444 = vcombine.low %v1421, %v1425
      %v1445 = vcombine.low %v1429, %v1433
      %v1450 = vmul.f32 %v404, %v1442
      %v1451 = vmul.f32 %v405, %v1443
      %v1452 = vmul.f32 %v406, %v1444
      %v1453 = vmul.f32 %v407, %v1445
      %v1458 = vcombine.high %v1450, %v1450
      %v1459 = vcombine.high %v1451, %v1451
      %v1460 = vcombine.high %v1452, %v1452
      %v1461 = vcombine.high %v1453, %v1453
      %v1466 = vadd.f32 %v1386, %v1450
      %v1467 = vadd.f32 %v1387, %v1458
      %v1468 = vadd.f32 %v1388, %v1451
      %v1469 = vadd.f32 %v1389, %v1459
      %v1470 = vadd.f32 %v1390, %v1452
      %v1471 = vadd.f32 %v1391, %v1460
      %v1472 = vadd.f32 %v1392, %v1453
      %v1473 = vadd.f32 %v1393, %v1461
      %v1482 = vcombine.low %v1466, %v1467
      %v1483 = vcombine.low %v1468, %v1469
      %v1484 = vcombine.low %v1470, %v1471
      %v1485 = vcombine.low %v1472, %v1473
      %1490 = vst [vmem:[%s351] sm:$0x77] %v1482
      %1491 = vst [vmem:[%s351 + $0x8] sm:$0x77] %v1483
      %1492 = vst [vmem:[%s351 + $0x10] sm:$0x77] %v1484
      %1493 = vst [vmem:[%s351 + $0x18] sm:$0x77] %v1485
      %1494 = vst [vmem:[%s361] sm:$0xff] %v496
      %1495 = vst [vmem:[%s361 + $0x8] sm:$0xff] %v498
      %1496 = vst [vmem:[%s361 + $0x10] sm:$0xff] %v573
      %1497 = vst [vmem:[%s361 + $0x18] sm:$0xff] %v575
      %1498 = vst [vmem:[%s361 + $0x20] sm:$0xff] %v650
      %1499 = vst [vmem:[%s361 + $0x28] sm:$0xff] %v652
      %1500 = vst [vmem:[%s361 + $0x30] sm:$0xff] %v727
      %1501 = vst [vmem:[%s361 + $0x38] sm:$0xff] %v729
      %1502 = vst [vmem:[%s361 + $0x40] sm:$0xf] %v502
      %1503 = vst [vmem:[%s361 + $0x48] sm:$0xf] %v504
      %1504 = vst [vmem:[%s361 + $0x50] sm:$0xf] %v579
      %1505 = vst [vmem:[%s361 + $0x58] sm:$0xf] %v581
      %1506 = vst [vmem:[%s361 + $0x60] sm:$0xf] %v656
      %1507 = vst [vmem:[%s361 + $0x68] sm:$0xf] %v658
      %1508 = vst [vmem:[%s361 + $0x70] sm:$0xf] %v733
      %1509 = vst [vmem:[%s361 + $0x78] sm:$0xf] %v735
      %v1518 = vcombine.high %v770, %v772
      %v1519 = vcombine.high %v774, %v776
      %v1520 = vcombine.high %v778, %v780
      %v1521 = vcombine.high %v782, %v784
      %v1523 = vunpack.c.l.s4 1966171168
      %v1524 = vunpack.c.0.s8 %v1523
      %v1525 = vlaneseq
      %v1526 = vshrl.u32 %v1525, 7
      %v1527 = vsub.s32 %v1524, %v1526
      %v1528 = vrot.slane %v1518, %v1527
      %v1530 = vunpack.c.l.s4 1966171168
      %v1531 = vunpack.c.0.s8 %v1530
      %v1532 = vlaneseq
      %v1533 = vshrl.u32 %v1532, 7
      %v1534 = vsub.s32 %v1531, %v1533
      %v1535 = vrot.slane %v1519, %v1534
      %v1537 = vunpack.c.l.s4 1966171168
      %v1538 = vunpack.c.0.s8 %v1537
      %v1539 = vlaneseq
      %v1540 = vshrl.u32 %v1539, 7
      %v1541 = vsub.s32 %v1538, %v1540
      %v1542 = vrot.slane %v1520, %v1541
      %v1544 = vunpack.c.l.s4 1966171168
      %v1545 = vunpack.c.0.s8 %v1544
      %v1546 = vlaneseq
      %v1547 = vshrl.u32 %v1546, 7
      %v1548 = vsub.s32 %v1545, %v1547
      %v1549 = vrot.slane %v1521, %v1548
      %v1550 = vcombine.low %v1528, %v1535
      %v1551 = vcombine.low %v1542, %v1549
      %v1553 = vunpack.c.l.s4 1966171168
      %v1554 = vunpack.c.0.s8 %v1553
      %v1555 = vlaneseq
      %v1556 = vshrl.u32 %v1555, 7
      %v1557 = vsub.s32 %v1554, %v1556
      %v1558 = vrot.slane %v1550, %v1557
      %v1560 = vunpack.c.l.s4 1966171168
      %v1561 = vunpack.c.0.s8 %v1560
      %v1562 = vlaneseq
      %v1563 = vshrl.u32 %v1562, 7
      %v1564 = vsub.s32 %v1561, %v1563
      %v1565 = vrot.slane %v1551, %v1564
      %v1566 = vcombine.low %v1558, %v1565
      %1568 = vst [vmem:[%s370] sm:$0xff] %v1566
      %s1569 = smul.u32 8, %s23
      %p1570 = scmp.lt.s32.totalorder %s22, 1
      %s1571 = scalar_select %p1570, %s22, 1
      %p1572 = scmp.lt.s32.totalorder %s1569, 7
      %s1573 = scalar_select %p1572, %s1569, 7
      %s1574 = smul.addr %s1571, 8
      %s1575 = sadd.s32 %s1573, %s1574
      %s1576 = smul.addr %s1575, 4
      %s1577 = scalar_lea.vmem %s4, %s1576
      %s1578 = smul.u32 8, %s23
      %p1579 = scmp.lt.s32.totalorder %s22, 1
      %s1580 = scalar_select %p1579, %s22, 1
      %p1581 = scmp.lt.s32.totalorder %s1578, 7
      %s1582 = scalar_select %p1581, %s1578, 7
      %s1583 = smul.addr %s1580, 16
      %s1584 = sadd.s32 %s1582, %s1583
      %s1585 = smul.addr %s1584, 8
      %s1586 = scalar_lea.vmem %s5, %s1585
      %s1587 = smul.u32 8, %s23
      %p1588 = scmp.lt.s32.totalorder %s22, 1
      %s1589 = scalar_select %p1588, %s22, 1
      %p1590 = scmp.lt.s32.totalorder %s1587, 7
      %s1591 = scalar_select %p1590, %s1587, 7
      %s1592 = smul.addr %s1589, 8
      %s1593 = sadd.s32 %s1591, %s1592
      %s1594 = scalar_lea.vmem %s6, %s1593
      // Predicated region
      $region37: #{pctnet_forward.18} parent=35 // pred_check
        %p1595 = pneg %p148
      $region38: #{pctnet_forward.18} parent=35 // pred_check_branch
        %1597 = sbr.rel (%p1595) target = $region40
      $region39: #{pctnet_forward.18} parent=35 // pred_region
        %s1598 = smul.u32 8, %s23
      $region40: #{pctnet_forward.18} parent=35 // pred_fallthru
        _
      // Predicated region
      $region41: #{pctnet_forward.18} parent=35 // pred_check
        %p1599 = pneg %p176
      $region42: #{pctnet_forward.18} parent=35 // pred_check_branch
        %1601 = sbr.rel (%p1599) target = $region44
      $region43: #{pctnet_forward.18} parent=35 // pred_region
        %s1602 = smul.u32 8, %s23
      $region44: #{pctnet_forward.18} parent=35 // pred_fallthru
        _
      // Predicated region
      $region45: #{pctnet_forward.18} parent=35 // pred_check
        %p1603 = pneg %p204
      $region46: #{pctnet_forward.18} parent=35 // pred_check_branch
        %1605 = sbr.rel (%p1603) target = $region48
      $region47: #{pctnet_forward.18} parent=35 // pred_region
        %s1606 = smul.u32 8, %s23
      $region48: #{pctnet_forward.18} parent=35 // pred_fallthru
        _
    $region36: #{pctnet_forward.18} parent=5 // pred_fallthru
      _
    %p1607 = scmp.le.s32.totalorder 2, %s13
    // Predicated region
    $region49: #{pctnet_forward.18} parent=5 // pred_check
      %p1608 = pneg %p1607
    $region50: #{pctnet_forward.18} parent=5 // pred_check_branch
      %1610 = sbr.rel (%p1608) target = $region52
    $region51: #{pctnet_forward.18} parent=5 // pred_region
      %s1611 = ssub.s32 %s13, 2
      // Predicated region
      $region53: #{pctnet_forward.18} parent=51 // pred_check
        %p1612 = pneg %p154
      $region54: #{pctnet_forward.18} parent=51 // pred_check_branch
        %1614 = sbr.rel (%p1612) target = $region56
      $region55: #{pctnet_forward.18} parent=51 // pred_region
        %s1615 = smul.u32 8, %s25
        %p1616 = scmp.lt.s32.totalorder %s24, 1
        %s1617 = scalar_select %p1616, %s24, 1
        %p1618 = scmp.lt.s32.totalorder %s1615, 7
        %s1619 = scalar_select %p1618, %s1615, 7
        %s1620 = smul.addr %s1617, 8
        %s1621 = sadd.s32 %s1619, %s1620
        %s1622 = smul.addr %s1621, 4
        %s1623 = scalar_lea.vmem %s4, %s1622
      $region56: #{pctnet_forward.18} parent=51 // pred_fallthru
        _
      // Predicated region
      $region57: #{pctnet_forward.18} parent=51 // pred_check
        %p1624 = pneg %p182
      $region58: #{pctnet_forward.18} parent=51 // pred_check_branch
        %1626 = sbr.rel (%p1624) target = $region60
      $region59: #{pctnet_forward.18} parent=51 // pred_region
        %s1627 = smul.u32 8, %s25
        %p1628 = scmp.lt.s32.totalorder %s24, 1
        %s1629 = scalar_select %p1628, %s24, 1
        %p1630 = scmp.lt.s32.totalorder %s1627, 7
        %s1631 = scalar_select %p1630, %s1627, 7
        %s1632 = smul.addr %s1629, 16
        %s1633 = sadd.s32 %s1631, %s1632
        %s1634 = smul.addr %s1633, 8
        %s1635 = scalar_lea.vmem %s5, %s1634
      $region60: #{pctnet_forward.18} parent=51 // pred_fallthru
        _
      // Predicated region
      $region61: #{pctnet_forward.18} parent=51 // pred_check
        %p1636 = pneg %p210
      $region62: #{pctnet_forward.18} parent=51 // pred_check_branch
        %1638 = sbr.rel (%p1636) target = $region64
      $region63: #{pctnet_forward.18} parent=51 // pred_region
        %s1639 = smul.u32 8, %s25
        %p1640 = scmp.lt.s32.totalorder %s24, 1
        %s1641 = scalar_select %p1640, %s24, 1
        %p1642 = scmp.lt.s32.totalorder %s1639, 7
        %s1643 = scalar_select %p1642, %s1639, 7
        %s1644 = smul.addr %s1641, 8
        %s1645 = sadd.s32 %s1643, %s1644
        %s1646 = scalar_lea.vmem %s6, %s1645
      $region64: #{pctnet_forward.18} parent=51 // pred_fallthru
        _
    $region52: #{pctnet_forward.18} parent=5 // pred_fallthru
      _
  $region6: #{pctnet_forward.18} parent=0 // loop_footer
    %s17 = sadd.s32 1, %s13
  $region7: #{pctnet_forward.18} parent=0 // loop_footer_branch
    %12 = sbr.rel target = $region3
  $region8: #{pctnet_forward.18} parent=0 // loop_exit
    _

// kernel: pctnet_forward.19
$region0: #{pctnet_forward.19}
  #allocation0 [shape = 'u32[]', space=smem, size = 0x4, offset = 0x4, fixed_abs, tag = 'smem constant byte address 0x4 - core index']
  #allocation1 [shape = 'u32[144,128]{1,0:T(1,128)}', space=vmem, size = 0x12000, scoped, tag = 'internal scratch']
  %s0 = inlined_call_operand.vmem [shape: f32[2,3,4096], index: 0, kind: input, shape index: {}]
  %s1 = inlined_call_operand.vmem [shape: f32[2,12,4096], index: 1, kind: input, shape index: {}]
  %s2 = inlined_call_operand.vmem [shape: f32[2,1,4096], index: 2, kind: input, shape index: {}]
  %s3 = inlined_call_operand.vmem [shape: f32[2,3,4096], index: 3, kind: output, shape index: {}]
  %s4 = sld [smem:[#allocation0]]
  $region45: #{pctnet_forward.19} parent=0
    _
  %s6 = ssub.s32 1, %s4
  %s7 = scalar_select 0, %s6, %s4
  loop: start=0, step=1, limit=4
  $region2: #{pctnet_forward.19} parent=0 // loop_pre_header
    _
  $region3: #{pctnet_forward.19} parent=0 // loop_header
    %s9 = sphi 0, %s13
    %p10 = scmp.ge.s32.totalorder %s9, 4
    %s16 = sphi 0, %s28
    %s17 = sphi 0, %s24
    %s18 = sphi 0, %s16
    %s19 = sphi 0, %s17
    %s20 = sphi 0, %s18
    %s21 = sphi 0, %s19
    %s33 = sphi 0, %s35
    %s36 = sphi 0, %s33
    %s37 = sphi 0, %s36
    %s53 = sphi 0, %s37
    %s61 = sphi 0, %s63
    %s64 = sphi 0, %s61
    %s65 = sphi 0, %s64
    %s81 = sphi 0, %s65
    %s89 = sphi 0, %s91
    %s92 = sphi 0, %s89
    %s93 = sphi 0, %s92
    %s109 = sphi 0, %s93
    %s117 = sphi 0, %s119
    %s120 = sphi 0, %s117
    %s121 = sphi 0, %s120
    %s137 = sphi 0, %s121
  $region4: #{pctnet_forward.19} parent=0 // loop_header_branch
    %12 = sbr.rel (%p10) target = $region8
  $region5: #{pctnet_forward.19} parent=0 // loop_body
    %s14 = ssub.s32 %s9, 1
    %s15 = ssub.s32 %s9, 2
    %s22 = sadd.s32 1, %s17
    %p23 = scmp.ge.s32.totalorder %s22, 1
    %s24 = scalar_select %p23, 0, %s22
    %s25 = sadd.s32 1, %s16
    %s26 = scalar_select %p23, %s25, %s16
    %p27 = scmp.ge.s32.totalorder %s26, 2
    %s28 = scalar_select %p27, 0, %s26
    %s29 = ssub.s32 %s16, %s28
    %s30 = ssub.s32 %s17, %s24
    %s31 = sor.u32 %s29, %s30
    %p32 = scmp.eq.s32.totalorder %s31, 0
    %s34 = sadd.s32 %s33, 1
    %s35 = scalar_select %p32, %s33, %s34
    %p38 = pneg %p32
    %p39 = scmp.eq.s32.totalorder %s9, 1
    %p40 = por %p38, %p39
    %p41 = scmp.ne.s32.totalorder %s33, %s36
    %p42 = scmp.eq.s32.totalorder %s9, 0
    %p43 = por %p41, %p42
    %p44 = scmp.ne.s32.totalorder %s33, %s36
    %p45 = scmp.eq.s32.totalorder %s14, 1
    %p46 = por %p44, %p45
    %p47 = scmp.ne.s32.totalorder %s36, %s37
    %p48 = scmp.eq.s32.totalorder %s14, 0
    %p49 = por %p47, %p48
    %p50 = scmp.ne.s32.totalorder %s36, %s37
    %p51 = scmp.eq.s32.totalorder %s15, 1
    %p52 = por %p50, %p51
    %p54 = scmp.ne.s32.totalorder %s37, %s53
    %p55 = scmp.eq.s32.totalorder %s15, 0
    %p56 = por %p54, %p55
    %s57 = ssub.s32 %s16, %s28
    %s58 = ssub.s32 %s17, %s24
    %s59 = sor.u32 %s57, %s58
    %p60 = scmp.eq.s32.totalorder %s59, 0
    %s62 = sadd.s32 %s61, 1
    %s63 = scalar_select %p60, %s61, %s62
    %p66 = pneg %p60
    %p67 = scmp.eq.s32.totalorder %s9, 1
    %p68 = por %p66, %p67
    %p69 = scmp.ne.s32.totalorder %s61, %s64
    %p70 = scmp.eq.s32.totalorder %s9, 0
    %p71 = por %p69, %p70
    %p72 = scmp.ne.s32.totalorder %s61, %s64
    %p73 = scmp.eq.s32.totalorder %s14, 1
    %p74 = por %p72, %p73
    %p75 = scmp.ne.s32.totalorder %s64, %s65
    %p76 = scmp.eq.s32.totalorder %s14, 0
    %p77 = por %p75, %p76
    %p78 = scmp.ne.s32.totalorder %s64, %s65
    %p79 = scmp.eq.s32.totalorder %s15, 1
    %p80 = por %p78, %p79
    %p82 = scmp.ne.s32.totalorder %s65, %s81
    %p83 = scmp.eq.s32.totalorder %s15, 0
    %p84 = por %p82, %p83
    %s85 = ssub.s32 %s16, %s28
    %s86 = ssub.s32 %s17, %s24
    %s87 = sor.u32 %s85, %s86
    %p88 = scmp.eq.s32.totalorder %s87, 0
    %s90 = sadd.s32 %s89, 1
    %s91 = scalar_select %p88, %s89, %s90
    %p94 = pneg %p88
    %p95 = scmp.eq.s32.totalorder %s9, 1
    %p96 = por %p94, %p95
    %p97 = scmp.ne.s32.totalorder %s89, %s92
    %p98 = scmp.eq.s32.totalorder %s9, 0
    %p99 = por %p97, %p98
    %p100 = scmp.ne.s32.totalorder %s89, %s92
    %p101 = scmp.eq.s32.totalorder %s14, 1
    %p102 = por %p100, %p101
    %p103 = scmp.ne.s32.totalorder %s92, %s93
    %p104 = scmp.eq.s32.totalorder %s14, 0
    %p105 = por %p103, %p104
    %p106 = scmp.ne.s32.totalorder %s92, %s93
    %p107 = scmp.eq.s32.totalorder %s15, 1
    %p108 = por %p106, %p107
    %p110 = scmp.ne.s32.totalorder %s93, %s109
    %p111 = scmp.eq.s32.totalorder %s15, 0
    %p112 = por %p110, %p111
    %s113 = ssub.s32 %s16, %s28
    %s114 = ssub.s32 %s17, %s24
    %s115 = sor.u32 %s113, %s114
    %p116 = scmp.eq.s32.totalorder %s115, 0
    %s118 = sadd.s32 %s117, 1
    %s119 = scalar_select %p116, %s117, %s118
    %p122 = pneg %p116
    %p123 = scmp.eq.s32.totalorder %s9, 1
    %p124 = por %p122, %p123
    %p125 = scmp.ne.s32.totalorder %s117, %s120
    %p126 = scmp.eq.s32.totalorder %s9, 0
    %p127 = por %p125, %p126
    %p128 = scmp.ne.s32.totalorder %s117, %s120
    %p129 = scmp.eq.s32.totalorder %s14, 1
    %p130 = por %p128, %p129
    %p131 = scmp.ne.s32.totalorder %s120, %s121
    %p132 = scmp.eq.s32.totalorder %s14, 0
    %p133 = por %p131, %p132
    %p134 = scmp.ne.s32.totalorder %s120, %s121
    %p135 = scmp.eq.s32.totalorder %s15, 1
    %p136 = por %p134, %p135
    %p138 = scmp.ne.s32.totalorder %s121, %s137
    %p139 = scmp.eq.s32.totalorder %s15, 0
    %p140 = por %p138, %p139
    %p141 = scmp.le.s32.totalorder 1, %s9
    %p142 = scmp.lt.s32.totalorder %s9, 3
    %p143 = pnand %p141, %p142
    %p144 = pneg %p143
    // Predicated region
    $region9: #{pctnet_forward.19} parent=5 // pred_check
      _
    $region10: #{pctnet_forward.19} parent=5 // pred_check_branch
      %146 = sbr.rel (%p143) target = $region12
    $region11: #{pctnet_forward.19} parent=5 // pred_region
      %s147 = ssub.s32 %s9, 1
    $region12: #{pctnet_forward.19} parent=5 // pred_fallthru
      _
    %p148 = scmp.lt.s32.totalorder %s9, 2
    // Predicated region
    $region13: #{pctnet_forward.19} parent=5 // pred_check
      %p149 = pneg %p148
    $region14: #{pctnet_forward.19} parent=5 // pred_check_branch
      %151 = sbr.rel (%p149) target = $region16
    $region15: #{pctnet_forward.19} parent=5 // pred_region
      // Predicated region
      $region17: #{pctnet_forward.19} parent=15 // pred_check
        %p152 = pneg %p43
      $region18: #{pctnet_forward.19} parent=15 // pred_check_branch
        %154 = sbr.rel (%p152) target = $region20
      $region19: #{pctnet_forward.19} parent=15 // pred_region
        %s155 = smul.u32 32, %s17
        %p156 = scmp.lt.s32.totalorder %s16, 1
        %s157 = scalar_select %p156, %s16, 1
        %p158 = scmp.lt.s32.totalorder %s155, 31
        %s159 = scalar_select %p158, %s155, 31
        %s160 = smul.addr %s157, 32
        %s161 = sadd.s32 %s159, %s160
        %s162 = smul.addr %s161, 4
        %s163 = scalar_lea.vmem %s0, %s162
        %s164 = smul.u32 32, %s17
      $region20: #{pctnet_forward.19} parent=15 // pred_fallthru
        _
      // Predicated region
      $region21: #{pctnet_forward.19} parent=15 // pred_check
        %p165 = pneg %p71
      $region22: #{pctnet_forward.19} parent=15 // pred_check_branch
        %167 = sbr.rel (%p165) target = $region24
      $region23: #{pctnet_forward.19} parent=15 // pred_region
        %s168 = smul.u32 32, %s17
        %p169 = scmp.lt.s32.totalorder %s16, 1
        %s170 = scalar_select %p169, %s16, 1
        %p171 = scmp.lt.s32.totalorder %s168, 31
        %s172 = scalar_select %p171, %s168, 31
        %s173 = smul.addr %s170, 64
        %s174 = sadd.s32 %s172, %s173
        %s175 = smul.addr %s174, 8
        %s176 = scalar_lea.vmem %s1, %s175
        %s177 = smul.u32 32, %s17
      $region24: #{pctnet_forward.19} parent=15 // pred_fallthru
        _
      // Predicated region
      $region25: #{pctnet_forward.19} parent=15 // pred_check
        %p178 = pneg %p99
      $region26: #{pctnet_forward.19} parent=15 // pred_check_branch
        %180 = sbr.rel (%p178) target = $region28
      $region27: #{pctnet_forward.19} parent=15 // pred_region
        %s181 = smul.u32 32, %s17
        %p182 = scmp.lt.s32.totalorder %s16, 1
        %s183 = scalar_select %p182, %s16, 1
        %p184 = scmp.lt.s32.totalorder %s181, 31
        %s185 = scalar_select %p184, %s181, 31
        %s186 = smul.addr %s183, 32
        %s187 = sadd.s32 %s185, %s186
        %s188 = scalar_lea.vmem %s2, %s187
        %s189 = smul.u32 32, %s17
      $region28: #{pctnet_forward.19} parent=15 // pred_fallthru
        _
    $region16: #{pctnet_forward.19} parent=5 // pred_fallthru
      _
    %p190 = scmp.le.s32.totalorder 1, %s9
    %p191 = scmp.lt.s32.totalorder %s9, 3
    %p192 = pnand %p190, %p191
    %p193 = pneg %p192
    // Predicated region
    $region29: #{pctnet_forward.19} parent=5 // pred_check
      _
    $region30: #{pctnet_forward.19} parent=5 // pred_check_branch
      %195 = sbr.rel (%p192) target = $region32
    $region31: #{pctnet_forward.19} parent=5 // pred_region
      %s196 = ssub.s32 %s9, 1
      %s197 = smul.u32 32, %s19
      %p198 = scmp.lt.s32.totalorder %s18, 1
      %s199 = scalar_select %p198, %s18, 1
      %p200 = scmp.lt.s32.totalorder %s197, 31
      %s201 = scalar_select %p200, %s197, 31
      %s202 = smul.addr %s199, 32
      %s203 = sadd.s32 %s201, %s202
      %s204 = smul.addr %s203, 4
      %s205 = scalar_lea.vmem %s0, %s204
      %p206 = pneg %p49
      %p207 = pneg %p46
      %s208 = smul.u32 32, %s19
      %p209 = scmp.lt.s32.totalorder %s18, 1
      %s210 = scalar_select %p209, %s18, 1
      %p211 = scmp.lt.s32.totalorder %s208, 31
      %s212 = scalar_select %p211, %s208, 31
      %s213 = smul.addr %s210, 64
      %s214 = sadd.s32 %s212, %s213
      %s215 = smul.addr %s214, 8
      %s216 = scalar_lea.vmem %s1, %s215
      %p217 = pneg %p77
      %p218 = pneg %p74
      %s219 = smul.u32 32, %s19
      %p220 = scmp.lt.s32.totalorder %s18, 1
      %s221 = scalar_select %p220, %s18, 1
      %p222 = scmp.lt.s32.totalorder %s219, 31
      %s223 = scalar_select %p222, %s219, 31
      %s224 = smul.addr %s221, 32
      %s225 = sadd.s32 %s223, %s224
      %s226 = scalar_lea.vmem %s2, %s225
      %p227 = pneg %p105
      %p228 = pneg %p102
      %p229 = pneg %p133
      %p230 = pneg %p130
      %s231 = smul.u32 32, %s19
      %p232 = scmp.lt.s32.totalorder %s18, 1
      %s233 = scalar_select %p232, %s18, 1
      %p234 = scmp.lt.s32.totalorder %s231, 31
      %s235 = scalar_select %p234, %s231, 31
      %s236 = smul.addr %s233, 32
      %s237 = sadd.s32 %s235, %s236
      %s238 = smul.addr %s237, 4
      %s239 = scalar_lea.vmem %s3, %s238
      %s240 = smul.u32 32, %s19
      %p241 = scmp.lt.s32.totalorder %s18, 1
      %s242 = scalar_select %p241, %s18, 1
      %p243 = scmp.lt.s32.totalorder %s240, 31
      %s244 = scalar_select %p243, %s240, 31
      %s245 = smul.addr %s242, 32
      %s246 = sadd.s32 %s244, %s245
      %s247 = smul.addr %s246, 4
      %s248 = scalar_lea.vmem %s0, %s247
      %s249 = smul.u32 32, %s19
      %s250 = smul.u32 32, %s19
      %p251 = scmp.lt.s32.totalorder %s18, 1
      %s252 = scalar_select %p251, %s18, 1
      %p253 = scmp.lt.s32.totalorder %s250, 31
      %s254 = scalar_select %p253, %s250, 31
      %s255 = smul.addr %s252, 64
      %s256 = sadd.s32 %s254, %s255
      %s257 = smul.addr %s256, 8
      %s258 = scalar_lea.vmem %s1, %s257
      %s259 = smul.u32 32, %s19
      %s260 = smul.u32 32, %s19
      %p261 = scmp.lt.s32.totalorder %s18, 1
      %s262 = scalar_select %p261, %s18, 1
      %p263 = scmp.lt.s32.totalorder %s260, 31
      %s264 = scalar_select %p263, %s260, 31
      %s265 = smul.addr %s262, 32
      %s266 = sadd.s32 %s264, %s265
      %s267 = scalar_lea.vmem %s2, %s266
      %s268 = smul.u32 32, %s19
      %s269 = smul.u32 32, %s19
      %p270 = scmp.lt.s32.totalorder %s18, 1
      %s271 = scalar_select %p270, %s18, 1
      %p272 = scmp.lt.s32.totalorder %s269, 31
      %s273 = scalar_select %p272, %s269, 31
      %s274 = smul.addr %s271, 32
      %s275 = sadd.s32 %s273, %s274
      %s276 = smul.addr %s275, 4
      %s277 = scalar_lea.vmem %s3, %s276
      %s278 = smul.u32 32, %s19
      %v279 = vld [vmem:[%s248] sm:$0x77]
      %v280 = vld [vmem:[%s248 + $0x8] sm:$0x77]
      %v281 = vld [vmem:[%s248 + $0x10] sm:$0x77]
      %v282 = vld [vmem:[%s248 + $0x18] sm:$0x77]
      %v283 = vld [vmem:[%s248 + $0x20] sm:$0x77]
      %v284 = vld [vmem:[%s248 + $0x28] sm:$0x77]
      %v285 = vld [vmem:[%s248 + $0x30] sm:$0x77]
      %v286 = vld [vmem:[%s248 + $0x38] sm:$0x77]
      %v287 = vld [vmem:[%s248 + $0x40] sm:$0x77]
      %v288 = vld [vmem:[%s248 + $0x48] sm:$0x77]
      %v289 = vld [vmem:[%s248 + $0x50] sm:$0x77]
      %v290 = vld [vmem:[%s248 + $0x58] sm:$0x77]
      %v291 = vld [vmem:[%s248 + $0x60] sm:$0x77]
      %v292 = vld [vmem:[%s248 + $0x68] sm:$0x77]
      %v293 = vld [vmem:[%s248 + $0x70] sm:$0x77]
      %v294 = vld [vmem:[%s248 + $0x78] sm:$0x77]
      %v295 = vld [vmem:[%s258] sm:$0xff]
      %v296 = vld [vmem:[%s258 + $0x8] sm:$0xff]
      %v297 = vld [vmem:[%s258 + $0x10] sm:$0xff]
      %v298 = vld [vmem:[%s258 + $0x18] sm:$0xff]
      %v299 = vld [vmem:[%s258 + $0x20] sm:$0xff]
      %v300 = vld [vmem:[%s258 + $0x28] sm:$0xff]
      %v301 = vld [vmem:[%s258 + $0x30] sm:$0xff]
      %v302 = vld [vmem:[%s258 + $0x38] sm:$0xff]
      %v303 = vld [vmem:[%s258 + $0x40] sm:$0xff]
      %v304 = vld [vmem:[%s258 + $0x48] sm:$0xff]
      %v305 = vld [vmem:[%s258 + $0x50] sm:$0xff]
      %v306 = vld [vmem:[%s258 + $0x58] sm:$0xff]
      %v307 = vld [vmem:[%s258 + $0x60] sm:$0xff]
      %v308 = vld [vmem:[%s258 + $0x68] sm:$0xff]
      %v309 = vld [vmem:[%s258 + $0x70] sm:$0xff]
      %v310 = vld [vmem:[%s258 + $0x78] sm:$0xff]
      %v311 = vld [vmem:[%s258 + $0x80] sm:$0xff]
      %v312 = vld [vmem:[%s258 + $0x88] sm:$0xff]
      %v313 = vld [vmem:[%s258 + $0x90] sm:$0xff]
      %v314 = vld [vmem:[%s258 + $0x98] sm:$0xff]
      %v315 = vld [vmem:[%s258 + $0xa0] sm:$0xff]
      %v316 = vld [vmem:[%s258 + $0xa8] sm:$0xff]
      %v317 = vld [vmem:[%s258 + $0xb0] sm:$0xff]
      %v318 = vld [vmem:[%s258 + $0xb8] sm:$0xff]
      %v319 = vld [vmem:[%s258 + $0xc0] sm:$0xff]
      %v320 = vld [vmem:[%s258 + $0xc8] sm:$0xff]
      %v321 = vld [vmem:[%s258 + $0xd0] sm:$0xff]
      %v322 = vld [vmem:[%s258 + $0xd8] sm:$0xff]
      %v323 = vld [vmem:[%s258 + $0xe0] sm:$0xff]
      %v324 = vld [vmem:[%s258 + $0xe8] sm:$0xff]
      %v325 = vld [vmem:[%s258 + $0xf0] sm:$0xff]
      %v326 = vld [vmem:[%s258 + $0xf8] sm:$0xff]
      %v327 = vld [vmem:[%s258 + $0x100] sm:$0xf]
      %v328 = vld [vmem:[%s258 + $0x108] sm:$0xf]
      %v329 = vld [vmem:[%s258 + $0x110] sm:$0xf]
      %v330 = vld [vmem:[%s258 + $0x118] sm:$0xf]
      %v331 = vld [vmem:[%s258 + $0x120] sm:$0xf]
      %v332 = vld [vmem:[%s258 + $0x128] sm:$0xf]
      %v333 = vld [vmem:[%s258 + $0x130] sm:$0xf]
      %v334 = vld [vmem:[%s258 + $0x138] sm:$0xf]
      %v335 = vld [vmem:[%s258 + $0x140] sm:$0xf]
      %v336 = vld [vmem:[%s258 + $0x148] sm:$0xf]
      %v337 = vld [vmem:[%s258 + $0x150] sm:$0xf]
      %v338 = vld [vmem:[%s258 + $0x158] sm:$0xf]
      %v339 = vld [vmem:[%s258 + $0x160] sm:$0xf]
      %v340 = vld [vmem:[%s258 + $0x168] sm:$0xf]
      %v341 = vld [vmem:[%s258 + $0x170] sm:$0xf]
      %v342 = vld [vmem:[%s258 + $0x178] sm:$0xf]
      %v343 = vld [vmem:[%s258 + $0x180] sm:$0xf]
      %v344 = vld [vmem:[%s258 + $0x188] sm:$0xf]
      %v345 = vld [vmem:[%s258 + $0x190] sm:$0xf]
      %v346 = vld [vmem:[%s258 + $0x198] sm:$0xf]
      %v347 = vld [vmem:[%s258 + $0x1a0] sm:$0xf]
      %v348 = vld [vmem:[%s258 + $0x1a8] sm:$0xf]
      %v349 = vld [vmem:[%s258 + $0x1b0] sm:$0xf]
      %v350 = vld [vmem:[%s258 + $0x1b8] sm:$0xf]
      %v351 = vld [vmem:[%s258 + $0x1c0] sm:$0xf]
      %v352 = vld [vmem:[%s258 + $0x1c8] sm:$0xf]
      %v353 = vld [vmem:[%s258 + $0x1d0] sm:$0xf]
      %v354 = vld [vmem:[%s258 + $0x1d8] sm:$0xf]
      %v355 = vld [vmem:[%s258 + $0x1e0] sm:$0xf]
      %v356 = vld [vmem:[%s258 + $0x1e8] sm:$0xf]
      %v357 = vld [vmem:[%s258 + $0x1f0] sm:$0xf]
      %v358 = vld [vmem:[%s258 + $0x1f8] sm:$0xf]
      %v359 = vld [vmem:[%s267] sm:$0xff]
      %v360 = vld [vmem:[%s267 + $0x8] sm:$0xff]
      %v361 = vld [vmem:[%s267 + $0x10] sm:$0xff]
      %v362 = vld [vmem:[%s267 + $0x18] sm:$0xff]
      %v363 = vmul.f32 %v279, 0.229
      %v364 = vmul.f32 %v280, 0.229
      %v365 = vmul.f32 %v281, 0.229
      %v366 = vmul.f32 %v282, 0.229
      %v367 = vmul.f32 %v283, 0.229
      %v368 = vmul.f32 %v284, 0.229
      %v369 = vmul.f32 %v285, 0.229
      %v370 = vmul.f32 %v286, 0.229
      %v371 = vmul.f32 %v287, 0.229
      %v372 = vmul.f32 %v288, 0.229
      %v373 = vmul.f32 %v289, 0.229
      %v374 = vmul.f32 %v290, 0.229
      %v375 = vmul.f32 %v291, 0.229
      %v376 = vmul.f32 %v292, 0.229
      %v377 = vmul.f32 %v293, 0.229
      %v378 = vmul.f32 %v294, 0.229
      %v379 = vadd.f32 %v363, 0.485
      %v380 = vadd.f32 %v364, 0.485
      %v381 = vadd.f32 %v365, 0.485
      %v382 = vadd.f32 %v366, 0.485
      %v383 = vadd.f32 %v367, 0.485
      %v384 = vadd.f32 %v368, 0.485
      %v385 = vadd.f32 %v369, 0.485
      %v386 = vadd.f32 %v370, 0.485
      %v387 = vadd.f32 %v371, 0.485
      %v388 = vadd.f32 %v372, 0.485
      %v389 = vadd.f32 %v373, 0.485
      %v390 = vadd.f32 %v374, 0.485
      %v391 = vadd.f32 %v375, 0.485
      %v392 = vadd.f32 %v376, 0.485
      %v393 = vadd.f32 %v377, 0.485
      %v394 = vadd.f32 %v378, 0.485
      %v395 = vmul.f32 %v279, 0.224
      %v396 = vmul.f32 %v280, 0.224
      %v397 = vmul.f32 %v281, 0.224
      %v398 = vmul.f32 %v282, 0.224
      %v399 = vmul.f32 %v283, 0.224
      %v400 = vmul.f32 %v284, 0.224
      %v401 = vmul.f32 %v285, 0.224
      %v402 = vmul.f32 %v286, 0.224
      %v403 = vmul.f32 %v287, 0.224
      %v404 = vmul.f32 %v288, 0.224
      %v405 = vmul.f32 %v289, 0.224
      %v406 = vmul.f32 %v290, 0.224
      %v407 = vmul.f32 %v291, 0.224
      %v408 = vmul.f32 %v292, 0.224
      %v409 = vmul.f32 %v293, 0.224
      %v410 = vmul.f32 %v294, 0.224
      %v411 = vadd.f32 %v395, 0.456
      %v412 = vadd.f32 %v396, 0.456
      %v413 = vadd.f32 %v397, 0.456
      %v414 = vadd.f32 %v398, 0.456
      %v415 = vadd.f32 %v399, 0.456
      %v416 = vadd.f32 %v400, 0.456
      %v417 = vadd.f32 %v401, 0.456
      %v418 = vadd.f32 %v402, 0.456
      %v419 = vadd.f32 %v403, 0.456
      %v420 = vadd.f32 %v404, 0.456
      %v421 = vadd.f32 %v405, 0.456
      %v422 = vadd.f32 %v406, 0.456
      %v423 = vadd.f32 %v407, 0.456
      %v424 = vadd.f32 %v408, 0.456
      %v425 = vadd.f32 %v409, 0.456
      %v426 = vadd.f32 %v410, 0.456
      %v427 = vmul.f32 %v279, 0.225
      %v428 = vmul.f32 %v280, 0.225
      %v429 = vmul.f32 %v281, 0.225
      %v430 = vmul.f32 %v282, 0.225
      %v431 = vmul.f32 %v283, 0.225
      %v432 = vmul.f32 %v284, 0.225
      %v433 = vmul.f32 %v285, 0.225
      %v434 = vmul.f32 %v286, 0.225
      %v435 = vmul.f32 %v287, 0.225
      %v436 = vmul.f32 %v288, 0.225
      %v437 = vmul.f32 %v289, 0.225
      %v438 = vmul.f32 %v290, 0.225
      %v439 = vmul.f32 %v291, 0.225
      %v440 = vmul.f32 %v292, 0.225
      %v441 = vmul.f32 %v293, 0.225
      %v442 = vmul.f32 %v294, 0.225
      %v443 = vadd.f32 %v427, 0.406
      %v444 = vadd.f32 %v428, 0.406
      %v445 = vadd.f32 %v429, 0.406
      %v446 = vadd.f32 %v430, 0.406
      %v447 = vadd.f32 %v431, 0.406
      %v448 = vadd.f32 %v432, 0.406
      %v449 = vadd.f32 %v433, 0.406
      %v450 = vadd.f32 %v434, 0.406
      %v451 = vadd.f32 %v435, 0.406
      %v452 = vadd.f32 %v436, 0.406
      %v453 = vadd.f32 %v437, 0.406
      %v454 = vadd.f32 %v438, 0.406
      %v455 = vadd.f32 %v439, 0.406
      %v456 = vadd.f32 %v440, 0.406
      %v457 = vadd.f32 %v441, 0.406
      %v458 = vadd.f32 %v442, 0.406
      %v475 = vlaneseq
      %v476 = vshrl.u32 %v475, 7
      %v477 = vsub.s32 0, %v476
      %v478 = vrot.slane %v379, %v477
      %v479 = vlaneseq
      %v480 = vshrl.u32 %v479, 7
      %v481 = vsub.s32 4, %v480
      %v482 = vrot.slane %v379, %v481
      %v483 = vlaneseq
      %v484 = vshrl.u32 %v483, 7
      %v485 = vsub.s32 0, %v484
      %v486 = vrot.slane %v380, %v485
      %v487 = vlaneseq
      %v488 = vshrl.u32 %v487, 7
      %v489 = vsub.s32 4, %v488
      %v490 = vrot.slane %v380, %v489
      %v491 = vlaneseq
      %v492 = vshrl.u32 %v491, 7
      %v493 = vsub.s32 0, %v492
      %v494 = vrot.slane %v381, %v493
      %v495 = vlaneseq
      %v496 = vshrl.u32 %v495, 7
      %v497 = vsub.s32 4, %v496
      %v498 = vrot.slane %v381, %v497
      %v499 = vlaneseq
      %v500 = vshrl.u32 %v499, 7
      %v501 = vsub.s32 0, %v500
      %v502 = vrot.slane %v382, %v501
      %v503 = vlaneseq
      %v504 = vshrl.u32 %v503, 7
      %v505 = vsub.s32 4, %v504
      %v506 = vrot.slane %v382, %v505
      %v507 = vlaneseq
      %v508 = vshrl.u32 %v507, 7
      %v509 = vsub.s32 0, %v508
      %v510 = vrot.slane %v383, %v509
      %v511 = vlaneseq
      %v512 = vshrl.u32 %v511, 7
      %v513 = vsub.s32 4, %v512
      %v514 = vrot.slane %v383, %v513
      %v515 = vlaneseq
      %v516 = vshrl.u32 %v515, 7
      %v517 = vsub.s32 0, %v516
      %v518 = vrot.slane %v384, %v517
      %v519 = vlaneseq
      %v520 = vshrl.u32 %v519, 7
      %v521 = vsub.s32 4, %v520
      %v522 = vrot.slane %v384, %v521
      %v523 = vlaneseq
      %v524 = vshrl.u32 %v523, 7
      %v525 = vsub.s32 0, %v524
      %v526 = vrot.slane %v385, %v525
      %v527 = vlaneseq
      %v528 = vshrl.u32 %v527, 7
      %v529 = vsub.s32 4, %v528
      %v530 = vrot.slane %v385, %v529
      %v531 = vlaneseq
      %v532 = vshrl.u32 %v531, 7
      %v533 = vsub.s32 0, %v532
      %v534 = vrot.slane %v386, %v533
      %v535 = vlaneseq
      %v536 = vshrl.u32 %v535, 7
      %v537 = vsub.s32 4, %v536
      %v538 = vrot.slane %v386, %v537
      %v539 = vlaneseq
      %v540 = vshrl.u32 %v539, 7
      %v541 = vsub.s32 0, %v540
      %v542 = vrot.slane %v387, %v541
      %v543 = vlaneseq
      %v544 = vshrl.u32 %v543, 7
      %v545 = vsub.s32 4, %v544
      %v546 = vrot.slane %v387, %v545
      %v547 = vlaneseq
      %v548 = vshrl.u32 %v547, 7
      %v549 = vsub.s32 0, %v548
      %v550 = vrot.slane %v388, %v549
      %v551 = vlaneseq
      %v552 = vshrl.u32 %v551, 7
      %v553 = vsub.s32 4, %v552
      %v554 = vrot.slane %v388, %v553
      %v555 = vlaneseq
      %v556 = vshrl.u32 %v555, 7
      %v557 = vsub.s32 0, %v556
      %v558 = vrot.slane %v389, %v557
      %v559 = vlaneseq
      %v560 = vshrl.u32 %v559, 7
      %v561 = vsub.s32 4, %v560
      %v562 = vrot.slane %v389, %v561
      %v563 = vlaneseq
      %v564 = vshrl.u32 %v563, 7
      %v565 = vsub.s32 0, %v564
      %v566 = vrot.slane %v390, %v565
      %v567 = vlaneseq
      %v568 = vshrl.u32 %v567, 7
      %v569 = vsub.s32 4, %v568
      %v570 = vrot.slane %v390, %v569
      %v571 = vlaneseq
      %v572 = vshrl.u32 %v571, 7
      %v573 = vsub.s32 0, %v572
      %v574 = vrot.slane %v391, %v573
      %v575 = vlaneseq
      %v576 = vshrl.u32 %v575, 7
      %v577 = vsub.s32 4, %v576
      %v578 = vrot.slane %v391, %v577
      %v579 = vlaneseq
      %v580 = vshrl.u32 %v579, 7
      %v581 = vsub.s32 0, %v580
      %v582 = vrot.slane %v392, %v581
      %v583 = vlaneseq
      %v584 = vshrl.u32 %v583, 7
      %v585 = vsub.s32 4, %v584
      %v586 = vrot.slane %v392, %v585
      %v587 = vlaneseq
      %v588 = vshrl.u32 %v587, 7
      %v589 = vsub.s32 0, %v588
      %v590 = vrot.slane %v393, %v589
      %v591 = vlaneseq
      %v592 = vshrl.u32 %v591, 7
      %v593 = vsub.s32 4, %v592
      %v594 = vrot.slane %v393, %v593
      %v595 = vlaneseq
      %v596 = vshrl.u32 %v595, 7
      %v597 = vsub.s32 0, %v596
      %v598 = vrot.slane %v394, %v597
      %v599 = vlaneseq
      %v600 = vshrl.u32 %v599, 7
      %v601 = vsub.s32 4, %v600
      %v602 = vrot.slane %v394, %v601
      %v635 = vmul.f32 %v295, %v478
      %v636 = vmul.f32 %v296, %v482
      %v637 = vmul.f32 %v297, %v486
      %v638 = vmul.f32 %v298, %v490
      %v639 = vmul.f32 %v299, %v494
      %v640 = vmul.f32 %v300, %v498
      %v641 = vmul.f32 %v301, %v502
      %v642 = vmul.f32 %v302, %v506
      %v643 = vmul.f32 %v303, %v510
      %v644 = vmul.f32 %v304, %v514
      %v645 = vmul.f32 %v305, %v518
      %v646 = vmul.f32 %v306, %v522
      %v647 = vmul.f32 %v307, %v526
      %v648 = vmul.f32 %v308, %v530
      %v649 = vmul.f32 %v309, %v534
      %v650 = vmul.f32 %v310, %v538
      %v651 = vmul.f32 %v311, %v542
      %v652 = vmul.f32 %v312, %v546
      %v653 = vmul.f32 %v313, %v550
      %v654 = vmul.f32 %v314, %v554
      %v655 = vmul.f32 %v315, %v558
      %v656 = vmul.f32 %v316, %v562
      %v657 = vmul.f32 %v317, %v566
      %v658 = vmul.f32 %v318, %v570
      %v659 = vmul.f32 %v319, %v574
      %v660 = vmul.f32 %v320, %v578
      %v661 = vmul.f32 %v321, %v582
      %v662 = vmul.f32 %v322, %v586
      %v663 = vmul.f32 %v323, %v590
      %v664 = vmul.f32 %v324, %v594
      %v665 = vmul.f32 %v325, %v598
      %v666 = vmul.f32 %v326, %v602
      %v699 = vrot.slane %v635, 5
      %v700 = vrot.slane %v636, 5
      %v701 = vrot.slane %v637, 5
      %v702 = vrot.slane %v638, 5
      %v703 = vrot.slane %v639, 5
      %v704 = vrot.slane %v640, 5
      %v705 = vrot.slane %v641, 5
      %v706 = vrot.slane %v642, 5
      %v707 = vrot.slane %v643, 5
      %v708 = vrot.slane %v644, 5
      %v709 = vrot.slane %v645, 5
      %v710 = vrot.slane %v646, 5
      %v711 = vrot.slane %v647, 5
      %v712 = vrot.slane %v648, 5
      %v713 = vrot.slane %v649, 5
      %v714 = vrot.slane %v650, 5
      %v715 = vrot.slane %v651, 5
      %v716 = vrot.slane %v652, 5
      %v717 = vrot.slane %v653, 5
      %v718 = vrot.slane %v654, 5
      %v719 = vrot.slane %v655, 5
      %v720 = vrot.slane %v656, 5
      %v721 = vrot.slane %v657, 5
      %v722 = vrot.slane %v658, 5
      %v723 = vrot.slane %v659, 5
      %v724 = vrot.slane %v660, 5
      %v725 = vrot.slane %v661, 5
      %v726 = vrot.slane %v662, 5
      %v727 = vrot.slane %v663, 5
      %v728 = vrot.slane %v664, 5
      %v729 = vrot.slane %v665, 5
      %v730 = vrot.slane %v666, 5
      %v763 = vadd.f32 %v295, %v699
      %v764 = vadd.f32 %v296, %v700
      %v765 = vadd.f32 %v297, %v701
      %v766 = vadd.f32 %v298, %v702
      %v767 = vadd.f32 %v299, %v703
      %v768 = vadd.f32 %v300, %v704
      %v769 = vadd.f32 %v301, %v705
      %v770 = vadd.f32 %v302, %v706
      %v771 = vadd.f32 %v303, %v707
      %v772 = vadd.f32 %v304, %v708
      %v773 = vadd.f32 %v305, %v709
      %v774 = vadd.f32 %v306, %v710
      %v775 = vadd.f32 %v307, %v711
      %v776 = vadd.f32 %v308, %v712
      %v777 = vadd.f32 %v309, %v713
      %v778 = vadd.f32 %v310, %v714
      %v779 = vadd.f32 %v311, %v715
      %v780 = vadd.f32 %v312, %v716
      %v781 = vadd.f32 %v313, %v717
      %v782 = vadd.f32 %v314, %v718
      %v783 = vadd.f32 %v315, %v719
      %v784 = vadd.f32 %v316, %v720
      %v785 = vadd.f32 %v317, %v721
      %v786 = vadd.f32 %v318, %v722
      %v787 = vadd.f32 %v319, %v723
      %v788 = vadd.f32 %v320, %v724
      %v789 = vadd.f32 %v321, %v725
      %v790 = vadd.f32 %v322, %v726
      %v791 = vadd.f32 %v323, %v727
      %v792 = vadd.f32 %v324, %v728
      %v793 = vadd.f32 %v325, %v729
      %v794 = vadd.f32 %v326, %v730
      %v811 = vlaneseq
      %v812 = vshrl.u32 %v811, 7
      %v813 = vsub.s32 1, %v812
      %v814 = vrot.slane %v411, %v813
      %v815 = vlaneseq
      %v816 = vshrl.u32 %v815, 7
      %v817 = vsub.s32 5, %v816
      %v818 = vrot.slane %v411, %v817
      %v819 = vlaneseq
      %v820 = vshrl.u32 %v819, 7
      %v821 = vsub.s32 1, %v820
      %v822 = vrot.slane %v412, %v821
      %v823 = vlaneseq
      %v824 = vshrl.u32 %v823, 7
      %v825 = vsub.s32 5, %v824
      %v826 = vrot.slane %v412, %v825
      %v827 = vlaneseq
      %v828 = vshrl.u32 %v827, 7
      %v829 = vsub.s32 1, %v828
      %v830 = vrot.slane %v413, %v829
      %v831 = vlaneseq
      %v832 = vshrl.u32 %v831, 7
      %v833 = vsub.s32 5, %v832
      %v834 = vrot.slane %v413, %v833
      %v835 = vlaneseq
      %v836 = vshrl.u32 %v835, 7
      %v837 = vsub.s32 1, %v836
      %v838 = vrot.slane %v414, %v837
      %v839 = vlaneseq
      %v840 = vshrl.u32 %v839, 7
      %v841 = vsub.s32 5, %v840
      %v842 = vrot.slane %v414, %v841
      %v843 = vlaneseq
      %v844 = vshrl.u32 %v843, 7
      %v845 = vsub.s32 1, %v844
      %v846 = vrot.slane %v415, %v845
      %v847 = vlaneseq
      %v848 = vshrl.u32 %v847, 7
      %v849 = vsub.s32 5, %v848
      %v850 = vrot.slane %v415, %v849
      %v851 = vlaneseq
      %v852 = vshrl.u32 %v851, 7
      %v853 = vsub.s32 1, %v852
      %v854 = vrot.slane %v416, %v853
      %v855 = vlaneseq
      %v856 = vshrl.u32 %v855, 7
      %v857 = vsub.s32 5, %v856
      %v858 = vrot.slane %v416, %v857
      %v859 = vlaneseq
      %v860 = vshrl.u32 %v859, 7
      %v861 = vsub.s32 1, %v860
      %v862 = vrot.slane %v417, %v861
      %v863 = vlaneseq
      %v864 = vshrl.u32 %v863, 7
      %v865 = vsub.s32 5, %v864
      %v866 = vrot.slane %v417, %v865
      %v867 = vlaneseq
      %v868 = vshrl.u32 %v867, 7
      %v869 = vsub.s32 1, %v868
      %v870 = vrot.slane %v418, %v869
      %v871 = vlaneseq
      %v872 = vshrl.u32 %v871, 7
      %v873 = vsub.s32 5, %v872
      %v874 = vrot.slane %v418, %v873
      %v875 = vlaneseq
      %v876 = vshrl.u32 %v875, 7
      %v877 = vsub.s32 1, %v876
      %v878 = vrot.slane %v419, %v877
      %v879 = vlaneseq
      %v880 = vshrl.u32 %v879, 7
      %v881 = vsub.s32 5, %v880
      %v882 = vrot.slane %v419, %v881
      %v883 = vlaneseq
      %v884 = vshrl.u32 %v883, 7
      %v885 = vsub.s32 1, %v884
      %v886 = vrot.slane %v420, %v885
      %v887 = vlaneseq
      %v888 = vshrl.u32 %v887, 7
      %v889 = vsub.s32 5, %v888
      %v890 = vrot.slane %v420, %v889
      %v891 = vlaneseq
      %v892 = vshrl.u32 %v891, 7
      %v893 = vsub.s32 1, %v892
      %v894 = vrot.slane %v421, %v893
      %v895 = vlaneseq
      %v896 = vshrl.u32 %v895, 7
      %v897 = vsub.s32 5, %v896
      %v898 = vrot.slane %v421, %v897
      %v899 = vlaneseq
      %v900 = vshrl.u32 %v899, 7
      %v901 = vsub.s32 1, %v900
      %v902 = vrot.slane %v422, %v901
      %v903 = vlaneseq
      %v904 = vshrl.u32 %v903, 7
      %v905 = vsub.s32 5, %v904
      %v906 = vrot.slane %v422, %v905
      %v907 = vlaneseq
      %v908 = vshrl.u32 %v907, 7
      %v909 = vsub.s32 1, %v908
      %v910 = vrot.slane %v423, %v909
      %v911 = vlaneseq
      %v912 = vshrl.u32 %v911, 7
      %v913 = vsub.s32 5, %v912
      %v914 = vrot.slane %v423, %v913
      %v915 = vlaneseq
      %v916 = vshrl.u32 %v915, 7
      %v917 = vsub.s32 1, %v916
      %v918 = vrot.slane %v424, %v917
      %v919 = vlaneseq
      %v920 = vshrl.u32 %v919, 7
      %v921 = vsub.s32 5, %v920
      %v922 = vrot.slane %v424, %v921
      %v923 = vlaneseq
      %v924 = vshrl.u32 %v923, 7
      %v925 = vsub.s32 1, %v924
      %v926 = vrot.slane %v425, %v925
      %v927 = vlaneseq
      %v928 = vshrl.u32 %v927, 7
      %v929 = vsub.s32 5, %v928
      %v930 = vrot.slane %v425, %v929
      %v931 = vlaneseq
      %v932 = vshrl.u32 %v931, 7
      %v933 = vsub.s32 1, %v932
      %v934 = vrot.slane %v426, %v933
      %v935 = vlaneseq
      %v936 = vshrl.u32 %v935, 7
      %v937 = vsub.s32 5, %v936
      %v938 = vrot.slane %v426, %v937
      %v971 = vmul.f32 %v295, %v814
      %v972 = vmul.f32 %v296, %v818
      %v973 = vmul.f32 %v297, %v822
      %v974 = vmul.f32 %v298, %v826
      %v975 = vmul.f32 %v299, %v830
      %v976 = vmul.f32 %v300, %v834
      %v977 = vmul.f32 %v301, %v838
      %v978 = vmul.f32 %v302, %v842
      %v979 = vmul.f32 %v303, %v846
      %v980 = vmul.f32 %v304, %v850
      %v981 = vmul.f32 %v305, %v854
      %v982 = vmul.f32 %v306, %v858
      %v983 = vmul.f32 %v307, %v862
      %v984 = vmul.f32 %v308, %v866
      %v985 = vmul.f32 %v309, %v870
      %v986 = vmul.f32 %v310, %v874
      %v987 = vmul.f32 %v311, %v878
      %v988 = vmul.f32 %v312, %v882
      %v989 = vmul.f32 %v313, %v886
      %v990 = vmul.f32 %v314, %v890
      %v991 = vmul.f32 %v315, %v894
      %v992 = vmul.f32 %v316, %v898
      %v993 = vmul.f32 %v317, %v902
      %v994 = vmul.f32 %v318, %v906
      %v995 = vmul.f32 %v319, %v910
      %v996 = vmul.f32 %v320, %v914
      %v997 = vmul.f32 %v321, %v918
      %v998 = vmul.f32 %v322, %v922
      %v999 = vmul.f32 %v323, %v926
      %v1000 = vmul.f32 %v324, %v930
      %v1001 = vmul.f32 %v325, %v934
      %v1002 = vmul.f32 %v326, %v938
      %v1035 = vrot.slane %v971, 6
      %v1036 = vrot.slane %v972, 6
      %v1037 = vrot.slane %v973, 6
      %v1038 = vrot.slane %v974, 6
      %v1039 = vrot.slane %v975, 6
      %v1040 = vrot.slane %v976, 6
      %v1041 = vrot.slane %v977, 6
      %v1042 = vrot.slane %v978, 6
      %v1043 = vrot.slane %v979, 6
      %v1044 = vrot.slane %v980, 6
      %v1045 = vrot.slane %v981, 6
      %v1046 = vrot.slane %v982, 6
      %v1047 = vrot.slane %v983, 6
      %v1048 = vrot.slane %v984, 6
      %v1049 = vrot.slane %v985, 6
      %v1050 = vrot.slane %v986, 6
      %v1051 = vrot.slane %v987, 6
      %v1052 = vrot.slane %v988, 6
      %v1053 = vrot.slane %v989, 6
      %v1054 = vrot.slane %v990, 6
      %v1055 = vrot.slane %v991, 6
      %v1056 = vrot.slane %v992, 6
      %v1057 = vrot.slane %v993, 6
      %v1058 = vrot.slane %v994, 6
      %v1059 = vrot.slane %v995, 6
      %v1060 = vrot.slane %v996, 6
      %v1061 = vrot.slane %v997, 6
      %v1062 = vrot.slane %v998, 6
      %v1063 = vrot.slane %v999, 6
      %v1064 = vrot.slane %v1000, 6
      %v1065 = vrot.slane %v1001, 6
      %v1066 = vrot.slane %v1002, 6
      %v1099 = vadd.f32 %v763, %v1035
      %v1100 = vadd.f32 %v764, %v1036
      %v1101 = vadd.f32 %v765, %v1037
      %v1102 = vadd.f32 %v766, %v1038
      %v1103 = vadd.f32 %v767, %v1039
      %v1104 = vadd.f32 %v768, %v1040
      %v1105 = vadd.f32 %v769, %v1041
      %v1106 = vadd.f32 %v770, %v1042
      %v1107 = vadd.f32 %v771, %v1043
      %v1108 = vadd.f32 %v772, %v1044
      %v1109 = vadd.f32 %v773, %v1045
      %v1110 = vadd.f32 %v774, %v1046
      %v1111 = vadd.f32 %v775, %v1047
      %v1112 = vadd.f32 %v776, %v1048
      %v1113 = vadd.f32 %v777, %v1049
      %v1114 = vadd.f32 %v778, %v1050
      %v1115 = vadd.f32 %v779, %v1051
      %v1116 = vadd.f32 %v780, %v1052
      %v1117 = vadd.f32 %v781, %v1053
      %v1118 = vadd.f32 %v782, %v1054
      %v1119 = vadd.f32 %v783, %v1055
      %v1120 = vadd.f32 %v784, %v1056
      %v1121 = vadd.f32 %v785, %v1057
      %v1122 = vadd.f32 %v786, %v1058
      %v1123 = vadd.f32 %v787, %v1059
      %v1124 = vadd.f32 %v788, %v1060
      %v1125 = vadd.f32 %v789, %v1061
      %v1126 = vadd.f32 %v790, %v1062
      %v1127 = vadd.f32 %v791, %v1063
      %v1128 = vadd.f32 %v792, %v1064
      %v1129 = vadd.f32 %v793, %v1065
      %v1130 = vadd.f32 %v794, %v1066
      %v1147 = vlaneseq
      %v1148 = vshrl.u32 %v1147, 7
      %v1149 = vsub.s32 2, %v1148
      %v1150 = vrot.slane %v443, %v1149
      %v1151 = vlaneseq
      %v1152 = vshrl.u32 %v1151, 7
      %v1153 = vsub.s32 6, %v1152
      %v1154 = vrot.slane %v443, %v1153
      %v1155 = vlaneseq
      %v1156 = vshrl.u32 %v1155, 7
      %v1157 = vsub.s32 2, %v1156
      %v1158 = vrot.slane %v444, %v1157
      %v1159 = vlaneseq
      %v1160 = vshrl.u32 %v1159, 7
      %v1161 = vsub.s32 6, %v1160
      %v1162 = vrot.slane %v444, %v1161
      %v1163 = vlaneseq
      %v1164 = vshrl.u32 %v1163, 7
      %v1165 = vsub.s32 2, %v1164
      %v1166 = vrot.slane %v445, %v1165
      %v1167 = vlaneseq
      %v1168 = vshrl.u32 %v1167, 7
      %v1169 = vsub.s32 6, %v1168
      %v1170 = vrot.slane %v445, %v1169
      %v1171 = vlaneseq
      %v1172 = vshrl.u32 %v1171, 7
      %v1173 = vsub.s32 2, %v1172
      %v1174 = vrot.slane %v446, %v1173
      %v1175 = vlaneseq
      %v1176 = vshrl.u32 %v1175, 7
      %v1177 = vsub.s32 6, %v1176
      %v1178 = vrot.slane %v446, %v1177
      %v1179 = vlaneseq
      %v1180 = vshrl.u32 %v1179, 7
      %v1181 = vsub.s32 2, %v1180
      %v1182 = vrot.slane %v447, %v1181
      %v1183 = vlaneseq
      %v1184 = vshrl.u32 %v1183, 7
      %v1185 = vsub.s32 6, %v1184
      %v1186 = vrot.slane %v447, %v1185
      %v1187 = vlaneseq
      %v1188 = vshrl.u32 %v1187, 7
      %v1189 = vsub.s32 2, %v1188
      %v1190 = vrot.slane %v448, %v1189
      %v1191 = vlaneseq
      %v1192 = vshrl.u32 %v1191, 7
      %v1193 = vsub.s32 6, %v1192
      %v1194 = vrot.slane %v448, %v1193
      %v1195 = vlaneseq
      %v1196 = vshrl.u32 %v1195, 7
      %v1197 = vsub.s32 2, %v1196
      %v1198 = vrot.slane %v449, %v1197
      %v1199 = vlaneseq
      %v1200 = vshrl.u32 %v1199, 7
      %v1201 = vsub.s32 6, %v1200
      %v1202 = vrot.slane %v449, %v1201
      %v1203 = vlaneseq
      %v1204 = vshrl.u32 %v1203, 7
      %v1205 = vsub.s32 2, %v1204
      %v1206 = vrot.slane %v450, %v1205
      %v1207 = vlaneseq
      %v1208 = vshrl.u32 %v1207, 7
      %v1209 = vsub.s32 6, %v1208
      %v1210 = vrot.slane %v450, %v1209
      %v1211 = vlaneseq
      %v1212 = vshrl.u32 %v1211, 7
      %v1213 = vsub.s32 2, %v1212
      %v1214 = vrot.slane %v451, %v1213
      %v1215 = vlaneseq
      %v1216 = vshrl.u32 %v1215, 7
      %v1217 = vsub.s32 6, %v1216
      %v1218 = vrot.slane %v451, %v1217
      %v1219 = vlaneseq
      %v1220 = vshrl.u32 %v1219, 7
      %v1221 = vsub.s32 2, %v1220
      %v1222 = vrot.slane %v452, %v1221
      %v1223 = vlaneseq
      %v1224 = vshrl.u32 %v1223, 7
      %v1225 = vsub.s32 6, %v1224
      %v1226 = vrot.slane %v452, %v1225
      %v1227 = vlaneseq
      %v1228 = vshrl.u32 %v1227, 7
      %v1229 = vsub.s32 2, %v1228
      %v1230 = vrot.slane %v453, %v1229
      %v1231 = vlaneseq
      %v1232 = vshrl.u32 %v1231, 7
      %v1233 = vsub.s32 6, %v1232
      %v1234 = vrot.slane %v453, %v1233
      %v1235 = vlaneseq
      %v1236 = vshrl.u32 %v1235, 7
      %v1237 = vsub.s32 2, %v1236
      %v1238 = vrot.slane %v454, %v1237
      %v1239 = vlaneseq
      %v1240 = vshrl.u32 %v1239, 7
      %v1241 = vsub.s32 6, %v1240
      %v1242 = vrot.slane %v454, %v1241
      %v1243 = vlaneseq
      %v1244 = vshrl.u32 %v1243, 7
      %v1245 = vsub.s32 2, %v1244
      %v1246 = vrot.slane %v455, %v1245
      %v1247 = vlaneseq
      %v1248 = vshrl.u32 %v1247, 7
      %v1249 = vsub.s32 6, %v1248
      %v1250 = vrot.slane %v455, %v1249
      %v1251 = vlaneseq
      %v1252 = vshrl.u32 %v1251, 7
      %v1253 = vsub.s32 2, %v1252
      %v1254 = vrot.slane %v456, %v1253
      %v1255 = vlaneseq
      %v1256 = vshrl.u32 %v1255, 7
      %v1257 = vsub.s32 6, %v1256
      %v1258 = vrot.slane %v456, %v1257
      %v1259 = vlaneseq
      %v1260 = vshrl.u32 %v1259, 7
      %v1261 = vsub.s32 2, %v1260
      %v1262 = vrot.slane %v457, %v1261
      %v1263 = vlaneseq
      %v1264 = vshrl.u32 %v1263, 7
      %v1265 = vsub.s32 6, %v1264
      %v1266 = vrot.slane %v457, %v1265
      %v1267 = vlaneseq
      %v1268 = vshrl.u32 %v1267, 7
      %v1269 = vsub.s32 2, %v1268
      %v1270 = vrot.slane %v458, %v1269
      %v1271 = vlaneseq
      %v1272 = vshrl.u32 %v1271, 7
      %v1273 = vsub.s32 6, %v1272
      %v1274 = vrot.slane %v458, %v1273
      %v1307 = vmul.f32 %v295, %v1150
      %v1308 = vmul.f32 %v296, %v1154
      %v1309 = vmul.f32 %v297, %v1158
      %v1310 = vmul.f32 %v298, %v1162
      %v1311 = vmul.f32 %v299, %v1166
      %v1312 = vmul.f32 %v300, %v1170
      %v1313 = vmul.f32 %v301, %v1174
      %v1314 = vmul.f32 %v302, %v1178
      %v1315 = vmul.f32 %v303, %v1182
      %v1316 = vmul.f32 %v304, %v1186
      %v1317 = vmul.f32 %v305, %v1190
      %v1318 = vmul.f32 %v306, %v1194
      %v1319 = vmul.f32 %v307, %v1198
      %v1320 = vmul.f32 %v308, %v1202
      %v1321 = vmul.f32 %v309, %v1206
      %v1322 = vmul.f32 %v310, %v1210
      %v1323 = vmul.f32 %v311, %v1214
      %v1324 = vmul.f32 %v312, %v1218
      %v1325 = vmul.f32 %v313, %v1222
      %v1326 = vmul.f32 %v314, %v1226
      %v1327 = vmul.f32 %v315, %v1230
      %v1328 = vmul.f32 %v316, %v1234
      %v1329 = vmul.f32 %v317, %v1238
      %v1330 = vmul.f32 %v318, %v1242
      %v1331 = vmul.f32 %v319, %v1246
      %v1332 = vmul.f32 %v320, %v1250
      %v1333 = vmul.f32 %v321, %v1254
      %v1334 = vmul.f32 %v322, %v1258
      %v1335 = vmul.f32 %v323, %v1262
      %v1336 = vmul.f32 %v324, %v1266
      %v1337 = vmul.f32 %v325, %v1270
      %v1338 = vmul.f32 %v326, %v1274
      %v1371 = vrot.slane %v1307, 7
      %v1372 = vrot.slane %v1308, 7
      %v1373 = vrot.slane %v1309, 7
      %v1374 = vrot.slane %v1310, 7
      %v1375 = vrot.slane %v1311, 7
      %v1376 = vrot.slane %v1312, 7
      %v1377 = vrot.slane %v1313, 7
      %v1378 = vrot.slane %v1314, 7
      %v1379 = vrot.slane %v1315, 7
      %v1380 = vrot.slane %v1316, 7
      %v1381 = vrot.slane %v1317, 7
      %v1382 = vrot.slane %v1318, 7
      %v1383 = vrot.slane %v1319, 7
      %v1384 = vrot.slane %v1320, 7
      %v1385 = vrot.slane %v1321, 7
      %v1386 = vrot.slane %v1322, 7
      %v1387 = vrot.slane %v1323, 7
      %v1388 = vrot.slane %v1324, 7
      %v1389 = vrot.slane %v1325, 7
      %v1390 = vrot.slane %v1326, 7
      %v1391 = vrot.slane %v1327, 7
      %v1392 = vrot.slane %v1328, 7
      %v1393 = vrot.slane %v1329, 7
      %v1394 = vrot.slane %v1330, 7
      %v1395 = vrot.slane %v1331, 7
      %v1396 = vrot.slane %v1332, 7
      %v1397 = vrot.slane %v1333, 7
      %v1398 = vrot.slane %v1334, 7
      %v1399 = vrot.slane %v1335, 7
      %v1400 = vrot.slane %v1336, 7
      %v1401 = vrot.slane %v1337, 7
      %v1402 = vrot.slane %v1338, 7
      %v1435 = vadd.f32 %v1099, %v1371
      %v1436 = vadd.f32 %v1100, %v1372
      %v1437 = vadd.f32 %v1101, %v1373
      %v1438 = vadd.f32 %v1102, %v1374
      %v1439 = vadd.f32 %v1103, %v1375
      %v1440 = vadd.f32 %v1104, %v1376
      %v1441 = vadd.f32 %v1105, %v1377
      %v1442 = vadd.f32 %v1106, %v1378
      %v1443 = vadd.f32 %v1107, %v1379
      %v1444 = vadd.f32 %v1108, %v1380
      %v1445 = vadd.f32 %v1109, %v1381
      %v1446 = vadd.f32 %v1110, %v1382
      %v1447 = vadd.f32 %v1111, %v1383
      %v1448 = vadd.f32 %v1112, %v1384
      %v1449 = vadd.f32 %v1113, %v1385
      %v1450 = vadd.f32 %v1114, %v1386
      %v1451 = vadd.f32 %v1115, %v1387
      %v1452 = vadd.f32 %v1116, %v1388
      %v1453 = vadd.f32 %v1117, %v1389
      %v1454 = vadd.f32 %v1118, %v1390
      %v1455 = vadd.f32 %v1119, %v1391
      %v1456 = vadd.f32 %v1120, %v1392
      %v1457 = vadd.f32 %v1121, %v1393
      %v1458 = vadd.f32 %v1122, %v1394
      %v1459 = vadd.f32 %v1123, %v1395
      %v1460 = vadd.f32 %v1124, %v1396
      %v1461 = vadd.f32 %v1125, %v1397
      %v1462 = vadd.f32 %v1126, %v1398
      %v1463 = vadd.f32 %v1127, %v1399
      %v1464 = vadd.f32 %v1128, %v1400
      %v1465 = vadd.f32 %v1129, %v1401
      %v1466 = vadd.f32 %v1130, %v1402
      %v1467 = vmax.f32 %v1435, 0.0
      %v1468 = vmax.f32 %v1436, 0.0
      %v1469 = vmax.f32 %v1437, 0.0
      %v1470 = vmax.f32 %v1438, 0.0
      %v1471 = vmax.f32 %v1439, 0.0
      %v1472 = vmax.f32 %v1440, 0.0
      %v1473 = vmax.f32 %v1441, 0.0
      %v1474 = vmax.f32 %v1442, 0.0
      %v1475 = vmax.f32 %v1443, 0.0
      %v1476 = vmax.f32 %v1444, 0.0
      %v1477 = vmax.f32 %v1445, 0.0
      %v1478 = vmax.f32 %v1446, 0.0
      %v1479 = vmax.f32 %v1447, 0.0
      %v1480 = vmax.f32 %v1448, 0.0
      %v1481 = vmax.f32 %v1449, 0.0
      %v1482 = vmax.f32 %v1450, 0.0
      %v1483 = vmax.f32 %v1451, 0.0
      %v1484 = vmax.f32 %v1452, 0.0
      %v1485 = vmax.f32 %v1453, 0.0
      %v1486 = vmax.f32 %v1454, 0.0
      %v1487 = vmax.f32 %v1455, 0.0
      %v1488 = vmax.f32 %v1456, 0.0
      %v1489 = vmax.f32 %v1457, 0.0
      %v1490 = vmax.f32 %v1458, 0.0
      %v1491 = vmax.f32 %v1459, 0.0
      %v1492 = vmax.f32 %v1460, 0.0
      %v1493 = vmax.f32 %v1461, 0.0
      %v1494 = vmax.f32 %v1462, 0.0
      %v1495 = vmax.f32 %v1463, 0.0
      %v1496 = vmax.f32 %v1464, 0.0
      %v1497 = vmax.f32 %v1465, 0.0
      %v1498 = vmax.f32 %v1466, 0.0
      %v1499 = vmin.f32 %v1467, 1.0
      %v1500 = vmin.f32 %v1468, 1.0
      %v1501 = vmin.f32 %v1469, 1.0
      %v1502 = vmin.f32 %v1470, 1.0
      %v1503 = vmin.f32 %v1471, 1.0
      %v1504 = vmin.f32 %v1472, 1.0
      %v1505 = vmin.f32 %v1473, 1.0
      %v1506 = vmin.f32 %v1474, 1.0
      %v1507 = vmin.f32 %v1475, 1.0
      %v1508 = vmin.f32 %v1476, 1.0
      %v1509 = vmin.f32 %v1477, 1.0
      %v1510 = vmin.f32 %v1478, 1.0
      %v1511 = vmin.f32 %v1479, 1.0
      %v1512 = vmin.f32 %v1480, 1.0
      %v1513 = vmin.f32 %v1481, 1.0
      %v1514 = vmin.f32 %v1482, 1.0
      %v1515 = vmin.f32 %v1483, 1.0
      %v1516 = vmin.f32 %v1484, 1.0
      %v1517 = vmin.f32 %v1485, 1.0
      %v1518 = vmin.f32 %v1486, 1.0
      %v1519 = vmin.f32 %v1487, 1.0
      %v1520 = vmin.f32 %v1488, 1.0
      %v1521 = vmin.f32 %v1489, 1.0
      %v1522 = vmin.f32 %v1490, 1.0
      %v1523 = vmin.f32 %v1491, 1.0
      %v1524 = vmin.f32 %v1492, 1.0
      %v1525 = vmin.f32 %v1493, 1.0
      %v1526 = vmin.f32 %v1494, 1.0
      %v1527 = vmin.f32 %v1495, 1.0
      %v1528 = vmin.f32 %v1496, 1.0
      %v1529 = vmin.f32 %v1497, 1.0
      %v1530 = vmin.f32 %v1498, 1.0
      %v1531 = vsub.f32 %v1499, 0.485
      %v1532 = vsub.f32 %v1500, 0.485
      %v1533 = vsub.f32 %v1501, 0.485
      %v1534 = vsub.f32 %v1502, 0.485
      %v1535 = vsub.f32 %v1503, 0.485
      %v1536 = vsub.f32 %v1504, 0.485
      %v1537 = vsub.f32 %v1505, 0.485
      %v1538 = vsub.f32 %v1506, 0.485
      %v1539 = vsub.f32 %v1507, 0.485
      %v1540 = vsub.f32 %v1508, 0.485
      %v1541 = vsub.f32 %v1509, 0.485
      %v1542 = vsub.f32 %v1510, 0.485
      %v1543 = vsub.f32 %v1511, 0.485
      %v1544 = vsub.f32 %v1512, 0.485
      %v1545 = vsub.f32 %v1513, 0.485
      %v1546 = vsub.f32 %v1514, 0.485
      %v1547 = vsub.f32 %v1515, 0.485
      %v1548 = vsub.f32 %v1516, 0.485
      %v1549 = vsub.f32 %v1517, 0.485
      %v1550 = vsub.f32 %v1518, 0.485
      %v1551 = vsub.f32 %v1519, 0.485
      %v1552 = vsub.f32 %v1520, 0.485
      %v1553 = vsub.f32 %v1521, 0.485
      %v1554 = vsub.f32 %v1522, 0.485
      %v1555 = vsub.f32 %v1523, 0.485
      %v1556 = vsub.f32 %v1524, 0.485
      %v1557 = vsub.f32 %v1525, 0.485
      %v1558 = vsub.f32 %v1526, 0.485
      %v1559 = vsub.f32 %v1527, 0.485
      %v1560 = vsub.f32 %v1528, 0.485
      %v1561 = vsub.f32 %v1529, 0.485
      %v1562 = vsub.f32 %v1530, 0.485
      %v1563 = vrcp.pop 0.229
      %v1564 = vmul.f32 %v1531, %v1563
      %v1565 = vmul.f32 %v1532, %v1563
      %v1566 = vmul.f32 %v1533, %v1563
      %v1567 = vmul.f32 %v1534, %v1563
      %v1568 = vmul.f32 %v1535, %v1563
      %v1569 = vmul.f32 %v1536, %v1563
      %v1570 = vmul.f32 %v1537, %v1563
      %v1571 = vmul.f32 %v1538, %v1563
      %v1572 = vmul.f32 %v1539, %v1563
      %v1573 = vmul.f32 %v1540, %v1563
      %v1574 = vmul.f32 %v1541, %v1563
      %v1575 = vmul.f32 %v1542, %v1563
      %v1576 = vmul.f32 %v1543, %v1563
      %v1577 = vmul.f32 %v1544, %v1563
      %v1578 = vmul.f32 %v1545, %v1563
      %v1579 = vmul.f32 %v1546, %v1563
      %v1580 = vmul.f32 %v1547, %v1563
      %v1581 = vmul.f32 %v1548, %v1563
      %v1582 = vmul.f32 %v1549, %v1563
      %v1583 = vmul.f32 %v1550, %v1563
      %v1584 = vmul.f32 %v1551, %v1563
      %v1585 = vmul.f32 %v1552, %v1563
      %v1586 = vmul.f32 %v1553, %v1563
      %v1587 = vmul.f32 %v1554, %v1563
      %v1588 = vmul.f32 %v1555, %v1563
      %v1589 = vmul.f32 %v1556, %v1563
      %v1590 = vmul.f32 %v1557, %v1563
      %v1591 = vmul.f32 %v1558, %v1563
      %v1592 = vmul.f32 %v1559, %v1563
      %v1593 = vmul.f32 %v1560, %v1563
      %v1594 = vmul.f32 %v1561, %v1563
      %v1595 = vmul.f32 %v1562, %v1563
      %v1596 = vsub.f32 %v1499, 0.456
      %v1597 = vsub.f32 %v1500, 0.456
      %v1598 = vsub.f32 %v1501, 0.456
      %v1599 = vsub.f32 %v1502, 0.456
      %v1600 = vsub.f32 %v1503, 0.456
      %v1601 = vsub.f32 %v1504, 0.456
      %v1602 = vsub.f32 %v1505, 0.456
      %v1603 = vsub.f32 %v1506, 0.456
      %v1604 = vsub.f32 %v1507, 0.456
      %v1605 = vsub.f32 %v1508, 0.456
      %v1606 = vsub.f32 %v1509, 0.456
      %v1607 = vsub.f32 %v1510, 0.456
      %v1608 = vsub.f32 %v1511, 0.456
      %v1609 = vsub.f32 %v1512, 0.456
      %v1610 = vsub.f32 %v1513, 0.456
      %v1611 = vsub.f32 %v1514, 0.456
      %v1612 = vsub.f32 %v1515, 0.456
      %v1613 = vsub.f32 %v1516, 0.456
      %v1614 = vsub.f32 %v1517, 0.456
      %v1615 = vsub.f32 %v1518, 0.456
      %v1616 = vsub.f32 %v1519, 0.456
      %v1617 = vsub.f32 %v1520, 0.456
      %v1618 = vsub.f32 %v1521, 0.456
      %v1619 = vsub.f32 %v1522, 0.456
      %v1620 = vsub.f32 %v1523, 0.456
      %v1621 = vsub.f32 %v1524, 0.456
      %v1622 = vsub.f32 %v1525, 0.456
      %v1623 = vsub.f32 %v1526, 0.456
      %v1624 = vsub.f32 %v1527, 0.456
      %v1625 = vsub.f32 %v1528, 0.456
      %v1626 = vsub.f32 %v1529, 0.456
      %v1627 = vsub.f32 %v1530, 0.456
      %v1628 = vrcp.pop 0.224
      %v1629 = vmul.f32 %v1596, %v1628
      %v1630 = vmul.f32 %v1597, %v1628
      %v1631 = vmul.f32 %v1598, %v1628
      %v1632 = vmul.f32 %v1599, %v1628
      %v1633 = vmul.f32 %v1600, %v1628
      %v1634 = vmul.f32 %v1601, %v1628
      %v1635 = vmul.f32 %v1602, %v1628
      %v1636 = vmul.f32 %v1603, %v1628
      %v1637 = vmul.f32 %v1604, %v1628
      %v1638 = vmul.f32 %v1605, %v1628
      %v1639 = vmul.f32 %v1606, %v1628
      %v1640 = vmul.f32 %v1607, %v1628
      %v1641 = vmul.f32 %v1608, %v1628
      %v1642 = vmul.f32 %v1609, %v1628
      %v1643 = vmul.f32 %v1610, %v1628
      %v1644 = vmul.f32 %v1611, %v1628
      %v1645 = vmul.f32 %v1612, %v1628
      %v1646 = vmul.f32 %v1613, %v1628
      %v1647 = vmul.f32 %v1614, %v1628
      %v1648 = vmul.f32 %v1615, %v1628
      %v1649 = vmul.f32 %v1616, %v1628
      %v1650 = vmul.f32 %v1617, %v1628
      %v1651 = vmul.f32 %v1618, %v1628
      %v1652 = vmul.f32 %v1619, %v1628
      %v1653 = vmul.f32 %v1620, %v1628
      %v1654 = vmul.f32 %v1621, %v1628
      %v1655 = vmul.f32 %v1622, %v1628
      %v1656 = vmul.f32 %v1623, %v1628
      %v1657 = vmul.f32 %v1624, %v1628
      %v1658 = vmul.f32 %v1625, %v1628
      %v1659 = vmul.f32 %v1626, %v1628
      %v1660 = vmul.f32 %v1627, %v1628
      %v1661 = vmul.f32 %v327, %v478
      %v1662 = vmul.f32 %v328, %v482
      %v1663 = vmul.f32 %v329, %v486
      %v1664 = vmul.f32 %v330, %v490
      %v1665 = vmul.f32 %v331, %v494
      %v1666 = vmul.f32 %v332, %v498
      %v1667 = vmul.f32 %v333, %v502
      %v1668 = vmul.f32 %v334, %v506
      %v1669 = vmul.f32 %v335, %v510
      %v1670 = vmul.f32 %v336, %v514
      %v1671 = vmul.f32 %v337, %v518
      %v1672 = vmul.f32 %v338, %v522
      %v1673 = vmul.f32 %v339, %v526
      %v1674 = vmul.f32 %v340, %v530
      %v1675 = vmul.f32 %v341, %v534
      %v1676 = vmul.f32 %v342, %v538
      %v1677 = vmul.f32 %v343, %v542
      %v1678 = vmul.f32 %v344, %v546
      %v1679 = vmul.f32 %v345, %v550
      %v1680 = vmul.f32 %v346, %v554
      %v1681 = vmul.f32 %v347, %v558
      %v1682 = vmul.f32 %v348, %v562
      %v1683 = vmul.f32 %v349, %v566
      %v1684 = vmul.f32 %v350, %v570
      %v1685 = vmul.f32 %v351, %v574
      %v1686 = vmul.f32 %v352, %v578
      %v1687 = vmul.f32 %v353, %v582
      %v1688 = vmul.f32 %v354, %v586
      %v1689 = vmul.f32 %v355, %v590
      %v1690 = vmul.f32 %v356, %v594
      %v1691 = vmul.f32 %v357, %v598
      %v1692 = vmul.f32 %v358, %v602
      %v1725 = vrot.slane %v1661, 5
      %v1726 = vrot.slane %v1662, 5
      %v1727 = vrot.slane %v1663, 5
      %v1728 = vrot.slane %v1664, 5
      %v1729 = vrot.slane %v1665, 5
      %v1730 = vrot.slane %v1666, 5
      %v1731 = vrot.slane %v1667, 5
      %v1732 = vrot.slane %v1668, 5
      %v1733 = vrot.slane %v1669, 5
      %v1734 = vrot.slane %v1670, 5
      %v1735 = vrot.slane %v1671, 5
      %v1736 = vrot.slane %v1672, 5
      %v1737 = vrot.slane %v1673, 5
      %v1738 = vrot.slane %v1674, 5
      %v1739 = vrot.slane %v1675, 5
      %v1740 = vrot.slane %v1676, 5
      %v1741 = vrot.slane %v1677, 5
      %v1742 = vrot.slane %v1678, 5
      %v1743 = vrot.slane %v1679, 5
      %v1744 = vrot.slane %v1680, 5
      %v1745 = vrot.slane %v1681, 5
      %v1746 = vrot.slane %v1682, 5
      %v1747 = vrot.slane %v1683, 5
      %v1748 = vrot.slane %v1684, 5
      %v1749 = vrot.slane %v1685, 5
      %v1750 = vrot.slane %v1686, 5
      %v1751 = vrot.slane %v1687, 5
      %v1752 = vrot.slane %v1688, 5
      %v1753 = vrot.slane %v1689, 5
      %v1754 = vrot.slane %v1690, 5
      %v1755 = vrot.slane %v1691, 5
      %v1756 = vrot.slane %v1692, 5
      %v1789 = vadd.f32 %v327, %v1725
      %v1790 = vadd.f32 %v328, %v1726
      %v1791 = vadd.f32 %v329, %v1727
      %v1792 = vadd.f32 %v330, %v1728
      %v1793 = vadd.f32 %v331, %v1729
      %v1794 = vadd.f32 %v332, %v1730
      %v1795 = vadd.f32 %v333, %v1731
      %v1796 = vadd.f32 %v334, %v1732
      %v1797 = vadd.f32 %v335, %v1733
      %v1798 = vadd.f32 %v336, %v1734
      %v1799 = vadd.f32 %v337, %v1735
      %v1800 = vadd.f32 %v338, %v1736
      %v1801 = vadd.f32 %v339, %v1737
      %v1802 = vadd.f32 %v340, %v1738
      %v1803 = vadd.f32 %v341, %v1739
      %v1804 = vadd.f32 %v342, %v1740
      %v1805 = vadd.f32 %v343, %v1741
      %v1806 = vadd.f32 %v344, %v1742
      %v1807 = vadd.f32 %v345, %v1743
      %v1808 = vadd.f32 %v346, %v1744
      %v1809 = vadd.f32 %v347, %v1745
      %v1810 = vadd.f32 %v348, %v1746
      %v1811 = vadd.f32 %v349, %v1747
      %v1812 = vadd.f32 %v350, %v1748
      %v1813 = vadd.f32 %v351, %v1749
      %v1814 = vadd.f32 %v352, %v1750
      %v1815 = vadd.f32 %v353, %v1751
      %v1816 = vadd.f32 %v354, %v1752
      %v1817 = vadd.f32 %v355, %v1753
      %v1818 = vadd.f32 %v356, %v1754
      %v1819 = vadd.f32 %v357, %v1755
      %v1820 = vadd.f32 %v358, %v1756
      %v1821 = vmul.f32 %v327, %v814
      %v1822 = vmul.f32 %v328, %v818
      %v1823 = vmul.f32 %v329, %v822
      %v1824 = vmul.f32 %v330, %v826
      %v1825 = vmul.f32 %v331, %v830
      %v1826 = vmul.f32 %v332, %v834
      %v1827 = vmul.f32 %v333, %v838
      %v1828 = vmul.f32 %v334, %v842
      %v1829 = vmul.f32 %v335, %v846
      %v1830 = vmul.f32 %v336, %v850
      %v1831 = vmul.f32 %v337, %v854
      %v1832 = vmul.f32 %v338, %v858
      %v1833 = vmul.f32 %v339, %v862
      %v1834 = vmul.f32 %v340, %v866
      %v1835 = vmul.f32 %v341, %v870
      %v1836 = vmul.f32 %v342, %v874
      %v1837 = vmul.f32 %v343, %v878
      %v1838 = vmul.f32 %v344, %v882
      %v1839 = vmul.f32 %v345, %v886
      %v1840 = vmul.f32 %v346, %v890
      %v1841 = vmul.f32 %v347, %v894
      %v1842 = vmul.f32 %v348, %v898
      %v1843 = vmul.f32 %v349, %v902
      %v1844 = vmul.f32 %v350, %v906
      %v1845 = vmul.f32 %v351, %v910
      %v1846 = vmul.f32 %v352, %v914
      %v1847 = vmul.f32 %v353, %v918
      %v1848 = vmul.f32 %v354, %v922
      %v1849 = vmul.f32 %v355, %v926
      %v1850 = vmul.f32 %v356, %v930
      %v1851 = vmul.f32 %v357, %v934
      %v1852 = vmul.f32 %v358, %v938
      %v1885 = vrot.slane %v1821, 6
      %v1886 = vrot.slane %v1822, 6
      %v1887 = vrot.slane %v1823, 6
      %v1888 = vrot.slane %v1824, 6
      %v1889 = vrot.slane %v1825, 6
      %v1890 = vrot.slane %v1826, 6
      %v1891 = vrot.slane %v1827, 6
      %v1892 = vrot.slane %v1828, 6
      %v1893 = vrot.slane %v1829, 6
      %v1894 = vrot.slane %v1830, 6
      %v1895 = vrot.slane %v1831, 6
      %v1896 = vrot.slane %v1832, 6
      %v1897 = vrot.slane %v1833, 6
      %v1898 = vrot.slane %v1834, 6
      %v1899 = vrot.slane %v1835, 6
      %v1900 = vrot.slane %v1836, 6
      %v1901 = vrot.slane %v1837, 6
      %v1902 = vrot.slane %v1838, 6
      %v1903 = vrot.slane %v1839, 6
      %v1904 = vrot.slane %v1840, 6
      %v1905 = vrot.slane %v1841, 6
      %v1906 = vrot.slane %v1842, 6
      %v1907 = vrot.slane %v1843, 6
      %v1908 = vrot.slane %v1844, 6
      %v1909 = vrot.slane %v1845, 6
      %v1910 = vrot.slane %v1846, 6
      %v1911 = vrot.slane %v1847, 6
      %v1912 = vrot.slane %v1848, 6
      %v1913 = vrot.slane %v1849, 6
      %v1914 = vrot.slane %v1850, 6
      %v1915 = vrot.slane %v1851, 6
      %v1916 = vrot.slane %v1852, 6
      %v1949 = vadd.f32 %v1789, %v1885
      %v1950 = vadd.f32 %v1790, %v1886
      %v1951 = vadd.f32 %v1791, %v1887
      %v1952 = vadd.f32 %v1792, %v1888
      %v1953 = vadd.f32 %v1793, %v1889
      %v1954 = vadd.f32 %v1794, %v1890
      %v1955 = vadd.f32 %v1795, %v1891
      %v1956 = vadd.f32 %v1796, %v1892
      %v1957 = vadd.f32 %v1797, %v1893
      %v1958 = vadd.f32 %v1798, %v1894
      %v1959 = vadd.f32 %v1799, %v1895
      %v1960 = vadd.f32 %v1800, %v1896
      %v1961 = vadd.f32 %v1801, %v1897
      %v1962 = vadd.f32 %v1802, %v1898
      %v1963 = vadd.f32 %v1803, %v1899
      %v1964 = vadd.f32 %v1804, %v1900
      %v1965 = vadd.f32 %v1805, %v1901
      %v1966 = vadd.f32 %v1806, %v1902
      %v1967 = vadd.f32 %v1807, %v1903
      %v1968 = vadd.f32 %v1808, %v1904
      %v1969 = vadd.f32 %v1809, %v1905
      %v1970 = vadd.f32 %v1810, %v1906
      %v1971 = vadd.f32 %v1811, %v1907
      %v1972 = vadd.f32 %v1812, %v1908
      %v1973 = vadd.f32 %v1813, %v1909
      %v1974 = vadd.f32 %v1814, %v1910
      %v1975 = vadd.f32 %v1815, %v1911
      %v1976 = vadd.f32 %v1816, %v1912
      %v1977 = vadd.f32 %v1817, %v1913
      %v1978 = vadd.f32 %v1818, %v1914
      %v1979 = vadd.f32 %v1819, %v1915
      %v1980 = vadd.f32 %v1820, %v1916
      %v1981 = vmul.f32 %v327, %v1150
      %v1982 = vmul.f32 %v328, %v1154
      %v1983 = vmul.f32 %v329, %v1158
      %v1984 = vmul.f32 %v330, %v1162
      %v1985 = vmul.f32 %v331, %v1166
      %v1986 = vmul.f32 %v332, %v1170
      %v1987 = vmul.f32 %v333, %v1174
      %v1988 = vmul.f32 %v334, %v1178
      %v1989 = vmul.f32 %v335, %v1182
      %v1990 = vmul.f32 %v336, %v1186
      %v1991 = vmul.f32 %v337, %v1190
      %v1992 = vmul.f32 %v338, %v1194
      %v1993 = vmul.f32 %v339, %v1198
      %v1994 = vmul.f32 %v340, %v1202
      %v1995 = vmul.f32 %v341, %v1206
      %v1996 = vmul.f32 %v342, %v1210
      %v1997 = vmul.f32 %v343, %v1214
      %v1998 = vmul.f32 %v344, %v1218
      %v1999 = vmul.f32 %v345, %v1222
      %v2000 = vmul.f32 %v346, %v1226
      %v2001 = vmul.f32 %v347, %v1230
      %v2002 = vmul.f32 %v348, %v1234
      %v2003 = vmul.f32 %v349, %v1238
      %v2004 = vmul.f32 %v350, %v1242
      %v2005 = vmul.f32 %v351, %v1246
      %v2006 = vmul.f32 %v352, %v1250
      %v2007 = vmul.f32 %v353, %v1254
      %v2008 = vmul.f32 %v354, %v1258
      %v2009 = vmul.f32 %v355, %v1262
      %v2010 = vmul.f32 %v356, %v1266
      %v2011 = vmul.f32 %v357, %v1270
      %v2012 = vmul.f32 %v358, %v1274
      %v2045 = vrot.slane %v1981, 7
      %v2046 = vrot.slane %v1982, 7
      %v2047 = vrot.slane %v1983, 7
      %v2048 = vrot.slane %v1984, 7
      %v2049 = vrot.slane %v1985, 7
      %v2050 = vrot.slane %v1986, 7
      %v2051 = vrot.slane %v1987, 7
      %v2052 = vrot.slane %v1988, 7
      %v2053 = vrot.slane %v1989, 7
      %v2054 = vrot.slane %v1990, 7
      %v2055 = vrot.slane %v1991, 7
      %v2056 = vrot.slane %v1992, 7
      %v2057 = vrot.slane %v1993, 7
      %v2058 = vrot.slane %v1994, 7
      %v2059 = vrot.slane %v1995, 7
      %v2060 = vrot.slane %v1996, 7
      %v2061 = vrot.slane %v1997, 7
      %v2062 = vrot.slane %v1998, 7
      %v2063 = vrot.slane %v1999, 7
      %v2064 = vrot.slane %v2000, 7
      %v2065 = vrot.slane %v2001, 7
      %v2066 = vrot.slane %v2002, 7
      %v2067 = vrot.slane %v2003, 7
      %v2068 = vrot.slane %v2004, 7
      %v2069 = vrot.slane %v2005, 7
      %v2070 = vrot.slane %v2006, 7
      %v2071 = vrot.slane %v2007, 7
      %v2072 = vrot.slane %v2008, 7
      %v2073 = vrot.slane %v2009, 7
      %v2074 = vrot.slane %v2010, 7
      %v2075 = vrot.slane %v2011, 7
      %v2076 = vrot.slane %v2012, 7
      %v2109 = vadd.f32 %v1949, %v2045
      %v2110 = vadd.f32 %v1950, %v2046
      %v2111 = vadd.f32 %v1951, %v2047
      %v2112 = vadd.f32 %v1952, %v2048
      %v2113 = vadd.f32 %v1953, %v2049
      %v2114 = vadd.f32 %v1954, %v2050
      %v2115 = vadd.f32 %v1955, %v2051
      %v2116 = vadd.f32 %v1956, %v2052
      %v2117 = vadd.f32 %v1957, %v2053
      %v2118 = vadd.f32 %v1958, %v2054
      %v2119 = vadd.f32 %v1959, %v2055
      %v2120 = vadd.f32 %v1960, %v2056
      %v2121 = vadd.f32 %v1961, %v2057
      %v2122 = vadd.f32 %v1962, %v2058
      %v2123 = vadd.f32 %v1963, %v2059
      %v2124 = vadd.f32 %v1964, %v2060
      %v2125 = vadd.f32 %v1965, %v2061
      %v2126 = vadd.f32 %v1966, %v2062
      %v2127 = vadd.f32 %v1967, %v2063
      %v2128 = vadd.f32 %v1968, %v2064
      %v2129 = vadd.f32 %v1969, %v2065
      %v2130 = vadd.f32 %v1970, %v2066
      %v2131 = vadd.f32 %v1971, %v2067
      %v2132 = vadd.f32 %v1972, %v2068
      %v2133 = vadd.f32 %v1973, %v2069
      %v2134 = vadd.f32 %v1974, %v2070
      %v2135 = vadd.f32 %v1975, %v2071
      %v2136 = vadd.f32 %v1976, %v2072
      %v2137 = vadd.f32 %v1977, %v2073
      %v2138 = vadd.f32 %v1978, %v2074
      %v2139 = vadd.f32 %v1979, %v2075
      %v2140 = vadd.f32 %v1980, %v2076
      %v2141 = vmax.f32 %v2109, 0.0
      %v2142 = vmax.f32 %v2110, 0.0
      %v2143 = vmax.f32 %v2111, 0.0
      %v2144 = vmax.f32 %v2112, 0.0
      %v2145 = vmax.f32 %v2113, 0.0
      %v2146 = vmax.f32 %v2114, 0.0
      %v2147 = vmax.f32 %v2115, 0.0
      %v2148 = vmax.f32 %v2116, 0.0
      %v2149 = vmax.f32 %v2117, 0.0
      %v2150 = vmax.f32 %v2118, 0.0
      %v2151 = vmax.f32 %v2119, 0.0
      %v2152 = vmax.f32 %v2120, 0.0
      %v2153 = vmax.f32 %v2121, 0.0
      %v2154 = vmax.f32 %v2122, 0.0
      %v2155 = vmax.f32 %v2123, 0.0
      %v2156 = vmax.f32 %v2124, 0.0
      %v2157 = vmax.f32 %v2125, 0.0
      %v2158 = vmax.f32 %v2126, 0.0
      %v2159 = vmax.f32 %v2127, 0.0
      %v2160 = vmax.f32 %v2128, 0.0
      %v2161 = vmax.f32 %v2129, 0.0
      %v2162 = vmax.f32 %v2130, 0.0
      %v2163 = vmax.f32 %v2131, 0.0
      %v2164 = vmax.f32 %v2132, 0.0
      %v2165 = vmax.f32 %v2133, 0.0
      %v2166 = vmax.f32 %v2134, 0.0
      %v2167 = vmax.f32 %v2135, 0.0
      %v2168 = vmax.f32 %v2136, 0.0
      %v2169 = vmax.f32 %v2137, 0.0
      %v2170 = vmax.f32 %v2138, 0.0
      %v2171 = vmax.f32 %v2139, 0.0
      %v2172 = vmax.f32 %v2140, 0.0
      %v2173 = vmin.f32 %v2141, 1.0
      %v2174 = vmin.f32 %v2142, 1.0
      %v2175 = vmin.f32 %v2143, 1.0
      %v2176 = vmin.f32 %v2144, 1.0
      %v2177 = vmin.f32 %v2145, 1.0
      %v2178 = vmin.f32 %v2146, 1.0
      %v2179 = vmin.f32 %v2147, 1.0
      %v2180 = vmin.f32 %v2148, 1.0
      %v2181 = vmin.f32 %v2149, 1.0
      %v2182 = vmin.f32 %v2150, 1.0
      %v2183 = vmin.f32 %v2151, 1.0
      %v2184 = vmin.f32 %v2152, 1.0
      %v2185 = vmin.f32 %v2153, 1.0
      %v2186 = vmin.f32 %v2154, 1.0
      %v2187 = vmin.f32 %v2155, 1.0
      %v2188 = vmin.f32 %v2156, 1.0
      %v2189 = vmin.f32 %v2157, 1.0
      %v2190 = vmin.f32 %v2158, 1.0
      %v2191 = vmin.f32 %v2159, 1.0
      %v2192 = vmin.f32 %v2160, 1.0
      %v2193 = vmin.f32 %v2161, 1.0
      %v2194 = vmin.f32 %v2162, 1.0
      %v2195 = vmin.f32 %v2163, 1.0
      %v2196 = vmin.f32 %v2164, 1.0
      %v2197 = vmin.f32 %v2165, 1.0
      %v2198 = vmin.f32 %v2166, 1.0
      %v2199 = vmin.f32 %v2167, 1.0
      %v2200 = vmin.f32 %v2168, 1.0
      %v2201 = vmin.f32 %v2169, 1.0
      %v2202 = vmin.f32 %v2170, 1.0
      %v2203 = vmin.f32 %v2171, 1.0
      %v2204 = vmin.f32 %v2172, 1.0
      %v2205 = vsub.f32 %v2173, 0.406
      %v2206 = vsub.f32 %v2174, 0.406
      %v2207 = vsub.f32 %v2175, 0.406
      %v2208 = vsub.f32 %v2176, 0.406
      %v2209 = vsub.f32 %v2177, 0.406
      %v2210 = vsub.f32 %v2178, 0.406
      %v2211 = vsub.f32 %v2179, 0.406
      %v2212 = vsub.f32 %v2180, 0.406
      %v2213 = vsub.f32 %v2181, 0.406
      %v2214 = vsub.f32 %v2182, 0.406
      %v2215 = vsub.f32 %v2183, 0.406
      %v2216 = vsub.f32 %v2184, 0.406
      %v2217 = vsub.f32 %v2185, 0.406
      %v2218 = vsub.f32 %v2186, 0.406
      %v2219 = vsub.f32 %v2187, 0.406
      %v2220 = vsub.f32 %v2188, 0.406
      %v2221 = vsub.f32 %v2189, 0.406
      %v2222 = vsub.f32 %v2190, 0.406
      %v2223 = vsub.f32 %v2191, 0.406
      %v2224 = vsub.f32 %v2192, 0.406
      %v2225 = vsub.f32 %v2193, 0.406
      %v2226 = vsub.f32 %v2194, 0.406
      %v2227 = vsub.f32 %v2195, 0.406
      %v2228 = vsub.f32 %v2196, 0.406
      %v2229 = vsub.f32 %v2197, 0.406
      %v2230 = vsub.f32 %v2198, 0.406
      %v2231 = vsub.f32 %v2199, 0.406
      %v2232 = vsub.f32 %v2200, 0.406
      %v2233 = vsub.f32 %v2201, 0.406
      %v2234 = vsub.f32 %v2202, 0.406
      %v2235 = vsub.f32 %v2203, 0.406
      %v2236 = vsub.f32 %v2204, 0.406
      %v2237 = vrcp.pop 0.225
      %v2238 = vmul.f32 %v2205, %v2237
      %v2239 = vmul.f32 %v2206, %v2237
      %v2240 = vmul.f32 %v2207, %v2237
      %v2241 = vmul.f32 %v2208, %v2237
      %v2242 = vmul.f32 %v2209, %v2237
      %v2243 = vmul.f32 %v2210, %v2237
      %v2244 = vmul.f32 %v2211, %v2237
      %v2245 = vmul.f32 %v2212, %v2237
      %v2246 = vmul.f32 %v2213, %v2237
      %v2247 = vmul.f32 %v2214, %v2237
      %v2248 = vmul.f32 %v2215, %v2237
      %v2249 = vmul.f32 %v2216, %v2237
      %v2250 = vmul.f32 %v2217, %v2237
      %v2251 = vmul.f32 %v2218, %v2237
      %v2252 = vmul.f32 %v2219, %v2237
      %v2253 = vmul.f32 %v2220, %v2237
      %v2254 = vmul.f32 %v2221, %v2237
      %v2255 = vmul.f32 %v2222, %v2237
      %v2256 = vmul.f32 %v2223, %v2237
      %v2257 = vmul.f32 %v2224, %v2237
      %v2258 = vmul.f32 %v2225, %v2237
      %v2259 = vmul.f32 %v2226, %v2237
      %v2260 = vmul.f32 %v2227, %v2237
      %v2261 = vmul.f32 %v2228, %v2237
      %v2262 = vmul.f32 %v2229, %v2237
      %v2263 = vmul.f32 %v2230, %v2237
      %v2264 = vmul.f32 %v2231, %v2237
      %v2265 = vmul.f32 %v2232, %v2237
      %v2266 = vmul.f32 %v2233, %v2237
      %v2267 = vmul.f32 %v2234, %v2237
      %v2268 = vmul.f32 %v2235, %v2237
      %v2269 = vmul.f32 %v2236, %v2237
      %v2302 = vrot.slane %v1564, 3
      %v2303 = vrot.slane %v1565, 3
      %v2304 = vrot.slane %v1566, 3
      %v2305 = vrot.slane %v1567, 3
      %v2306 = vrot.slane %v1568, 3
      %v2307 = vrot.slane %v1569, 3
      %v2308 = vrot.slane %v1570, 3
      %v2309 = vrot.slane %v1571, 3
      %v2310 = vrot.slane %v1572, 3
      %v2311 = vrot.slane %v1573, 3
      %v2312 = vrot.slane %v1574, 3
      %v2313 = vrot.slane %v1575, 3
      %v2314 = vrot.slane %v1576, 3
      %v2315 = vrot.slane %v1577, 3
      %v2316 = vrot.slane %v1578, 3
      %v2317 = vrot.slane %v1579, 3
      %v2318 = vrot.slane %v1580, 3
      %v2319 = vrot.slane %v1581, 3
      %v2320 = vrot.slane %v1582, 3
      %v2321 = vrot.slane %v1583, 3
      %v2322 = vrot.slane %v1584, 3
      %v2323 = vrot.slane %v1585, 3
      %v2324 = vrot.slane %v1586, 3
      %v2325 = vrot.slane %v1587, 3
      %v2326 = vrot.slane %v1588, 3
      %v2327 = vrot.slane %v1589, 3
      %v2328 = vrot.slane %v1590, 3
      %v2329 = vrot.slane %v1591, 3
      %v2330 = vrot.slane %v1592, 3
      %v2331 = vrot.slane %v1593, 3
      %v2332 = vrot.slane %v1594, 3
      %v2333 = vrot.slane %v1595, 3
      %v2398 = vrot.slane %v1629, 6
      %v2399 = vrot.slane %v1630, 6
      %v2400 = vrot.slane %v1631, 6
      %v2401 = vrot.slane %v1632, 6
      %v2402 = vrot.slane %v1633, 6
      %v2403 = vrot.slane %v1634, 6
      %v2404 = vrot.slane %v1635, 6
      %v2405 = vrot.slane %v1636, 6
      %v2406 = vrot.slane %v1637, 6
      %v2407 = vrot.slane %v1638, 6
      %v2408 = vrot.slane %v1639, 6
      %v2409 = vrot.slane %v1640, 6
      %v2410 = vrot.slane %v1641, 6
      %v2411 = vrot.slane %v1642, 6
      %v2412 = vrot.slane %v1643, 6
      %v2413 = vrot.slane %v1644, 6
      %v2414 = vrot.slane %v1645, 6
      %v2415 = vrot.slane %v1646, 6
      %v2416 = vrot.slane %v1647, 6
      %v2417 = vrot.slane %v1648, 6
      %v2418 = vrot.slane %v1649, 6
      %v2419 = vrot.slane %v1650, 6
      %v2420 = vrot.slane %v1651, 6
      %v2421 = vrot.slane %v1652, 6
      %v2422 = vrot.slane %v1653, 6
      %v2423 = vrot.slane %v1654, 6
      %v2424 = vrot.slane %v1655, 6
      %v2425 = vrot.slane %v1656, 6
      %v2426 = vrot.slane %v1657, 6
      %v2427 = vrot.slane %v1658, 6
      %v2428 = vrot.slane %v1659, 6
      %v2429 = vrot.slane %v1660, 6
      %v2494 = vrot.slane %v2238, 1
      %v2495 = vrot.slane %v2239, 1
      %v2496 = vrot.slane %v2240, 1
      %v2497 = vrot.slane %v2241, 1
      %v2498 = vrot.slane %v2242, 1
      %v2499 = vrot.slane %v2243, 1
      %v2500 = vrot.slane %v2244, 1
      %v2501 = vrot.slane %v2245, 1
      %v2502 = vrot.slane %v2246, 1
      %v2503 = vrot.slane %v2247, 1
      %v2504 = vrot.slane %v2248, 1
      %v2505 = vrot.slane %v2249, 1
      %v2506 = vrot.slane %v2250, 1
      %v2507 = vrot.slane %v2251, 1
      %v2508 = vrot.slane %v2252, 1
      %v2509 = vrot.slane %v2253, 1
      %v2510 = vrot.slane %v2254, 1
      %v2511 = vrot.slane %v2255, 1
      %v2512 = vrot.slane %v2256, 1
      %v2513 = vrot.slane %v2257, 1
      %v2514 = vrot.slane %v2258, 1
      %v2515 = vrot.slane %v2259, 1
      %v2516 = vrot.slane %v2260, 1
      %v2517 = vrot.slane %v2261, 1
      %v2518 = vrot.slane %v2262, 1
      %v2519 = vrot.slane %v2263, 1
      %v2520 = vrot.slane %v2264, 1
      %v2521 = vrot.slane %v2265, 1
      %v2522 = vrot.slane %v2266, 1
      %v2523 = vrot.slane %v2267, 1
      %v2524 = vrot.slane %v2268, 1
      %v2525 = vrot.slane %v2269, 1
      %vm2558 = vcmask 1040384
      %v2559 = vsel %vm2558, %v2302, %v2398
      %v2560 = vsel %vm2558, %v2303, %v2399
      %v2561 = vsel %vm2558, %v2304, %v2400
      %v2562 = vsel %vm2558, %v2305, %v2401
      %v2563 = vsel %vm2558, %v2306, %v2402
      %v2564 = vsel %vm2558, %v2307, %v2403
      %v2565 = vsel %vm2558, %v2308, %v2404
      %v2566 = vsel %vm2558, %v2309, %v2405
      %v2567 = vsel %vm2558, %v2310, %v2406
      %v2568 = vsel %vm2558, %v2311, %v2407
      %v2569 = vsel %vm2558, %v2312, %v2408
      %v2570 = vsel %vm2558, %v2313, %v2409
      %v2571 = vsel %vm2558, %v2314, %v2410
      %v2572 = vsel %vm2558, %v2315, %v2411
      %v2573 = vsel %vm2558, %v2316, %v2412
      %v2574 = vsel %vm2558, %v2317, %v2413
      %v2575 = vsel %vm2558, %v2318, %v2414
      %v2576 = vsel %vm2558, %v2319, %v2415
      %v2577 = vsel %vm2558, %v2320, %v2416
      %v2578 = vsel %vm2558, %v2321, %v2417
      %v2579 = vsel %vm2558, %v2322, %v2418
      %v2580 = vsel %vm2558, %v2323, %v2419
      %v2581 = vsel %vm2558, %v2324, %v2420
      %v2582 = vsel %vm2558, %v2325, %v2421
      %v2583 = vsel %vm2558, %v2326, %v2422
      %v2584 = vsel %vm2558, %v2327, %v2423
      %v2585 = vsel %vm2558, %v2328, %v2424
      %v2586 = vsel %vm2558, %v2329, %v2425
      %v2587 = vsel %vm2558, %v2330, %v2426
      %v2588 = vsel %vm2558, %v2331, %v2427
      %v2589 = vsel %vm2558, %v2332, %v2428
      %v2590 = vsel %vm2558, %v2333, %v2429
      %vm2591 = vcmask 1041408
      %v2592 = vsel %vm2591, %v2559, %v2494
      %v2593 = vsel %vm2591, %v2560, %v2495
      %v2594 = vsel %vm2591, %v2561, %v2496
      %v2595 = vsel %vm2591, %v2562, %v2497
      %v2596 = vsel %vm2591, %v2563, %v2498
      %v2597 = vsel %vm2591, %v2564, %v2499
      %v2598 = vsel %vm2591, %v2565, %v2500
      %v2599 = vsel %vm2591, %v2566, %v2501
      %v2600 = vsel %vm2591, %v2567, %v2502
      %v2601 = vsel %vm2591, %v2568, %v2503
      %v2602 = vsel %vm2591, %v2569, %v2504
      %v2603 = vsel %vm2591, %v2570, %v2505
      %v2604 = vsel %vm2591, %v2571, %v2506
      %v2605 = vsel %vm2591, %v2572, %v2507
      %v2606 = vsel %vm2591, %v2573, %v2508
      %v2607 = vsel %vm2591, %v2574, %v2509
      %v2608 = vsel %vm2591, %v2575, %v2510
      %v2609 = vsel %vm2591, %v2576, %v2511
      %v2610 = vsel %vm2591, %v2577, %v2512
      %v2611 = vsel %vm2591, %v2578, %v2513
      %v2612 = vsel %vm2591, %v2579, %v2514
      %v2613 = vsel %vm2591, %v2580, %v2515
      %v2614 = vsel %vm2591, %v2581, %v2516
      %v2615 = vsel %vm2591, %v2582, %v2517
      %v2616 = vsel %vm2591, %v2583, %v2518
      %v2617 = vsel %vm2591, %v2584, %v2519
      %v2618 = vsel %vm2591, %v2585, %v2520
      %v2619 = vsel %vm2591, %v2586, %v2521
      %v2620 = vsel %vm2591, %v2587, %v2522
      %v2621 = vsel %vm2591, %v2588, %v2523
      %v2622 = vsel %vm2591, %v2589, %v2524
      %v2623 = vsel %vm2591, %v2590, %v2525
      %v2628 = vlaneseq
      %v2629 = vshrl.u32 %v2628, 7
      %v2630 = vsub.s32 0, %v2629
      %v2631 = vrot.slane %v359, %v2630
      %v2632 = vlaneseq
      %v2633 = vshrl.u32 %v2632, 7
      %v2634 = vsub.s32 1, %v2633
      %v2635 = vrot.slane %v359, %v2634
      %v2636 = vlaneseq
      %v2637 = vshrl.u32 %v2636, 7
      %v2638 = vsub.s32 2, %v2637
      %v2639 = vrot.slane %v359, %v2638
      %v2640 = vlaneseq
      %v2641 = vshrl.u32 %v2640, 7
      %v2642 = vsub.s32 3, %v2641
      %v2643 = vrot.slane %v359, %v2642
      %v2644 = vlaneseq
      %v2645 = vshrl.u32 %v2644, 7
      %v2646 = vsub.s32 4, %v2645
      %v2647 = vrot.slane %v359, %v2646
      %v2648 = vlaneseq
      %v2649 = vshrl.u32 %v2648, 7
      %v2650 = vsub.s32 5, %v2649
      %v2651 = vrot.slane %v359, %v2650
      %v2652 = vlaneseq
      %v2653 = vshrl.u32 %v2652, 7
      %v2654 = vsub.s32 6, %v2653
      %v2655 = vrot.slane %v359, %v2654
      %v2656 = vlaneseq
      %v2657 = vshrl.u32 %v2656, 7
      %v2658 = vsub.s32 7, %v2657
      %v2659 = vrot.slane %v359, %v2658
      %v2660 = vlaneseq
      %v2661 = vshrl.u32 %v2660, 7
      %v2662 = vsub.s32 0, %v2661
      %v2663 = vrot.slane %v360, %v2662
      %v2664 = vlaneseq
      %v2665 = vshrl.u32 %v2664, 7
      %v2666 = vsub.s32 1, %v2665
      %v2667 = vrot.slane %v360, %v2666
      %v2668 = vlaneseq
      %v2669 = vshrl.u32 %v2668, 7
      %v2670 = vsub.s32 2, %v2669
      %v2671 = vrot.slane %v360, %v2670
      %v2672 = vlaneseq
      %v2673 = vshrl.u32 %v2672, 7
      %v2674 = vsub.s32 3, %v2673
      %v2675 = vrot.slane %v360, %v2674
      %v2676 = vlaneseq
      %v2677 = vshrl.u32 %v2676, 7
      %v2678 = vsub.s32 4, %v2677
      %v2679 = vrot.slane %v360, %v2678
      %v2680 = vlaneseq
      %v2681 = vshrl.u32 %v2680, 7
      %v2682 = vsub.s32 5, %v2681
      %v2683 = vrot.slane %v360, %v2682
      %v2684 = vlaneseq
      %v2685 = vshrl.u32 %v2684, 7
      %v2686 = vsub.s32 6, %v2685
      %v2687 = vrot.slane %v360, %v2686
      %v2688 = vlaneseq
      %v2689 = vshrl.u32 %v2688, 7
      %v2690 = vsub.s32 7, %v2689
      %v2691 = vrot.slane %v360, %v2690
      %v2692 = vlaneseq
      %v2693 = vshrl.u32 %v2692, 7
      %v2694 = vsub.s32 0, %v2693
      %v2695 = vrot.slane %v361, %v2694
      %v2696 = vlaneseq
      %v2697 = vshrl.u32 %v2696, 7
      %v2698 = vsub.s32 1, %v2697
      %v2699 = vrot.slane %v361, %v2698
      %v2700 = vlaneseq
      %v2701 = vshrl.u32 %v2700, 7
      %v2702 = vsub.s32 2, %v2701
      %v2703 = vrot.slane %v361, %v2702
      %v2704 = vlaneseq
      %v2705 = vshrl.u32 %v2704, 7
      %v2706 = vsub.s32 3, %v2705
      %v2707 = vrot.slane %v361, %v2706
      %v2708 = vlaneseq
      %v2709 = vshrl.u32 %v2708, 7
      %v2710 = vsub.s32 4, %v2709
      %v2711 = vrot.slane %v361, %v2710
      %v2712 = vlaneseq
      %v2713 = vshrl.u32 %v2712, 7
      %v2714 = vsub.s32 5, %v2713
      %v2715 = vrot.slane %v361, %v2714
      %v2716 = vlaneseq
      %v2717 = vshrl.u32 %v2716, 7
      %v2718 = vsub.s32 6, %v2717
      %v2719 = vrot.slane %v361, %v2718
      %v2720 = vlaneseq
      %v2721 = vshrl.u32 %v2720, 7
      %v2722 = vsub.s32 7, %v2721
      %v2723 = vrot.slane %v361, %v2722
      %v2724 = vlaneseq
      %v2725 = vshrl.u32 %v2724, 7
      %v2726 = vsub.s32 0, %v2725
      %v2727 = vrot.slane %v362, %v2726
      %v2728 = vlaneseq
      %v2729 = vshrl.u32 %v2728, 7
      %v2730 = vsub.s32 1, %v2729
      %v2731 = vrot.slane %v362, %v2730
      %v2732 = vlaneseq
      %v2733 = vshrl.u32 %v2732, 7
      %v2734 = vsub.s32 2, %v2733
      %v2735 = vrot.slane %v362, %v2734
      %v2736 = vlaneseq
      %v2737 = vshrl.u32 %v2736, 7
      %v2738 = vsub.s32 3, %v2737
      %v2739 = vrot.slane %v362, %v2738
      %v2740 = vlaneseq
      %v2741 = vshrl.u32 %v2740, 7
      %v2742 = vsub.s32 4, %v2741
      %v2743 = vrot.slane %v362, %v2742
      %v2744 = vlaneseq
      %v2745 = vshrl.u32 %v2744, 7
      %v2746 = vsub.s32 5, %v2745
      %v2747 = vrot.slane %v362, %v2746
      %v2748 = vlaneseq
      %v2749 = vshrl.u32 %v2748, 7
      %v2750 = vsub.s32 6, %v2749
      %v2751 = vrot.slane %v362, %v2750
      %v2752 = vlaneseq
      %v2753 = vshrl.u32 %v2752, 7
      %v2754 = vsub.s32 7, %v2753
      %v2755 = vrot.slane %v362, %v2754
      %v2788 = vmul.f32 %v2592, %v2631
      %v2789 = vmul.f32 %v2593, %v2635
      %v2790 = vmul.f32 %v2594, %v2639
      %v2791 = vmul.f32 %v2595, %v2643
      %v2792 = vmul.f32 %v2596, %v2647
      %v2793 = vmul.f32 %v2597, %v2651
      %v2794 = vmul.f32 %v2598, %v2655
      %v2795 = vmul.f32 %v2599, %v2659
      %v2796 = vmul.f32 %v2600, %v2663
      %v2797 = vmul.f32 %v2601, %v2667
      %v2798 = vmul.f32 %v2602, %v2671
      %v2799 = vmul.f32 %v2603, %v2675
      %v2800 = vmul.f32 %v2604, %v2679
      %v2801 = vmul.f32 %v2605, %v2683
      %v2802 = vmul.f32 %v2606, %v2687
      %v2803 = vmul.f32 %v2607, %v2691
      %v2804 = vmul.f32 %v2608, %v2695
      %v2805 = vmul.f32 %v2609, %v2699
      %v2806 = vmul.f32 %v2610, %v2703
      %v2807 = vmul.f32 %v2611, %v2707
      %v2808 = vmul.f32 %v2612, %v2711
      %v2809 = vmul.f32 %v2613, %v2715
      %v2810 = vmul.f32 %v2614, %v2719
      %v2811 = vmul.f32 %v2615, %v2723
      %v2812 = vmul.f32 %v2616, %v2727
      %v2813 = vmul.f32 %v2617, %v2731
      %v2814 = vmul.f32 %v2618, %v2735
      %v2815 = vmul.f32 %v2619, %v2739
      %v2816 = vmul.f32 %v2620, %v2743
      %v2817 = vmul.f32 %v2621, %v2747
      %v2818 = vmul.f32 %v2622, %v2751
      %v2819 = vmul.f32 %v2623, %v2755
      %v2820 = vsub.f32 1.0, %v359
      %v2821 = vsub.f32 1.0, %v360
      %v2822 = vsub.f32 1.0, %v361
      %v2823 = vsub.f32 1.0, %v362
      %v2828 = vlaneseq
      %v2829 = vshrl.u32 %v2828, 7
      %v2830 = vsub.s32 0, %v2829
      %v2831 = vrot.slane %v2820, %v2830
      %v2832 = vlaneseq
      %v2833 = vshrl.u32 %v2832, 7
      %v2834 = vsub.s32 1, %v2833
      %v2835 = vrot.slane %v2820, %v2834
      %v2836 = vlaneseq
      %v2837 = vshrl.u32 %v2836, 7
      %v2838 = vsub.s32 2, %v2837
      %v2839 = vrot.slane %v2820, %v2838
      %v2840 = vlaneseq
      %v2841 = vshrl.u32 %v2840, 7
      %v2842 = vsub.s32 3, %v2841
      %v2843 = vrot.slane %v2820, %v2842
      %v2844 = vlaneseq
      %v2845 = vshrl.u32 %v2844, 7
      %v2846 = vsub.s32 4, %v2845
      %v2847 = vrot.slane %v2820, %v2846
      %v2848 = vlaneseq
      %v2849 = vshrl.u32 %v2848, 7
      %v2850 = vsub.s32 5, %v2849
      %v2851 = vrot.slane %v2820, %v2850
      %v2852 = vlaneseq
      %v2853 = vshrl.u32 %v2852, 7
      %v2854 = vsub.s32 6, %v2853
      %v2855 = vrot.slane %v2820, %v2854
      %v2856 = vlaneseq
      %v2857 = vshrl.u32 %v2856, 7
      %v2858 = vsub.s32 7, %v2857
      %v2859 = vrot.slane %v2820, %v2858
      %v2860 = vlaneseq
      %v2861 = vshrl.u32 %v2860, 7
      %v2862 = vsub.s32 0, %v2861
      %v2863 = vrot.slane %v2821, %v2862
      %v2864 = vlaneseq
      %v2865 = vshrl.u32 %v2864, 7
      %v2866 = vsub.s32 1, %v2865
      %v2867 = vrot.slane %v2821, %v2866
      %v2868 = vlaneseq
      %v2869 = vshrl.u32 %v2868, 7
      %v2870 = vsub.s32 2, %v2869
      %v2871 = vrot.slane %v2821, %v2870
      %v2872 = vlaneseq
      %v2873 = vshrl.u32 %v2872, 7
      %v2874 = vsub.s32 3, %v2873
      %v2875 = vrot.slane %v2821, %v2874
      %v2876 = vlaneseq
      %v2877 = vshrl.u32 %v2876, 7
      %v2878 = vsub.s32 4, %v2877
      %v2879 = vrot.slane %v2821, %v2878
      %v2880 = vlaneseq
      %v2881 = vshrl.u32 %v2880, 7
      %v2882 = vsub.s32 5, %v2881
      %v2883 = vrot.slane %v2821, %v2882
      %v2884 = vlaneseq
      %v2885 = vshrl.u32 %v2884, 7
      %v2886 = vsub.s32 6, %v2885
      %v2887 = vrot.slane %v2821, %v2886
      %v2888 = vlaneseq
      %v2889 = vshrl.u32 %v2888, 7
      %v2890 = vsub.s32 7, %v2889
      %v2891 = vrot.slane %v2821, %v2890
      %v2892 = vlaneseq
      %v2893 = vshrl.u32 %v2892, 7
      %v2894 = vsub.s32 0, %v2893
      %v2895 = vrot.slane %v2822, %v2894
      %v2896 = vlaneseq
      %v2897 = vshrl.u32 %v2896, 7
      %v2898 = vsub.s32 1, %v2897
      %v2899 = vrot.slane %v2822, %v2898
      %v2900 = vlaneseq
      %v2901 = vshrl.u32 %v2900, 7
      %v2902 = vsub.s32 2, %v2901
      %v2903 = vrot.slane %v2822, %v2902
      %v2904 = vlaneseq
      %v2905 = vshrl.u32 %v2904, 7
      %v2906 = vsub.s32 3, %v2905
      %v2907 = vrot.slane %v2822, %v2906
      %v2908 = vlaneseq
      %v2909 = vshrl.u32 %v2908, 7
      %v2910 = vsub.s32 4, %v2909
      %v2911 = vrot.slane %v2822, %v2910
      %v2912 = vlaneseq
      %v2913 = vshrl.u32 %v2912, 7
      %v2914 = vsub.s32 5, %v2913
      %v2915 = vrot.slane %v2822, %v2914
      %v2916 = vlaneseq
      %v2917 = vshrl.u32 %v2916, 7
      %v2918 = vsub.s32 6, %v2917
      %v2919 = vrot.slane %v2822, %v2918
      %v2920 = vlaneseq
      %v2921 = vshrl.u32 %v2920, 7
      %v2922 = vsub.s32 7, %v2921
      %v2923 = vrot.slane %v2822, %v2922
      %v2924 = vlaneseq
      %v2925 = vshrl.u32 %v2924, 7
      %v2926 = vsub.s32 0, %v2925
      %v2927 = vrot.slane %v2823, %v2926
      %v2928 = vlaneseq
      %v2929 = vshrl.u32 %v2928, 7
      %v2930 = vsub.s32 1, %v2929
      %v2931 = vrot.slane %v2823, %v2930
      %v2932 = vlaneseq
      %v2933 = vshrl.u32 %v2932, 7
      %v2934 = vsub.s32 2, %v2933
      %v2935 = vrot.slane %v2823, %v2934
      %v2936 = vlaneseq
      %v2937 = vshrl.u32 %v2936, 7
      %v2938 = vsub.s32 3, %v2937
      %v2939 = vrot.slane %v2823, %v2938
      %v2940 = vlaneseq
      %v2941 = vshrl.u32 %v2940, 7
      %v2942 = vsub.s32 4, %v2941
      %v2943 = vrot.slane %v2823, %v2942
      %v2944 = vlaneseq
      %v2945 = vshrl.u32 %v2944, 7
      %v2946 = vsub.s32 5, %v2945
      %v2947 = vrot.slane %v2823, %v2946
      %v2948 = vlaneseq
      %v2949 = vshrl.u32 %v2948, 7
      %v2950 = vsub.s32 6, %v2949
      %v2951 = vrot.slane %v2823, %v2950
      %v2952 = vlaneseq
      %v2953 = vshrl.u32 %v2952, 7
      %v2954 = vsub.s32 7, %v2953
      %v2955 = vrot.slane %v2823, %v2954
      %v2956 = vcombine.low %v2831, %v2835
      %v2957 = vcombine.low %v2839, %v2843
      %v2958 = vcombine.low %v2847, %v2851
      %v2959 = vcombine.low %v2855, %v2859
      %v2960 = vcombine.low %v2863, %v2867
      %v2961 = vcombine.low %v2871, %v2875
      %v2962 = vcombine.low %v2879, %v2883
      %v2963 = vcombine.low %v2887, %v2891
      %v2964 = vcombine.low %v2895, %v2899
      %v2965 = vcombine.low %v2903, %v2907
      %v2966 = vcombine.low %v2911, %v2915
      %v2967 = vcombine.low %v2919, %v2923
      %v2968 = vcombine.low %v2927, %v2931
      %v2969 = vcombine.low %v2935, %v2939
      %v2970 = vcombine.low %v2943, %v2947
      %v2971 = vcombine.low %v2951, %v2955
      %v2988 = vmul.f32 %v279, %v2956
      %v2989 = vmul.f32 %v280, %v2957
      %v2990 = vmul.f32 %v281, %v2958
      %v2991 = vmul.f32 %v282, %v2959
      %v2992 = vmul.f32 %v283, %v2960
      %v2993 = vmul.f32 %v284, %v2961
      %v2994 = vmul.f32 %v285, %v2962
      %v2995 = vmul.f32 %v286, %v2963
      %v2996 = vmul.f32 %v287, %v2964
      %v2997 = vmul.f32 %v288, %v2965
      %v2998 = vmul.f32 %v289, %v2966
      %v2999 = vmul.f32 %v290, %v2967
      %v3000 = vmul.f32 %v291, %v2968
      %v3001 = vmul.f32 %v292, %v2969
      %v3002 = vmul.f32 %v293, %v2970
      %v3003 = vmul.f32 %v294, %v2971
      %v3020 = vcombine.high %v2988, %v2988
      %v3021 = vcombine.high %v2989, %v2989
      %v3022 = vcombine.high %v2990, %v2990
      %v3023 = vcombine.high %v2991, %v2991
      %v3024 = vcombine.high %v2992, %v2992
      %v3025 = vcombine.high %v2993, %v2993
      %v3026 = vcombine.high %v2994, %v2994
      %v3027 = vcombine.high %v2995, %v2995
      %v3028 = vcombine.high %v2996, %v2996
      %v3029 = vcombine.high %v2997, %v2997
      %v3030 = vcombine.high %v2998, %v2998
      %v3031 = vcombine.high %v2999, %v2999
      %v3032 = vcombine.high %v3000, %v3000
      %v3033 = vcombine.high %v3001, %v3001
      %v3034 = vcombine.high %v3002, %v3002
      %v3035 = vcombine.high %v3003, %v3003
      %v3052 = vadd.f32 %v2788, %v2988
      %v3053 = vadd.f32 %v2789, %v3020
      %v3054 = vadd.f32 %v2790, %v2989
      %v3055 = vadd.f32 %v2791, %v3021
      %v3056 = vadd.f32 %v2792, %v2990
      %v3057 = vadd.f32 %v2793, %v3022
      %v3058 = vadd.f32 %v2794, %v2991
      %v3059 = vadd.f32 %v2795, %v3023
      %v3060 = vadd.f32 %v2796, %v2992
      %v3061 = vadd.f32 %v2797, %v3024
      %v3062 = vadd.f32 %v2798, %v2993
      %v3063 = vadd.f32 %v2799, %v3025
      %v3064 = vadd.f32 %v2800, %v2994
      %v3065 = vadd.f32 %v2801, %v3026
      %v3066 = vadd.f32 %v2802, %v2995
      %v3067 = vadd.f32 %v2803, %v3027
      %v3068 = vadd.f32 %v2804, %v2996
      %v3069 = vadd.f32 %v2805, %v3028
      %v3070 = vadd.f32 %v2806, %v2997
      %v3071 = vadd.f32 %v2807, %v3029
      %v3072 = vadd.f32 %v2808, %v2998
      %v3073 = vadd.f32 %v2809, %v3030
      %v3074 = vadd.f32 %v2810, %v2999
      %v3075 = vadd.f32 %v2811, %v3031
      %v3076 = vadd.f32 %v2812, %v3000
      %v3077 = vadd.f32 %v2813, %v3032
      %v3078 = vadd.f32 %v2814, %v3001
      %v3079 = vadd.f32 %v2815, %v3033
      %v3080 = vadd.f32 %v2816, %v3002
      %v3081 = vadd.f32 %v2817, %v3034
      %v3082 = vadd.f32 %v2818, %v3003
      %v3083 = vadd.f32 %v2819, %v3035
      %v3116 = vcombine.low %v3052, %v3053
      %v3117 = vcombine.low %v3054, %v3055
      %v3118 = vcombine.low %v3056, %v3057
      %v3119 = vcombine.low %v3058, %v3059
      %v3120 = vcombine.low %v3060, %v3061
      %v3121 = vcombine.low %v3062, %v3063
      %v3122 = vcombine.low %v3064, %v3065
      %v3123 = vcombine.low %v3066, %v3067
      %v3124 = vcombine.low %v3068, %v3069
      %v3125 = vcombine.low %v3070, %v3071
      %v3126 = vcombine.low %v3072, %v3073
      %v3127 = vcombine.low %v3074, %v3075
      %v3128 = vcombine.low %v3076, %v3077
      %v3129 = vcombine.low %v3078, %v3079
      %v3130 = vcombine.low %v3080, %v3081
      %v3131 = vcombine.low %v3082, %v3083
      %3148 = vst [vmem:[%s277] sm:$0x77] %v3116
      %3149 = vst [vmem:[%s277 + $0x8] sm:$0x77] %v3117
      %3150 = vst [vmem:[%s277 + $0x10] sm:$0x77] %v3118
      %3151 = vst [vmem:[%s277 + $0x18] sm:$0x77] %v3119
      %3152 = vst [vmem:[%s277 + $0x20] sm:$0x77] %v3120
      %3153 = vst [vmem:[%s277 + $0x28] sm:$0x77] %v3121
      %3154 = vst [vmem:[%s277 + $0x30] sm:$0x77] %v3122
      %3155 = vst [vmem:[%s277 + $0x38] sm:$0x77] %v3123
      %3156 = vst [vmem:[%s277 + $0x40] sm:$0x77] %v3124
      %3157 = vst [vmem:[%s277 + $0x48] sm:$0x77] %v3125
      %3158 = vst [vmem:[%s277 + $0x50] sm:$0x77] %v3126
      %3159 = vst [vmem:[%s277 + $0x58] sm:$0x77] %v3127
      %3160 = vst [vmem:[%s277 + $0x60] sm:$0x77] %v3128
      %3161 = vst [vmem:[%s277 + $0x68] sm:$0x77] %v3129
      %3162 = vst [vmem:[%s277 + $0x70] sm:$0x77] %v3130
      %3163 = vst [vmem:[%s277 + $0x78] sm:$0x77] %v3131
      %s3164 = smul.u32 32, %s19
      %p3165 = scmp.lt.s32.totalorder %s18, 1
      %s3166 = scalar_select %p3165, %s18, 1
      %p3167 = scmp.lt.s32.totalorder %s3164, 31
      %s3168 = scalar_select %p3167, %s3164, 31
      %s3169 = smul.addr %s3166, 32
      %s3170 = sadd.s32 %s3168, %s3169
      %s3171 = smul.addr %s3170, 4
      %s3172 = scalar_lea.vmem %s3, %s3171
      // Predicated region
      $region33: #{pctnet_forward.19} parent=31 // pred_check
        %p3173 = pneg %p130
      $region34: #{pctnet_forward.19} parent=31 // pred_check_branch
        %3175 = sbr.rel (%p3173) target = $region36
      $region35: #{pctnet_forward.19} parent=31 // pred_region
        %s3176 = smul.u32 32, %s19
      $region36: #{pctnet_forward.19} parent=31 // pred_fallthru
        _
    $region32: #{pctnet_forward.19} parent=5 // pred_fallthru
      _
    %p3177 = scmp.le.s32.totalorder 2, %s9
    // Predicated region
    $region37: #{pctnet_forward.19} parent=5 // pred_check
      %p3178 = pneg %p3177
    $region38: #{pctnet_forward.19} parent=5 // pred_check_branch
      %3180 = sbr.rel (%p3178) target = $region40
    $region39: #{pctnet_forward.19} parent=5 // pred_region
      %s3181 = ssub.s32 %s9, 2
      // Predicated region
      $region41: #{pctnet_forward.19} parent=39 // pred_check
        %p3182 = pneg %p136
      $region42: #{pctnet_forward.19} parent=39 // pred_check_branch
        %3184 = sbr.rel (%p3182) target = $region44
      $region43: #{pctnet_forward.19} parent=39 // pred_region
        %s3185 = smul.u32 32, %s21
        %p3186 = scmp.lt.s32.totalorder %s20, 1
        %s3187 = scalar_select %p3186, %s20, 1
        %p3188 = scmp.lt.s32.totalorder %s3185, 31
        %s3189 = scalar_select %p3188, %s3185, 31
        %s3190 = smul.addr %s3187, 32
        %s3191 = sadd.s32 %s3189, %s3190
        %s3192 = smul.addr %s3191, 4
        %s3193 = scalar_lea.vmem %s3, %s3192
      $region44: #{pctnet_forward.19} parent=39 // pred_fallthru
        _
    $region40: #{pctnet_forward.19} parent=5 // pred_fallthru
      _
  $region6: #{pctnet_forward.19} parent=0 // loop_footer
    %s13 = sadd.s32 1, %s9
  $region7: #{pctnet_forward.19} parent=0 // loop_footer_branch
    %8 = sbr.rel target = $region3
  $region8: #{pctnet_forward.19} parent=0 // loop_exit
    _

</llo_original>
